<compile_context>
chip_gen: v7x
topology: tpu7x:2x2x1
jax: 0.10.0
libtpu: 0.0.40
codegen_flags: <defaults>
</compile_context>

<pallas_src>
import functools

import jax
import jax.numpy as jnp
from jax.experimental import pallas as pl
from jax.experimental.pallas import tpu as pltpu

_LANE = 128
_BF16 = jnp.bfloat16


# ----------------------------------------------------------------------------
# small helpers
# ----------------------------------------------------------------------------
def _rup(n, m):
    return ((n + m - 1) // m) * m


def _pad_last(a, target):
    c = a.shape[-1]
    if c == target:
        return a
    pw = [(0, 0)] * (a.ndim - 1) + [(0, target - c)]
    return jnp.pad(a, pw)


def _pad_axis(a, axis, target):
    c = a.shape[axis]
    if c == target:
        return a
    pw = [(0, 0)] * a.ndim
    pw[axis] = (0, target - c)
    return jnp.pad(a, pw)


def _vmem_budget_bytes():
    """~70% of physical VMEM: v5e/v6e ~128 MiB, v7x ~64 MiB."""
    try:
        cap = int(pltpu.get_tpu_info().vmem_capacity_bytes)
    except Exception:  # pragma: no cover - conservative fallback
        cap = 64 << 20
    return int(0.7 * cap)


def _fold_bn(gamma, beta, mean, var, eps=1e-5):
    scale = gamma / jnp.sqrt(var + eps)
    bias = beta - mean * scale
    return scale, bias


def _pick_tm(m, target, mult=16):
    """Largest tile <= target, multiple of `mult`, dividing m (else fall back)."""
    cand = min(target, m)
    cand -= cand % mult
    if cand < mult:
        return min(target, _rup(m, mult))
    while cand > mult and m % cand != 0:
        cand -= mult
    if m % cand == 0:
        return cand
    return min(target, 128)


# ----------------------------------------------------------------------------
# Call A: fused conv1(1x1)+BN1+ReLU  ->  conv2(3x3)+BN2+ReLU   (grid over batch)
# ----------------------------------------------------------------------------
def _conv1_conv2_kernel(x_ref, w1_ref, b1_ref, w2_ref, b2_ref, o_ref,
                        xpad_ref, acc_ref, *, stride, dilation, w_off):
    H, W, Cin = x_ref.shape
    Ho, Wo, Cmid = o_ref.shape
    pad = dilation

    # conv1 (1x1) + BN1 + ReLU, written straight into the interior of the
    # zero-bordered VMEM scratch (spatial padding never touches HBM, no h1
    # round trip).  Interior store is 8-sublane aligned (w_off multiple of 8).
    h1 = jnp.dot(x_ref[...].reshape(H * W, Cin), w1_ref[...],
                 preferred_element_type=jnp.float32)
    h1 = jnp.maximum(h1 + b1_ref[...], 0.0)
    xpad_ref[...] = jnp.zeros_like(xpad_ref)            # zero borders each step
    xpad_ref[pad:pad + H, w_off:w_off + W, :] = h1.reshape(H, W, Cmid)

    # conv2 (3x3): nine tap matmuls accumulated in a VMEM f32 scratch ref.
    acc_ref[...] = jnp.zeros_like(acc_ref)
    for ky in range(3):
        for kx in range(3):
            oy = ky * dilation
            ox = w_off - pad + kx * dilation
            if stride == 1:
                win = xpad_ref[oy:oy + Ho, ox:ox + Wo, :]
            else:
                # TODO(synk): stride>1 sublane-strided loads relayout per tap
                # and are untested; prefer a row-tiled grid with the stride
                # folded into the DMA pattern.
                win = xpad_ref[pl.ds(oy, Ho, stride), pl.ds(ox, Wo, stride), :]
            # TODO(synk): when Wo % 8 != 0 this reshape repacks; a pltpu.roll
            # based kx shift and/or K=3*Cmid grouped taps would avoid the
            # relayout and better fill the 256x256 MXU on v6e/v7x.
            acc_ref[...] += jnp.dot(
                win.reshape(Ho * Wo, Cmid).astype(_BF16),
                w2_ref[ky * 3 + kx],
                preferred_element_type=jnp.float32)

    out = jnp.maximum(acc_ref[...] + b2_ref[...], 0.0)
    o_ref[...] = out.reshape(Ho, Wo, Cmid).astype(o_ref.dtype)


def _conv1_conv2(x_nhwc, w1, b1, w2_taps, b2, stride, dilation):
    """x_nhwc: (N,H,W,cin_p) bf16; w1: (cin_p,width_p) bf16 (BN folded);
    w2_taps: (9,width_p,width_p) bf16 (BN folded); b1/b2: (width_p,) f32."""
    N, H, W, Cin = x_nhwc.shape
    _, width_p = w1.shape
    pad = dilation
    assert dilation >= 1
    w_off = max(8, _rup(dilation, 8))          # aligned interior column offset
    Hp = H + 2 * pad
    Wp = w_off + W + pad
    Ho = (H + 2 * pad - 2 * dilation - 1) // stride + 1
    Wo = (W + 2 * pad - 2 * dilation - 1) // stride + 1

    b1r = b1.reshape(1, width_p).astype(jnp.float32)
    b2r = b2.reshape(1, width_p).astype(jnp.float32)

    kernel = functools.partial(_conv1_conv2_kernel, stride=stride,
                               dilation=dilation, w_off=w_off)

    est = (2 * H * W * Cin * 2 + 2 * Cin * width_p * 2
           + 2 * 9 * width_p * width_p * 2 + 4 * width_p * 4
           + 2 * Ho * Wo * width_p * 2
           + Hp * Wp * width_p * 4 + Ho * Wo * width_p * 4)
    flops = 2 * N * (H * W * Cin * width_p + Ho * Wo * 9 * width_p * width_p)
    bytes_accessed = (N * H * W * Cin * 2 + Cin * width_p * 2
                      + 9 * width_p * width_p * 2 + 2 * width_p * 4
                      + N * Ho * Wo * width_p * 2)

    return pl.pallas_call(
        kernel,
        out_shape=jax.ShapeDtypeStruct((N, Ho, Wo, width_p), _BF16),
        grid_spec=pltpu.PrefetchScalarGridSpec(
            num_scalar_prefetch=0,
            grid=(N,),
            in_specs=[
                pl.BlockSpec((None, H, W, Cin), lambda n: (n, 0, 0, 0)),
                pl.BlockSpec((Cin, width_p), lambda n: (0, 0)),
                pl.BlockSpec((1, width_p), lambda n: (0, 0)),
                pl.BlockSpec((9, width_p, width_p), lambda n: (0, 0, 0)),
                pl.BlockSpec((1, width_p), lambda n: (0, 0)),
            ],
            out_specs=pl.BlockSpec((None, Ho, Wo, width_p),
                                   lambda n: (n, 0, 0, 0)),
            scratch_shapes=[
                pltpu.VMEM((Hp, Wp, width_p), jnp.float32),      # padded h1
                pltpu.VMEM((Ho * Wo, width_p), jnp.float32),     # tap accumulator
            ],
        ),
        compiler_params=pltpu.CompilerParams(
            dimension_semantics=("parallel",),
            vmem_limit_bytes=int(min(_vmem_budget_bytes(),
                                     max(32 << 20, 2 * est))),
        ),
        cost_estimate=pl.CostEstimate(
            flops=flops, transcendentals=0, bytes_accessed=bytes_accessed),
    )(x_nhwc, w1, b1r, w2_taps, b2r)


# ----------------------------------------------------------------------------
# Call B: fused conv3(1x1)+BN3 + shortcut + residual add + ReLU
# ----------------------------------------------------------------------------
def _conv3_identity_kernel(h_ref, w3_ref, b3_ref, r_ref, o_ref):
    acc = jnp.dot(h_ref[...], w3_ref[...], preferred_element_type=jnp.float32)
    acc = acc + b3_ref[...] + r_ref[...].astype(jnp.float32)
    o_ref[...] = jnp.maximum(acc, 0.0).astype(o_ref.dtype)


def _conv3_projection_kernel(h_ref, w3_ref, b3_ref, xs_ref, wsc_ref, bsc_ref,
                             o_ref):
    acc = jnp.dot(h_ref[...], w3_ref[...],
                  preferred_element_type=jnp.float32) + b3_ref[...]
    sc = jnp.dot(xs_ref[...], wsc_ref[...],
                 preferred_element_type=jnp.float32) + bsc_ref[...]
    o_ref[...] = jnp.maximum(acc + sc, 0.0).astype(o_ref.dtype)


def _conv3_shortcut_fused(h2_flat, w3, b3, shortcut, out_dtype=_BF16):
    """shortcut = ("identity", res_flat)          res_flat: (M, cout_p) bf16
               or ("projection", x_flat, wsc, bsc) x_flat: (M, cin_p) bf16."""
    M, K = h2_flat.shape
    _, C = w3.shape
    budget = _vmem_budget_bytes()
    # M-tile target: 1024 on v5e/v6e (128 MiB VMEM), 512 on v7x (64 MiB).
    big_vmem = budget >= (80 << 20)
    target = 1024 if big_vmem else 512
    tile_cap = (40 << 20) if big_vmem else (24 << 20)

    is_proj = shortcut[0] == "projection"
    if is_proj:
        x_flat, wsc, bsc = shortcut[1], shortcut[2], shortcut[3]
        Kx = x_flat.shape[1]
    else:
        res_flat = shortcut[1]
        Kx = C

    def vmem_bytes(tm):
        b = 2 * tm * K * 2 + 2 * K * C * 2 + 2 * C * 4 + 2 * tm * C * 2
        b += 2 * tm * Kx * 2
        if is_proj:
            b += 2 * Kx * C * 2 + 2 * C * 4
        return b

    while target > 64 and vmem_bytes(target) > tile_cap:
        target //= 2
    tm = _pick_tm(M, target)
    Mp = _rup(M, tm)
    if Mp != M:                       # fallback only; tm usually divides M
        h2_flat = jnp.pad(h2_flat, ((0, Mp - M), (0, 0)))
        if is_proj:
            x_flat = jnp.pad(x_flat, ((0, Mp - M), (0, 0)))
        else:
            res_flat = jnp.pad(res_flat, ((0, Mp - M), (0, 0)))

    b3r = b3.reshape(1, C).astype(jnp.float32)

    in_specs = [
        pl.BlockSpec((tm, K), lambda i: (i, 0)),
        pl.BlockSpec((K, C), lambda i: (0, 0)),
        pl.BlockSpec((1, C), lambda i: (0, 0)),
    ]
    if is_proj:
        bscr = bsc.reshape(1, C).astype(jnp.float32)
        in_specs += [
            pl.BlockSpec((tm, Kx), lambda i: (i, 0)),
            pl.BlockSpec((Kx, C), lambda i: (0, 0)),
            pl.BlockSpec((1, C), lambda i: (0, 0)),
        ]
        args = [h2_flat, w3, b3r, x_flat, wsc, bscr]
        kernel = _conv3_projection_kernel
        flops = 2 * Mp * (K + Kx) * C
        bytes_accessed = (Mp * K * 2 + K * C * 2 + Mp * Kx * 2 + Kx * C * 2
                          + 2 * C * 4 + Mp * C * 2)
    else:
        in_specs += [pl.BlockSpec((tm, C), lambda i: (i, 0))]
        args = [h2_flat, w3, b3r, res_flat]
        kernel = _conv3_identity_kernel
        flops = 2 * Mp * K * C
        bytes_accessed = Mp * K * 2 + K * C * 2 + C * 4 + 2 * Mp * C * 2

    est = vmem_bytes(tm)
    out = pl.pallas_call(
        kernel,
        out_shape=jax.ShapeDtypeStruct((Mp, C), out_dtype),
        grid_spec=pltpu.PrefetchScalarGridSpec(
            num_scalar_prefetch=0,
            grid=(Mp // tm,),
            in_specs=in_specs,
            out_specs=pl.BlockSpec((tm, C), lambda i: (i, 0)),
        ),
        compiler_params=pltpu.CompilerParams(
            dimension_semantics=("parallel",),
            vmem_limit_bytes=int(min(budget, max(32 << 20, 2 * est))),
        ),
        cost_estimate=pl.CostEstimate(
            flops=flops, transcendentals=0, bytes_accessed=bytes_accessed),
    )(*args)
    return out[:M] if Mp != M else out


# ----------------------------------------------------------------------------
# Bottleneck forward (PyTorch NCHW in / NCHW out, inference-mode BN)
# ----------------------------------------------------------------------------
def bottleneck_forward(x_nchw, p, stride=1, dilation=1):
    N, Cin, H, W = x_nchw.shape
    width = p["conv1_w"].shape[0]
    cout = p["conv3_w"].shape[0]
    cin_p = _rup(Cin, _LANE)
    width_p = _rup(width, _LANE)
    cout_p = _rup(cout, _LANE)

    pad = dilation
    Ho = (H + 2 * pad - 2 * dilation - 1) // stride + 1
    Wo = (W + 2 * pad - 2 * dilation - 1) // stride + 1

    # NHWC, channel-padded to a multiple of 128, bf16 activations.
    x = jnp.transpose(x_nchw, (0, 2, 3, 1))
    x_p = _pad_last(x, cin_p).astype(_BF16)

    # Fold inference-mode BN into per-channel weight scales + f32 biases.
    s1, b1 = _fold_bn(*p["bn1"])
    s2, b2 = _fold_bn(*p["bn2"])
    s3, b3 = _fold_bn(*p["bn3"])

    w1 = (p["conv1_w"][:, :, 0, 0] * s1[:, None]).T            # (Cin, width)
    w1 = _pad_axis(_pad_last(w1, width_p), 0, cin_p).astype(_BF16)
    b1 = _pad_last(b1, width_p)

    w2 = jnp.transpose(p["conv2_w"], (2, 3, 1, 0)) * s2[None, None, None, :]
    w2 = _pad_axis(_pad_last(w2, width_p), 2, width_p)          # (3,3,wp,wp)
    w2 = w2.reshape(9, width_p, width_p).astype(_BF16)
    b2 = _pad_last(b2, width_p)

    # ---- conv1+BN1+ReLU -> conv2+BN2+ReLU, one fused pallas_call -------------
    h2 = _conv1_conv2(x_p, w1, b1, w2, b2, stride, dilation)    # (N,Ho,Wo,wp)

    # ---- conv3+BN3 + shortcut + add + ReLU, one fused pallas_call ------------
    w3 = (p["conv3_w"][:, :, 0, 0] * s3[:, None]).T             # (width, cout)
    w3 = _pad_axis(_pad_last(w3, cout_p), 0, width_p).astype(_BF16)
    b3 = _pad_last(b3, cout_p)

    if "sc_conv_w" in p:
        ssc, bsc = _fold_bn(*p["sc_bn"])
        wsc = (p["sc_conv_w"][:, :, 0, 0] * ssc[:, None]).T     # (Cin, cout)
        wsc = _pad_axis(_pad_last(wsc, cout_p), 0, cin_p).astype(_BF16)
        bsc = _pad_last(bsc, cout_p)
        if stride == 1:
            x_sc = x_p                       # no copy: identical row set
        else:
            # TODO(synk): this strided slice materializes one pass over x in
            # HBM; folding the stride into the BlockSpec index_map would
            # remove it.
            x_sc = x_p[:, ::stride, ::stride, :][:, :Ho, :Wo, :]
        shortcut = ("projection", x_sc.reshape(N * Ho * Wo, cin_p), wsc, bsc)
    else:
        assert stride == 1 and Cin == cout, (
            "identity shortcut requires stride == 1 and in_planes == "
            "expansion * planes")
        # NOTE: identity residual is the bf16-rounded, channel-padded input.
        shortcut = ("identity", x_p.reshape(N * H * W, cin_p))

    out = _conv3_shortcut_fused(h2.reshape(N * Ho * Wo, width_p), w3, b3,
                                shortcut)

    # Channel slice + NCHW transpose in bf16, upcast to f32 last.
    out = out.reshape(N, Ho, Wo, cout_p)[..., :cout]
    return jnp.transpose(out, (0, 3, 1, 2)).astype(jnp.float32)


# ----------------------------------------------------------------------------
# Pure-JAX f32 reference (correctness check)
# ----------------------------------------------------------------------------
def _ref_forward(x, p, stride=1, dilation=1, eps=1e-5):
    def conv(x, w, s, pad, dil=1):
        return jax.lax.conv_general_dilated(
            x, w, window_strides=(s, s),
            padding=((pad, pad), (pad, pad)),
            rhs_dilation=(dil, dil),
            dimension_numbers=("NCHW", "OIHW", "NCHW"))

    def bn(x, g, b, m, v):
        shp = (1, -1, 1, 1)
        return (x - m.reshape(shp)) / jnp.sqrt(v.reshape(shp) + eps) * \
            g.reshape(shp) + b.reshape(shp)

    out = jax.nn.relu(bn(conv(x, p["conv1_w"], 1, 0), *p["bn1"]))
    out = jax.nn.relu(bn(conv(out, p["conv2_w"], stride, dilation, dilation),
                         *p["bn2"]))
    out = bn(conv(out, p["conv3_w"], 1, 0), *p["bn3"])
    sc = bn(conv(x, p["sc_conv_w"], stride, 0), *p["sc_bn"]) \
        if "sc_conv_w" in p else x
    return jax.nn.relu(out + sc)


# ----------------------------------------------------------------------------
# Deterministic parameter init
# ----------------------------------------------------------------------------
def init_params(key, in_planes, planes, stride=1, base_width=64, groups=1,
                expansion=4):
    width = int(planes * (base_width / 64.0)) * groups
    cout = planes * expansion
    keys = jax.random.split(key, 16)

    def bn_params(k, c):
        k1, k2, k3, k4 = jax.random.split(k, 4)
        gamma = jax.random.uniform(k1, (c,), jnp.float32, 0.5, 1.5)
        beta = 0.1 * jax.random.normal(k2, (c,), jnp.float32)
        mean = 0.1 * jax.random.normal(k3, (c,), jnp.float32)
        var = jax.random.uniform(k4, (c,), jnp.float32, 0.5, 1.5)
        return (gamma, beta, mean, var)

    p = {
        "conv1_w": 0.2 * jax.random.normal(keys[0], (width, in_planes, 1, 1),
                                           jnp.float32),
        "bn1": bn_params(keys[1], width),
        "conv2_w": 0.2 * jax.random.normal(keys[2], (width, width, 3, 3),
                                           jnp.float32),
        "bn2": bn_params(keys[3], width),
        "conv3_w": 0.2 * jax.random.normal(keys[4], (cout, width, 1, 1),
                                           jnp.float32),
        "bn3": bn_params(keys[5], cout),
    }
    if stride != 1 or in_planes != cout:
        p["sc_conv_w"] = 0.2 * jax.random.normal(
            keys[6], (cout, in_planes, 1, 1), jnp.float32)
        p["sc_bn"] = bn_params(keys[7], cout)
    return p


# ----------------------------------------------------------------------------
if __name__ == "__main__":
    key = jax.random.PRNGKey(0)
    k_x, k_p = jax.random.split(key)

    # small shapes: N=2, in_planes=4, planes=4 -> width=4, out channels=16
    N, in_planes, planes, H, W = 2, 4, 4, 16, 16
    stride = 1
    x = jax.random.normal(k_x, (N, in_planes, H, W), jnp.float32)
    params = init_params(k_p, in_planes, planes, stride=stride)

    fwd = jax.jit(functools.partial(bottleneck_forward, stride=stride,
                                    dilation=1))
    out = jax.block_until_ready(fwd(x, params))
    ref = jax.block_until_ready(_ref_forward(x, params, stride=stride))

    assert out.shape == ref.shape == (N, planes * 4, H // stride, W // stride)
    err = float(jnp.max(jnp.abs(out - ref)))
    # bf16 activations/weights with f32 accumulation: allow bf16-level error.
    assert jnp.allclose(out, ref, rtol=5e-2, atol=5e-2), f"max abs err = {err}"

    print("KERNEL_OK")
</pallas_src>

<mosaic_0001>
module attributes {stable_mosaic.version = 11 : i64} {
  func.func @_conv1_conv2_kernel(%arg0: i32, %arg1: memref<1x16x16x128xbf16, #tpu.memory_space<vmem>>, %arg2: memref<128x128xbf16, #tpu.memory_space<vmem>>, %arg3: memref<1x128xf32, #tpu.memory_space<vmem>>, %arg4: memref<9x128x128xbf16, #tpu.memory_space<vmem>>, %arg5: memref<1x128xf32, #tpu.memory_space<vmem>>, %arg6: memref<1x16x16x128xbf16, #tpu.memory_space<vmem>>, %arg7: memref<18x25x128xf32, #tpu.memory_space<vmem>>, %arg8: memref<256x128xf32, #tpu.memory_space<vmem>>) attributes {dimension_semantics = [#tpu.dimension_semantics<parallel>], iteration_bounds = array<i64: 2>, scalar_prefetch = 0 : i64, scratch_operands = 2 : i64, tpu.core_type = #tpu.core_type<tc>, window_params = [{transform_indices = @transform_0, window_bounds = array<i64: 1, 16, 16, 128>}, {pipeline_mode = #tpu.pipeline_mode<synchronous>, transform_indices = @transform_1, window_bounds = array<i64: 128, 128>}, {pipeline_mode = #tpu.pipeline_mode<synchronous>, transform_indices = @transform_2, window_bounds = array<i64: 1, 128>}, {pipeline_mode = #tpu.pipeline_mode<synchronous>, transform_indices = @transform_3, window_bounds = array<i64: 9, 128, 128>}, {pipeline_mode = #tpu.pipeline_mode<synchronous>, transform_indices = @transform_4, window_bounds = array<i64: 1, 128>}, {transform_indices = @transform_5, window_bounds = array<i64: 1, 16, 16, 128>}]} {
    %c0 = arith.constant 0 : index
    %c0_0 = arith.constant 0 : index
    %c0_1 = arith.constant 0 : index
    %c0_2 = arith.constant 0 : index
    %0 = vector.load %arg1[%c0, %c0_0, %c0_1, %c0_2] : memref<1x16x16x128xbf16, #tpu.memory_space<vmem>>, vector<1x16x16x128xbf16>
    %1 = vector.shape_cast %0 : vector<1x16x16x128xbf16> to vector<16x16x128xbf16>
    %2 = vector.shape_cast %1 : vector<16x16x128xbf16> to vector<256x128xbf16>
    %c0_3 = arith.constant 0 : index
    %c0_4 = arith.constant 0 : index
    %3 = vector.load %arg2[%c0_3, %c0_4] : memref<128x128xbf16, #tpu.memory_space<vmem>>, vector<128x128xbf16>
    %cst = arith.constant dense<0.000000e+00> : vector<256x128xf32>
    %4 = tpu.matmul %2, %3, %cst {dimension_numbers = #tpu.dot_dimension_numbers<[1], [0], [0], [1], [0, 0, 1, 1], [], []>} : vector<256x128xbf16>, vector<128x128xbf16>, vector<256x128xf32> -> vector<256x128xf32>
    %c0_5 = arith.constant 0 : index
    %c0_6 = arith.constant 0 : index
    %5 = vector.load %arg3[%c0_5, %c0_6] : memref<1x128xf32, #tpu.memory_space<vmem>>, vector<1x128xf32>
    %6 = vector.broadcast %5 : vector<1x128xf32> to vector<256x128xf32>
    %7 = arith.addf %4, %6 : vector<256x128xf32>
    %cst_7 = arith.constant 0.000000e+00 : f32
    %8 = vector.broadcast %cst_7 : f32 to vector<256x128xf32>
    %9 = arith.maximumf %7, %8 : vector<256x128xf32>
    %cst_8 = arith.constant 0.000000e+00 : f32
    %10 = vector.broadcast %cst_8 : f32 to vector<18x25x128xf32>
    %c0_9 = arith.constant 0 : index
    %c0_10 = arith.constant 0 : index
    %c0_11 = arith.constant 0 : index
    %11 = vector.load %arg7[%c0_9, %c0_10, %c0_11] : memref<18x25x128xf32, #tpu.memory_space<vmem>>, vector<18x25x128xf32>
    tpu.vector_store %arg7[%c0_9, %c0_10, %c0_11], %10 {strides = array<i32>} : memref<18x25x128xf32, #tpu.memory_space<vmem>>, vector<18x25x128xf32>,
    %12 = vector.shape_cast %9 : vector<256x128xf32> to vector<16x16x128xf32>
    %c1 = arith.constant 1 : index
    %c8 = arith.constant 8 : index
    %c0_12 = arith.constant 0 : index
    %13 = vector.load %arg7[%c1, %c8, %c0_12] : memref<18x25x128xf32, #tpu.memory_space<vmem>>, vector<16x16x128xf32>
    tpu.vector_store %arg7[%c1, %c8, %c0_12], %12 {strides = array<i32>} : memref<18x25x128xf32, #tpu.memory_space<vmem>>, vector<16x16x128xf32>,
    %cst_13 = arith.constant 0.000000e+00 : f32
    %14 = vector.broadcast %cst_13 : f32 to vector<256x128xf32>
    %c0_14 = arith.constant 0 : index
    %c0_15 = arith.constant 0 : index
    %15 = vector.load %arg8[%c0_14, %c0_15] : memref<256x128xf32, #tpu.memory_space<vmem>>, vector<256x128xf32>
    tpu.vector_store %arg8[%c0_14, %c0_15], %14 {strides = array<i32>} : memref<256x128xf32, #tpu.memory_space<vmem>>, vector<256x128xf32>,
    %c0_16 = arith.constant 0 : index
    %c7 = arith.constant 7 : index
    %c0_17 = arith.constant 0 : index
    %16 = vector.load %arg7[%c0_16, %c7, %c0_17] : memref<18x25x128xf32, #tpu.memory_space<vmem>>, vector<16x16x128xf32>
    %c0_18 = arith.constant 0 : index
    %c0_19 = arith.constant 0 : index
    %17 = vector.load %arg8[%c0_18, %c0_19] : memref<256x128xf32, #tpu.memory_space<vmem>>, vector<256x128xf32>
    %18 = vector.shape_cast %16 : vector<16x16x128xf32> to vector<256x128xf32>
    %19 = arith.truncf %18 : vector<256x128xf32> to vector<256x128xbf16>
    %c0_20 = arith.constant 0 : index
    %c0_21 = arith.constant 0 : index
    %c0_22 = arith.constant 0 : index
    %20 = vector.load %arg4[%c0_20, %c0_21, %c0_22] : memref<9x128x128xbf16, #tpu.memory_space<vmem>>, vector<1x128x128xbf16>
    %21 = vector.shape_cast %20 : vector<1x128x128xbf16> to vector<128x128xbf16>
    %cst_23 = arith.constant dense<0.000000e+00> : vector<256x128xf32>
    %22 = tpu.matmul %19, %21, %cst_23 {dimension_numbers = #tpu.dot_dimension_numbers<[1], [0], [0], [1], [0, 0, 1, 1], [], []>} : vector<256x128xbf16>, vector<128x128xbf16>, vector<256x128xf32> -> vector<256x128xf32>
    %23 = arith.addf %17, %22 : vector<256x128xf32>
    %c0_24 = arith.constant 0 : index
    %c0_25 = arith.constant 0 : index
    %24 = vector.load %arg8[%c0_24, %c0_25] : memref<256x128xf32, #tpu.memory_space<vmem>>, vector<256x128xf32>
    tpu.vector_store %arg8[%c0_24, %c0_25], %23 {strides = array<i32>} : memref<256x128xf32, #tpu.memory_space<vmem>>, vector<256x128xf32>,
    %c0_26 = arith.constant 0 : index
    %c8_27 = arith.constant 8 : index
    %c0_28 = arith.constant 0 : index
    %25 = vector.load %arg7[%c0_26, %c8_27, %c0_28] : memref<18x25x128xf32, #tpu.memory_space<vmem>>, vector<16x16x128xf32>
    %c0_29 = arith.constant 0 : index
    %c0_30 = arith.constant 0 : index
    %26 = vector.load %arg8[%c0_29, %c0_30] : memref<256x128xf32, #tpu.memory_space<vmem>>, vector<256x128xf32>
    %27 = vector.shape_cast %25 : vector<16x16x128xf32> to vector<256x128xf32>
    %28 = arith.truncf %27 : vector<256x128xf32> to vector<256x128xbf16>
    %c1_31 = arith.constant 1 : index
    %c0_32 = arith.constant 0 : index
    %c0_33 = arith.constant 0 : index
    %29 = vector.load %arg4[%c1_31, %c0_32, %c0_33] : memref<9x128x128xbf16, #tpu.memory_space<vmem>>, vector<1x128x128xbf16>
    %30 = vector.shape_cast %29 : vector<1x128x128xbf16> to vector<128x128xbf16>
    %cst_34 = arith.constant dense<0.000000e+00> : vector<256x128xf32>
    %31 = tpu.matmul %28, %30, %cst_34 {dimension_numbers = #tpu.dot_dimension_numbers<[1], [0], [0], [1], [0, 0, 1, 1], [], []>} : vector<256x128xbf16>, vector<128x128xbf16>, vector<256x128xf32> -> vector<256x128xf32>
    %32 = arith.addf %26, %31 : vector<256x128xf32>
    %c0_35 = arith.constant 0 : index
    %c0_36 = arith.constant 0 : index
    %33 = vector.load %arg8[%c0_35, %c0_36] : memref<256x128xf32, #tpu.memory_space<vmem>>, vector<256x128xf32>
    tpu.vector_store %arg8[%c0_35, %c0_36], %32 {strides = array<i32>} : memref<256x128xf32, #tpu.memory_space<vmem>>, vector<256x128xf32>,
    %c0_37 = arith.constant 0 : index
    %c9 = arith.constant 9 : index
    %c0_38 = arith.constant 0 : index
    %34 = vector.load %arg7[%c0_37, %c9, %c0_38] : memref<18x25x128xf32, #tpu.memory_space<vmem>>, vector<16x16x128xf32>
    %c0_39 = arith.constant 0 : index
    %c0_40 = arith.constant 0 : index
    %35 = vector.load %arg8[%c0_39, %c0_40] : memref<256x128xf32, #tpu.memory_space<vmem>>, vector<256x128xf32>
    %36 = vector.shape_cast %34 : vector<16x16x128xf32> to vector<256x128xf32>
    %37 = arith.truncf %36 : vector<256x128xf32> to vector<256x128xbf16>
    %c2 = arith.constant 2 : index
    %c0_41 = arith.constant 0 : index
    %c0_42 = arith.constant 0 : index
    %38 = vector.load %arg4[%c2, %c0_41, %c0_42] : memref<9x128x128xbf16, #tpu.memory_space<vmem>>, vector<1x128x128xbf16>
    %39 = vector.shape_cast %38 : vector<1x128x128xbf16> to vector<128x128xbf16>
    %cst_43 = arith.constant dense<0.000000e+00> : vector<256x128xf32>
    %40 = tpu.matmul %37, %39, %cst_43 {dimension_numbers = #tpu.dot_dimension_numbers<[1], [0], [0], [1], [0, 0, 1, 1], [], []>} : vector<256x128xbf16>, vector<128x128xbf16>, vector<256x128xf32> -> vector<256x128xf32>
    %41 = arith.addf %35, %40 : vector<256x128xf32>
    %c0_44 = arith.constant 0 : index
    %c0_45 = arith.constant 0 : index
    %42 = vector.load %arg8[%c0_44, %c0_45] : memref<256x128xf32, #tpu.memory_space<vmem>>, vector<256x128xf32>
    tpu.vector_store %arg8[%c0_44, %c0_45], %41 {strides = array<i32>} : memref<256x128xf32, #tpu.memory_space<vmem>>, vector<256x128xf32>,
    %c1_46 = arith.constant 1 : index
    %c7_47 = arith.constant 7 : index
    %c0_48 = arith.constant 0 : index
    %43 = vector.load %arg7[%c1_46, %c7_47, %c0_48] : memref<18x25x128xf32, #tpu.memory_space<vmem>>, vector<16x16x128xf32>
    %c0_49 = arith.constant 0 : index
    %c0_50 = arith.constant 0 : index
    %44 = vector.load %arg8[%c0_49, %c0_50] : memref<256x128xf32, #tpu.memory_space<vmem>>, vector<256x128xf32>
    %45 = vector.shape_cast %43 : vector<16x16x128xf32> to vector<256x128xf32>
    %46 = arith.truncf %45 : vector<256x128xf32> to vector<256x128xbf16>
    %c3 = arith.constant 3 : index
    %c0_51 = arith.constant 0 : index
    %c0_52 = arith.constant 0 : index
    %47 = vector.load %arg4[%c3, %c0_51, %c0_52] : memref<9x128x128xbf16, #tpu.memory_space<vmem>>, vector<1x128x128xbf16>
    %48 = vector.shape_cast %47 : vector<1x128x128xbf16> to vector<128x128xbf16>
    %cst_53 = arith.constant dense<0.000000e+00> : vector<256x128xf32>
    %49 = tpu.matmul %46, %48, %cst_53 {dimension_numbers = #tpu.dot_dimension_numbers<[1], [0], [0], [1], [0, 0, 1, 1], [], []>} : vector<256x128xbf16>, vector<128x128xbf16>, vector<256x128xf32> -> vector<256x128xf32>
    %50 = arith.addf %44, %49 : vector<256x128xf32>
    %c0_54 = arith.constant 0 : index
    %c0_55 = arith.constant 0 : index
    %51 = vector.load %arg8[%c0_54, %c0_55] : memref<256x128xf32, #tpu.memory_space<vmem>>, vector<256x128xf32>
    tpu.vector_store %arg8[%c0_54, %c0_55], %50 {strides = array<i32>} : memref<256x128xf32, #tpu.memory_space<vmem>>, vector<256x128xf32>,
    %c1_56 = arith.constant 1 : index
    %c8_57 = arith.constant 8 : index
    %c0_58 = arith.constant 0 : index
    %52 = vector.load %arg7[%c1_56, %c8_57, %c0_58] : memref<18x25x128xf32, #tpu.memory_space<vmem>>, vector<16x16x128xf32>
    %c0_59 = arith.constant 0 : index
    %c0_60 = arith.constant 0 : index
    %53 = vector.load %arg8[%c0_59, %c0_60] : memref<256x128xf32, #tpu.memory_space<vmem>>, vector<256x128xf32>
    %54 = vector.shape_cast %52 : vector<16x16x128xf32> to vector<256x128xf32>
    %55 = arith.truncf %54 : vector<256x128xf32> to vector<256x128xbf16>
    %c4 = arith.constant 4 : index
    %c0_61 = arith.constant 0 : index
    %c0_62 = arith.constant 0 : index
    %56 = vector.load %arg4[%c4, %c0_61, %c0_62] : memref<9x128x128xbf16, #tpu.memory_space<vmem>>, vector<1x128x128xbf16>
    %57 = vector.shape_cast %56 : vector<1x128x128xbf16> to vector<128x128xbf16>
    %cst_63 = arith.constant dense<0.000000e+00> : vector<256x128xf32>
    %58 = tpu.matmul %55, %57, %cst_63 {dimension_numbers = #tpu.dot_dimension_numbers<[1], [0], [0], [1], [0, 0, 1, 1], [], []>} : vector<256x128xbf16>, vector<128x128xbf16>, vector<256x128xf32> -> vector<256x128xf32>
    %59 = arith.addf %53, %58 : vector<256x128xf32>
    %c0_64 = arith.constant 0 : index
    %c0_65 = arith.constant 0 : index
    %60 = vector.load %arg8[%c0_64, %c0_65] : memref<256x128xf32, #tpu.memory_space<vmem>>, vector<256x128xf32>
    tpu.vector_store %arg8[%c0_64, %c0_65], %59 {strides = array<i32>} : memref<256x128xf32, #tpu.memory_space<vmem>>, vector<256x128xf32>,
    %c1_66 = arith.constant 1 : index
    %c9_67 = arith.constant 9 : index
    %c0_68 = arith.constant 0 : index
    %61 = vector.load %arg7[%c1_66, %c9_67, %c0_68] : memref<18x25x128xf32, #tpu.memory_space<vmem>>, vector<16x16x128xf32>
    %c0_69 = arith.constant 0 : index
    %c0_70 = arith.constant 0 : index
    %62 = vector.load %arg8[%c0_69, %c0_70] : memref<256x128xf32, #tpu.memory_space<vmem>>, vector<256x128xf32>
    %63 = vector.shape_cast %61 : vector<16x16x128xf32> to vector<256x128xf32>
    %64 = arith.truncf %63 : vector<256x128xf32> to vector<256x128xbf16>
    %c5 = arith.constant 5 : index
    %c0_71 = arith.constant 0 : index
    %c0_72 = arith.constant 0 : index
    %65 = vector.load %arg4[%c5, %c0_71, %c0_72] : memref<9x128x128xbf16, #tpu.memory_space<vmem>>, vector<1x128x128xbf16>
    %66 = vector.shape_cast %65 : vector<1x128x128xbf16> to vector<128x128xbf16>
    %cst_73 = arith.constant dense<0.000000e+00> : vector<256x128xf32>
    %67 = tpu.matmul %64, %66, %cst_73 {dimension_numbers = #tpu.dot_dimension_numbers<[1], [0], [0], [1], [0, 0, 1, 1], [], []>} : vector<256x128xbf16>, vector<128x128xbf16>, vector<256x128xf32> -> vector<256x128xf32>
    %68 = arith.addf %62, %67 : vector<256x128xf32>
    %c0_74 = arith.constant 0 : index
    %c0_75 = arith.constant 0 : index
    %69 = vector.load %arg8[%c0_74, %c0_75] : memref<256x128xf32, #tpu.memory_space<vmem>>, vector<256x128xf32>
    tpu.vector_store %arg8[%c0_74, %c0_75], %68 {strides = array<i32>} : memref<256x128xf32, #tpu.memory_space<vmem>>, vector<256x128xf32>,
    %c2_76 = arith.constant 2 : index
    %c7_77 = arith.constant 7 : index
    %c0_78 = arith.constant 0 : index
    %70 = vector.load %arg7[%c2_76, %c7_77, %c0_78] : memref<18x25x128xf32, #tpu.memory_space<vmem>>, vector<16x16x128xf32>
    %c0_79 = arith.constant 0 : index
    %c0_80 = arith.constant 0 : index
    %71 = vector.load %arg8[%c0_79, %c0_80] : memref<256x128xf32, #tpu.memory_space<vmem>>, vector<256x128xf32>
    %72 = vector.shape_cast %70 : vector<16x16x128xf32> to vector<256x128xf32>
    %73 = arith.truncf %72 : vector<256x128xf32> to vector<256x128xbf16>
    %c6 = arith.constant 6 : index
    %c0_81 = arith.constant 0 : index
    %c0_82 = arith.constant 0 : index
    %74 = vector.load %arg4[%c6, %c0_81, %c0_82] : memref<9x128x128xbf16, #tpu.memory_space<vmem>>, vector<1x128x128xbf16>
    %75 = vector.shape_cast %74 : vector<1x128x128xbf16> to vector<128x128xbf16>
    %cst_83 = arith.constant dense<0.000000e+00> : vector<256x128xf32>
    %76 = tpu.matmul %73, %75, %cst_83 {dimension_numbers = #tpu.dot_dimension_numbers<[1], [0], [0], [1], [0, 0, 1, 1], [], []>} : vector<256x128xbf16>, vector<128x128xbf16>, vector<256x128xf32> -> vector<256x128xf32>
    %77 = arith.addf %71, %76 : vector<256x128xf32>
    %c0_84 = arith.constant 0 : index
    %c0_85 = arith.constant 0 : index
    %78 = vector.load %arg8[%c0_84, %c0_85] : memref<256x128xf32, #tpu.memory_space<vmem>>, vector<256x128xf32>
    tpu.vector_store %arg8[%c0_84, %c0_85], %77 {strides = array<i32>} : memref<256x128xf32, #tpu.memory_space<vmem>>, vector<256x128xf32>,
    %c2_86 = arith.constant 2 : index
    %c8_87 = arith.constant 8 : index
    %c0_88 = arith.constant 0 : index
    %79 = vector.load %arg7[%c2_86, %c8_87, %c0_88] : memref<18x25x128xf32, #tpu.memory_space<vmem>>, vector<16x16x128xf32>
    %c0_89 = arith.constant 0 : index
    %c0_90 = arith.constant 0 : index
    %80 = vector.load %arg8[%c0_89, %c0_90] : memref<256x128xf32, #tpu.memory_space<vmem>>, vector<256x128xf32>
    %81 = vector.shape_cast %79 : vector<16x16x128xf32> to vector<256x128xf32>
    %82 = arith.truncf %81 : vector<256x128xf32> to vector<256x128xbf16>
    %c7_91 = arith.constant 7 : index
    %c0_92 = arith.constant 0 : index
    %c0_93 = arith.constant 0 : index
    %83 = vector.load %arg4[%c7_91, %c0_92, %c0_93] : memref<9x128x128xbf16, #tpu.memory_space<vmem>>, vector<1x128x128xbf16>
    %84 = vector.shape_cast %83 : vector<1x128x128xbf16> to vector<128x128xbf16>
    %cst_94 = arith.constant dense<0.000000e+00> : vector<256x128xf32>
    %85 = tpu.matmul %82, %84, %cst_94 {dimension_numbers = #tpu.dot_dimension_numbers<[1], [0], [0], [1], [0, 0, 1, 1], [], []>} : vector<256x128xbf16>, vector<128x128xbf16>, vector<256x128xf32> -> vector<256x128xf32>
    %86 = arith.addf %80, %85 : vector<256x128xf32>
    %c0_95 = arith.constant 0 : index
    %c0_96 = arith.constant 0 : index
    %87 = vector.load %arg8[%c0_95, %c0_96] : memref<256x128xf32, #tpu.memory_space<vmem>>, vector<256x128xf32>
    tpu.vector_store %arg8[%c0_95, %c0_96], %86 {strides = array<i32>} : memref<256x128xf32, #tpu.memory_space<vmem>>, vector<256x128xf32>,
    %c2_97 = arith.constant 2 : index
    %c9_98 = arith.constant 9 : index
    %c0_99 = arith.constant 0 : index
    %88 = vector.load %arg7[%c2_97, %c9_98, %c0_99] : memref<18x25x128xf32, #tpu.memory_space<vmem>>, vector<16x16x128xf32>
    %c0_100 = arith.constant 0 : index
    %c0_101 = arith.constant 0 : index
    %89 = vector.load %arg8[%c0_100, %c0_101] : memref<256x128xf32, #tpu.memory_space<vmem>>, vector<256x128xf32>
    %90 = vector.shape_cast %88 : vector<16x16x128xf32> to vector<256x128xf32>
    %91 = arith.truncf %90 : vector<256x128xf32> to vector<256x128xbf16>
    %c8_102 = arith.constant 8 : index
    %c0_103 = arith.constant 0 : index
    %c0_104 = arith.constant 0 : index
    %92 = vector.load %arg4[%c8_102, %c0_103, %c0_104] : memref<9x128x128xbf16, #tpu.memory_space<vmem>>, vector<1x128x128xbf16>
    %93 = vector.shape_cast %92 : vector<1x128x128xbf16> to vector<128x128xbf16>
    %cst_105 = arith.constant dense<0.000000e+00> : vector<256x128xf32>
    %94 = tpu.matmul %91, %93, %cst_105 {dimension_numbers = #tpu.dot_dimension_numbers<[1], [0], [0], [1], [0, 0, 1, 1], [], []>} : vector<256x128xbf16>, vector<128x128xbf16>, vector<256x128xf32> -> vector<256x128xf32>
    %95 = arith.addf %89, %94 : vector<256x128xf32>
    %c0_106 = arith.constant 0 : index
    %c0_107 = arith.constant 0 : index
    %96 = vector.load %arg8[%c0_106, %c0_107] : memref<256x128xf32, #tpu.memory_space<vmem>>, vector<256x128xf32>
    tpu.vector_store %arg8[%c0_106, %c0_107], %95 {strides = array<i32>} : memref<256x128xf32, #tpu.memory_space<vmem>>, vector<256x128xf32>,
    %c0_108 = arith.constant 0 : index
    %c0_109 = arith.constant 0 : index
    %97 = vector.load %arg8[%c0_108, %c0_109] : memref<256x128xf32, #tpu.memory_space<vmem>>, vector<256x128xf32>
    %c0_110 = arith.constant 0 : index
    %c0_111 = arith.constant 0 : index
    %98 = vector.load %arg5[%c0_110, %c0_111] : memref<1x128xf32, #tpu.memory_space<vmem>>, vector<1x128xf32>
    %99 = vector.broadcast %98 : vector<1x128xf32> to vector<256x128xf32>
    %100 = arith.addf %97, %99 : vector<256x128xf32>
    %cst_112 = arith.constant 0.000000e+00 : f32
    %101 = vector.broadcast %cst_112 : f32 to vector<256x128xf32>
    %102 = arith.maximumf %100, %101 : vector<256x128xf32>
    %103 = vector.shape_cast %102 : vector<256x128xf32> to vector<16x16x128xf32>
    %104 = arith.truncf %103 : vector<16x16x128xf32> to vector<16x16x128xbf16>
    %c0_113 = arith.constant 0 : index
    %c0_114 = arith.constant 0 : index
    %c0_115 = arith.constant 0 : index
    %c0_116 = arith.constant 0 : index
    %105 = vector.load %arg6[%c0_113, %c0_114, %c0_115, %c0_116] : memref<1x16x16x128xbf16, #tpu.memory_space<vmem>>, vector<1x16x16x128xbf16>
    %106 = vector.shape_cast %105 : vector<1x16x16x128xbf16> to vector<16x16x128xbf16>
    %107 = vector.shape_cast %104 : vector<16x16x128xbf16> to vector<1x16x16x128xbf16>
    tpu.vector_store %arg6[%c0_113, %c0_114, %c0_115, %c0_116], %107 {strides = array<i32>} : memref<1x16x16x128xbf16, #tpu.memory_space<vmem>>, vector<1x16x16x128xbf16>,
    return
  }
  func.func @transform_0(%arg0: i32) -> (i32, i32, i32, i32) {
    %c0_i32 = arith.constant 0 : i32
    %c0_i32_0 = arith.constant 0 : i32
    %c0_i32_1 = arith.constant 0 : i32
    %c0_i32_2 = arith.constant 0 : i32
    return %arg0, %c0_i32, %c0_i32_0, %c0_i32_1 : i32, i32, i32, i32
  }
  func.func @transform_1(%arg0: i32) -> (i32, i32) {
    %c0_i32 = arith.constant 0 : i32
    %c0_i32_0 = arith.constant 0 : i32
    %c0_i32_1 = arith.constant 0 : i32
    return %c0_i32, %c0_i32_0 : i32, i32
  }
  func.func @transform_2(%arg0: i32) -> (i32, i32) {
    %c0_i32 = arith.constant 0 : i32
    %c0_i32_0 = arith.constant 0 : i32
    %c0_i32_1 = arith.constant 0 : i32
    return %c0_i32, %c0_i32_0 : i32, i32
  }
  func.func @transform_3(%arg0: i32) -> (i32, i32, i32) {
    %c0_i32 = arith.constant 0 : i32
    %c0_i32_0 = arith.constant 0 : i32
    %c0_i32_1 = arith.constant 0 : i32
    %c0_i32_2 = arith.constant 0 : i32
    return %c0_i32, %c0_i32_0, %c0_i32_1 : i32, i32, i32
  }
  func.func @transform_4(%arg0: i32) -> (i32, i32) {
    %c0_i32 = arith.constant 0 : i32
    %c0_i32_0 = arith.constant 0 : i32
    %c0_i32_1 = arith.constant 0 : i32
    return %c0_i32, %c0_i32_0 : i32, i32
  }
  func.func @transform_5(%arg0: i32) -> (i32, i32, i32, i32) {
    %c0_i32 = arith.constant 0 : i32
    %c0_i32_0 = arith.constant 0 : i32
    %c0_i32_1 = arith.constant 0 : i32
    %c0_i32_2 = arith.constant 0 : i32
    return %arg0, %c0_i32, %c0_i32_0, %c0_i32_1 : i32, i32, i32, i32
  }
}

module attributes {stable_mosaic.version = 11 : i64} {
  func.func @_conv3_projection_kernel(%arg0: i32, %arg1: memref<512x128xbf16, #tpu.memory_space<vmem>>, %arg2: memref<128x128xbf16, #tpu.memory_space<vmem>>, %arg3: memref<1x128xf32, #tpu.memory_space<vmem>>, %arg4: memref<512x128xbf16, #tpu.memory_space<vmem>>, %arg5: memref<128x128xbf16, #tpu.memory_space<vmem>>, %arg6: memref<1x128xf32, #tpu.memory_space<vmem>>, %arg7: memref<512x128xbf16, #tpu.memory_space<vmem>>) attributes {dimension_semantics = [#tpu.dimension_semantics<parallel>], iteration_bounds = array<i64: 1>, scalar_prefetch = 0 : i64, scratch_operands = 0 : i64, tpu.core_type = #tpu.core_type<tc>, window_params = [{transform_indices = @transform_0, window_bounds = array<i64: 512, 128>}, {pipeline_mode = #tpu.pipeline_mode<synchronous>, transform_indices = @transform_1, window_bounds = array<i64: 128, 128>}, {pipeline_mode = #tpu.pipeline_mode<synchronous>, transform_indices = @transform_2, window_bounds = array<i64: 1, 128>}, {transform_indices = @transform_3, window_bounds = array<i64: 512, 128>}, {pipeline_mode = #tpu.pipeline_mode<synchronous>, transform_indices = @transform_4, window_bounds = array<i64: 128, 128>}, {pipeline_mode = #tpu.pipeline_mode<synchronous>, transform_indices = @transform_5, window_bounds = array<i64: 1, 128>}, {transform_indices = @transform_6, window_bounds = array<i64: 512, 128>}]} {
    %c0 = arith.constant 0 : index
    %c0_0 = arith.constant 0 : index
    %0 = vector.load %arg1[%c0, %c0_0] : memref<512x128xbf16, #tpu.memory_space<vmem>>, vector<512x128xbf16>
    %c0_1 = arith.constant 0 : index
    %c0_2 = arith.constant 0 : index
    %1 = vector.load %arg2[%c0_1, %c0_2] : memref<128x128xbf16, #tpu.memory_space<vmem>>, vector<128x128xbf16>
    %cst = arith.constant dense<0.000000e+00> : vector<512x128xf32>
    %2 = tpu.matmul %0, %1, %cst {dimension_numbers = #tpu.dot_dimension_numbers<[1], [0], [0], [1], [0, 0, 1, 1], [], []>} : vector<512x128xbf16>, vector<128x128xbf16>, vector<512x128xf32> -> vector<512x128xf32>
    %c0_3 = arith.constant 0 : index
    %c0_4 = arith.constant 0 : index
    %3 = vector.load %arg3[%c0_3, %c0_4] : memref<1x128xf32, #tpu.memory_space<vmem>>, vector<1x128xf32>
    %4 = vector.broadcast %3 : vector<1x128xf32> to vector<512x128xf32>
    %5 = arith.addf %2, %4 : vector<512x128xf32>
    %c0_5 = arith.constant 0 : index
    %c0_6 = arith.constant 0 : index
    %6 = vector.load %arg4[%c0_5, %c0_6] : memref<512x128xbf16, #tpu.memory_space<vmem>>, vector<512x128xbf16>
    %c0_7 = arith.constant 0 : index
    %c0_8 = arith.constant 0 : index
    %7 = vector.load %arg5[%c0_7, %c0_8] : memref<128x128xbf16, #tpu.memory_space<vmem>>, vector<128x128xbf16>
    %cst_9 = arith.constant dense<0.000000e+00> : vector<512x128xf32>
    %8 = tpu.matmul %6, %7, %cst_9 {dimension_numbers = #tpu.dot_dimension_numbers<[1], [0], [0], [1], [0, 0, 1, 1], [], []>} : vector<512x128xbf16>, vector<128x128xbf16>, vector<512x128xf32> -> vector<512x128xf32>
    %c0_10 = arith.constant 0 : index
    %c0_11 = arith.constant 0 : index
    %9 = vector.load %arg6[%c0_10, %c0_11] : memref<1x128xf32, #tpu.memory_space<vmem>>, vector<1x128xf32>
    %10 = vector.broadcast %9 : vector<1x128xf32> to vector<512x128xf32>
    %11 = arith.addf %8, %10 : vector<512x128xf32>
    %12 = arith.addf %5, %11 : vector<512x128xf32>
    %cst_12 = arith.constant 0.000000e+00 : f32
    %13 = vector.broadcast %cst_12 : f32 to vector<512x128xf32>
    %14 = arith.maximumf %12, %13 : vector<512x128xf32>
    %15 = arith.truncf %14 : vector<512x128xf32> to vector<512x128xbf16>
    %c0_13 = arith.constant 0 : index
    %c0_14 = arith.constant 0 : index
    %16 = vector.load %arg7[%c0_13, %c0_14] : memref<512x128xbf16, #tpu.memory_space<vmem>>, vector<512x128xbf16>
    tpu.vector_store %arg7[%c0_13, %c0_14], %15 {strides = array<i32>} : memref<512x128xbf16, #tpu.memory_space<vmem>>, vector<512x128xbf16>,
    return
  }
  func.func @transform_0(%arg0: i32) -> (i32, i32) {
    %c0_i32 = arith.constant 0 : i32
    %c0_i32_0 = arith.constant 0 : i32
    return %arg0, %c0_i32 : i32, i32
  }
  func.func @transform_1(%arg0: i32) -> (i32, i32) {
    %c0_i32 = arith.constant 0 : i32
    %c0_i32_0 = arith.constant 0 : i32
    %c0_i32_1 = arith.constant 0 : i32
    return %c0_i32, %c0_i32_0 : i32, i32
  }
  func.func @transform_2(%arg0: i32) -> (i32, i32) {
    %c0_i32 = arith.constant 0 : i32
    %c0_i32_0 = arith.constant 0 : i32
    %c0_i32_1 = arith.constant 0 : i32
    return %c0_i32, %c0_i32_0 : i32, i32
  }
  func.func @transform_3(%arg0: i32) -> (i32, i32) {
    %c0_i32 = arith.constant 0 : i32
    %c0_i32_0 = arith.constant 0 : i32
    return %arg0, %c0_i32 : i32, i32
  }
  func.func @transform_4(%arg0: i32) -> (i32, i32) {
    %c0_i32 = arith.constant 0 : i32
    %c0_i32_0 = arith.constant 0 : i32
    %c0_i32_1 = arith.constant 0 : i32
    return %c0_i32, %c0_i32_0 : i32, i32
  }
  func.func @transform_5(%arg0: i32) -> (i32, i32) {
    %c0_i32 = arith.constant 0 : i32
    %c0_i32_0 = arith.constant 0 : i32
    %c0_i32_1 = arith.constant 0 : i32
    return %c0_i32, %c0_i32_0 : i32, i32
  }
  func.func @transform_6(%arg0: i32) -> (i32, i32) {
    %c0_i32 = arith.constant 0 : i32
    %c0_i32_0 = arith.constant 0 : i32
    return %arg0, %c0_i32 : i32, i32
  }
}

</mosaic_0001>

<llo_original>
// kernel: bottleneck_forward.3
$region0: #{bottleneck_forward.3}
  #allocation0 [shape = 'u32[]', space=smem, size = 0x4, offset = 0x4, fixed_abs, tag = 'smem constant byte address 0x4 - core index']
  #allocation1 [shape = 'u32[144,128]{1,0:T(1,128)}', space=vmem, size = 0x12000, scoped, tag = 'internal scratch']
  %s0 = inlined_call_operand.vmem [shape: bf16[512,128], index: 0, kind: input, shape index: {}]
  %s1 = inlined_call_operand.vmem [shape: bf16[128,128], index: 1, kind: input, shape index: {}]
  %s2 = inlined_call_operand.vmem [shape: f32[1,128], index: 2, kind: input, shape index: {}]
  %s3 = inlined_call_operand.vmem [shape: bf16[512,128], index: 3, kind: input, shape index: {}]
  %s4 = inlined_call_operand.vmem [shape: bf16[128,128], index: 4, kind: input, shape index: {}]
  %s5 = inlined_call_operand.vmem [shape: f32[1,128], index: 5, kind: input, shape index: {}]
  %s6 = inlined_call_operand.vmem [shape: bf16[512,128], index: 6, kind: output, shape index: {}]
  %s7 = sld [smem:[#allocation0]]
  $region34: #{bottleneck_forward.3} parent=0
    _
  %s9 = ssub.s32 1, %s7
  %s10 = scalar_select 0, %s9, %s7
  // Predicated region
  $region2: #{bottleneck_forward.3} parent=0 // pred_check
    _
  $region3: #{bottleneck_forward.3} parent=0 // pred_check_branch
    %12 = sbr.rel (0) target = $region5
  $region4: #{bottleneck_forward.3} parent=0 // pred_region
    _
  $region5: #{bottleneck_forward.3} parent=0 // pred_fallthru
    _
  // Predicated region
  $region6: #{bottleneck_forward.3} parent=0 // pred_check
    _
  $region7: #{bottleneck_forward.3} parent=0 // pred_check_branch
    %14 = sbr.rel (0) target = $region9
  $region8: #{bottleneck_forward.3} parent=0 // pred_region
    _
  $region9: #{bottleneck_forward.3} parent=0 // pred_fallthru
    _
  // Predicated region
  $region10: #{bottleneck_forward.3} parent=0 // pred_check
    _
  $region11: #{bottleneck_forward.3} parent=0 // pred_check_branch
    %16 = sbr.rel (0) target = $region13
  $region12: #{bottleneck_forward.3} parent=0 // pred_region
    _
  $region13: #{bottleneck_forward.3} parent=0 // pred_fallthru
    _
  // Predicated region
  $region14: #{bottleneck_forward.3} parent=0 // pred_check
    _
  $region15: #{bottleneck_forward.3} parent=0 // pred_check_branch
    %18 = sbr.rel (0) target = $region17
  $region16: #{bottleneck_forward.3} parent=0 // pred_region
    _
  $region17: #{bottleneck_forward.3} parent=0 // pred_fallthru
    _
  // Predicated region
  $region18: #{bottleneck_forward.3} parent=0 // pred_check
    _
  $region19: #{bottleneck_forward.3} parent=0 // pred_check_branch
    %20 = sbr.rel (0) target = $region21
  $region20: #{bottleneck_forward.3} parent=0 // pred_region
    _
  $region21: #{bottleneck_forward.3} parent=0 // pred_fallthru
    _
  // Predicated region
  $region22: #{bottleneck_forward.3} parent=0 // pred_check
    _
  $region23: #{bottleneck_forward.3} parent=0 // pred_check_branch
    %22 = sbr.rel (0) target = $region25
  $region24: #{bottleneck_forward.3} parent=0 // pred_region
    _
  $region25: #{bottleneck_forward.3} parent=0 // pred_fallthru
    _
  %v24 = vld [vmem:[%s0] sm:$0xf]
  %v25 = vld [vmem:[%s0 + $0x4] sm:$0xf]
  %v26 = vld [vmem:[%s0 + $0x8] sm:$0xf]
  %v27 = vld [vmem:[%s0 + $0xc] sm:$0xf]
  %v28 = vld [vmem:[%s0 + $0x10] sm:$0xf]
  %v29 = vld [vmem:[%s0 + $0x14] sm:$0xf]
  %v30 = vld [vmem:[%s0 + $0x18] sm:$0xf]
  %v31 = vld [vmem:[%s0 + $0x1c] sm:$0xf]
  %v32 = vld [vmem:[%s0 + $0x20] sm:$0xf]
  %v33 = vld [vmem:[%s0 + $0x24] sm:$0xf]
  %v34 = vld [vmem:[%s0 + $0x28] sm:$0xf]
  %v35 = vld [vmem:[%s0 + $0x2c] sm:$0xf]
  %v36 = vld [vmem:[%s0 + $0x30] sm:$0xf]
  %v37 = vld [vmem:[%s0 + $0x34] sm:$0xf]
  %v38 = vld [vmem:[%s0 + $0x38] sm:$0xf]
  %v39 = vld [vmem:[%s0 + $0x3c] sm:$0xf]
  %v40 = vld [vmem:[%s0 + $0x40] sm:$0xf]
  %v41 = vld [vmem:[%s0 + $0x44] sm:$0xf]
  %v42 = vld [vmem:[%s0 + $0x48] sm:$0xf]
  %v43 = vld [vmem:[%s0 + $0x4c] sm:$0xf]
  %v44 = vld [vmem:[%s0 + $0x50] sm:$0xf]
  %v45 = vld [vmem:[%s0 + $0x54] sm:$0xf]
  %v46 = vld [vmem:[%s0 + $0x58] sm:$0xf]
  %v47 = vld [vmem:[%s0 + $0x5c] sm:$0xf]
  %v48 = vld [vmem:[%s0 + $0x60] sm:$0xf]
  %v49 = vld [vmem:[%s0 + $0x64] sm:$0xf]
  %v50 = vld [vmem:[%s0 + $0x68] sm:$0xf]
  %v51 = vld [vmem:[%s0 + $0x6c] sm:$0xf]
  %v52 = vld [vmem:[%s0 + $0x70] sm:$0xf]
  %v53 = vld [vmem:[%s0 + $0x74] sm:$0xf]
  %v54 = vld [vmem:[%s0 + $0x78] sm:$0xf]
  %v55 = vld [vmem:[%s0 + $0x7c] sm:$0xf]
  %v56 = vld [vmem:[%s0 + $0x80] sm:$0xf]
  %v57 = vld [vmem:[%s0 + $0x84] sm:$0xf]
  %v58 = vld [vmem:[%s0 + $0x88] sm:$0xf]
  %v59 = vld [vmem:[%s0 + $0x8c] sm:$0xf]
  %v60 = vld [vmem:[%s0 + $0x90] sm:$0xf]
  %v61 = vld [vmem:[%s0 + $0x94] sm:$0xf]
  %v62 = vld [vmem:[%s0 + $0x98] sm:$0xf]
  %v63 = vld [vmem:[%s0 + $0x9c] sm:$0xf]
  %v64 = vld [vmem:[%s0 + $0xa0] sm:$0xf]
  %v65 = vld [vmem:[%s0 + $0xa4] sm:$0xf]
  %v66 = vld [vmem:[%s0 + $0xa8] sm:$0xf]
  %v67 = vld [vmem:[%s0 + $0xac] sm:$0xf]
  %v68 = vld [vmem:[%s0 + $0xb0] sm:$0xf]
  %v69 = vld [vmem:[%s0 + $0xb4] sm:$0xf]
  %v70 = vld [vmem:[%s0 + $0xb8] sm:$0xf]
  %v71 = vld [vmem:[%s0 + $0xbc] sm:$0xf]
  %v72 = vld [vmem:[%s0 + $0xc0] sm:$0xf]
  %v73 = vld [vmem:[%s0 + $0xc4] sm:$0xf]
  %v74 = vld [vmem:[%s0 + $0xc8] sm:$0xf]
  %v75 = vld [vmem:[%s0 + $0xcc] sm:$0xf]
  %v76 = vld [vmem:[%s0 + $0xd0] sm:$0xf]
  %v77 = vld [vmem:[%s0 + $0xd4] sm:$0xf]
  %v78 = vld [vmem:[%s0 + $0xd8] sm:$0xf]
  %v79 = vld [vmem:[%s0 + $0xdc] sm:$0xf]
  %v80 = vld [vmem:[%s0 + $0xe0] sm:$0xf]
  %v81 = vld [vmem:[%s0 + $0xe4] sm:$0xf]
  %v82 = vld [vmem:[%s0 + $0xe8] sm:$0xf]
  %v83 = vld [vmem:[%s0 + $0xec] sm:$0xf]
  %v84 = vld [vmem:[%s0 + $0xf0] sm:$0xf]
  %v85 = vld [vmem:[%s0 + $0xf4] sm:$0xf]
  %v86 = vld [vmem:[%s0 + $0xf8] sm:$0xf]
  %v87 = vld [vmem:[%s0 + $0xfc] sm:$0xf]
  %v88 = vld [vmem:[%s1] sm:$0xf]
  %v89 = vld [vmem:[%s1 + $0x4] sm:$0xf]
  %v90 = vld [vmem:[%s1 + $0x8] sm:$0xf]
  %v91 = vld [vmem:[%s1 + $0xc] sm:$0xf]
  %v92 = vld [vmem:[%s1 + $0x10] sm:$0xf]
  %v93 = vld [vmem:[%s1 + $0x14] sm:$0xf]
  %v94 = vld [vmem:[%s1 + $0x18] sm:$0xf]
  %v95 = vld [vmem:[%s1 + $0x1c] sm:$0xf]
  %v96 = vld [vmem:[%s1 + $0x20] sm:$0xf]
  %v97 = vld [vmem:[%s1 + $0x24] sm:$0xf]
  %v98 = vld [vmem:[%s1 + $0x28] sm:$0xf]
  %v99 = vld [vmem:[%s1 + $0x2c] sm:$0xf]
  %v100 = vld [vmem:[%s1 + $0x30] sm:$0xf]
  %v101 = vld [vmem:[%s1 + $0x34] sm:$0xf]
  %v102 = vld [vmem:[%s1 + $0x38] sm:$0xf]
  %v103 = vld [vmem:[%s1 + $0x3c] sm:$0xf]
  %v104 = vld [vmem:[%s2] sm:$0x1]
  %v106 = vlaneseq
  %v107 = vshrl.u32 %v106, 7
  %v108 = vsub.s32 0, %v107
  %v109 = vrot.slane %v104, %v108
  %v175 = vunpack.c.l.b16 %v24
  %v176 = vunpack.c.l.b16 %v25
  %v177 = vunpack.c.l.b16 %v26
  %v178 = vunpack.c.l.b16 %v27
  %v179 = vunpack.c.l.b16 %v28
  %v180 = vunpack.c.l.b16 %v29
  %v181 = vunpack.c.l.b16 %v30
  %v182 = vunpack.c.l.b16 %v31
  %v183 = vunpack.c.l.b16 %v32
  %v184 = vunpack.c.l.b16 %v33
  %v185 = vunpack.c.l.b16 %v34
  %v186 = vunpack.c.l.b16 %v35
  %v187 = vunpack.c.l.b16 %v36
  %v188 = vunpack.c.l.b16 %v37
  %v189 = vunpack.c.l.b16 %v38
  %v190 = vunpack.c.l.b16 %v39
  %v191 = vunpack.c.l.b16 %v40
  %v192 = vunpack.c.l.b16 %v41
  %v193 = vunpack.c.l.b16 %v42
  %v194 = vunpack.c.l.b16 %v43
  %v195 = vunpack.c.l.b16 %v44
  %v196 = vunpack.c.l.b16 %v45
  %v197 = vunpack.c.l.b16 %v46
  %v198 = vunpack.c.l.b16 %v47
  %v199 = vunpack.c.l.b16 %v48
  %v200 = vunpack.c.l.b16 %v49
  %v201 = vunpack.c.l.b16 %v50
  %v202 = vunpack.c.l.b16 %v51
  %v203 = vunpack.c.l.b16 %v52
  %v204 = vunpack.c.l.b16 %v53
  %v205 = vunpack.c.l.b16 %v54
  %v206 = vunpack.c.l.b16 %v55
  %v207 = vunpack.c.l.b16 %v56
  %v208 = vunpack.c.l.b16 %v57
  %v209 = vunpack.c.l.b16 %v58
  %v210 = vunpack.c.l.b16 %v59
  %v211 = vunpack.c.l.b16 %v60
  %v212 = vunpack.c.l.b16 %v61
  %v213 = vunpack.c.l.b16 %v62
  %v214 = vunpack.c.l.b16 %v63
  %v215 = vunpack.c.l.b16 %v64
  %v216 = vunpack.c.l.b16 %v65
  %v217 = vunpack.c.l.b16 %v66
  %v218 = vunpack.c.l.b16 %v67
  %v219 = vunpack.c.l.b16 %v68
  %v220 = vunpack.c.l.b16 %v69
  %v221 = vunpack.c.l.b16 %v70
  %v222 = vunpack.c.l.b16 %v71
  %v223 = vunpack.c.l.b16 %v72
  %v224 = vunpack.c.l.b16 %v73
  %v225 = vunpack.c.l.b16 %v74
  %v226 = vunpack.c.l.b16 %v75
  %v227 = vunpack.c.l.b16 %v76
  %v228 = vunpack.c.l.b16 %v77
  %v229 = vunpack.c.l.b16 %v78
  %v230 = vunpack.c.l.b16 %v79
  %v231 = vunpack.c.l.b16 %v80
  %v232 = vunpack.c.l.b16 %v81
  %v233 = vunpack.c.l.b16 %v82
  %v234 = vunpack.c.l.b16 %v83
  %v235 = vunpack.c.l.b16 %v84
  %v236 = vunpack.c.l.b16 %v85
  %v237 = vunpack.c.l.b16 %v86
  %v238 = vunpack.c.l.b16 %v87
  %v239 = vpack.c.b16 %v176, %v175
  %v240 = vpack.c.b16 %v178, %v177
  %v241 = vpack.c.b16 %v180, %v179
  %v242 = vpack.c.b16 %v182, %v181
  %v243 = vpack.c.b16 %v184, %v183
  %v244 = vpack.c.b16 %v186, %v185
  %v245 = vpack.c.b16 %v188, %v187
  %v246 = vpack.c.b16 %v190, %v189
  %v247 = vpack.c.b16 %v192, %v191
  %v248 = vpack.c.b16 %v194, %v193
  %v249 = vpack.c.b16 %v196, %v195
  %v250 = vpack.c.b16 %v198, %v197
  %v251 = vpack.c.b16 %v200, %v199
  %v252 = vpack.c.b16 %v202, %v201
  %v253 = vpack.c.b16 %v204, %v203
  %v254 = vpack.c.b16 %v206, %v205
  %v255 = vpack.c.b16 %v208, %v207
  %v256 = vpack.c.b16 %v210, %v209
  %v257 = vpack.c.b16 %v212, %v211
  %v258 = vpack.c.b16 %v214, %v213
  %v259 = vpack.c.b16 %v216, %v215
  %v260 = vpack.c.b16 %v218, %v217
  %v261 = vpack.c.b16 %v220, %v219
  %v262 = vpack.c.b16 %v222, %v221
  %v263 = vpack.c.b16 %v224, %v223
  %v264 = vpack.c.b16 %v226, %v225
  %v265 = vpack.c.b16 %v228, %v227
  %v266 = vpack.c.b16 %v230, %v229
  %v267 = vpack.c.b16 %v232, %v231
  %v268 = vpack.c.b16 %v234, %v233
  %v269 = vpack.c.b16 %v236, %v235
  %v270 = vpack.c.b16 %v238, %v237
  %v319 = vunpack.c.l.b16 %v88
  %v320 = vunpack.c.l.b16 %v89
  %v321 = vunpack.c.l.b16 %v90
  %v322 = vunpack.c.l.b16 %v91
  %v323 = vunpack.c.l.b16 %v92
  %v324 = vunpack.c.l.b16 %v93
  %v325 = vunpack.c.l.b16 %v94
  %v326 = vunpack.c.l.b16 %v95
  %v327 = vunpack.c.l.b16 %v96
  %v328 = vunpack.c.l.b16 %v97
  %v329 = vunpack.c.l.b16 %v98
  %v330 = vunpack.c.l.b16 %v99
  %v331 = vunpack.c.l.b16 %v100
  %v332 = vunpack.c.l.b16 %v101
  %v333 = vunpack.c.l.b16 %v102
  %v334 = vunpack.c.l.b16 %v103
  %v335 = vpack.c.b16 %v320, %v319
  %v336 = vpack.c.b16 %v322, %v321
  %v337 = vpack.c.b16 %v324, %v323
  %v338 = vpack.c.b16 %v326, %v325
  %v339 = vpack.c.b16 %v328, %v327
  %v340 = vpack.c.b16 %v330, %v329
  %v341 = vpack.c.b16 %v332, %v331
  %v342 = vpack.c.b16 %v334, %v333
  %351 = vmatprep.subr.bf16.mxu0 0
  %352 = vmatpush1.bf16.msra.mxu0 %v335
  %353 = vmatprep.subr.bf16.mxu0 0
  %354 = vmatpush1.bf16.msra.mxu0 %v336
  %355 = vmatprep.subr.bf16.mxu0 0
  %356 = vmatpush1.bf16.msra.mxu0 %v337
  %357 = vmatprep.subr.bf16.mxu0 0
  %358 = vmatpush1.bf16.msra.mxu0 %v338
  %359 = vmatprep.subr.bf16.mxu0 0
  %360 = vmatpush1.bf16.msra.mxu0 %v339
  %361 = vmatprep.subr.bf16.mxu0 0
  %362 = vmatpush1.bf16.msra.mxu0 %v340
  %363 = vmatprep.subr.bf16.mxu0 0
  %364 = vmatpush1.bf16.msra.mxu0 %v341
  %365 = vmatprep.subr.bf16.mxu0 0
  %366 = vmatpush1.bf16.msra.mxu0 %v342
  %367 = vmatprep.subr.bf16.mxu0 0
  %368 = vmatpush1.bf16.msra.mxu0 0
  %369 = vmatprep.subr.bf16.mxu0 0
  %370 = vmatpush1.bf16.msra.mxu0 0
  %371 = vmatprep.subr.bf16.mxu0 0
  %372 = vmatpush1.bf16.msra.mxu0 0
  %373 = vmatprep.subr.bf16.mxu0 0
  %374 = vmatpush1.bf16.msra.mxu0 0
  %375 = vmatprep.subr.bf16.mxu0 0
  %376 = vmatpush1.bf16.msra.mxu0 0
  %377 = vmatprep.subr.bf16.mxu0 0
  %378 = vmatpush1.bf16.msra.mxu0 0
  %379 = vmatprep.subr.bf16.mxu0 0
  %380 = vmatpush1.bf16.msra.mxu0 0
  %381 = vmatprep.subr.bf16.mxu0 0
  %382 = vmatpush1.bf16.msra.mxu0 0
  %383 = vmatprep.mubr.bf16.mxu0 0
  %384 = vmatmul.mubr.bf16.gmra.mrb[0].mxu0 %v239
  %v385 = vpop.f32.mrb[0].mxu0
  %v386 = vadd.f32 %v109, %v385
  %v387 = vpop.f32.mrb[0].mxu0
  %v388 = vpop.f32.mrb[0].mxu0
  %v389 = vadd.f32 %v109, %v388
  %v390 = vpop.f32.mrb[0].mxu0
  %391 = vmatprep.mubr.bf16.mxu0 0
  %392 = vmatmul.mubr.bf16.gmra.mrb[0].mxu0 %v240
  %v393 = vpop.f32.mrb[0].mxu0
  %v394 = vadd.f32 %v109, %v393
  %v395 = vpop.f32.mrb[0].mxu0
  %v396 = vpop.f32.mrb[0].mxu0
  %v397 = vadd.f32 %v109, %v396
  %v398 = vpop.f32.mrb[0].mxu0
  %399 = vmatprep.mubr.bf16.mxu0 0
  %400 = vmatmul.mubr.bf16.gmra.mrb[0].mxu0 %v241
  %v401 = vpop.f32.mrb[0].mxu0
  %v402 = vadd.f32 %v109, %v401
  %v403 = vpop.f32.mrb[0].mxu0
  %v404 = vpop.f32.mrb[0].mxu0
  %v405 = vadd.f32 %v109, %v404
  %v406 = vpop.f32.mrb[0].mxu0
  %407 = vmatprep.mubr.bf16.mxu0 0
  %408 = vmatmul.mubr.bf16.gmra.mrb[0].mxu0 %v242
  %v409 = vpop.f32.mrb[0].mxu0
  %v410 = vadd.f32 %v109, %v409
  %v411 = vpop.f32.mrb[0].mxu0
  %v412 = vpop.f32.mrb[0].mxu0
  %v413 = vadd.f32 %v109, %v412
  %v414 = vpop.f32.mrb[0].mxu0
  %415 = vmatprep.mubr.bf16.mxu0 0
  %416 = vmatmul.mubr.bf16.gmra.mrb[0].mxu0 %v243
  %v417 = vpop.f32.mrb[0].mxu0
  %v418 = vadd.f32 %v109, %v417
  %v419 = vpop.f32.mrb[0].mxu0
  %v420 = vpop.f32.mrb[0].mxu0
  %v421 = vadd.f32 %v109, %v420
  %v422 = vpop.f32.mrb[0].mxu0
  %423 = vmatprep.mubr.bf16.mxu0 0
  %424 = vmatmul.mubr.bf16.gmra.mrb[0].mxu0 %v244
  %v425 = vpop.f32.mrb[0].mxu0
  %v426 = vadd.f32 %v109, %v425
  %v427 = vpop.f32.mrb[0].mxu0
  %v428 = vpop.f32.mrb[0].mxu0
  %v429 = vadd.f32 %v109, %v428
  %v430 = vpop.f32.mrb[0].mxu0
  %431 = vmatprep.mubr.bf16.mxu0 0
  %432 = vmatmul.mubr.bf16.gmra.mrb[0].mxu0 %v245
  %v433 = vpop.f32.mrb[0].mxu0
  %v434 = vadd.f32 %v109, %v433
  %v435 = vpop.f32.mrb[0].mxu0
  %v436 = vpop.f32.mrb[0].mxu0
  %v437 = vadd.f32 %v109, %v436
  %v438 = vpop.f32.mrb[0].mxu0
  %439 = vmatprep.mubr.bf16.mxu0 0
  %440 = vmatmul.mubr.bf16.gmra.mrb[0].mxu0 %v246
  %v441 = vpop.f32.mrb[0].mxu0
  %v442 = vadd.f32 %v109, %v441
  %v443 = vpop.f32.mrb[0].mxu0
  %v444 = vpop.f32.mrb[0].mxu0
  %v445 = vadd.f32 %v109, %v444
  %v446 = vpop.f32.mrb[0].mxu0
  %447 = vmatprep.mubr.bf16.mxu0 0
  %448 = vmatmul.mubr.bf16.gmra.mrb[0].mxu0 %v247
  %v449 = vpop.f32.mrb[0].mxu0
  %v450 = vadd.f32 %v109, %v449
  %v451 = vpop.f32.mrb[0].mxu0
  %v452 = vpop.f32.mrb[0].mxu0
  %v453 = vadd.f32 %v109, %v452
  %v454 = vpop.f32.mrb[0].mxu0
  %455 = vmatprep.mubr.bf16.mxu0 0
  %456 = vmatmul.mubr.bf16.gmra.mrb[0].mxu0 %v248
  %v457 = vpop.f32.mrb[0].mxu0
  %v458 = vadd.f32 %v109, %v457
  %v459 = vpop.f32.mrb[0].mxu0
  %v460 = vpop.f32.mrb[0].mxu0
  %v461 = vadd.f32 %v109, %v460
  %v462 = vpop.f32.mrb[0].mxu0
  %463 = vmatprep.mubr.bf16.mxu0 0
  %464 = vmatmul.mubr.bf16.gmra.mrb[0].mxu0 %v249
  %v465 = vpop.f32.mrb[0].mxu0
  %v466 = vadd.f32 %v109, %v465
  %v467 = vpop.f32.mrb[0].mxu0
  %v468 = vpop.f32.mrb[0].mxu0
  %v469 = vadd.f32 %v109, %v468
  %v470 = vpop.f32.mrb[0].mxu0
  %471 = vmatprep.mubr.bf16.mxu0 0
  %472 = vmatmul.mubr.bf16.gmra.mrb[0].mxu0 %v250
  %v473 = vpop.f32.mrb[0].mxu0
  %v474 = vadd.f32 %v109, %v473
  %v475 = vpop.f32.mrb[0].mxu0
  %v476 = vpop.f32.mrb[0].mxu0
  %v477 = vadd.f32 %v109, %v476
  %v478 = vpop.f32.mrb[0].mxu0
  %479 = vmatprep.mubr.bf16.mxu0 0
  %480 = vmatmul.mubr.bf16.gmra.mrb[0].mxu0 %v251
  %v481 = vpop.f32.mrb[0].mxu0
  %v482 = vadd.f32 %v109, %v481
  %v483 = vpop.f32.mrb[0].mxu0
  %v484 = vpop.f32.mrb[0].mxu0
  %v485 = vadd.f32 %v109, %v484
  %v486 = vpop.f32.mrb[0].mxu0
  %487 = vmatprep.mubr.bf16.mxu0 0
  %488 = vmatmul.mubr.bf16.gmra.mrb[0].mxu0 %v252
  %v489 = vpop.f32.mrb[0].mxu0
  %v490 = vadd.f32 %v109, %v489
  %v491 = vpop.f32.mrb[0].mxu0
  %v492 = vpop.f32.mrb[0].mxu0
  %v493 = vadd.f32 %v109, %v492
  %v494 = vpop.f32.mrb[0].mxu0
  %495 = vmatprep.mubr.bf16.mxu0 0
  %496 = vmatmul.mubr.bf16.gmra.mrb[0].mxu0 %v253
  %v497 = vpop.f32.mrb[0].mxu0
  %v498 = vadd.f32 %v109, %v497
  %v499 = vpop.f32.mrb[0].mxu0
  %v500 = vpop.f32.mrb[0].mxu0
  %v501 = vadd.f32 %v109, %v500
  %v502 = vpop.f32.mrb[0].mxu0
  %503 = vmatprep.mubr.bf16.mxu0 0
  %504 = vmatmul.mubr.bf16.gmra.mrb[0].mxu0 %v254
  %v505 = vpop.f32.mrb[0].mxu0
  %v506 = vadd.f32 %v109, %v505
  %v507 = vpop.f32.mrb[0].mxu0
  %v508 = vpop.f32.mrb[0].mxu0
  %v509 = vadd.f32 %v109, %v508
  %v510 = vpop.f32.mrb[0].mxu0
  %511 = vmatprep.mubr.bf16.mxu0 0
  %512 = vmatmul.mubr.bf16.gmra.mrb[0].mxu0 %v255
  %v513 = vpop.f32.mrb[0].mxu0
  %v514 = vadd.f32 %v109, %v513
  %v515 = vpop.f32.mrb[0].mxu0
  %v516 = vpop.f32.mrb[0].mxu0
  %v517 = vadd.f32 %v109, %v516
  %v518 = vpop.f32.mrb[0].mxu0
  %519 = vmatprep.mubr.bf16.mxu0 0
  %520 = vmatmul.mubr.bf16.gmra.mrb[0].mxu0 %v256
  %v521 = vpop.f32.mrb[0].mxu0
  %v522 = vadd.f32 %v109, %v521
  %v523 = vpop.f32.mrb[0].mxu0
  %v524 = vpop.f32.mrb[0].mxu0
  %v525 = vadd.f32 %v109, %v524
  %v526 = vpop.f32.mrb[0].mxu0
  %527 = vmatprep.mubr.bf16.mxu0 0
  %528 = vmatmul.mubr.bf16.gmra.mrb[0].mxu0 %v257
  %v529 = vpop.f32.mrb[0].mxu0
  %v530 = vadd.f32 %v109, %v529
  %v531 = vpop.f32.mrb[0].mxu0
  %v532 = vpop.f32.mrb[0].mxu0
  %v533 = vadd.f32 %v109, %v532
  %v534 = vpop.f32.mrb[0].mxu0
  %535 = vmatprep.mubr.bf16.mxu0 0
  %536 = vmatmul.mubr.bf16.gmra.mrb[0].mxu0 %v258
  %v537 = vpop.f32.mrb[0].mxu0
  %v538 = vadd.f32 %v109, %v537
  %v539 = vpop.f32.mrb[0].mxu0
  %v540 = vpop.f32.mrb[0].mxu0
  %v541 = vadd.f32 %v109, %v540
  %v542 = vpop.f32.mrb[0].mxu0
  %543 = vmatprep.mubr.bf16.mxu0 0
  %544 = vmatmul.mubr.bf16.gmra.mrb[0].mxu0 %v259
  %v545 = vpop.f32.mrb[0].mxu0
  %v546 = vadd.f32 %v109, %v545
  %v547 = vpop.f32.mrb[0].mxu0
  %v548 = vpop.f32.mrb[0].mxu0
  %v549 = vadd.f32 %v109, %v548
  %v550 = vpop.f32.mrb[0].mxu0
  %551 = vmatprep.mubr.bf16.mxu0 0
  %552 = vmatmul.mubr.bf16.gmra.mrb[0].mxu0 %v260
  %v553 = vpop.f32.mrb[0].mxu0
  %v554 = vadd.f32 %v109, %v553
  %v555 = vpop.f32.mrb[0].mxu0
  %v556 = vpop.f32.mrb[0].mxu0
  %v557 = vadd.f32 %v109, %v556
  %v558 = vpop.f32.mrb[0].mxu0
  %559 = vmatprep.mubr.bf16.mxu0 0
  %560 = vmatmul.mubr.bf16.gmra.mrb[0].mxu0 %v261
  %v561 = vpop.f32.mrb[0].mxu0
  %v562 = vadd.f32 %v109, %v561
  %v563 = vpop.f32.mrb[0].mxu0
  %v564 = vpop.f32.mrb[0].mxu0
  %v565 = vadd.f32 %v109, %v564
  %v566 = vpop.f32.mrb[0].mxu0
  %567 = vmatprep.mubr.bf16.mxu0 0
  %568 = vmatmul.mubr.bf16.gmra.mrb[0].mxu0 %v262
  %v569 = vpop.f32.mrb[0].mxu0
  %v570 = vadd.f32 %v109, %v569
  %v571 = vpop.f32.mrb[0].mxu0
  %v572 = vpop.f32.mrb[0].mxu0
  %v573 = vadd.f32 %v109, %v572
  %v574 = vpop.f32.mrb[0].mxu0
  %575 = vmatprep.mubr.bf16.mxu0 0
  %576 = vmatmul.mubr.bf16.gmra.mrb[0].mxu0 %v263
  %v577 = vpop.f32.mrb[0].mxu0
  %v578 = vadd.f32 %v109, %v577
  %v579 = vpop.f32.mrb[0].mxu0
  %v580 = vpop.f32.mrb[0].mxu0
  %v581 = vadd.f32 %v109, %v580
  %v582 = vpop.f32.mrb[0].mxu0
  %583 = vmatprep.mubr.bf16.mxu0 0
  %584 = vmatmul.mubr.bf16.gmra.mrb[0].mxu0 %v264
  %v585 = vpop.f32.mrb[0].mxu0
  %v586 = vadd.f32 %v109, %v585
  %v587 = vpop.f32.mrb[0].mxu0
  %v588 = vpop.f32.mrb[0].mxu0
  %v589 = vadd.f32 %v109, %v588
  %v590 = vpop.f32.mrb[0].mxu0
  %591 = vmatprep.mubr.bf16.mxu0 0
  %592 = vmatmul.mubr.bf16.gmra.mrb[0].mxu0 %v265
  %v593 = vpop.f32.mrb[0].mxu0
  %v594 = vadd.f32 %v109, %v593
  %v595 = vpop.f32.mrb[0].mxu0
  %v596 = vpop.f32.mrb[0].mxu0
  %v597 = vadd.f32 %v109, %v596
  %v598 = vpop.f32.mrb[0].mxu0
  %599 = vmatprep.mubr.bf16.mxu0 0
  %600 = vmatmul.mubr.bf16.gmra.mrb[0].mxu0 %v266
  %v601 = vpop.f32.mrb[0].mxu0
  %v602 = vadd.f32 %v109, %v601
  %v603 = vpop.f32.mrb[0].mxu0
  %v604 = vpop.f32.mrb[0].mxu0
  %v605 = vadd.f32 %v109, %v604
  %v606 = vpop.f32.mrb[0].mxu0
  %607 = vmatprep.mubr.bf16.mxu0 0
  %608 = vmatmul.mubr.bf16.gmra.mrb[0].mxu0 %v267
  %v609 = vpop.f32.mrb[0].mxu0
  %v610 = vadd.f32 %v109, %v609
  %v611 = vpop.f32.mrb[0].mxu0
  %v612 = vpop.f32.mrb[0].mxu0
  %v613 = vadd.f32 %v109, %v612
  %v614 = vpop.f32.mrb[0].mxu0
  %615 = vmatprep.mubr.bf16.mxu0 0
  %616 = vmatmul.mubr.bf16.gmra.mrb[0].mxu0 %v268
  %v617 = vpop.f32.mrb[0].mxu0
  %v618 = vadd.f32 %v109, %v617
  %v619 = vpop.f32.mrb[0].mxu0
  %v620 = vpop.f32.mrb[0].mxu0
  %v621 = vadd.f32 %v109, %v620
  %v622 = vpop.f32.mrb[0].mxu0
  %623 = vmatprep.mubr.bf16.mxu0 0
  %624 = vmatmul.mubr.bf16.gmra.mrb[0].mxu0 %v269
  %v625 = vpop.f32.mrb[0].mxu0
  %v626 = vadd.f32 %v109, %v625
  %v627 = vpop.f32.mrb[0].mxu0
  %v628 = vpop.f32.mrb[0].mxu0
  %v629 = vadd.f32 %v109, %v628
  %v630 = vpop.f32.mrb[0].mxu0
  %631 = vmatprep.mubr.bf16.mxu0 0
  %632 = vmatmul.mubr.bf16.gmra.mrb[0].mxu0 %v270
  %v633 = vpop.f32.mrb[0].mxu0
  %v634 = vadd.f32 %v109, %v633
  %v635 = vpop.f32.mrb[0].mxu0
  %v636 = vpop.f32.mrb[0].mxu0
  %v637 = vadd.f32 %v109, %v636
  %v638 = vpop.f32.mrb[0].mxu0
  %639 = vdwg.mxu0
  %v640 = vld [vmem:[%s3] sm:$0xf]
  %v641 = vld [vmem:[%s3 + $0x4] sm:$0xf]
  %v642 = vld [vmem:[%s3 + $0x8] sm:$0xf]
  %v643 = vld [vmem:[%s3 + $0xc] sm:$0xf]
  %v644 = vld [vmem:[%s3 + $0x10] sm:$0xf]
  %v645 = vld [vmem:[%s3 + $0x14] sm:$0xf]
  %v646 = vld [vmem:[%s3 + $0x18] sm:$0xf]
  %v647 = vld [vmem:[%s3 + $0x1c] sm:$0xf]
  %v648 = vld [vmem:[%s3 + $0x20] sm:$0xf]
  %v649 = vld [vmem:[%s3 + $0x24] sm:$0xf]
  %v650 = vld [vmem:[%s3 + $0x28] sm:$0xf]
  %v651 = vld [vmem:[%s3 + $0x2c] sm:$0xf]
  %v652 = vld [vmem:[%s3 + $0x30] sm:$0xf]
  %v653 = vld [vmem:[%s3 + $0x34] sm:$0xf]
  %v654 = vld [vmem:[%s3 + $0x38] sm:$0xf]
  %v655 = vld [vmem:[%s3 + $0x3c] sm:$0xf]
  %v656 = vld [vmem:[%s3 + $0x40] sm:$0xf]
  %v657 = vld [vmem:[%s3 + $0x44] sm:$0xf]
  %v658 = vld [vmem:[%s3 + $0x48] sm:$0xf]
  %v659 = vld [vmem:[%s3 + $0x4c] sm:$0xf]
  %v660 = vld [vmem:[%s3 + $0x50] sm:$0xf]
  %v661 = vld [vmem:[%s3 + $0x54] sm:$0xf]
  %v662 = vld [vmem:[%s3 + $0x58] sm:$0xf]
  %v663 = vld [vmem:[%s3 + $0x5c] sm:$0xf]
  %v664 = vld [vmem:[%s3 + $0x60] sm:$0xf]
  %v665 = vld [vmem:[%s3 + $0x64] sm:$0xf]
  %v666 = vld [vmem:[%s3 + $0x68] sm:$0xf]
  %v667 = vld [vmem:[%s3 + $0x6c] sm:$0xf]
  %v668 = vld [vmem:[%s3 + $0x70] sm:$0xf]
  %v669 = vld [vmem:[%s3 + $0x74] sm:$0xf]
  %v670 = vld [vmem:[%s3 + $0x78] sm:$0xf]
  %v671 = vld [vmem:[%s3 + $0x7c] sm:$0xf]
  %v672 = vld [vmem:[%s3 + $0x80] sm:$0xf]
  %v673 = vld [vmem:[%s3 + $0x84] sm:$0xf]
  %v674 = vld [vmem:[%s3 + $0x88] sm:$0xf]
  %v675 = vld [vmem:[%s3 + $0x8c] sm:$0xf]
  %v676 = vld [vmem:[%s3 + $0x90] sm:$0xf]
  %v677 = vld [vmem:[%s3 + $0x94] sm:$0xf]
  %v678 = vld [vmem:[%s3 + $0x98] sm:$0xf]
  %v679 = vld [vmem:[%s3 + $0x9c] sm:$0xf]
  %v680 = vld [vmem:[%s3 + $0xa0] sm:$0xf]
  %v681 = vld [vmem:[%s3 + $0xa4] sm:$0xf]
  %v682 = vld [vmem:[%s3 + $0xa8] sm:$0xf]
  %v683 = vld [vmem:[%s3 + $0xac] sm:$0xf]
  %v684 = vld [vmem:[%s3 + $0xb0] sm:$0xf]
  %v685 = vld [vmem:[%s3 + $0xb4] sm:$0xf]
  %v686 = vld [vmem:[%s3 + $0xb8] sm:$0xf]
  %v687 = vld [vmem:[%s3 + $0xbc] sm:$0xf]
  %v688 = vld [vmem:[%s3 + $0xc0] sm:$0xf]
  %v689 = vld [vmem:[%s3 + $0xc4] sm:$0xf]
  %v690 = vld [vmem:[%s3 + $0xc8] sm:$0xf]
  %v691 = vld [vmem:[%s3 + $0xcc] sm:$0xf]
  %v692 = vld [vmem:[%s3 + $0xd0] sm:$0xf]
  %v693 = vld [vmem:[%s3 + $0xd4] sm:$0xf]
  %v694 = vld [vmem:[%s3 + $0xd8] sm:$0xf]
  %v695 = vld [vmem:[%s3 + $0xdc] sm:$0xf]
  %v696 = vld [vmem:[%s3 + $0xe0] sm:$0xf]
  %v697 = vld [vmem:[%s3 + $0xe4] sm:$0xf]
  %v698 = vld [vmem:[%s3 + $0xe8] sm:$0xf]
  %v699 = vld [vmem:[%s3 + $0xec] sm:$0xf]
  %v700 = vld [vmem:[%s3 + $0xf0] sm:$0xf]
  %v701 = vld [vmem:[%s3 + $0xf4] sm:$0xf]
  %v702 = vld [vmem:[%s3 + $0xf8] sm:$0xf]
  %v703 = vld [vmem:[%s3 + $0xfc] sm:$0xf]
  %v704 = vld [vmem:[%s4] sm:$0xf]
  %v705 = vld [vmem:[%s4 + $0x4] sm:$0xf]
  %v706 = vld [vmem:[%s4 + $0x8] sm:$0xf]
  %v707 = vld [vmem:[%s4 + $0xc] sm:$0xf]
  %v708 = vld [vmem:[%s4 + $0x10] sm:$0xf]
  %v709 = vld [vmem:[%s4 + $0x14] sm:$0xf]
  %v710 = vld [vmem:[%s4 + $0x18] sm:$0xf]
  %v711 = vld [vmem:[%s4 + $0x1c] sm:$0xf]
  %v712 = vld [vmem:[%s4 + $0x20] sm:$0xf]
  %v713 = vld [vmem:[%s4 + $0x24] sm:$0xf]
  %v714 = vld [vmem:[%s4 + $0x28] sm:$0xf]
  %v715 = vld [vmem:[%s4 + $0x2c] sm:$0xf]
  %v716 = vld [vmem:[%s4 + $0x30] sm:$0xf]
  %v717 = vld [vmem:[%s4 + $0x34] sm:$0xf]
  %v718 = vld [vmem:[%s4 + $0x38] sm:$0xf]
  %v719 = vld [vmem:[%s4 + $0x3c] sm:$0xf]
  %v720 = vld [vmem:[%s5] sm:$0x1]
  %v722 = vlaneseq
  %v723 = vshrl.u32 %v722, 7
  %v724 = vsub.s32 0, %v723
  %v725 = vrot.slane %v720, %v724
  %v791 = vunpack.c.l.b16 %v640
  %v792 = vunpack.c.l.b16 %v641
  %v793 = vunpack.c.l.b16 %v642
  %v794 = vunpack.c.l.b16 %v643
  %v795 = vunpack.c.l.b16 %v644
  %v796 = vunpack.c.l.b16 %v645
  %v797 = vunpack.c.l.b16 %v646
  %v798 = vunpack.c.l.b16 %v647
  %v799 = vunpack.c.l.b16 %v648
  %v800 = vunpack.c.l.b16 %v649
  %v801 = vunpack.c.l.b16 %v650
  %v802 = vunpack.c.l.b16 %v651
  %v803 = vunpack.c.l.b16 %v652
  %v804 = vunpack.c.l.b16 %v653
  %v805 = vunpack.c.l.b16 %v654
  %v806 = vunpack.c.l.b16 %v655
  %v807 = vunpack.c.l.b16 %v656
  %v808 = vunpack.c.l.b16 %v657
  %v809 = vunpack.c.l.b16 %v658
  %v810 = vunpack.c.l.b16 %v659
  %v811 = vunpack.c.l.b16 %v660
  %v812 = vunpack.c.l.b16 %v661
  %v813 = vunpack.c.l.b16 %v662
  %v814 = vunpack.c.l.b16 %v663
  %v815 = vunpack.c.l.b16 %v664
  %v816 = vunpack.c.l.b16 %v665
  %v817 = vunpack.c.l.b16 %v666
  %v818 = vunpack.c.l.b16 %v667
  %v819 = vunpack.c.l.b16 %v668
  %v820 = vunpack.c.l.b16 %v669
  %v821 = vunpack.c.l.b16 %v670
  %v822 = vunpack.c.l.b16 %v671
  %v823 = vunpack.c.l.b16 %v672
  %v824 = vunpack.c.l.b16 %v673
  %v825 = vunpack.c.l.b16 %v674
  %v826 = vunpack.c.l.b16 %v675
  %v827 = vunpack.c.l.b16 %v676
  %v828 = vunpack.c.l.b16 %v677
  %v829 = vunpack.c.l.b16 %v678
  %v830 = vunpack.c.l.b16 %v679
  %v831 = vunpack.c.l.b16 %v680
  %v832 = vunpack.c.l.b16 %v681
  %v833 = vunpack.c.l.b16 %v682
  %v834 = vunpack.c.l.b16 %v683
  %v835 = vunpack.c.l.b16 %v684
  %v836 = vunpack.c.l.b16 %v685
  %v837 = vunpack.c.l.b16 %v686
  %v838 = vunpack.c.l.b16 %v687
  %v839 = vunpack.c.l.b16 %v688
  %v840 = vunpack.c.l.b16 %v689
  %v841 = vunpack.c.l.b16 %v690
  %v842 = vunpack.c.l.b16 %v691
  %v843 = vunpack.c.l.b16 %v692
  %v844 = vunpack.c.l.b16 %v693
  %v845 = vunpack.c.l.b16 %v694
  %v846 = vunpack.c.l.b16 %v695
  %v847 = vunpack.c.l.b16 %v696
  %v848 = vunpack.c.l.b16 %v697
  %v849 = vunpack.c.l.b16 %v698
  %v850 = vunpack.c.l.b16 %v699
  %v851 = vunpack.c.l.b16 %v700
  %v852 = vunpack.c.l.b16 %v701
  %v853 = vunpack.c.l.b16 %v702
  %v854 = vunpack.c.l.b16 %v703
  %v855 = vpack.c.b16 %v792, %v791
  %v856 = vpack.c.b16 %v794, %v793
  %v857 = vpack.c.b16 %v796, %v795
  %v858 = vpack.c.b16 %v798, %v797
  %v859 = vpack.c.b16 %v800, %v799
  %v860 = vpack.c.b16 %v802, %v801
  %v861 = vpack.c.b16 %v804, %v803
  %v862 = vpack.c.b16 %v806, %v805
  %v863 = vpack.c.b16 %v808, %v807
  %v864 = vpack.c.b16 %v810, %v809
  %v865 = vpack.c.b16 %v812, %v811
  %v866 = vpack.c.b16 %v814, %v813
  %v867 = vpack.c.b16 %v816, %v815
  %v868 = vpack.c.b16 %v818, %v817
  %v869 = vpack.c.b16 %v820, %v819
  %v870 = vpack.c.b16 %v822, %v821
  %v871 = vpack.c.b16 %v824, %v823
  %v872 = vpack.c.b16 %v826, %v825
  %v873 = vpack.c.b16 %v828, %v827
  %v874 = vpack.c.b16 %v830, %v829
  %v875 = vpack.c.b16 %v832, %v831
  %v876 = vpack.c.b16 %v834, %v833
  %v877 = vpack.c.b16 %v836, %v835
  %v878 = vpack.c.b16 %v838, %v837
  %v879 = vpack.c.b16 %v840, %v839
  %v880 = vpack.c.b16 %v842, %v841
  %v881 = vpack.c.b16 %v844, %v843
  %v882 = vpack.c.b16 %v846, %v845
  %v883 = vpack.c.b16 %v848, %v847
  %v884 = vpack.c.b16 %v850, %v849
  %v885 = vpack.c.b16 %v852, %v851
  %v886 = vpack.c.b16 %v854, %v853
  %v935 = vunpack.c.l.b16 %v704
  %v936 = vunpack.c.l.b16 %v705
  %v937 = vunpack.c.l.b16 %v706
  %v938 = vunpack.c.l.b16 %v707
  %v939 = vunpack.c.l.b16 %v708
  %v940 = vunpack.c.l.b16 %v709
  %v941 = vunpack.c.l.b16 %v710
  %v942 = vunpack.c.l.b16 %v711
  %v943 = vunpack.c.l.b16 %v712
  %v944 = vunpack.c.l.b16 %v713
  %v945 = vunpack.c.l.b16 %v714
  %v946 = vunpack.c.l.b16 %v715
  %v947 = vunpack.c.l.b16 %v716
  %v948 = vunpack.c.l.b16 %v717
  %v949 = vunpack.c.l.b16 %v718
  %v950 = vunpack.c.l.b16 %v719
  %v951 = vpack.c.b16 %v936, %v935
  %v952 = vpack.c.b16 %v938, %v937
  %v953 = vpack.c.b16 %v940, %v939
  %v954 = vpack.c.b16 %v942, %v941
  %v955 = vpack.c.b16 %v944, %v943
  %v956 = vpack.c.b16 %v946, %v945
  %v957 = vpack.c.b16 %v948, %v947
  %v958 = vpack.c.b16 %v950, %v949
  %967 = vmatprep.subr.bf16.mxu0 0
  %968 = vmatpush1.bf16.msra.mxu0 %v951
  %969 = vmatprep.subr.bf16.mxu0 0
  %970 = vmatpush1.bf16.msra.mxu0 %v952
  %971 = vmatprep.subr.bf16.mxu0 0
  %972 = vmatpush1.bf16.msra.mxu0 %v953
  %973 = vmatprep.subr.bf16.mxu0 0
  %974 = vmatpush1.bf16.msra.mxu0 %v954
  %975 = vmatprep.subr.bf16.mxu0 0
  %976 = vmatpush1.bf16.msra.mxu0 %v955
  %977 = vmatprep.subr.bf16.mxu0 0
  %978 = vmatpush1.bf16.msra.mxu0 %v956
  %979 = vmatprep.subr.bf16.mxu0 0
  %980 = vmatpush1.bf16.msra.mxu0 %v957
  %981 = vmatprep.subr.bf16.mxu0 0
  %982 = vmatpush1.bf16.msra.mxu0 %v958
  %983 = vmatprep.subr.bf16.mxu0 0
  %984 = vmatpush1.bf16.msra.mxu0 0
  %985 = vmatprep.subr.bf16.mxu0 0
  %986 = vmatpush1.bf16.msra.mxu0 0
  %987 = vmatprep.subr.bf16.mxu0 0
  %988 = vmatpush1.bf16.msra.mxu0 0
  %989 = vmatprep.subr.bf16.mxu0 0
  %990 = vmatpush1.bf16.msra.mxu0 0
  %991 = vmatprep.subr.bf16.mxu0 0
  %992 = vmatpush1.bf16.msra.mxu0 0
  %993 = vmatprep.subr.bf16.mxu0 0
  %994 = vmatpush1.bf16.msra.mxu0 0
  %995 = vmatprep.subr.bf16.mxu0 0
  %996 = vmatpush1.bf16.msra.mxu0 0
  %997 = vmatprep.subr.bf16.mxu0 0
  %998 = vmatpush1.bf16.msra.mxu0 0
  %999 = vmatprep.mubr.bf16.mxu0 0
  %1000 = vmatmul.mubr.bf16.gmra.mrb[0].mxu0 %v855
  %v1001 = vpop.f32.mrb[0].mxu0
  %v1002 = vadd.f32 %v725, %v1001
  %v1003 = vpop.f32.mrb[0].mxu0
  %v1004 = vpop.f32.mrb[0].mxu0
  %v1005 = vadd.f32 %v725, %v1004
  %v1006 = vpop.f32.mrb[0].mxu0
  %1007 = vmatprep.mubr.bf16.mxu0 0
  %1008 = vmatmul.mubr.bf16.gmra.mrb[0].mxu0 %v856
  %v1009 = vpop.f32.mrb[0].mxu0
  %v1010 = vadd.f32 %v725, %v1009
  %v1011 = vpop.f32.mrb[0].mxu0
  %v1012 = vpop.f32.mrb[0].mxu0
  %v1013 = vadd.f32 %v725, %v1012
  %v1014 = vpop.f32.mrb[0].mxu0
  %1015 = vmatprep.mubr.bf16.mxu0 0
  %1016 = vmatmul.mubr.bf16.gmra.mrb[0].mxu0 %v857
  %v1017 = vpop.f32.mrb[0].mxu0
  %v1018 = vadd.f32 %v725, %v1017
  %v1019 = vpop.f32.mrb[0].mxu0
  %v1020 = vpop.f32.mrb[0].mxu0
  %v1021 = vadd.f32 %v725, %v1020
  %v1022 = vpop.f32.mrb[0].mxu0
  %1023 = vmatprep.mubr.bf16.mxu0 0
  %1024 = vmatmul.mubr.bf16.gmra.mrb[0].mxu0 %v858
  %v1025 = vpop.f32.mrb[0].mxu0
  %v1026 = vadd.f32 %v725, %v1025
  %v1027 = vpop.f32.mrb[0].mxu0
  %v1028 = vpop.f32.mrb[0].mxu0
  %v1029 = vadd.f32 %v725, %v1028
  %v1030 = vpop.f32.mrb[0].mxu0
  %1031 = vmatprep.mubr.bf16.mxu0 0
  %1032 = vmatmul.mubr.bf16.gmra.mrb[0].mxu0 %v859
  %v1033 = vpop.f32.mrb[0].mxu0
  %v1034 = vadd.f32 %v725, %v1033
  %v1035 = vpop.f32.mrb[0].mxu0
  %v1036 = vpop.f32.mrb[0].mxu0
  %v1037 = vadd.f32 %v725, %v1036
  %v1038 = vpop.f32.mrb[0].mxu0
  %1039 = vmatprep.mubr.bf16.mxu0 0
  %1040 = vmatmul.mubr.bf16.gmra.mrb[0].mxu0 %v860
  %v1041 = vpop.f32.mrb[0].mxu0
  %v1042 = vadd.f32 %v725, %v1041
  %v1043 = vpop.f32.mrb[0].mxu0
  %v1044 = vpop.f32.mrb[0].mxu0
  %v1045 = vadd.f32 %v725, %v1044
  %v1046 = vpop.f32.mrb[0].mxu0
  %1047 = vmatprep.mubr.bf16.mxu0 0
  %1048 = vmatmul.mubr.bf16.gmra.mrb[0].mxu0 %v861
  %v1049 = vpop.f32.mrb[0].mxu0
  %v1050 = vadd.f32 %v725, %v1049
  %v1051 = vpop.f32.mrb[0].mxu0
  %v1052 = vpop.f32.mrb[0].mxu0
  %v1053 = vadd.f32 %v725, %v1052
  %v1054 = vpop.f32.mrb[0].mxu0
  %1055 = vmatprep.mubr.bf16.mxu0 0
  %1056 = vmatmul.mubr.bf16.gmra.mrb[0].mxu0 %v862
  %v1057 = vpop.f32.mrb[0].mxu0
  %v1058 = vadd.f32 %v725, %v1057
  %v1059 = vpop.f32.mrb[0].mxu0
  %v1060 = vpop.f32.mrb[0].mxu0
  %v1061 = vadd.f32 %v725, %v1060
  %v1062 = vpop.f32.mrb[0].mxu0
  %1063 = vmatprep.mubr.bf16.mxu0 0
  %1064 = vmatmul.mubr.bf16.gmra.mrb[0].mxu0 %v863
  %v1065 = vpop.f32.mrb[0].mxu0
  %v1066 = vadd.f32 %v725, %v1065
  %v1067 = vpop.f32.mrb[0].mxu0
  %v1068 = vpop.f32.mrb[0].mxu0
  %v1069 = vadd.f32 %v725, %v1068
  %v1070 = vpop.f32.mrb[0].mxu0
  %1071 = vmatprep.mubr.bf16.mxu0 0
  %1072 = vmatmul.mubr.bf16.gmra.mrb[0].mxu0 %v864
  %v1073 = vpop.f32.mrb[0].mxu0
  %v1074 = vadd.f32 %v725, %v1073
  %v1075 = vpop.f32.mrb[0].mxu0
  %v1076 = vpop.f32.mrb[0].mxu0
  %v1077 = vadd.f32 %v725, %v1076
  %v1078 = vpop.f32.mrb[0].mxu0
  %1079 = vmatprep.mubr.bf16.mxu0 0
  %1080 = vmatmul.mubr.bf16.gmra.mrb[0].mxu0 %v865
  %v1081 = vpop.f32.mrb[0].mxu0
  %v1082 = vadd.f32 %v725, %v1081
  %v1083 = vpop.f32.mrb[0].mxu0
  %v1084 = vpop.f32.mrb[0].mxu0
  %v1085 = vadd.f32 %v725, %v1084
  %v1086 = vpop.f32.mrb[0].mxu0
  %1087 = vmatprep.mubr.bf16.mxu0 0
  %1088 = vmatmul.mubr.bf16.gmra.mrb[0].mxu0 %v866
  %v1089 = vpop.f32.mrb[0].mxu0
  %v1090 = vadd.f32 %v725, %v1089
  %v1091 = vpop.f32.mrb[0].mxu0
  %v1092 = vpop.f32.mrb[0].mxu0
  %v1093 = vadd.f32 %v725, %v1092
  %v1094 = vpop.f32.mrb[0].mxu0
  %1095 = vmatprep.mubr.bf16.mxu0 0
  %1096 = vmatmul.mubr.bf16.gmra.mrb[0].mxu0 %v867
  %v1097 = vpop.f32.mrb[0].mxu0
  %v1098 = vadd.f32 %v725, %v1097
  %v1099 = vpop.f32.mrb[0].mxu0
  %v1100 = vpop.f32.mrb[0].mxu0
  %v1101 = vadd.f32 %v725, %v1100
  %v1102 = vpop.f32.mrb[0].mxu0
  %1103 = vmatprep.mubr.bf16.mxu0 0
  %1104 = vmatmul.mubr.bf16.gmra.mrb[0].mxu0 %v868
  %v1105 = vpop.f32.mrb[0].mxu0
  %v1106 = vadd.f32 %v725, %v1105
  %v1107 = vpop.f32.mrb[0].mxu0
  %v1108 = vpop.f32.mrb[0].mxu0
  %v1109 = vadd.f32 %v725, %v1108
  %v1110 = vpop.f32.mrb[0].mxu0
  %1111 = vmatprep.mubr.bf16.mxu0 0
  %1112 = vmatmul.mubr.bf16.gmra.mrb[0].mxu0 %v869
  %v1113 = vpop.f32.mrb[0].mxu0
  %v1114 = vadd.f32 %v725, %v1113
  %v1115 = vpop.f32.mrb[0].mxu0
  %v1116 = vpop.f32.mrb[0].mxu0
  %v1117 = vadd.f32 %v725, %v1116
  %v1118 = vpop.f32.mrb[0].mxu0
  %1119 = vmatprep.mubr.bf16.mxu0 0
  %1120 = vmatmul.mubr.bf16.gmra.mrb[0].mxu0 %v870
  %v1121 = vpop.f32.mrb[0].mxu0
  %v1122 = vadd.f32 %v725, %v1121
  %v1123 = vpop.f32.mrb[0].mxu0
  %v1124 = vpop.f32.mrb[0].mxu0
  %v1125 = vadd.f32 %v725, %v1124
  %v1126 = vpop.f32.mrb[0].mxu0
  %1127 = vmatprep.mubr.bf16.mxu0 0
  %1128 = vmatmul.mubr.bf16.gmra.mrb[0].mxu0 %v871
  %v1129 = vpop.f32.mrb[0].mxu0
  %v1130 = vadd.f32 %v725, %v1129
  %v1131 = vpop.f32.mrb[0].mxu0
  %v1132 = vpop.f32.mrb[0].mxu0
  %v1133 = vadd.f32 %v725, %v1132
  %v1134 = vpop.f32.mrb[0].mxu0
  %1135 = vmatprep.mubr.bf16.mxu0 0
  %1136 = vmatmul.mubr.bf16.gmra.mrb[0].mxu0 %v872
  %v1137 = vpop.f32.mrb[0].mxu0
  %v1138 = vadd.f32 %v725, %v1137
  %v1139 = vpop.f32.mrb[0].mxu0
  %v1140 = vpop.f32.mrb[0].mxu0
  %v1141 = vadd.f32 %v725, %v1140
  %v1142 = vpop.f32.mrb[0].mxu0
  %1143 = vmatprep.mubr.bf16.mxu0 0
  %1144 = vmatmul.mubr.bf16.gmra.mrb[0].mxu0 %v873
  %v1145 = vpop.f32.mrb[0].mxu0
  %v1146 = vadd.f32 %v725, %v1145
  %v1147 = vpop.f32.mrb[0].mxu0
  %v1148 = vpop.f32.mrb[0].mxu0
  %v1149 = vadd.f32 %v725, %v1148
  %v1150 = vpop.f32.mrb[0].mxu0
  %1151 = vmatprep.mubr.bf16.mxu0 0
  %1152 = vmatmul.mubr.bf16.gmra.mrb[0].mxu0 %v874
  %v1153 = vpop.f32.mrb[0].mxu0
  %v1154 = vadd.f32 %v725, %v1153
  %v1155 = vpop.f32.mrb[0].mxu0
  %v1156 = vpop.f32.mrb[0].mxu0
  %v1157 = vadd.f32 %v725, %v1156
  %v1158 = vpop.f32.mrb[0].mxu0
  %1159 = vmatprep.mubr.bf16.mxu0 0
  %1160 = vmatmul.mubr.bf16.gmra.mrb[0].mxu0 %v875
  %v1161 = vpop.f32.mrb[0].mxu0
  %v1162 = vadd.f32 %v725, %v1161
  %v1163 = vpop.f32.mrb[0].mxu0
  %v1164 = vpop.f32.mrb[0].mxu0
  %v1165 = vadd.f32 %v725, %v1164
  %v1166 = vpop.f32.mrb[0].mxu0
  %1167 = vmatprep.mubr.bf16.mxu0 0
  %1168 = vmatmul.mubr.bf16.gmra.mrb[0].mxu0 %v876
  %v1169 = vpop.f32.mrb[0].mxu0
  %v1170 = vadd.f32 %v725, %v1169
  %v1171 = vpop.f32.mrb[0].mxu0
  %v1172 = vpop.f32.mrb[0].mxu0
  %v1173 = vadd.f32 %v725, %v1172
  %v1174 = vpop.f32.mrb[0].mxu0
  %1175 = vmatprep.mubr.bf16.mxu0 0
  %1176 = vmatmul.mubr.bf16.gmra.mrb[0].mxu0 %v877
  %v1177 = vpop.f32.mrb[0].mxu0
  %v1178 = vadd.f32 %v725, %v1177
  %v1179 = vpop.f32.mrb[0].mxu0
  %v1180 = vpop.f32.mrb[0].mxu0
  %v1181 = vadd.f32 %v725, %v1180
  %v1182 = vpop.f32.mrb[0].mxu0
  %1183 = vmatprep.mubr.bf16.mxu0 0
  %1184 = vmatmul.mubr.bf16.gmra.mrb[0].mxu0 %v878
  %v1185 = vpop.f32.mrb[0].mxu0
  %v1186 = vadd.f32 %v725, %v1185
  %v1187 = vpop.f32.mrb[0].mxu0
  %v1188 = vpop.f32.mrb[0].mxu0
  %v1189 = vadd.f32 %v725, %v1188
  %v1190 = vpop.f32.mrb[0].mxu0
  %1191 = vmatprep.mubr.bf16.mxu0 0
  %1192 = vmatmul.mubr.bf16.gmra.mrb[0].mxu0 %v879
  %v1193 = vpop.f32.mrb[0].mxu0
  %v1194 = vadd.f32 %v725, %v1193
  %v1195 = vpop.f32.mrb[0].mxu0
  %v1196 = vpop.f32.mrb[0].mxu0
  %v1197 = vadd.f32 %v725, %v1196
  %v1198 = vpop.f32.mrb[0].mxu0
  %1199 = vmatprep.mubr.bf16.mxu0 0
  %1200 = vmatmul.mubr.bf16.gmra.mrb[0].mxu0 %v880
  %v1201 = vpop.f32.mrb[0].mxu0
  %v1202 = vadd.f32 %v725, %v1201
  %v1203 = vpop.f32.mrb[0].mxu0
  %v1204 = vpop.f32.mrb[0].mxu0
  %v1205 = vadd.f32 %v725, %v1204
  %v1206 = vpop.f32.mrb[0].mxu0
  %1207 = vmatprep.mubr.bf16.mxu0 0
  %1208 = vmatmul.mubr.bf16.gmra.mrb[0].mxu0 %v881
  %v1209 = vpop.f32.mrb[0].mxu0
  %v1210 = vadd.f32 %v725, %v1209
  %v1211 = vpop.f32.mrb[0].mxu0
  %v1212 = vpop.f32.mrb[0].mxu0
  %v1213 = vadd.f32 %v725, %v1212
  %v1214 = vpop.f32.mrb[0].mxu0
  %1215 = vmatprep.mubr.bf16.mxu0 0
  %1216 = vmatmul.mubr.bf16.gmra.mrb[0].mxu0 %v882
  %v1217 = vpop.f32.mrb[0].mxu0
  %v1218 = vadd.f32 %v725, %v1217
  %v1219 = vpop.f32.mrb[0].mxu0
  %v1220 = vpop.f32.mrb[0].mxu0
  %v1221 = vadd.f32 %v725, %v1220
  %v1222 = vpop.f32.mrb[0].mxu0
  %1223 = vmatprep.mubr.bf16.mxu0 0
  %1224 = vmatmul.mubr.bf16.gmra.mrb[0].mxu0 %v883
  %v1225 = vpop.f32.mrb[0].mxu0
  %v1226 = vadd.f32 %v725, %v1225
  %v1227 = vpop.f32.mrb[0].mxu0
  %v1228 = vpop.f32.mrb[0].mxu0
  %v1229 = vadd.f32 %v725, %v1228
  %v1230 = vpop.f32.mrb[0].mxu0
  %1231 = vmatprep.mubr.bf16.mxu0 0
  %1232 = vmatmul.mubr.bf16.gmra.mrb[0].mxu0 %v884
  %v1233 = vpop.f32.mrb[0].mxu0
  %v1234 = vadd.f32 %v725, %v1233
  %v1235 = vpop.f32.mrb[0].mxu0
  %v1236 = vpop.f32.mrb[0].mxu0
  %v1237 = vadd.f32 %v725, %v1236
  %v1238 = vpop.f32.mrb[0].mxu0
  %1239 = vmatprep.mubr.bf16.mxu0 0
  %1240 = vmatmul.mubr.bf16.gmra.mrb[0].mxu0 %v885
  %v1241 = vpop.f32.mrb[0].mxu0
  %v1242 = vadd.f32 %v725, %v1241
  %v1243 = vpop.f32.mrb[0].mxu0
  %v1244 = vpop.f32.mrb[0].mxu0
  %v1245 = vadd.f32 %v725, %v1244
  %v1246 = vpop.f32.mrb[0].mxu0
  %1247 = vmatprep.mubr.bf16.mxu0 0
  %1248 = vmatmul.mubr.bf16.gmra.mrb[0].mxu0 %v886
  %v1249 = vpop.f32.mrb[0].mxu0
  %v1250 = vadd.f32 %v725, %v1249
  %v1251 = vpop.f32.mrb[0].mxu0
  %v1252 = vpop.f32.mrb[0].mxu0
  %v1253 = vadd.f32 %v725, %v1252
  %v1254 = vpop.f32.mrb[0].mxu0
  %1255 = vdwg.mxu0
  %v1256 = vadd.f32 %v386, %v1002
  %v1257 = vadd.f32 %v389, %v1005
  %v1258 = vadd.f32 %v394, %v1010
  %v1259 = vadd.f32 %v397, %v1013
  %v1260 = vadd.f32 %v402, %v1018
  %v1261 = vadd.f32 %v405, %v1021
  %v1262 = vadd.f32 %v410, %v1026
  %v1263 = vadd.f32 %v413, %v1029
  %v1264 = vadd.f32 %v418, %v1034
  %v1265 = vadd.f32 %v421, %v1037
  %v1266 = vadd.f32 %v426, %v1042
  %v1267 = vadd.f32 %v429, %v1045
  %v1268 = vadd.f32 %v434, %v1050
  %v1269 = vadd.f32 %v437, %v1053
  %v1270 = vadd.f32 %v442, %v1058
  %v1271 = vadd.f32 %v445, %v1061
  %v1272 = vadd.f32 %v450, %v1066
  %v1273 = vadd.f32 %v453, %v1069
  %v1274 = vadd.f32 %v458, %v1074
  %v1275 = vadd.f32 %v461, %v1077
  %v1276 = vadd.f32 %v466, %v1082
  %v1277 = vadd.f32 %v469, %v1085
  %v1278 = vadd.f32 %v474, %v1090
  %v1279 = vadd.f32 %v477, %v1093
  %v1280 = vadd.f32 %v482, %v1098
  %v1281 = vadd.f32 %v485, %v1101
  %v1282 = vadd.f32 %v490, %v1106
  %v1283 = vadd.f32 %v493, %v1109
  %v1284 = vadd.f32 %v498, %v1114
  %v1285 = vadd.f32 %v501, %v1117
  %v1286 = vadd.f32 %v506, %v1122
  %v1287 = vadd.f32 %v509, %v1125
  %v1288 = vadd.f32 %v514, %v1130
  %v1289 = vadd.f32 %v517, %v1133
  %v1290 = vadd.f32 %v522, %v1138
  %v1291 = vadd.f32 %v525, %v1141
  %v1292 = vadd.f32 %v530, %v1146
  %v1293 = vadd.f32 %v533, %v1149
  %v1294 = vadd.f32 %v538, %v1154
  %v1295 = vadd.f32 %v541, %v1157
  %v1296 = vadd.f32 %v546, %v1162
  %v1297 = vadd.f32 %v549, %v1165
  %v1298 = vadd.f32 %v554, %v1170
  %v1299 = vadd.f32 %v557, %v1173
  %v1300 = vadd.f32 %v562, %v1178
  %v1301 = vadd.f32 %v565, %v1181
  %v1302 = vadd.f32 %v570, %v1186
  %v1303 = vadd.f32 %v573, %v1189
  %v1304 = vadd.f32 %v578, %v1194
  %v1305 = vadd.f32 %v581, %v1197
  %v1306 = vadd.f32 %v586, %v1202
  %v1307 = vadd.f32 %v589, %v1205
  %v1308 = vadd.f32 %v594, %v1210
  %v1309 = vadd.f32 %v597, %v1213
  %v1310 = vadd.f32 %v602, %v1218
  %v1311 = vadd.f32 %v605, %v1221
  %v1312 = vadd.f32 %v610, %v1226
  %v1313 = vadd.f32 %v613, %v1229
  %v1314 = vadd.f32 %v618, %v1234
  %v1315 = vadd.f32 %v621, %v1237
  %v1316 = vadd.f32 %v626, %v1242
  %v1317 = vadd.f32 %v629, %v1245
  %v1318 = vadd.f32 %v634, %v1250
  %v1319 = vadd.f32 %v637, %v1253
  %v1320 = vmax.f32 %v1256, 0.0
  %v1321 = vmax.f32 %v1257, 0.0
  %v1322 = vmax.f32 %v1258, 0.0
  %v1323 = vmax.f32 %v1259, 0.0
  %v1324 = vmax.f32 %v1260, 0.0
  %v1325 = vmax.f32 %v1261, 0.0
  %v1326 = vmax.f32 %v1262, 0.0
  %v1327 = vmax.f32 %v1263, 0.0
  %v1328 = vmax.f32 %v1264, 0.0
  %v1329 = vmax.f32 %v1265, 0.0
  %v1330 = vmax.f32 %v1266, 0.0
  %v1331 = vmax.f32 %v1267, 0.0
  %v1332 = vmax.f32 %v1268, 0.0
  %v1333 = vmax.f32 %v1269, 0.0
  %v1334 = vmax.f32 %v1270, 0.0
  %v1335 = vmax.f32 %v1271, 0.0
  %v1336 = vmax.f32 %v1272, 0.0
  %v1337 = vmax.f32 %v1273, 0.0
  %v1338 = vmax.f32 %v1274, 0.0
  %v1339 = vmax.f32 %v1275, 0.0
  %v1340 = vmax.f32 %v1276, 0.0
  %v1341 = vmax.f32 %v1277, 0.0
  %v1342 = vmax.f32 %v1278, 0.0
  %v1343 = vmax.f32 %v1279, 0.0
  %v1344 = vmax.f32 %v1280, 0.0
  %v1345 = vmax.f32 %v1281, 0.0
  %v1346 = vmax.f32 %v1282, 0.0
  %v1347 = vmax.f32 %v1283, 0.0
  %v1348 = vmax.f32 %v1284, 0.0
  %v1349 = vmax.f32 %v1285, 0.0
  %v1350 = vmax.f32 %v1286, 0.0
  %v1351 = vmax.f32 %v1287, 0.0
  %v1352 = vmax.f32 %v1288, 0.0
  %v1353 = vmax.f32 %v1289, 0.0
  %v1354 = vmax.f32 %v1290, 0.0
  %v1355 = vmax.f32 %v1291, 0.0
  %v1356 = vmax.f32 %v1292, 0.0
  %v1357 = vmax.f32 %v1293, 0.0
  %v1358 = vmax.f32 %v1294, 0.0
  %v1359 = vmax.f32 %v1295, 0.0
  %v1360 = vmax.f32 %v1296, 0.0
  %v1361 = vmax.f32 %v1297, 0.0
  %v1362 = vmax.f32 %v1298, 0.0
  %v1363 = vmax.f32 %v1299, 0.0
  %v1364 = vmax.f32 %v1300, 0.0
  %v1365 = vmax.f32 %v1301, 0.0
  %v1366 = vmax.f32 %v1302, 0.0
  %v1367 = vmax.f32 %v1303, 0.0
  %v1368 = vmax.f32 %v1304, 0.0
  %v1369 = vmax.f32 %v1305, 0.0
  %v1370 = vmax.f32 %v1306, 0.0
  %v1371 = vmax.f32 %v1307, 0.0
  %v1372 = vmax.f32 %v1308, 0.0
  %v1373 = vmax.f32 %v1309, 0.0
  %v1374 = vmax.f32 %v1310, 0.0
  %v1375 = vmax.f32 %v1311, 0.0
  %v1376 = vmax.f32 %v1312, 0.0
  %v1377 = vmax.f32 %v1313, 0.0
  %v1378 = vmax.f32 %v1314, 0.0
  %v1379 = vmax.f32 %v1315, 0.0
  %v1380 = vmax.f32 %v1316, 0.0
  %v1381 = vmax.f32 %v1317, 0.0
  %v1382 = vmax.f32 %v1318, 0.0
  %v1383 = vmax.f32 %v1319, 0.0
  %v1384 = vpack.c.bf16 %v1321, %v1320
  %v1385 = vpack.c.bf16 %v1323, %v1322
  %v1386 = vpack.c.bf16 %v1325, %v1324
  %v1387 = vpack.c.bf16 %v1327, %v1326
  %v1388 = vpack.c.bf16 %v1329, %v1328
  %v1389 = vpack.c.bf16 %v1331, %v1330
  %v1390 = vpack.c.bf16 %v1333, %v1332
  %v1391 = vpack.c.bf16 %v1335, %v1334
  %v1392 = vpack.c.bf16 %v1337, %v1336
  %v1393 = vpack.c.bf16 %v1339, %v1338
  %v1394 = vpack.c.bf16 %v1341, %v1340
  %v1395 = vpack.c.bf16 %v1343, %v1342
  %v1396 = vpack.c.bf16 %v1345, %v1344
  %v1397 = vpack.c.bf16 %v1347, %v1346
  %v1398 = vpack.c.bf16 %v1349, %v1348
  %v1399 = vpack.c.bf16 %v1351, %v1350
  %v1400 = vpack.c.bf16 %v1353, %v1352
  %v1401 = vpack.c.bf16 %v1355, %v1354
  %v1402 = vpack.c.bf16 %v1357, %v1356
  %v1403 = vpack.c.bf16 %v1359, %v1358
  %v1404 = vpack.c.bf16 %v1361, %v1360
  %v1405 = vpack.c.bf16 %v1363, %v1362
  %v1406 = vpack.c.bf16 %v1365, %v1364
  %v1407 = vpack.c.bf16 %v1367, %v1366
  %v1408 = vpack.c.bf16 %v1369, %v1368
  %v1409 = vpack.c.bf16 %v1371, %v1370
  %v1410 = vpack.c.bf16 %v1373, %v1372
  %v1411 = vpack.c.bf16 %v1375, %v1374
  %v1412 = vpack.c.bf16 %v1377, %v1376
  %v1413 = vpack.c.bf16 %v1379, %v1378
  %v1414 = vpack.c.bf16 %v1381, %v1380
  %v1415 = vpack.c.bf16 %v1383, %v1382
  %v1448 = vunpack.c.l.b16 %v1384
  %v1449 = vunpack.c.h.b16 %v1384
  %v1450 = vunpack.c.l.b16 %v1385
  %v1451 = vunpack.c.h.b16 %v1385
  %v1452 = vunpack.c.l.b16 %v1386
  %v1453 = vunpack.c.h.b16 %v1386
  %v1454 = vunpack.c.l.b16 %v1387
  %v1455 = vunpack.c.h.b16 %v1387
  %v1456 = vunpack.c.l.b16 %v1388
  %v1457 = vunpack.c.h.b16 %v1388
  %v1458 = vunpack.c.l.b16 %v1389
  %v1459 = vunpack.c.h.b16 %v1389
  %v1460 = vunpack.c.l.b16 %v1390
  %v1461 = vunpack.c.h.b16 %v1390
  %v1462 = vunpack.c.l.b16 %v1391
  %v1463 = vunpack.c.h.b16 %v1391
  %v1464 = vunpack.c.l.b16 %v1392
  %v1465 = vunpack.c.h.b16 %v1392
  %v1466 = vunpack.c.l.b16 %v1393
  %v1467 = vunpack.c.h.b16 %v1393
  %v1468 = vunpack.c.l.b16 %v1394
  %v1469 = vunpack.c.h.b16 %v1394
  %v1470 = vunpack.c.l.b16 %v1395
  %v1471 = vunpack.c.h.b16 %v1395
  %v1472 = vunpack.c.l.b16 %v1396
  %v1473 = vunpack.c.h.b16 %v1396
  %v1474 = vunpack.c.l.b16 %v1397
  %v1475 = vunpack.c.h.b16 %v1397
  %v1476 = vunpack.c.l.b16 %v1398
  %v1477 = vunpack.c.h.b16 %v1398
  %v1478 = vunpack.c.l.b16 %v1399
  %v1479 = vunpack.c.h.b16 %v1399
  %v1480 = vunpack.c.l.b16 %v1400
  %v1481 = vunpack.c.h.b16 %v1400
  %v1482 = vunpack.c.l.b16 %v1401
  %v1483 = vunpack.c.h.b16 %v1401
  %v1484 = vunpack.c.l.b16 %v1402
  %v1485 = vunpack.c.h.b16 %v1402
  %v1486 = vunpack.c.l.b16 %v1403
  %v1487 = vunpack.c.h.b16 %v1403
  %v1488 = vunpack.c.l.b16 %v1404
  %v1489 = vunpack.c.h.b16 %v1404
  %v1490 = vunpack.c.l.b16 %v1405
  %v1491 = vunpack.c.h.b16 %v1405
  %v1492 = vunpack.c.l.b16 %v1406
  %v1493 = vunpack.c.h.b16 %v1406
  %v1494 = vunpack.c.l.b16 %v1407
  %v1495 = vunpack.c.h.b16 %v1407
  %v1496 = vunpack.c.l.b16 %v1408
  %v1497 = vunpack.c.h.b16 %v1408
  %v1498 = vunpack.c.l.b16 %v1409
  %v1499 = vunpack.c.h.b16 %v1409
  %v1500 = vunpack.c.l.b16 %v1410
  %v1501 = vunpack.c.h.b16 %v1410
  %v1502 = vunpack.c.l.b16 %v1411
  %v1503 = vunpack.c.h.b16 %v1411
  %v1504 = vunpack.c.l.b16 %v1412
  %v1505 = vunpack.c.h.b16 %v1412
  %v1506 = vunpack.c.l.b16 %v1413
  %v1507 = vunpack.c.h.b16 %v1413
  %v1508 = vunpack.c.l.b16 %v1414
  %v1509 = vunpack.c.h.b16 %v1414
  %v1510 = vunpack.c.l.b16 %v1415
  %v1511 = vunpack.c.h.b16 %v1415
  %v1512 = vpack.c.b16 %v1448, %v1448
  %v1513 = vpack.c.b16 %v1449, %v1449
  %v1514 = vpack.c.b16 %v1450, %v1450
  %v1515 = vpack.c.b16 %v1451, %v1451
  %v1516 = vpack.c.b16 %v1452, %v1452
  %v1517 = vpack.c.b16 %v1453, %v1453
  %v1518 = vpack.c.b16 %v1454, %v1454
  %v1519 = vpack.c.b16 %v1455, %v1455
  %v1520 = vpack.c.b16 %v1456, %v1456
  %v1521 = vpack.c.b16 %v1457, %v1457
  %v1522 = vpack.c.b16 %v1458, %v1458
  %v1523 = vpack.c.b16 %v1459, %v1459
  %v1524 = vpack.c.b16 %v1460, %v1460
  %v1525 = vpack.c.b16 %v1461, %v1461
  %v1526 = vpack.c.b16 %v1462, %v1462
  %v1527 = vpack.c.b16 %v1463, %v1463
  %v1528 = vpack.c.b16 %v1464, %v1464
  %v1529 = vpack.c.b16 %v1465, %v1465
  %v1530 = vpack.c.b16 %v1466, %v1466
  %v1531 = vpack.c.b16 %v1467, %v1467
  %v1532 = vpack.c.b16 %v1468, %v1468
  %v1533 = vpack.c.b16 %v1469, %v1469
  %v1534 = vpack.c.b16 %v1470, %v1470
  %v1535 = vpack.c.b16 %v1471, %v1471
  %v1536 = vpack.c.b16 %v1472, %v1472
  %v1537 = vpack.c.b16 %v1473, %v1473
  %v1538 = vpack.c.b16 %v1474, %v1474
  %v1539 = vpack.c.b16 %v1475, %v1475
  %v1540 = vpack.c.b16 %v1476, %v1476
  %v1541 = vpack.c.b16 %v1477, %v1477
  %v1542 = vpack.c.b16 %v1478, %v1478
  %v1543 = vpack.c.b16 %v1479, %v1479
  %v1544 = vpack.c.b16 %v1480, %v1480
  %v1545 = vpack.c.b16 %v1481, %v1481
  %v1546 = vpack.c.b16 %v1482, %v1482
  %v1547 = vpack.c.b16 %v1483, %v1483
  %v1548 = vpack.c.b16 %v1484, %v1484
  %v1549 = vpack.c.b16 %v1485, %v1485
  %v1550 = vpack.c.b16 %v1486, %v1486
  %v1551 = vpack.c.b16 %v1487, %v1487
  %v1552 = vpack.c.b16 %v1488, %v1488
  %v1553 = vpack.c.b16 %v1489, %v1489
  %v1554 = vpack.c.b16 %v1490, %v1490
  %v1555 = vpack.c.b16 %v1491, %v1491
  %v1556 = vpack.c.b16 %v1492, %v1492
  %v1557 = vpack.c.b16 %v1493, %v1493
  %v1558 = vpack.c.b16 %v1494, %v1494
  %v1559 = vpack.c.b16 %v1495, %v1495
  %v1560 = vpack.c.b16 %v1496, %v1496
  %v1561 = vpack.c.b16 %v1497, %v1497
  %v1562 = vpack.c.b16 %v1498, %v1498
  %v1563 = vpack.c.b16 %v1499, %v1499
  %v1564 = vpack.c.b16 %v1500, %v1500
  %v1565 = vpack.c.b16 %v1501, %v1501
  %v1566 = vpack.c.b16 %v1502, %v1502
  %v1567 = vpack.c.b16 %v1503, %v1503
  %v1568 = vpack.c.b16 %v1504, %v1504
  %v1569 = vpack.c.b16 %v1505, %v1505
  %v1570 = vpack.c.b16 %v1506, %v1506
  %v1571 = vpack.c.b16 %v1507, %v1507
  %v1572 = vpack.c.b16 %v1508, %v1508
  %v1573 = vpack.c.b16 %v1509, %v1509
  %v1574 = vpack.c.b16 %v1510, %v1510
  %v1575 = vpack.c.b16 %v1511, %v1511
  %1640 = vst [vmem:[%s6] sm:$0xf] %v1512
  %1641 = vst [vmem:[%s6 + $0x4] sm:$0xf] %v1513
  %1642 = vst [vmem:[%s6 + $0x8] sm:$0xf] %v1514
  %1643 = vst [vmem:[%s6 + $0xc] sm:$0xf] %v1515
  %1644 = vst [vmem:[%s6 + $0x10] sm:$0xf] %v1516
  %1645 = vst [vmem:[%s6 + $0x14] sm:$0xf] %v1517
  %1646 = vst [vmem:[%s6 + $0x18] sm:$0xf] %v1518
  %1647 = vst [vmem:[%s6 + $0x1c] sm:$0xf] %v1519
  %1648 = vst [vmem:[%s6 + $0x20] sm:$0xf] %v1520
  %1649 = vst [vmem:[%s6 + $0x24] sm:$0xf] %v1521
  %1650 = vst [vmem:[%s6 + $0x28] sm:$0xf] %v1522
  %1651 = vst [vmem:[%s6 + $0x2c] sm:$0xf] %v1523
  %1652 = vst [vmem:[%s6 + $0x30] sm:$0xf] %v1524
  %1653 = vst [vmem:[%s6 + $0x34] sm:$0xf] %v1525
  %1654 = vst [vmem:[%s6 + $0x38] sm:$0xf] %v1526
  %1655 = vst [vmem:[%s6 + $0x3c] sm:$0xf] %v1527
  %1656 = vst [vmem:[%s6 + $0x40] sm:$0xf] %v1528
  %1657 = vst [vmem:[%s6 + $0x44] sm:$0xf] %v1529
  %1658 = vst [vmem:[%s6 + $0x48] sm:$0xf] %v1530
  %1659 = vst [vmem:[%s6 + $0x4c] sm:$0xf] %v1531
  %1660 = vst [vmem:[%s6 + $0x50] sm:$0xf] %v1532
  %1661 = vst [vmem:[%s6 + $0x54] sm:$0xf] %v1533
  %1662 = vst [vmem:[%s6 + $0x58] sm:$0xf] %v1534
  %1663 = vst [vmem:[%s6 + $0x5c] sm:$0xf] %v1535
  %1664 = vst [vmem:[%s6 + $0x60] sm:$0xf] %v1536
  %1665 = vst [vmem:[%s6 + $0x64] sm:$0xf] %v1537
  %1666 = vst [vmem:[%s6 + $0x68] sm:$0xf] %v1538
  %1667 = vst [vmem:[%s6 + $0x6c] sm:$0xf] %v1539
  %1668 = vst [vmem:[%s6 + $0x70] sm:$0xf] %v1540
  %1669 = vst [vmem:[%s6 + $0x74] sm:$0xf] %v1541
  %1670 = vst [vmem:[%s6 + $0x78] sm:$0xf] %v1542
  %1671 = vst [vmem:[%s6 + $0x7c] sm:$0xf] %v1543
  %1672 = vst [vmem:[%s6 + $0x80] sm:$0xf] %v1544
  %1673 = vst [vmem:[%s6 + $0x84] sm:$0xf] %v1545
  %1674 = vst [vmem:[%s6 + $0x88] sm:$0xf] %v1546
  %1675 = vst [vmem:[%s6 + $0x8c] sm:$0xf] %v1547
  %1676 = vst [vmem:[%s6 + $0x90] sm:$0xf] %v1548
  %1677 = vst [vmem:[%s6 + $0x94] sm:$0xf] %v1549
  %1678 = vst [vmem:[%s6 + $0x98] sm:$0xf] %v1550
  %1679 = vst [vmem:[%s6 + $0x9c] sm:$0xf] %v1551
  %1680 = vst [vmem:[%s6 + $0xa0] sm:$0xf] %v1552
  %1681 = vst [vmem:[%s6 + $0xa4] sm:$0xf] %v1553
  %1682 = vst [vmem:[%s6 + $0xa8] sm:$0xf] %v1554
  %1683 = vst [vmem:[%s6 + $0xac] sm:$0xf] %v1555
  %1684 = vst [vmem:[%s6 + $0xb0] sm:$0xf] %v1556
  %1685 = vst [vmem:[%s6 + $0xb4] sm:$0xf] %v1557
  %1686 = vst [vmem:[%s6 + $0xb8] sm:$0xf] %v1558
  %1687 = vst [vmem:[%s6 + $0xbc] sm:$0xf] %v1559
  %1688 = vst [vmem:[%s6 + $0xc0] sm:$0xf] %v1560
  %1689 = vst [vmem:[%s6 + $0xc4] sm:$0xf] %v1561
  %1690 = vst [vmem:[%s6 + $0xc8] sm:$0xf] %v1562
  %1691 = vst [vmem:[%s6 + $0xcc] sm:$0xf] %v1563
  %1692 = vst [vmem:[%s6 + $0xd0] sm:$0xf] %v1564
  %1693 = vst [vmem:[%s6 + $0xd4] sm:$0xf] %v1565
  %1694 = vst [vmem:[%s6 + $0xd8] sm:$0xf] %v1566
  %1695 = vst [vmem:[%s6 + $0xdc] sm:$0xf] %v1567
  %1696 = vst [vmem:[%s6 + $0xe0] sm:$0xf] %v1568
  %1697 = vst [vmem:[%s6 + $0xe4] sm:$0xf] %v1569
  %1698 = vst [vmem:[%s6 + $0xe8] sm:$0xf] %v1570
  %1699 = vst [vmem:[%s6 + $0xec] sm:$0xf] %v1571
  %1700 = vst [vmem:[%s6 + $0xf0] sm:$0xf] %v1572
  %1701 = vst [vmem:[%s6 + $0xf4] sm:$0xf] %v1573
  %1702 = vst [vmem:[%s6 + $0xf8] sm:$0xf] %v1574
  %1703 = vst [vmem:[%s6 + $0xfc] sm:$0xf] %v1575
  // Predicated region
  $region26: #{bottleneck_forward.3} parent=0 // pred_check
    _
  $region27: #{bottleneck_forward.3} parent=0 // pred_check_branch
    %1705 = sbr.rel (0) target = $region29
  $region28: #{bottleneck_forward.3} parent=0 // pred_region
    _
  $region29: #{bottleneck_forward.3} parent=0 // pred_fallthru
    _
  // Predicated region
  $region30: #{bottleneck_forward.3} parent=0 // pred_check
    _
  $region31: #{bottleneck_forward.3} parent=0 // pred_check_branch
    %1707 = sbr.rel (0) target = $region33
  $region32: #{bottleneck_forward.3} parent=0 // pred_region
    _
  $region33: #{bottleneck_forward.3} parent=0 // pred_fallthru
    _

// kernel: bottleneck_forward.2
$region0: #{bottleneck_forward.2}
  #allocation0 [shape = 'u32[]', space=smem, size = 0x4, offset = 0x4, fixed_abs, tag = 'smem constant byte address 0x4 - core index']
  #allocation1 [shape = 'u32[144,128]{1,0:T(1,128)}', space=vmem, size = 0x12000, scoped, tag = 'internal scratch']
  #allocation2 [shape = 'f32[18,25,128]{2,1,0:T(8,128)}', space=vmem, size = 0x48000, scoped, tag = 'scratch operand']
  #allocation3 [shape = 'f32[256,128]{1,0:T(8,128)}', space=vmem, size = 0x20000, scoped, tag = 'scratch operand']
  %s0 = inlined_call_operand.vmem [shape: bf16[2,16,16,128], index: 0, kind: input, shape index: {}]
  %s1 = inlined_call_operand.vmem [shape: bf16[128,128], index: 1, kind: input, shape index: {}]
  %s2 = inlined_call_operand.vmem [shape: f32[1,128], index: 2, kind: input, shape index: {}]
  %s3 = inlined_call_operand.vmem [shape: bf16[9,128,128], index: 3, kind: input, shape index: {}]
  %s4 = inlined_call_operand.vmem [shape: f32[1,128], index: 4, kind: input, shape index: {}]
  %s5 = inlined_call_operand.vmem [shape: bf16[2,16,16,128], index: 5, kind: output, shape index: {}]
  %s6 = sld [smem:[#allocation0]]
  $region53: #{bottleneck_forward.2} parent=0
    _
  %s8 = ssub.s32 1, %s6
  %s9 = scalar_select 0, %s8, %s6
  loop: start=0, step=1, limit=4
  $region2: #{bottleneck_forward.2} parent=0 // loop_pre_header
    _
  $region3: #{bottleneck_forward.2} parent=0 // loop_header
    %s11 = sphi 0, %s15
    %p12 = scmp.ge.s32.totalorder %s11, 4
    %s21 = sphi 0, %s23
    %s24 = sphi 0, %s21
    %s25 = sphi 0, %s24
    %s41 = sphi 0, %s25
    %s45 = sphi 0, %s45
    %s47 = sphi 0, %s45
    %s48 = sphi 0, %s47
    %s62 = sphi 0, %s48
    %s66 = sphi 0, %s66
    %s68 = sphi 0, %s66
    %s69 = sphi 0, %s68
    %s83 = sphi 0, %s69
    %s87 = sphi 0, %s87
    %s89 = sphi 0, %s87
    %s90 = sphi 0, %s89
    %s104 = sphi 0, %s90
    %s108 = sphi 0, %s108
    %s110 = sphi 0, %s108
    %s111 = sphi 0, %s110
    %s125 = sphi 0, %s111
    %s131 = sphi 0, %s133
    %s134 = sphi 0, %s131
    %s135 = sphi 0, %s134
    %s151 = sphi 0, %s135
  $region4: #{bottleneck_forward.2} parent=0 // loop_header_branch
    %14 = sbr.rel (%p12) target = $region8
  $region5: #{bottleneck_forward.2} parent=0 // loop_body
    %s16 = ssub.s32 %s11, 1
    %s17 = ssub.s32 %s11, 2
    %s18 = sadd.s32 %s11, 1
    %s19 = ssub.s32 %s11, %s18
    %p20 = scmp.eq.s32.totalorder %s19, 0
    %s22 = sadd.s32 %s21, 1
    %s23 = scalar_select %p20, %s21, %s22
    %p26 = pneg %p20
    %p27 = scmp.eq.s32.totalorder %s11, 1
    %p28 = por %p26, %p27
    %p29 = scmp.ne.s32.totalorder %s21, %s24
    %p30 = scmp.eq.s32.totalorder %s11, 0
    %p31 = por %p29, %p30
    %p32 = scmp.ne.s32.totalorder %s21, %s24
    %p33 = scmp.eq.s32.totalorder %s16, 1
    %p34 = por %p32, %p33
    %p35 = scmp.ne.s32.totalorder %s24, %s25
    %p36 = scmp.eq.s32.totalorder %s16, 0
    %p37 = por %p35, %p36
    %p38 = scmp.ne.s32.totalorder %s24, %s25
    %p39 = scmp.eq.s32.totalorder %s17, 1
    %p40 = por %p38, %p39
    %p42 = scmp.ne.s32.totalorder %s25, %s41
    %p43 = scmp.eq.s32.totalorder %s17, 0
    %p44 = por %p42, %p43
    %s46 = sadd.s32 %s45, 1
    %p49 = scmp.eq.s32.totalorder %s11, 1
    %p50 = scmp.ne.s32.totalorder %s45, %s47
    %p51 = scmp.eq.s32.totalorder %s11, 0
    %p52 = por %p50, %p51
    %p53 = scmp.ne.s32.totalorder %s45, %s47
    %p54 = scmp.eq.s32.totalorder %s16, 1
    %p55 = por %p53, %p54
    %p56 = scmp.ne.s32.totalorder %s47, %s48
    %p57 = scmp.eq.s32.totalorder %s16, 0
    %p58 = por %p56, %p57
    %p59 = scmp.ne.s32.totalorder %s47, %s48
    %p60 = scmp.eq.s32.totalorder %s17, 1
    %p61 = por %p59, %p60
    %p63 = scmp.ne.s32.totalorder %s48, %s62
    %p64 = scmp.eq.s32.totalorder %s17, 0
    %p65 = por %p63, %p64
    %s67 = sadd.s32 %s66, 1
    %p70 = scmp.eq.s32.totalorder %s11, 1
    %p71 = scmp.ne.s32.totalorder %s66, %s68
    %p72 = scmp.eq.s32.totalorder %s11, 0
    %p73 = por %p71, %p72
    %p74 = scmp.ne.s32.totalorder %s66, %s68
    %p75 = scmp.eq.s32.totalorder %s16, 1
    %p76 = por %p74, %p75
    %p77 = scmp.ne.s32.totalorder %s68, %s69
    %p78 = scmp.eq.s32.totalorder %s16, 0
    %p79 = por %p77, %p78
    %p80 = scmp.ne.s32.totalorder %s68, %s69
    %p81 = scmp.eq.s32.totalorder %s17, 1
    %p82 = por %p80, %p81
    %p84 = scmp.ne.s32.totalorder %s69, %s83
    %p85 = scmp.eq.s32.totalorder %s17, 0
    %p86 = por %p84, %p85
    %s88 = sadd.s32 %s87, 1
    %p91 = scmp.eq.s32.totalorder %s11, 1
    %p92 = scmp.ne.s32.totalorder %s87, %s89
    %p93 = scmp.eq.s32.totalorder %s11, 0
    %p94 = por %p92, %p93
    %p95 = scmp.ne.s32.totalorder %s87, %s89
    %p96 = scmp.eq.s32.totalorder %s16, 1
    %p97 = por %p95, %p96
    %p98 = scmp.ne.s32.totalorder %s89, %s90
    %p99 = scmp.eq.s32.totalorder %s16, 0
    %p100 = por %p98, %p99
    %p101 = scmp.ne.s32.totalorder %s89, %s90
    %p102 = scmp.eq.s32.totalorder %s17, 1
    %p103 = por %p101, %p102
    %p105 = scmp.ne.s32.totalorder %s90, %s104
    %p106 = scmp.eq.s32.totalorder %s17, 0
    %p107 = por %p105, %p106
    %s109 = sadd.s32 %s108, 1
    %p112 = scmp.eq.s32.totalorder %s11, 1
    %p113 = scmp.ne.s32.totalorder %s108, %s110
    %p114 = scmp.eq.s32.totalorder %s11, 0
    %p115 = por %p113, %p114
    %p116 = scmp.ne.s32.totalorder %s108, %s110
    %p117 = scmp.eq.s32.totalorder %s16, 1
    %p118 = por %p116, %p117
    %p119 = scmp.ne.s32.totalorder %s110, %s111
    %p120 = scmp.eq.s32.totalorder %s16, 0
    %p121 = por %p119, %p120
    %p122 = scmp.ne.s32.totalorder %s110, %s111
    %p123 = scmp.eq.s32.totalorder %s17, 1
    %p124 = por %p122, %p123
    %p126 = scmp.ne.s32.totalorder %s111, %s125
    %p127 = scmp.eq.s32.totalorder %s17, 0
    %p128 = por %p126, %p127
    %s129 = ssub.s32 %s11, %s18
    %p130 = scmp.eq.s32.totalorder %s129, 0
    %s132 = sadd.s32 %s131, 1
    %s133 = scalar_select %p130, %s131, %s132
    %p136 = pneg %p130
    %p137 = scmp.eq.s32.totalorder %s11, 1
    %p138 = por %p136, %p137
    %p139 = scmp.ne.s32.totalorder %s131, %s134
    %p140 = scmp.eq.s32.totalorder %s11, 0
    %p141 = por %p139, %p140
    %p142 = scmp.ne.s32.totalorder %s131, %s134
    %p143 = scmp.eq.s32.totalorder %s16, 1
    %p144 = por %p142, %p143
    %p145 = scmp.ne.s32.totalorder %s134, %s135
    %p146 = scmp.eq.s32.totalorder %s16, 0
    %p147 = por %p145, %p146
    %p148 = scmp.ne.s32.totalorder %s134, %s135
    %p149 = scmp.eq.s32.totalorder %s17, 1
    %p150 = por %p148, %p149
    %p152 = scmp.ne.s32.totalorder %s135, %s151
    %p153 = scmp.eq.s32.totalorder %s17, 0
    %p154 = por %p152, %p153
    %p155 = scmp.le.s32.totalorder 1, %s11
    %p156 = scmp.lt.s32.totalorder %s11, 3
    %p157 = pnand %p155, %p156
    %p158 = pneg %p157
    // Predicated region
    $region9: #{bottleneck_forward.2} parent=5 // pred_check
      _
    $region10: #{bottleneck_forward.2} parent=5 // pred_check_branch
      %160 = sbr.rel (%p157) target = $region12
    $region11: #{bottleneck_forward.2} parent=5 // pred_region
      %s161 = ssub.s32 %s11, 1
      // Predicated region
      $region13: #{bottleneck_forward.2} parent=11 // pred_check
        %p162 = pneg %p58
      $region14: #{bottleneck_forward.2} parent=11 // pred_check_branch
        %164 = sbr.rel (%p162) target = $region16
      $region15: #{bottleneck_forward.2} parent=11 // pred_region
        _
      $region16: #{bottleneck_forward.2} parent=11 // pred_fallthru
        _
      // Predicated region
      $region17: #{bottleneck_forward.2} parent=11 // pred_check
        %p165 = pneg %p79
      $region18: #{bottleneck_forward.2} parent=11 // pred_check_branch
        %167 = sbr.rel (%p165) target = $region20
      $region19: #{bottleneck_forward.2} parent=11 // pred_region
        _
      $region20: #{bottleneck_forward.2} parent=11 // pred_fallthru
        _
      // Predicated region
      $region21: #{bottleneck_forward.2} parent=11 // pred_check
        %p168 = pneg %p100
      $region22: #{bottleneck_forward.2} parent=11 // pred_check_branch
        %170 = sbr.rel (%p168) target = $region24
      $region23: #{bottleneck_forward.2} parent=11 // pred_region
        _
      $region24: #{bottleneck_forward.2} parent=11 // pred_fallthru
        _
      // Predicated region
      $region25: #{bottleneck_forward.2} parent=11 // pred_check
        %p171 = pneg %p121
      $region26: #{bottleneck_forward.2} parent=11 // pred_check_branch
        %173 = sbr.rel (%p171) target = $region28
      $region27: #{bottleneck_forward.2} parent=11 // pred_region
        _
      $region28: #{bottleneck_forward.2} parent=11 // pred_fallthru
        _
    $region12: #{bottleneck_forward.2} parent=5 // pred_fallthru
      _
    %p174 = scmp.lt.s32.totalorder %s11, 2
    // Predicated region
    $region29: #{bottleneck_forward.2} parent=5 // pred_check
      %p175 = pneg %p174
    $region30: #{bottleneck_forward.2} parent=5 // pred_check_branch
      %177 = sbr.rel (%p175) target = $region32
    $region31: #{bottleneck_forward.2} parent=5 // pred_region
      // Predicated region
      $region33: #{bottleneck_forward.2} parent=31 // pred_check
        %p178 = pneg %p31
      $region34: #{bottleneck_forward.2} parent=31 // pred_check_branch
        %180 = sbr.rel (%p178) target = $region36
      $region35: #{bottleneck_forward.2} parent=31 // pred_region
        %p181 = scmp.lt.s32.totalorder %s11, 1
        %s182 = scalar_select %p181, %s11, 1
        %s183 = smul.addr %s182, 32
        %s184 = smul.addr %s183, 4
        %s185 = scalar_lea.vmem %s0, %s184
      $region36: #{bottleneck_forward.2} parent=31 // pred_fallthru
        _
    $region32: #{bottleneck_forward.2} parent=5 // pred_fallthru
      _
    %p186 = scmp.le.s32.totalorder 1, %s11
    %p187 = scmp.lt.s32.totalorder %s11, 3
    %p188 = pnand %p186, %p187
    %p189 = pneg %p188
    // Predicated region
    $region37: #{bottleneck_forward.2} parent=5 // pred_check
      _
    $region38: #{bottleneck_forward.2} parent=5 // pred_check_branch
      %191 = sbr.rel (%p188) target = $region40
    $region39: #{bottleneck_forward.2} parent=5 // pred_region
      %s192 = ssub.s32 %s11, 1
      %p193 = scmp.lt.s32.totalorder %s16, 1
      %s194 = scalar_select %p193, %s16, 1
      %s195 = smul.addr %s194, 32
      %s196 = smul.addr %s195, 4
      %s197 = scalar_lea.vmem %s0, %s196
      %p198 = pneg %p37
      %p199 = pneg %p34
      %p200 = pneg %p58
      %p201 = pneg %p55
      %p202 = pneg %p79
      %p203 = pneg %p76
      %p204 = pneg %p100
      %p205 = pneg %p97
      %p206 = pneg %p121
      %p207 = pneg %p118
      %p208 = pneg %p147
      %p209 = pneg %p144
      %p210 = scmp.lt.s32.totalorder %s16, 1
      %s211 = scalar_select %p210, %s16, 1
      %s212 = smul.addr %s211, 32
      %s213 = smul.addr %s212, 4
      %s214 = scalar_lea.vmem %s5, %s213
      %p215 = scmp.lt.s32.totalorder %s16, 1
      %s216 = scalar_select %p215, %s16, 1
      %s217 = smul.addr %s216, 32
      %s218 = smul.addr %s217, 4
      %s219 = scalar_lea.vmem %s0, %s218
      %p220 = scmp.lt.s32.totalorder %s16, 1
      %s221 = scalar_select %p220, %s16, 1
      %s222 = smul.addr %s221, 32
      %s223 = smul.addr %s222, 4
      %s224 = scalar_lea.vmem %s5, %s223
      %v226 = vld [vmem:[%s219] sm:$0xf]
      %v227 = vld [vmem:[%s219 + $0x4] sm:$0xf]
      %v228 = vld [vmem:[%s219 + $0x8] sm:$0xf]
      %v229 = vld [vmem:[%s219 + $0xc] sm:$0xf]
      %v230 = vld [vmem:[%s219 + $0x10] sm:$0xf]
      %v231 = vld [vmem:[%s219 + $0x14] sm:$0xf]
      %v232 = vld [vmem:[%s219 + $0x18] sm:$0xf]
      %v233 = vld [vmem:[%s219 + $0x1c] sm:$0xf]
      %v234 = vld [vmem:[%s219 + $0x20] sm:$0xf]
      %v235 = vld [vmem:[%s219 + $0x24] sm:$0xf]
      %v236 = vld [vmem:[%s219 + $0x28] sm:$0xf]
      %v237 = vld [vmem:[%s219 + $0x2c] sm:$0xf]
      %v238 = vld [vmem:[%s219 + $0x30] sm:$0xf]
      %v239 = vld [vmem:[%s219 + $0x34] sm:$0xf]
      %v240 = vld [vmem:[%s219 + $0x38] sm:$0xf]
      %v241 = vld [vmem:[%s219 + $0x3c] sm:$0xf]
      %v242 = vld [vmem:[%s219 + $0x40] sm:$0xf]
      %v243 = vld [vmem:[%s219 + $0x44] sm:$0xf]
      %v244 = vld [vmem:[%s219 + $0x48] sm:$0xf]
      %v245 = vld [vmem:[%s219 + $0x4c] sm:$0xf]
      %v246 = vld [vmem:[%s219 + $0x50] sm:$0xf]
      %v247 = vld [vmem:[%s219 + $0x54] sm:$0xf]
      %v248 = vld [vmem:[%s219 + $0x58] sm:$0xf]
      %v249 = vld [vmem:[%s219 + $0x5c] sm:$0xf]
      %v250 = vld [vmem:[%s219 + $0x60] sm:$0xf]
      %v251 = vld [vmem:[%s219 + $0x64] sm:$0xf]
      %v252 = vld [vmem:[%s219 + $0x68] sm:$0xf]
      %v253 = vld [vmem:[%s219 + $0x6c] sm:$0xf]
      %v254 = vld [vmem:[%s219 + $0x70] sm:$0xf]
      %v255 = vld [vmem:[%s219 + $0x74] sm:$0xf]
      %v256 = vld [vmem:[%s219 + $0x78] sm:$0xf]
      %v257 = vld [vmem:[%s219 + $0x7c] sm:$0xf]
      %v258 = vld [vmem:[%s1] sm:$0xf]
      %v259 = vld [vmem:[%s1 + $0x4] sm:$0xf]
      %v260 = vld [vmem:[%s1 + $0x8] sm:$0xf]
      %v261 = vld [vmem:[%s1 + $0xc] sm:$0xf]
      %v262 = vld [vmem:[%s1 + $0x10] sm:$0xf]
      %v263 = vld [vmem:[%s1 + $0x14] sm:$0xf]
      %v264 = vld [vmem:[%s1 + $0x18] sm:$0xf]
      %v265 = vld [vmem:[%s1 + $0x1c] sm:$0xf]
      %v266 = vld [vmem:[%s1 + $0x20] sm:$0xf]
      %v267 = vld [vmem:[%s1 + $0x24] sm:$0xf]
      %v268 = vld [vmem:[%s1 + $0x28] sm:$0xf]
      %v269 = vld [vmem:[%s1 + $0x2c] sm:$0xf]
      %v270 = vld [vmem:[%s1 + $0x30] sm:$0xf]
      %v271 = vld [vmem:[%s1 + $0x34] sm:$0xf]
      %v272 = vld [vmem:[%s1 + $0x38] sm:$0xf]
      %v273 = vld [vmem:[%s1 + $0x3c] sm:$0xf]
      %v274 = vld [vmem:[%s2] sm:$0x1]
      %v276 = vlaneseq
      %v277 = vshrl.u32 %v276, 7
      %v278 = vsub.s32 0, %v277
      %v279 = vrot.slane %v274, %v278
      %v313 = vunpack.c.l.b16 %v226
      %v314 = vunpack.c.l.b16 %v227
      %v315 = vunpack.c.l.b16 %v228
      %v316 = vunpack.c.l.b16 %v229
      %v317 = vunpack.c.l.b16 %v230
      %v318 = vunpack.c.l.b16 %v231
      %v319 = vunpack.c.l.b16 %v232
      %v320 = vunpack.c.l.b16 %v233
      %v321 = vunpack.c.l.b16 %v234
      %v322 = vunpack.c.l.b16 %v235
      %v323 = vunpack.c.l.b16 %v236
      %v324 = vunpack.c.l.b16 %v237
      %v325 = vunpack.c.l.b16 %v238
      %v326 = vunpack.c.l.b16 %v239
      %v327 = vunpack.c.l.b16 %v240
      %v328 = vunpack.c.l.b16 %v241
      %v329 = vunpack.c.l.b16 %v242
      %v330 = vunpack.c.l.b16 %v243
      %v331 = vunpack.c.l.b16 %v244
      %v332 = vunpack.c.l.b16 %v245
      %v333 = vunpack.c.l.b16 %v246
      %v334 = vunpack.c.l.b16 %v247
      %v335 = vunpack.c.l.b16 %v248
      %v336 = vunpack.c.l.b16 %v249
      %v337 = vunpack.c.l.b16 %v250
      %v338 = vunpack.c.l.b16 %v251
      %v339 = vunpack.c.l.b16 %v252
      %v340 = vunpack.c.l.b16 %v253
      %v341 = vunpack.c.l.b16 %v254
      %v342 = vunpack.c.l.b16 %v255
      %v343 = vunpack.c.l.b16 %v256
      %v344 = vunpack.c.l.b16 %v257
      %v345 = vpack.c.b16 %v314, %v313
      %v346 = vpack.c.b16 %v316, %v315
      %v347 = vpack.c.b16 %v318, %v317
      %v348 = vpack.c.b16 %v320, %v319
      %v349 = vpack.c.b16 %v322, %v321
      %v350 = vpack.c.b16 %v324, %v323
      %v351 = vpack.c.b16 %v326, %v325
      %v352 = vpack.c.b16 %v328, %v327
      %v353 = vpack.c.b16 %v330, %v329
      %v354 = vpack.c.b16 %v332, %v331
      %v355 = vpack.c.b16 %v334, %v333
      %v356 = vpack.c.b16 %v336, %v335
      %v357 = vpack.c.b16 %v338, %v337
      %v358 = vpack.c.b16 %v340, %v339
      %v359 = vpack.c.b16 %v342, %v341
      %v360 = vpack.c.b16 %v344, %v343
      %v393 = vunpack.c.l.b16 %v258
      %v394 = vunpack.c.l.b16 %v259
      %v395 = vunpack.c.l.b16 %v260
      %v396 = vunpack.c.l.b16 %v261
      %v397 = vunpack.c.l.b16 %v262
      %v398 = vunpack.c.l.b16 %v263
      %v399 = vunpack.c.l.b16 %v264
      %v400 = vunpack.c.l.b16 %v265
      %v401 = vunpack.c.l.b16 %v266
      %v402 = vunpack.c.l.b16 %v267
      %v403 = vunpack.c.l.b16 %v268
      %v404 = vunpack.c.l.b16 %v269
      %v405 = vunpack.c.l.b16 %v270
      %v406 = vunpack.c.l.b16 %v271
      %v407 = vunpack.c.l.b16 %v272
      %v408 = vunpack.c.l.b16 %v273
      %v409 = vpack.c.b16 %v394, %v393
      %v410 = vpack.c.b16 %v396, %v395
      %v411 = vpack.c.b16 %v398, %v397
      %v412 = vpack.c.b16 %v400, %v399
      %v413 = vpack.c.b16 %v402, %v401
      %v414 = vpack.c.b16 %v404, %v403
      %v415 = vpack.c.b16 %v406, %v405
      %v416 = vpack.c.b16 %v408, %v407
      %425 = vmatprep.subr.bf16.mxu0 0
      %426 = vmatpush1.bf16.msra.mxu0 %v409
      %427 = vmatprep.subr.bf16.mxu0 0
      %428 = vmatpush1.bf16.msra.mxu0 %v410
      %429 = vmatprep.subr.bf16.mxu0 0
      %430 = vmatpush1.bf16.msra.mxu0 %v411
      %431 = vmatprep.subr.bf16.mxu0 0
      %432 = vmatpush1.bf16.msra.mxu0 %v412
      %433 = vmatprep.subr.bf16.mxu0 0
      %434 = vmatpush1.bf16.msra.mxu0 %v413
      %435 = vmatprep.subr.bf16.mxu0 0
      %436 = vmatpush1.bf16.msra.mxu0 %v414
      %437 = vmatprep.subr.bf16.mxu0 0
      %438 = vmatpush1.bf16.msra.mxu0 %v415
      %439 = vmatprep.subr.bf16.mxu0 0
      %440 = vmatpush1.bf16.msra.mxu0 %v416
      %441 = vmatprep.subr.bf16.mxu0 0
      %442 = vmatpush1.bf16.msra.mxu0 0
      %443 = vmatprep.subr.bf16.mxu0 0
      %444 = vmatpush1.bf16.msra.mxu0 0
      %445 = vmatprep.subr.bf16.mxu0 0
      %446 = vmatpush1.bf16.msra.mxu0 0
      %447 = vmatprep.subr.bf16.mxu0 0
      %448 = vmatpush1.bf16.msra.mxu0 0
      %449 = vmatprep.subr.bf16.mxu0 0
      %450 = vmatpush1.bf16.msra.mxu0 0
      %451 = vmatprep.subr.bf16.mxu0 0
      %452 = vmatpush1.bf16.msra.mxu0 0
      %453 = vmatprep.subr.bf16.mxu0 0
      %454 = vmatpush1.bf16.msra.mxu0 0
      %455 = vmatprep.subr.bf16.mxu0 0
      %456 = vmatpush1.bf16.msra.mxu0 0
      %457 = vmatprep.mubr.bf16.mxu0 0
      %458 = vmatmul.mubr.bf16.gmra.mrb[0].mxu0 %v345
      %v459 = vpop.f32.mrb[0].mxu0
      %v460 = vadd.f32 %v279, %v459
      %v461 = vpop.f32.mrb[0].mxu0
      %v462 = vpop.f32.mrb[0].mxu0
      %v463 = vadd.f32 %v279, %v462
      %v464 = vpop.f32.mrb[0].mxu0
      %465 = vmatprep.mubr.bf16.mxu0 0
      %466 = vmatmul.mubr.bf16.gmra.mrb[0].mxu0 %v346
      %v467 = vpop.f32.mrb[0].mxu0
      %v468 = vadd.f32 %v279, %v467
      %v469 = vpop.f32.mrb[0].mxu0
      %v470 = vpop.f32.mrb[0].mxu0
      %v471 = vadd.f32 %v279, %v470
      %v472 = vpop.f32.mrb[0].mxu0
      %473 = vmatprep.mubr.bf16.mxu0 0
      %474 = vmatmul.mubr.bf16.gmra.mrb[0].mxu0 %v347
      %v475 = vpop.f32.mrb[0].mxu0
      %v476 = vadd.f32 %v279, %v475
      %v477 = vpop.f32.mrb[0].mxu0
      %v478 = vpop.f32.mrb[0].mxu0
      %v479 = vadd.f32 %v279, %v478
      %v480 = vpop.f32.mrb[0].mxu0
      %481 = vmatprep.mubr.bf16.mxu0 0
      %482 = vmatmul.mubr.bf16.gmra.mrb[0].mxu0 %v348
      %v483 = vpop.f32.mrb[0].mxu0
      %v484 = vadd.f32 %v279, %v483
      %v485 = vpop.f32.mrb[0].mxu0
      %v486 = vpop.f32.mrb[0].mxu0
      %v487 = vadd.f32 %v279, %v486
      %v488 = vpop.f32.mrb[0].mxu0
      %489 = vmatprep.mubr.bf16.mxu0 0
      %490 = vmatmul.mubr.bf16.gmra.mrb[0].mxu0 %v349
      %v491 = vpop.f32.mrb[0].mxu0
      %v492 = vadd.f32 %v279, %v491
      %v493 = vpop.f32.mrb[0].mxu0
      %v494 = vpop.f32.mrb[0].mxu0
      %v495 = vadd.f32 %v279, %v494
      %v496 = vpop.f32.mrb[0].mxu0
      %497 = vmatprep.mubr.bf16.mxu0 0
      %498 = vmatmul.mubr.bf16.gmra.mrb[0].mxu0 %v350
      %v499 = vpop.f32.mrb[0].mxu0
      %v500 = vadd.f32 %v279, %v499
      %v501 = vpop.f32.mrb[0].mxu0
      %v502 = vpop.f32.mrb[0].mxu0
      %v503 = vadd.f32 %v279, %v502
      %v504 = vpop.f32.mrb[0].mxu0
      %505 = vmatprep.mubr.bf16.mxu0 0
      %506 = vmatmul.mubr.bf16.gmra.mrb[0].mxu0 %v351
      %v507 = vpop.f32.mrb[0].mxu0
      %v508 = vadd.f32 %v279, %v507
      %v509 = vpop.f32.mrb[0].mxu0
      %v510 = vpop.f32.mrb[0].mxu0
      %v511 = vadd.f32 %v279, %v510
      %v512 = vpop.f32.mrb[0].mxu0
      %513 = vmatprep.mubr.bf16.mxu0 0
      %514 = vmatmul.mubr.bf16.gmra.mrb[0].mxu0 %v352
      %v515 = vpop.f32.mrb[0].mxu0
      %v516 = vadd.f32 %v279, %v515
      %v517 = vpop.f32.mrb[0].mxu0
      %v518 = vpop.f32.mrb[0].mxu0
      %v519 = vadd.f32 %v279, %v518
      %v520 = vpop.f32.mrb[0].mxu0
      %521 = vmatprep.mubr.bf16.mxu0 0
      %522 = vmatmul.mubr.bf16.gmra.mrb[0].mxu0 %v353
      %v523 = vpop.f32.mrb[0].mxu0
      %v524 = vadd.f32 %v279, %v523
      %v525 = vpop.f32.mrb[0].mxu0
      %v526 = vpop.f32.mrb[0].mxu0
      %v527 = vadd.f32 %v279, %v526
      %v528 = vpop.f32.mrb[0].mxu0
      %529 = vmatprep.mubr.bf16.mxu0 0
      %530 = vmatmul.mubr.bf16.gmra.mrb[0].mxu0 %v354
      %v531 = vpop.f32.mrb[0].mxu0
      %v532 = vadd.f32 %v279, %v531
      %v533 = vpop.f32.mrb[0].mxu0
      %v534 = vpop.f32.mrb[0].mxu0
      %v535 = vadd.f32 %v279, %v534
      %v536 = vpop.f32.mrb[0].mxu0
      %537 = vmatprep.mubr.bf16.mxu0 0
      %538 = vmatmul.mubr.bf16.gmra.mrb[0].mxu0 %v355
      %v539 = vpop.f32.mrb[0].mxu0
      %v540 = vadd.f32 %v279, %v539
      %v541 = vpop.f32.mrb[0].mxu0
      %v542 = vpop.f32.mrb[0].mxu0
      %v543 = vadd.f32 %v279, %v542
      %v544 = vpop.f32.mrb[0].mxu0
      %545 = vmatprep.mubr.bf16.mxu0 0
      %546 = vmatmul.mubr.bf16.gmra.mrb[0].mxu0 %v356
      %v547 = vpop.f32.mrb[0].mxu0
      %v548 = vadd.f32 %v279, %v547
      %v549 = vpop.f32.mrb[0].mxu0
      %v550 = vpop.f32.mrb[0].mxu0
      %v551 = vadd.f32 %v279, %v550
      %v552 = vpop.f32.mrb[0].mxu0
      %553 = vmatprep.mubr.bf16.mxu0 0
      %554 = vmatmul.mubr.bf16.gmra.mrb[0].mxu0 %v357
      %v555 = vpop.f32.mrb[0].mxu0
      %v556 = vadd.f32 %v279, %v555
      %v557 = vpop.f32.mrb[0].mxu0
      %v558 = vpop.f32.mrb[0].mxu0
      %v559 = vadd.f32 %v279, %v558
      %v560 = vpop.f32.mrb[0].mxu0
      %561 = vmatprep.mubr.bf16.mxu0 0
      %562 = vmatmul.mubr.bf16.gmra.mrb[0].mxu0 %v358
      %v563 = vpop.f32.mrb[0].mxu0
      %v564 = vadd.f32 %v279, %v563
      %v565 = vpop.f32.mrb[0].mxu0
      %v566 = vpop.f32.mrb[0].mxu0
      %v567 = vadd.f32 %v279, %v566
      %v568 = vpop.f32.mrb[0].mxu0
      %569 = vmatprep.mubr.bf16.mxu0 0
      %570 = vmatmul.mubr.bf16.gmra.mrb[0].mxu0 %v359
      %v571 = vpop.f32.mrb[0].mxu0
      %v572 = vadd.f32 %v279, %v571
      %v573 = vpop.f32.mrb[0].mxu0
      %v574 = vpop.f32.mrb[0].mxu0
      %v575 = vadd.f32 %v279, %v574
      %v576 = vpop.f32.mrb[0].mxu0
      %577 = vmatprep.mubr.bf16.mxu0 0
      %578 = vmatmul.mubr.bf16.gmra.mrb[0].mxu0 %v360
      %v579 = vpop.f32.mrb[0].mxu0
      %v580 = vadd.f32 %v279, %v579
      %v581 = vpop.f32.mrb[0].mxu0
      %v582 = vpop.f32.mrb[0].mxu0
      %v583 = vadd.f32 %v279, %v582
      %v584 = vpop.f32.mrb[0].mxu0
      %585 = vdwg.mxu0
      %v586 = vmax.f32 %v460, 0.0
      %v587 = vmax.f32 %v463, 0.0
      %v588 = vmax.f32 %v468, 0.0
      %v589 = vmax.f32 %v471, 0.0
      %v590 = vmax.f32 %v476, 0.0
      %v591 = vmax.f32 %v479, 0.0
      %v592 = vmax.f32 %v484, 0.0
      %v593 = vmax.f32 %v487, 0.0
      %v594 = vmax.f32 %v492, 0.0
      %v595 = vmax.f32 %v495, 0.0
      %v596 = vmax.f32 %v500, 0.0
      %v597 = vmax.f32 %v503, 0.0
      %v598 = vmax.f32 %v508, 0.0
      %v599 = vmax.f32 %v511, 0.0
      %v600 = vmax.f32 %v516, 0.0
      %v601 = vmax.f32 %v519, 0.0
      %v602 = vmax.f32 %v524, 0.0
      %v603 = vmax.f32 %v527, 0.0
      %v604 = vmax.f32 %v532, 0.0
      %v605 = vmax.f32 %v535, 0.0
      %v606 = vmax.f32 %v540, 0.0
      %v607 = vmax.f32 %v543, 0.0
      %v608 = vmax.f32 %v548, 0.0
      %v609 = vmax.f32 %v551, 0.0
      %v610 = vmax.f32 %v556, 0.0
      %v611 = vmax.f32 %v559, 0.0
      %v612 = vmax.f32 %v564, 0.0
      %v613 = vmax.f32 %v567, 0.0
      %v614 = vmax.f32 %v572, 0.0
      %v615 = vmax.f32 %v575, 0.0
      %v616 = vmax.f32 %v580, 0.0
      %v617 = vmax.f32 %v583, 0.0
      %618 = vst [vmem:[#allocation2] sm:$0xff] 0.0
      %619 = vst [vmem:[#allocation2 + $0x8] sm:$0xff] 0.0
      %620 = vst [vmem:[#allocation2 + $0x10] sm:$0xff] 0.0
      %621 = vst [vmem:[#allocation2 + $0x18] sm:$0x1] 0.0
      %622 = vst [vmem:[#allocation2 + $0x20] sm:$0xff] 0.0
      %623 = vst [vmem:[#allocation2 + $0x28] sm:$0xff] 0.0
      %624 = vst [vmem:[#allocation2 + $0x30] sm:$0xff] 0.0
      %625 = vst [vmem:[#allocation2 + $0x38] sm:$0x1] 0.0
      %626 = vst [vmem:[#allocation2 + $0x40] sm:$0xff] 0.0
      %627 = vst [vmem:[#allocation2 + $0x48] sm:$0xff] 0.0
      %628 = vst [vmem:[#allocation2 + $0x50] sm:$0xff] 0.0
      %629 = vst [vmem:[#allocation2 + $0x58] sm:$0x1] 0.0
      %630 = vst [vmem:[#allocation2 + $0x60] sm:$0xff] 0.0
      %631 = vst [vmem:[#allocation2 + $0x68] sm:$0xff] 0.0
      %632 = vst [vmem:[#allocation2 + $0x70] sm:$0xff] 0.0
      %633 = vst [vmem:[#allocation2 + $0x78] sm:$0x1] 0.0
      %634 = vst [vmem:[#allocation2 + $0x80] sm:$0xff] 0.0
      %635 = vst [vmem:[#allocation2 + $0x88] sm:$0xff] 0.0
      %636 = vst [vmem:[#allocation2 + $0x90] sm:$0xff] 0.0
      %637 = vst [vmem:[#allocation2 + $0x98] sm:$0x1] 0.0
      %638 = vst [vmem:[#allocation2 + $0xa0] sm:$0xff] 0.0
      %639 = vst [vmem:[#allocation2 + $0xa8] sm:$0xff] 0.0
      %640 = vst [vmem:[#allocation2 + $0xb0] sm:$0xff] 0.0
      %641 = vst [vmem:[#allocation2 + $0xb8] sm:$0x1] 0.0
      %642 = vst [vmem:[#allocation2 + $0xc0] sm:$0xff] 0.0
      %643 = vst [vmem:[#allocation2 + $0xc8] sm:$0xff] 0.0
      %644 = vst [vmem:[#allocation2 + $0xd0] sm:$0xff] 0.0
      %645 = vst [vmem:[#allocation2 + $0xd8] sm:$0x1] 0.0
      %646 = vst [vmem:[#allocation2 + $0xe0] sm:$0xff] 0.0
      %647 = vst [vmem:[#allocation2 + $0xe8] sm:$0xff] 0.0
      %648 = vst [vmem:[#allocation2 + $0xf0] sm:$0xff] 0.0
      %649 = vst [vmem:[#allocation2 + $0xf8] sm:$0x1] 0.0
      %650 = vst [vmem:[#allocation2 + $0x100] sm:$0xff] 0.0
      %651 = vst [vmem:[#allocation2 + $0x108] sm:$0xff] 0.0
      %652 = vst [vmem:[#allocation2 + $0x110] sm:$0xff] 0.0
      %653 = vst [vmem:[#allocation2 + $0x118] sm:$0x1] 0.0
      %654 = vst [vmem:[#allocation2 + $0x120] sm:$0xff] 0.0
      %655 = vst [vmem:[#allocation2 + $0x128] sm:$0xff] 0.0
      %656 = vst [vmem:[#allocation2 + $0x130] sm:$0xff] 0.0
      %657 = vst [vmem:[#allocation2 + $0x138] sm:$0x1] 0.0
      %658 = vst [vmem:[#allocation2 + $0x140] sm:$0xff] 0.0
      %659 = vst [vmem:[#allocation2 + $0x148] sm:$0xff] 0.0
      %660 = vst [vmem:[#allocation2 + $0x150] sm:$0xff] 0.0
      %661 = vst [vmem:[#allocation2 + $0x158] sm:$0x1] 0.0
      %662 = vst [vmem:[#allocation2 + $0x160] sm:$0xff] 0.0
      %663 = vst [vmem:[#allocation2 + $0x168] sm:$0xff] 0.0
      %664 = vst [vmem:[#allocation2 + $0x170] sm:$0xff] 0.0
      %665 = vst [vmem:[#allocation2 + $0x178] sm:$0x1] 0.0
      %666 = vst [vmem:[#allocation2 + $0x180] sm:$0xff] 0.0
      %667 = vst [vmem:[#allocation2 + $0x188] sm:$0xff] 0.0
      %668 = vst [vmem:[#allocation2 + $0x190] sm:$0xff] 0.0
      %669 = vst [vmem:[#allocation2 + $0x198] sm:$0x1] 0.0
      %670 = vst [vmem:[#allocation2 + $0x1a0] sm:$0xff] 0.0
      %671 = vst [vmem:[#allocation2 + $0x1a8] sm:$0xff] 0.0
      %672 = vst [vmem:[#allocation2 + $0x1b0] sm:$0xff] 0.0
      %673 = vst [vmem:[#allocation2 + $0x1b8] sm:$0x1] 0.0
      %674 = vst [vmem:[#allocation2 + $0x1c0] sm:$0xff] 0.0
      %675 = vst [vmem:[#allocation2 + $0x1c8] sm:$0xff] 0.0
      %676 = vst [vmem:[#allocation2 + $0x1d0] sm:$0xff] 0.0
      %677 = vst [vmem:[#allocation2 + $0x1d8] sm:$0x1] 0.0
      %678 = vst [vmem:[#allocation2 + $0x1e0] sm:$0xff] 0.0
      %679 = vst [vmem:[#allocation2 + $0x1e8] sm:$0xff] 0.0
      %680 = vst [vmem:[#allocation2 + $0x1f0] sm:$0xff] 0.0
      %681 = vst [vmem:[#allocation2 + $0x1f8] sm:$0x1] 0.0
      %682 = vst [vmem:[#allocation2 + $0x200] sm:$0xff] 0.0
      %683 = vst [vmem:[#allocation2 + $0x208] sm:$0xff] 0.0
      %684 = vst [vmem:[#allocation2 + $0x210] sm:$0xff] 0.0
      %685 = vst [vmem:[#allocation2 + $0x218] sm:$0x1] 0.0
      %686 = vst [vmem:[#allocation2 + $0x220] sm:$0xff] 0.0
      %687 = vst [vmem:[#allocation2 + $0x228] sm:$0xff] 0.0
      %688 = vst [vmem:[#allocation2 + $0x230] sm:$0xff] 0.0
      %689 = vst [vmem:[#allocation2 + $0x238] sm:$0x1] 0.0
      %s690 = scalar_lea.vmem [#allocation2], 32
      %691 = vst [vmem:[%s690 + $0x8] sm:$0xff] %v586
      %692 = vst [vmem:[%s690 + $0x10] sm:$0xff] %v587
      %693 = vst [vmem:[%s690 + $0x28] sm:$0xff] %v588
      %694 = vst [vmem:[%s690 + $0x30] sm:$0xff] %v589
      %695 = vst [vmem:[%s690 + $0x48] sm:$0xff] %v590
      %696 = vst [vmem:[%s690 + $0x50] sm:$0xff] %v591
      %697 = vst [vmem:[%s690 + $0x68] sm:$0xff] %v592
      %698 = vst [vmem:[%s690 + $0x70] sm:$0xff] %v593
      %699 = vst [vmem:[%s690 + $0x88] sm:$0xff] %v594
      %700 = vst [vmem:[%s690 + $0x90] sm:$0xff] %v595
      %701 = vst [vmem:[%s690 + $0xa8] sm:$0xff] %v596
      %702 = vst [vmem:[%s690 + $0xb0] sm:$0xff] %v597
      %703 = vst [vmem:[%s690 + $0xc8] sm:$0xff] %v598
      %704 = vst [vmem:[%s690 + $0xd0] sm:$0xff] %v599
      %705 = vst [vmem:[%s690 + $0xe8] sm:$0xff] %v600
      %706 = vst [vmem:[%s690 + $0xf0] sm:$0xff] %v601
      %707 = vst [vmem:[%s690 + $0x108] sm:$0xff] %v602
      %708 = vst [vmem:[%s690 + $0x110] sm:$0xff] %v603
      %709 = vst [vmem:[%s690 + $0x128] sm:$0xff] %v604
      %710 = vst [vmem:[%s690 + $0x130] sm:$0xff] %v605
      %711 = vst [vmem:[%s690 + $0x148] sm:$0xff] %v606
      %712 = vst [vmem:[%s690 + $0x150] sm:$0xff] %v607
      %713 = vst [vmem:[%s690 + $0x168] sm:$0xff] %v608
      %714 = vst [vmem:[%s690 + $0x170] sm:$0xff] %v609
      %715 = vst [vmem:[%s690 + $0x188] sm:$0xff] %v610
      %716 = vst [vmem:[%s690 + $0x190] sm:$0xff] %v611
      %717 = vst [vmem:[%s690 + $0x1a8] sm:$0xff] %v612
      %718 = vst [vmem:[%s690 + $0x1b0] sm:$0xff] %v613
      %719 = vst [vmem:[%s690 + $0x1c8] sm:$0xff] %v614
      %720 = vst [vmem:[%s690 + $0x1d0] sm:$0xff] %v615
      %721 = vst [vmem:[%s690 + $0x1e8] sm:$0xff] %v616
      %722 = vst [vmem:[%s690 + $0x1f0] sm:$0xff] %v617
      %723 = vst [vmem:[#allocation3] sm:$0xff] 0.0
      %724 = vst [vmem:[#allocation3 + $0x8] sm:$0xff] 0.0
      %725 = vst [vmem:[#allocation3 + $0x10] sm:$0xff] 0.0
      %726 = vst [vmem:[#allocation3 + $0x18] sm:$0xff] 0.0
      %727 = vst [vmem:[#allocation3 + $0x20] sm:$0xff] 0.0
      %728 = vst [vmem:[#allocation3 + $0x28] sm:$0xff] 0.0
      %729 = vst [vmem:[#allocation3 + $0x30] sm:$0xff] 0.0
      %730 = vst [vmem:[#allocation3 + $0x38] sm:$0xff] 0.0
      %731 = vst [vmem:[#allocation3 + $0x40] sm:$0xff] 0.0
      %732 = vst [vmem:[#allocation3 + $0x48] sm:$0xff] 0.0
      %733 = vst [vmem:[#allocation3 + $0x50] sm:$0xff] 0.0
      %734 = vst [vmem:[#allocation3 + $0x58] sm:$0xff] 0.0
      %735 = vst [vmem:[#allocation3 + $0x60] sm:$0xff] 0.0
      %736 = vst [vmem:[#allocation3 + $0x68] sm:$0xff] 0.0
      %737 = vst [vmem:[#allocation3 + $0x70] sm:$0xff] 0.0
      %738 = vst [vmem:[#allocation3 + $0x78] sm:$0xff] 0.0
      %739 = vst [vmem:[#allocation3 + $0x80] sm:$0xff] 0.0
      %740 = vst [vmem:[#allocation3 + $0x88] sm:$0xff] 0.0
      %741 = vst [vmem:[#allocation3 + $0x90] sm:$0xff] 0.0
      %742 = vst [vmem:[#allocation3 + $0x98] sm:$0xff] 0.0
      %743 = vst [vmem:[#allocation3 + $0xa0] sm:$0xff] 0.0
      %744 = vst [vmem:[#allocation3 + $0xa8] sm:$0xff] 0.0
      %745 = vst [vmem:[#allocation3 + $0xb0] sm:$0xff] 0.0
      %746 = vst [vmem:[#allocation3 + $0xb8] sm:$0xff] 0.0
      %747 = vst [vmem:[#allocation3 + $0xc0] sm:$0xff] 0.0
      %748 = vst [vmem:[#allocation3 + $0xc8] sm:$0xff] 0.0
      %749 = vst [vmem:[#allocation3 + $0xd0] sm:$0xff] 0.0
      %750 = vst [vmem:[#allocation3 + $0xd8] sm:$0xff] 0.0
      %751 = vst [vmem:[#allocation3 + $0xe0] sm:$0xff] 0.0
      %752 = vst [vmem:[#allocation3 + $0xe8] sm:$0xff] 0.0
      %753 = vst [vmem:[#allocation3 + $0xf0] sm:$0xff] 0.0
      %754 = vst [vmem:[#allocation3 + $0xf8] sm:$0xff] 0.0
      %v755 = vld [vmem:[#allocation2 + $0x7] sm:$0xff]
      %v756 = vld [vmem:[#allocation2 + $0xf] sm:$0xff]
      %v757 = vld [vmem:[#allocation2 + $0x27] sm:$0xff]
      %v758 = vld [vmem:[#allocation2 + $0x2f] sm:$0xff]
      %v759 = vld [vmem:[#allocation2 + $0x47] sm:$0xff]
      %v760 = vld [vmem:[#allocation2 + $0x4f] sm:$0xff]
      %v761 = vld [vmem:[#allocation2 + $0x67] sm:$0xff]
      %v762 = vld [vmem:[#allocation2 + $0x6f] sm:$0xff]
      %v763 = vld [vmem:[#allocation2 + $0x87] sm:$0xff]
      %v764 = vld [vmem:[#allocation2 + $0x8f] sm:$0xff]
      %v765 = vld [vmem:[#allocation2 + $0xa7] sm:$0xff]
      %v766 = vld [vmem:[#allocation2 + $0xaf] sm:$0xff]
      %v767 = vld [vmem:[#allocation2 + $0xc7] sm:$0xff]
      %v768 = vld [vmem:[#allocation2 + $0xcf] sm:$0xff]
      %v769 = vld [vmem:[#allocation2 + $0xe7] sm:$0xff]
      %v770 = vld [vmem:[#allocation2 + $0xef] sm:$0xff]
      %v771 = vld [vmem:[#allocation2 + $0x107] sm:$0xff]
      %v772 = vld [vmem:[#allocation2 + $0x10f] sm:$0xff]
      %v773 = vld [vmem:[#allocation2 + $0x127] sm:$0xff]
      %v774 = vld [vmem:[#allocation2 + $0x12f] sm:$0xff]
      %v775 = vld [vmem:[#allocation2 + $0x147] sm:$0xff]
      %v776 = vld [vmem:[#allocation2 + $0x14f] sm:$0xff]
      %v777 = vld [vmem:[#allocation2 + $0x167] sm:$0xff]
      %v778 = vld [vmem:[#allocation2 + $0x16f] sm:$0xff]
      %v779 = vld [vmem:[#allocation2 + $0x187] sm:$0xff]
      %v780 = vld [vmem:[#allocation2 + $0x18f] sm:$0xff]
      %v781 = vld [vmem:[#allocation2 + $0x1a7] sm:$0xff]
      %v782 = vld [vmem:[#allocation2 + $0x1af] sm:$0xff]
      %v783 = vld [vmem:[#allocation2 + $0x1c7] sm:$0xff]
      %v784 = vld [vmem:[#allocation2 + $0x1cf] sm:$0xff]
      %v785 = vld [vmem:[#allocation2 + $0x1e7] sm:$0xff]
      %v786 = vld [vmem:[#allocation2 + $0x1ef] sm:$0xff]
      %v787 = vld [vmem:[#allocation3] sm:$0xff]
      %v788 = vld [vmem:[#allocation3 + $0x8] sm:$0xff]
      %v789 = vld [vmem:[#allocation3 + $0x10] sm:$0xff]
      %v790 = vld [vmem:[#allocation3 + $0x18] sm:$0xff]
      %v791 = vld [vmem:[#allocation3 + $0x20] sm:$0xff]
      %v792 = vld [vmem:[#allocation3 + $0x28] sm:$0xff]
      %v793 = vld [vmem:[#allocation3 + $0x30] sm:$0xff]
      %v794 = vld [vmem:[#allocation3 + $0x38] sm:$0xff]
      %v795 = vld [vmem:[#allocation3 + $0x40] sm:$0xff]
      %v796 = vld [vmem:[#allocation3 + $0x48] sm:$0xff]
      %v797 = vld [vmem:[#allocation3 + $0x50] sm:$0xff]
      %v798 = vld [vmem:[#allocation3 + $0x58] sm:$0xff]
      %v799 = vld [vmem:[#allocation3 + $0x60] sm:$0xff]
      %v800 = vld [vmem:[#allocation3 + $0x68] sm:$0xff]
      %v801 = vld [vmem:[#allocation3 + $0x70] sm:$0xff]
      %v802 = vld [vmem:[#allocation3 + $0x78] sm:$0xff]
      %v803 = vld [vmem:[#allocation3 + $0x80] sm:$0xff]
      %v804 = vld [vmem:[#allocation3 + $0x88] sm:$0xff]
      %v805 = vld [vmem:[#allocation3 + $0x90] sm:$0xff]
      %v806 = vld [vmem:[#allocation3 + $0x98] sm:$0xff]
      %v807 = vld [vmem:[#allocation3 + $0xa0] sm:$0xff]
      %v808 = vld [vmem:[#allocation3 + $0xa8] sm:$0xff]
      %v809 = vld [vmem:[#allocation3 + $0xb0] sm:$0xff]
      %v810 = vld [vmem:[#allocation3 + $0xb8] sm:$0xff]
      %v811 = vld [vmem:[#allocation3 + $0xc0] sm:$0xff]
      %v812 = vld [vmem:[#allocation3 + $0xc8] sm:$0xff]
      %v813 = vld [vmem:[#allocation3 + $0xd0] sm:$0xff]
      %v814 = vld [vmem:[#allocation3 + $0xd8] sm:$0xff]
      %v815 = vld [vmem:[#allocation3 + $0xe0] sm:$0xff]
      %v816 = vld [vmem:[#allocation3 + $0xe8] sm:$0xff]
      %v817 = vld [vmem:[#allocation3 + $0xf0] sm:$0xff]
      %v818 = vld [vmem:[#allocation3 + $0xf8] sm:$0xff]
      %v819 = vpack.c.bf16 %v756, %v755
      %v820 = vpack.c.bf16 %v758, %v757
      %v821 = vpack.c.bf16 %v760, %v759
      %v822 = vpack.c.bf16 %v762, %v761
      %v823 = vpack.c.bf16 %v764, %v763
      %v824 = vpack.c.bf16 %v766, %v765
      %v825 = vpack.c.bf16 %v768, %v767
      %v826 = vpack.c.bf16 %v770, %v769
      %v827 = vpack.c.bf16 %v772, %v771
      %v828 = vpack.c.bf16 %v774, %v773
      %v829 = vpack.c.bf16 %v776, %v775
      %v830 = vpack.c.bf16 %v778, %v777
      %v831 = vpack.c.bf16 %v780, %v779
      %v832 = vpack.c.bf16 %v782, %v781
      %v833 = vpack.c.bf16 %v784, %v783
      %v834 = vpack.c.bf16 %v786, %v785
      %v835 = vld [vmem:[%s3] sm:$0xf]
      %v836 = vld [vmem:[%s3 + $0x4] sm:$0xf]
      %v837 = vld [vmem:[%s3 + $0x8] sm:$0xf]
      %v838 = vld [vmem:[%s3 + $0xc] sm:$0xf]
      %v839 = vld [vmem:[%s3 + $0x10] sm:$0xf]
      %v840 = vld [vmem:[%s3 + $0x14] sm:$0xf]
      %v841 = vld [vmem:[%s3 + $0x18] sm:$0xf]
      %v842 = vld [vmem:[%s3 + $0x1c] sm:$0xf]
      %v843 = vld [vmem:[%s3 + $0x20] sm:$0xf]
      %v844 = vld [vmem:[%s3 + $0x24] sm:$0xf]
      %v845 = vld [vmem:[%s3 + $0x28] sm:$0xf]
      %v846 = vld [vmem:[%s3 + $0x2c] sm:$0xf]
      %v847 = vld [vmem:[%s3 + $0x30] sm:$0xf]
      %v848 = vld [vmem:[%s3 + $0x34] sm:$0xf]
      %v849 = vld [vmem:[%s3 + $0x38] sm:$0xf]
      %v850 = vld [vmem:[%s3 + $0x3c] sm:$0xf]
      %v867 = vunpack.c.l.b16 %v835
      %v868 = vunpack.c.l.b16 %v836
      %v869 = vunpack.c.l.b16 %v837
      %v870 = vunpack.c.l.b16 %v838
      %v871 = vunpack.c.l.b16 %v839
      %v872 = vunpack.c.l.b16 %v840
      %v873 = vunpack.c.l.b16 %v841
      %v874 = vunpack.c.l.b16 %v842
      %v875 = vunpack.c.l.b16 %v843
      %v876 = vunpack.c.l.b16 %v844
      %v877 = vunpack.c.l.b16 %v845
      %v878 = vunpack.c.l.b16 %v846
      %v879 = vunpack.c.l.b16 %v847
      %v880 = vunpack.c.l.b16 %v848
      %v881 = vunpack.c.l.b16 %v849
      %v882 = vunpack.c.l.b16 %v850
      %v883 = vpack.c.b16 %v868, %v867
      %v884 = vpack.c.b16 %v870, %v869
      %v885 = vpack.c.b16 %v872, %v871
      %v886 = vpack.c.b16 %v874, %v873
      %v887 = vpack.c.b16 %v876, %v875
      %v888 = vpack.c.b16 %v878, %v877
      %v889 = vpack.c.b16 %v880, %v879
      %v890 = vpack.c.b16 %v882, %v881
      %899 = vmatprep.subr.bf16.mxu0 0
      %900 = vmatpush1.bf16.msra.mxu0 %v883
      %901 = vmatprep.subr.bf16.mxu0 0
      %902 = vmatpush1.bf16.msra.mxu0 %v884
      %903 = vmatprep.subr.bf16.mxu0 0
      %904 = vmatpush1.bf16.msra.mxu0 %v885
      %905 = vmatprep.subr.bf16.mxu0 0
      %906 = vmatpush1.bf16.msra.mxu0 %v886
      %907 = vmatprep.subr.bf16.mxu0 0
      %908 = vmatpush1.bf16.msra.mxu0 %v887
      %909 = vmatprep.subr.bf16.mxu0 0
      %910 = vmatpush1.bf16.msra.mxu0 %v888
      %911 = vmatprep.subr.bf16.mxu0 0
      %912 = vmatpush1.bf16.msra.mxu0 %v889
      %913 = vmatprep.subr.bf16.mxu0 0
      %914 = vmatpush1.bf16.msra.mxu0 %v890
      %915 = vmatprep.subr.bf16.mxu0 0
      %916 = vmatpush1.bf16.msra.mxu0 0
      %917 = vmatprep.subr.bf16.mxu0 0
      %918 = vmatpush1.bf16.msra.mxu0 0
      %919 = vmatprep.subr.bf16.mxu0 0
      %920 = vmatpush1.bf16.msra.mxu0 0
      %921 = vmatprep.subr.bf16.mxu0 0
      %922 = vmatpush1.bf16.msra.mxu0 0
      %923 = vmatprep.subr.bf16.mxu0 0
      %924 = vmatpush1.bf16.msra.mxu0 0
      %925 = vmatprep.subr.bf16.mxu0 0
      %926 = vmatpush1.bf16.msra.mxu0 0
      %927 = vmatprep.subr.bf16.mxu0 0
      %928 = vmatpush1.bf16.msra.mxu0 0
      %929 = vmatprep.subr.bf16.mxu0 0
      %930 = vmatpush1.bf16.msra.mxu0 0
      %931 = vmatprep.mubr.bf16.mxu0 0
      %932 = vmatmul.mubr.bf16.gmra.mrb[0].mxu0 %v819
      %v933 = vpop.f32.mrb[0].mxu0
      %v934 = vadd.f32 0.0, %v933
      %v935 = vpop.f32.mrb[0].mxu0
      %v936 = vpop.f32.mrb[0].mxu0
      %v937 = vadd.f32 0.0, %v936
      %v938 = vpop.f32.mrb[0].mxu0
      %939 = vmatprep.mubr.bf16.mxu0 0
      %940 = vmatmul.mubr.bf16.gmra.mrb[0].mxu0 %v820
      %v941 = vpop.f32.mrb[0].mxu0
      %v942 = vadd.f32 0.0, %v941
      %v943 = vpop.f32.mrb[0].mxu0
      %v944 = vpop.f32.mrb[0].mxu0
      %v945 = vadd.f32 0.0, %v944
      %v946 = vpop.f32.mrb[0].mxu0
      %947 = vmatprep.mubr.bf16.mxu0 0
      %948 = vmatmul.mubr.bf16.gmra.mrb[0].mxu0 %v821
      %v949 = vpop.f32.mrb[0].mxu0
      %v950 = vadd.f32 0.0, %v949
      %v951 = vpop.f32.mrb[0].mxu0
      %v952 = vpop.f32.mrb[0].mxu0
      %v953 = vadd.f32 0.0, %v952
      %v954 = vpop.f32.mrb[0].mxu0
      %955 = vmatprep.mubr.bf16.mxu0 0
      %956 = vmatmul.mubr.bf16.gmra.mrb[0].mxu0 %v822
      %v957 = vpop.f32.mrb[0].mxu0
      %v958 = vadd.f32 0.0, %v957
      %v959 = vpop.f32.mrb[0].mxu0
      %v960 = vpop.f32.mrb[0].mxu0
      %v961 = vadd.f32 0.0, %v960
      %v962 = vpop.f32.mrb[0].mxu0
      %963 = vmatprep.mubr.bf16.mxu0 0
      %964 = vmatmul.mubr.bf16.gmra.mrb[0].mxu0 %v823
      %v965 = vpop.f32.mrb[0].mxu0
      %v966 = vadd.f32 0.0, %v965
      %v967 = vpop.f32.mrb[0].mxu0
      %v968 = vpop.f32.mrb[0].mxu0
      %v969 = vadd.f32 0.0, %v968
      %v970 = vpop.f32.mrb[0].mxu0
      %971 = vmatprep.mubr.bf16.mxu0 0
      %972 = vmatmul.mubr.bf16.gmra.mrb[0].mxu0 %v824
      %v973 = vpop.f32.mrb[0].mxu0
      %v974 = vadd.f32 0.0, %v973
      %v975 = vpop.f32.mrb[0].mxu0
      %v976 = vpop.f32.mrb[0].mxu0
      %v977 = vadd.f32 0.0, %v976
      %v978 = vpop.f32.mrb[0].mxu0
      %979 = vmatprep.mubr.bf16.mxu0 0
      %980 = vmatmul.mubr.bf16.gmra.mrb[0].mxu0 %v825
      %v981 = vpop.f32.mrb[0].mxu0
      %v982 = vadd.f32 0.0, %v981
      %v983 = vpop.f32.mrb[0].mxu0
      %v984 = vpop.f32.mrb[0].mxu0
      %v985 = vadd.f32 0.0, %v984
      %v986 = vpop.f32.mrb[0].mxu0
      %987 = vmatprep.mubr.bf16.mxu0 0
      %988 = vmatmul.mubr.bf16.gmra.mrb[0].mxu0 %v826
      %v989 = vpop.f32.mrb[0].mxu0
      %v990 = vadd.f32 0.0, %v989
      %v991 = vpop.f32.mrb[0].mxu0
      %v992 = vpop.f32.mrb[0].mxu0
      %v993 = vadd.f32 0.0, %v992
      %v994 = vpop.f32.mrb[0].mxu0
      %995 = vmatprep.mubr.bf16.mxu0 0
      %996 = vmatmul.mubr.bf16.gmra.mrb[0].mxu0 %v827
      %v997 = vpop.f32.mrb[0].mxu0
      %v998 = vadd.f32 0.0, %v997
      %v999 = vpop.f32.mrb[0].mxu0
      %v1000 = vpop.f32.mrb[0].mxu0
      %v1001 = vadd.f32 0.0, %v1000
      %v1002 = vpop.f32.mrb[0].mxu0
      %1003 = vmatprep.mubr.bf16.mxu0 0
      %1004 = vmatmul.mubr.bf16.gmra.mrb[0].mxu0 %v828
      %v1005 = vpop.f32.mrb[0].mxu0
      %v1006 = vadd.f32 0.0, %v1005
      %v1007 = vpop.f32.mrb[0].mxu0
      %v1008 = vpop.f32.mrb[0].mxu0
      %v1009 = vadd.f32 0.0, %v1008
      %v1010 = vpop.f32.mrb[0].mxu0
      %1011 = vmatprep.mubr.bf16.mxu0 0
      %1012 = vmatmul.mubr.bf16.gmra.mrb[0].mxu0 %v829
      %v1013 = vpop.f32.mrb[0].mxu0
      %v1014 = vadd.f32 0.0, %v1013
      %v1015 = vpop.f32.mrb[0].mxu0
      %v1016 = vpop.f32.mrb[0].mxu0
      %v1017 = vadd.f32 0.0, %v1016
      %v1018 = vpop.f32.mrb[0].mxu0
      %1019 = vmatprep.mubr.bf16.mxu0 0
      %1020 = vmatmul.mubr.bf16.gmra.mrb[0].mxu0 %v830
      %v1021 = vpop.f32.mrb[0].mxu0
      %v1022 = vadd.f32 0.0, %v1021
      %v1023 = vpop.f32.mrb[0].mxu0
      %v1024 = vpop.f32.mrb[0].mxu0
      %v1025 = vadd.f32 0.0, %v1024
      %v1026 = vpop.f32.mrb[0].mxu0
      %1027 = vmatprep.mubr.bf16.mxu0 0
      %1028 = vmatmul.mubr.bf16.gmra.mrb[0].mxu0 %v831
      %v1029 = vpop.f32.mrb[0].mxu0
      %v1030 = vadd.f32 0.0, %v1029
      %v1031 = vpop.f32.mrb[0].mxu0
      %v1032 = vpop.f32.mrb[0].mxu0
      %v1033 = vadd.f32 0.0, %v1032
      %v1034 = vpop.f32.mrb[0].mxu0
      %1035 = vmatprep.mubr.bf16.mxu0 0
      %1036 = vmatmul.mubr.bf16.gmra.mrb[0].mxu0 %v832
      %v1037 = vpop.f32.mrb[0].mxu0
      %v1038 = vadd.f32 0.0, %v1037
      %v1039 = vpop.f32.mrb[0].mxu0
      %v1040 = vpop.f32.mrb[0].mxu0
      %v1041 = vadd.f32 0.0, %v1040
      %v1042 = vpop.f32.mrb[0].mxu0
      %1043 = vmatprep.mubr.bf16.mxu0 0
      %1044 = vmatmul.mubr.bf16.gmra.mrb[0].mxu0 %v833
      %v1045 = vpop.f32.mrb[0].mxu0
      %v1046 = vadd.f32 0.0, %v1045
      %v1047 = vpop.f32.mrb[0].mxu0
      %v1048 = vpop.f32.mrb[0].mxu0
      %v1049 = vadd.f32 0.0, %v1048
      %v1050 = vpop.f32.mrb[0].mxu0
      %1051 = vmatprep.mubr.bf16.mxu0 0
      %1052 = vmatmul.mubr.bf16.gmra.mrb[0].mxu0 %v834
      %v1053 = vpop.f32.mrb[0].mxu0
      %v1054 = vadd.f32 0.0, %v1053
      %v1055 = vpop.f32.mrb[0].mxu0
      %v1056 = vpop.f32.mrb[0].mxu0
      %v1057 = vadd.f32 0.0, %v1056
      %v1058 = vpop.f32.mrb[0].mxu0
      %1059 = vdwg.mxu0
      %v1060 = vadd.f32 %v787, %v934
      %v1061 = vadd.f32 %v788, %v937
      %v1062 = vadd.f32 %v789, %v942
      %v1063 = vadd.f32 %v790, %v945
      %v1064 = vadd.f32 %v791, %v950
      %v1065 = vadd.f32 %v792, %v953
      %v1066 = vadd.f32 %v793, %v958
      %v1067 = vadd.f32 %v794, %v961
      %v1068 = vadd.f32 %v795, %v966
      %v1069 = vadd.f32 %v796, %v969
      %v1070 = vadd.f32 %v797, %v974
      %v1071 = vadd.f32 %v798, %v977
      %v1072 = vadd.f32 %v799, %v982
      %v1073 = vadd.f32 %v800, %v985
      %v1074 = vadd.f32 %v801, %v990
      %v1075 = vadd.f32 %v802, %v993
      %v1076 = vadd.f32 %v803, %v998
      %v1077 = vadd.f32 %v804, %v1001
      %v1078 = vadd.f32 %v805, %v1006
      %v1079 = vadd.f32 %v806, %v1009
      %v1080 = vadd.f32 %v807, %v1014
      %v1081 = vadd.f32 %v808, %v1017
      %v1082 = vadd.f32 %v809, %v1022
      %v1083 = vadd.f32 %v810, %v1025
      %v1084 = vadd.f32 %v811, %v1030
      %v1085 = vadd.f32 %v812, %v1033
      %v1086 = vadd.f32 %v813, %v1038
      %v1087 = vadd.f32 %v814, %v1041
      %v1088 = vadd.f32 %v815, %v1046
      %v1089 = vadd.f32 %v816, %v1049
      %v1090 = vadd.f32 %v817, %v1054
      %v1091 = vadd.f32 %v818, %v1057
      %1092 = vst [vmem:[#allocation3] sm:$0xff] %v1060
      %1093 = vst [vmem:[#allocation3 + $0x8] sm:$0xff] %v1061
      %1094 = vst [vmem:[#allocation3 + $0x10] sm:$0xff] %v1062
      %1095 = vst [vmem:[#allocation3 + $0x18] sm:$0xff] %v1063
      %1096 = vst [vmem:[#allocation3 + $0x20] sm:$0xff] %v1064
      %1097 = vst [vmem:[#allocation3 + $0x28] sm:$0xff] %v1065
      %1098 = vst [vmem:[#allocation3 + $0x30] sm:$0xff] %v1066
      %1099 = vst [vmem:[#allocation3 + $0x38] sm:$0xff] %v1067
      %1100 = vst [vmem:[#allocation3 + $0x40] sm:$0xff] %v1068
      %1101 = vst [vmem:[#allocation3 + $0x48] sm:$0xff] %v1069
      %1102 = vst [vmem:[#allocation3 + $0x50] sm:$0xff] %v1070
      %1103 = vst [vmem:[#allocation3 + $0x58] sm:$0xff] %v1071
      %1104 = vst [vmem:[#allocation3 + $0x60] sm:$0xff] %v1072
      %1105 = vst [vmem:[#allocation3 + $0x68] sm:$0xff] %v1073
      %1106 = vst [vmem:[#allocation3 + $0x70] sm:$0xff] %v1074
      %1107 = vst [vmem:[#allocation3 + $0x78] sm:$0xff] %v1075
      %1108 = vst [vmem:[#allocation3 + $0x80] sm:$0xff] %v1076
      %1109 = vst [vmem:[#allocation3 + $0x88] sm:$0xff] %v1077
      %1110 = vst [vmem:[#allocation3 + $0x90] sm:$0xff] %v1078
      %1111 = vst [vmem:[#allocation3 + $0x98] sm:$0xff] %v1079
      %1112 = vst [vmem:[#allocation3 + $0xa0] sm:$0xff] %v1080
      %1113 = vst [vmem:[#allocation3 + $0xa8] sm:$0xff] %v1081
      %1114 = vst [vmem:[#allocation3 + $0xb0] sm:$0xff] %v1082
      %1115 = vst [vmem:[#allocation3 + $0xb8] sm:$0xff] %v1083
      %1116 = vst [vmem:[#allocation3 + $0xc0] sm:$0xff] %v1084
      %1117 = vst [vmem:[#allocation3 + $0xc8] sm:$0xff] %v1085
      %1118 = vst [vmem:[#allocation3 + $0xd0] sm:$0xff] %v1086
      %1119 = vst [vmem:[#allocation3 + $0xd8] sm:$0xff] %v1087
      %1120 = vst [vmem:[#allocation3 + $0xe0] sm:$0xff] %v1088
      %1121 = vst [vmem:[#allocation3 + $0xe8] sm:$0xff] %v1089
      %1122 = vst [vmem:[#allocation3 + $0xf0] sm:$0xff] %v1090
      %1123 = vst [vmem:[#allocation3 + $0xf8] sm:$0xff] %v1091
      %v1124 = vld [vmem:[#allocation2 + $0x8] sm:$0xff]
      %v1125 = vld [vmem:[#allocation2 + $0x10] sm:$0xff]
      %v1126 = vld [vmem:[#allocation2 + $0x28] sm:$0xff]
      %v1127 = vld [vmem:[#allocation2 + $0x30] sm:$0xff]
      %v1128 = vld [vmem:[#allocation2 + $0x48] sm:$0xff]
      %v1129 = vld [vmem:[#allocation2 + $0x50] sm:$0xff]
      %v1130 = vld [vmem:[#allocation2 + $0x68] sm:$0xff]
      %v1131 = vld [vmem:[#allocation2 + $0x70] sm:$0xff]
      %v1132 = vld [vmem:[#allocation2 + $0x88] sm:$0xff]
      %v1133 = vld [vmem:[#allocation2 + $0x90] sm:$0xff]
      %v1134 = vld [vmem:[#allocation2 + $0xa8] sm:$0xff]
      %v1135 = vld [vmem:[#allocation2 + $0xb0] sm:$0xff]
      %v1136 = vld [vmem:[#allocation2 + $0xc8] sm:$0xff]
      %v1137 = vld [vmem:[#allocation2 + $0xd0] sm:$0xff]
      %v1138 = vld [vmem:[#allocation2 + $0xe8] sm:$0xff]
      %v1139 = vld [vmem:[#allocation2 + $0xf0] sm:$0xff]
      %v1140 = vld [vmem:[#allocation2 + $0x108] sm:$0xff]
      %v1141 = vld [vmem:[#allocation2 + $0x110] sm:$0xff]
      %v1142 = vld [vmem:[#allocation2 + $0x128] sm:$0xff]
      %v1143 = vld [vmem:[#allocation2 + $0x130] sm:$0xff]
      %v1144 = vld [vmem:[#allocation2 + $0x148] sm:$0xff]
      %v1145 = vld [vmem:[#allocation2 + $0x150] sm:$0xff]
      %v1146 = vld [vmem:[#allocation2 + $0x168] sm:$0xff]
      %v1147 = vld [vmem:[#allocation2 + $0x170] sm:$0xff]
      %v1148 = vld [vmem:[#allocation2 + $0x188] sm:$0xff]
      %v1149 = vld [vmem:[#allocation2 + $0x190] sm:$0xff]
      %v1150 = vld [vmem:[#allocation2 + $0x1a8] sm:$0xff]
      %v1151 = vld [vmem:[#allocation2 + $0x1b0] sm:$0xff]
      %v1152 = vld [vmem:[#allocation2 + $0x1c8] sm:$0xff]
      %v1153 = vld [vmem:[#allocation2 + $0x1d0] sm:$0xff]
      %v1154 = vld [vmem:[#allocation2 + $0x1e8] sm:$0xff]
      %v1155 = vld [vmem:[#allocation2 + $0x1f0] sm:$0xff]
      %v1156 = vld [vmem:[#allocation3] sm:$0xff]
      %v1157 = vld [vmem:[#allocation3 + $0x8] sm:$0xff]
      %v1158 = vld [vmem:[#allocation3 + $0x10] sm:$0xff]
      %v1159 = vld [vmem:[#allocation3 + $0x18] sm:$0xff]
      %v1160 = vld [vmem:[#allocation3 + $0x20] sm:$0xff]
      %v1161 = vld [vmem:[#allocation3 + $0x28] sm:$0xff]
      %v1162 = vld [vmem:[#allocation3 + $0x30] sm:$0xff]
      %v1163 = vld [vmem:[#allocation3 + $0x38] sm:$0xff]
      %v1164 = vld [vmem:[#allocation3 + $0x40] sm:$0xff]
      %v1165 = vld [vmem:[#allocation3 + $0x48] sm:$0xff]
      %v1166 = vld [vmem:[#allocation3 + $0x50] sm:$0xff]
      %v1167 = vld [vmem:[#allocation3 + $0x58] sm:$0xff]
      %v1168 = vld [vmem:[#allocation3 + $0x60] sm:$0xff]
      %v1169 = vld [vmem:[#allocation3 + $0x68] sm:$0xff]
      %v1170 = vld [vmem:[#allocation3 + $0x70] sm:$0xff]
      %v1171 = vld [vmem:[#allocation3 + $0x78] sm:$0xff]
      %v1172 = vld [vmem:[#allocation3 + $0x80] sm:$0xff]
      %v1173 = vld [vmem:[#allocation3 + $0x88] sm:$0xff]
      %v1174 = vld [vmem:[#allocation3 + $0x90] sm:$0xff]
      %v1175 = vld [vmem:[#allocation3 + $0x98] sm:$0xff]
      %v1176 = vld [vmem:[#allocation3 + $0xa0] sm:$0xff]
      %v1177 = vld [vmem:[#allocation3 + $0xa8] sm:$0xff]
      %v1178 = vld [vmem:[#allocation3 + $0xb0] sm:$0xff]
      %v1179 = vld [vmem:[#allocation3 + $0xb8] sm:$0xff]
      %v1180 = vld [vmem:[#allocation3 + $0xc0] sm:$0xff]
      %v1181 = vld [vmem:[#allocation3 + $0xc8] sm:$0xff]
      %v1182 = vld [vmem:[#allocation3 + $0xd0] sm:$0xff]
      %v1183 = vld [vmem:[#allocation3 + $0xd8] sm:$0xff]
      %v1184 = vld [vmem:[#allocation3 + $0xe0] sm:$0xff]
      %v1185 = vld [vmem:[#allocation3 + $0xe8] sm:$0xff]
      %v1186 = vld [vmem:[#allocation3 + $0xf0] sm:$0xff]
      %v1187 = vld [vmem:[#allocation3 + $0xf8] sm:$0xff]
      %v1188 = vpack.c.bf16 %v1125, %v1124
      %v1189 = vpack.c.bf16 %v1127, %v1126
      %v1190 = vpack.c.bf16 %v1129, %v1128
      %v1191 = vpack.c.bf16 %v1131, %v1130
      %v1192 = vpack.c.bf16 %v1133, %v1132
      %v1193 = vpack.c.bf16 %v1135, %v1134
      %v1194 = vpack.c.bf16 %v1137, %v1136
      %v1195 = vpack.c.bf16 %v1139, %v1138
      %v1196 = vpack.c.bf16 %v1141, %v1140
      %v1197 = vpack.c.bf16 %v1143, %v1142
      %v1198 = vpack.c.bf16 %v1145, %v1144
      %v1199 = vpack.c.bf16 %v1147, %v1146
      %v1200 = vpack.c.bf16 %v1149, %v1148
      %v1201 = vpack.c.bf16 %v1151, %v1150
      %v1202 = vpack.c.bf16 %v1153, %v1152
      %v1203 = vpack.c.bf16 %v1155, %v1154
      %s1204 = scalar_lea.vmem %s3, 64
      %v1205 = vld [vmem:[%s1204] sm:$0xf]
      %v1206 = vld [vmem:[%s1204 + $0x4] sm:$0xf]
      %v1207 = vld [vmem:[%s1204 + $0x8] sm:$0xf]
      %v1208 = vld [vmem:[%s1204 + $0xc] sm:$0xf]
      %v1209 = vld [vmem:[%s1204 + $0x10] sm:$0xf]
      %v1210 = vld [vmem:[%s1204 + $0x14] sm:$0xf]
      %v1211 = vld [vmem:[%s1204 + $0x18] sm:$0xf]
      %v1212 = vld [vmem:[%s1204 + $0x1c] sm:$0xf]
      %v1213 = vld [vmem:[%s1204 + $0x20] sm:$0xf]
      %v1214 = vld [vmem:[%s1204 + $0x24] sm:$0xf]
      %v1215 = vld [vmem:[%s1204 + $0x28] sm:$0xf]
      %v1216 = vld [vmem:[%s1204 + $0x2c] sm:$0xf]
      %v1217 = vld [vmem:[%s1204 + $0x30] sm:$0xf]
      %v1218 = vld [vmem:[%s1204 + $0x34] sm:$0xf]
      %v1219 = vld [vmem:[%s1204 + $0x38] sm:$0xf]
      %v1220 = vld [vmem:[%s1204 + $0x3c] sm:$0xf]
      %v1237 = vunpack.c.l.b16 %v1205
      %v1238 = vunpack.c.l.b16 %v1206
      %v1239 = vunpack.c.l.b16 %v1207
      %v1240 = vunpack.c.l.b16 %v1208
      %v1241 = vunpack.c.l.b16 %v1209
      %v1242 = vunpack.c.l.b16 %v1210
      %v1243 = vunpack.c.l.b16 %v1211
      %v1244 = vunpack.c.l.b16 %v1212
      %v1245 = vunpack.c.l.b16 %v1213
      %v1246 = vunpack.c.l.b16 %v1214
      %v1247 = vunpack.c.l.b16 %v1215
      %v1248 = vunpack.c.l.b16 %v1216
      %v1249 = vunpack.c.l.b16 %v1217
      %v1250 = vunpack.c.l.b16 %v1218
      %v1251 = vunpack.c.l.b16 %v1219
      %v1252 = vunpack.c.l.b16 %v1220
      %v1253 = vpack.c.b16 %v1238, %v1237
      %v1254 = vpack.c.b16 %v1240, %v1239
      %v1255 = vpack.c.b16 %v1242, %v1241
      %v1256 = vpack.c.b16 %v1244, %v1243
      %v1257 = vpack.c.b16 %v1246, %v1245
      %v1258 = vpack.c.b16 %v1248, %v1247
      %v1259 = vpack.c.b16 %v1250, %v1249
      %v1260 = vpack.c.b16 %v1252, %v1251
      %1269 = vmatprep.subr.bf16.mxu0 0
      %1270 = vmatpush1.bf16.msra.mxu0 %v1253
      %1271 = vmatprep.subr.bf16.mxu0 0
      %1272 = vmatpush1.bf16.msra.mxu0 %v1254
      %1273 = vmatprep.subr.bf16.mxu0 0
      %1274 = vmatpush1.bf16.msra.mxu0 %v1255
      %1275 = vmatprep.subr.bf16.mxu0 0
      %1276 = vmatpush1.bf16.msra.mxu0 %v1256
      %1277 = vmatprep.subr.bf16.mxu0 0
      %1278 = vmatpush1.bf16.msra.mxu0 %v1257
      %1279 = vmatprep.subr.bf16.mxu0 0
      %1280 = vmatpush1.bf16.msra.mxu0 %v1258
      %1281 = vmatprep.subr.bf16.mxu0 0
      %1282 = vmatpush1.bf16.msra.mxu0 %v1259
      %1283 = vmatprep.subr.bf16.mxu0 0
      %1284 = vmatpush1.bf16.msra.mxu0 %v1260
      %1285 = vmatprep.subr.bf16.mxu0 0
      %1286 = vmatpush1.bf16.msra.mxu0 0
      %1287 = vmatprep.subr.bf16.mxu0 0
      %1288 = vmatpush1.bf16.msra.mxu0 0
      %1289 = vmatprep.subr.bf16.mxu0 0
      %1290 = vmatpush1.bf16.msra.mxu0 0
      %1291 = vmatprep.subr.bf16.mxu0 0
      %1292 = vmatpush1.bf16.msra.mxu0 0
      %1293 = vmatprep.subr.bf16.mxu0 0
      %1294 = vmatpush1.bf16.msra.mxu0 0
      %1295 = vmatprep.subr.bf16.mxu0 0
      %1296 = vmatpush1.bf16.msra.mxu0 0
      %1297 = vmatprep.subr.bf16.mxu0 0
      %1298 = vmatpush1.bf16.msra.mxu0 0
      %1299 = vmatprep.subr.bf16.mxu0 0
      %1300 = vmatpush1.bf16.msra.mxu0 0
      %1301 = vmatprep.mubr.bf16.mxu0 0
      %1302 = vmatmul.mubr.bf16.gmra.mrb[0].mxu0 %v1188
      %v1303 = vpop.f32.mrb[0].mxu0
      %v1304 = vadd.f32 0.0, %v1303
      %v1305 = vpop.f32.mrb[0].mxu0
      %v1306 = vpop.f32.mrb[0].mxu0
      %v1307 = vadd.f32 0.0, %v1306
      %v1308 = vpop.f32.mrb[0].mxu0
      %1309 = vmatprep.mubr.bf16.mxu0 0
      %1310 = vmatmul.mubr.bf16.gmra.mrb[0].mxu0 %v1189
      %v1311 = vpop.f32.mrb[0].mxu0
      %v1312 = vadd.f32 0.0, %v1311
      %v1313 = vpop.f32.mrb[0].mxu0
      %v1314 = vpop.f32.mrb[0].mxu0
      %v1315 = vadd.f32 0.0, %v1314
      %v1316 = vpop.f32.mrb[0].mxu0
      %1317 = vmatprep.mubr.bf16.mxu0 0
      %1318 = vmatmul.mubr.bf16.gmra.mrb[0].mxu0 %v1190
      %v1319 = vpop.f32.mrb[0].mxu0
      %v1320 = vadd.f32 0.0, %v1319
      %v1321 = vpop.f32.mrb[0].mxu0
      %v1322 = vpop.f32.mrb[0].mxu0
      %v1323 = vadd.f32 0.0, %v1322
      %v1324 = vpop.f32.mrb[0].mxu0
      %1325 = vmatprep.mubr.bf16.mxu0 0
      %1326 = vmatmul.mubr.bf16.gmra.mrb[0].mxu0 %v1191
      %v1327 = vpop.f32.mrb[0].mxu0
      %v1328 = vadd.f32 0.0, %v1327
      %v1329 = vpop.f32.mrb[0].mxu0
      %v1330 = vpop.f32.mrb[0].mxu0
      %v1331 = vadd.f32 0.0, %v1330
      %v1332 = vpop.f32.mrb[0].mxu0
      %1333 = vmatprep.mubr.bf16.mxu0 0
      %1334 = vmatmul.mubr.bf16.gmra.mrb[0].mxu0 %v1192
      %v1335 = vpop.f32.mrb[0].mxu0
      %v1336 = vadd.f32 0.0, %v1335
      %v1337 = vpop.f32.mrb[0].mxu0
      %v1338 = vpop.f32.mrb[0].mxu0
      %v1339 = vadd.f32 0.0, %v1338
      %v1340 = vpop.f32.mrb[0].mxu0
      %1341 = vmatprep.mubr.bf16.mxu0 0
      %1342 = vmatmul.mubr.bf16.gmra.mrb[0].mxu0 %v1193
      %v1343 = vpop.f32.mrb[0].mxu0
      %v1344 = vadd.f32 0.0, %v1343
      %v1345 = vpop.f32.mrb[0].mxu0
      %v1346 = vpop.f32.mrb[0].mxu0
      %v1347 = vadd.f32 0.0, %v1346
      %v1348 = vpop.f32.mrb[0].mxu0
      %1349 = vmatprep.mubr.bf16.mxu0 0
      %1350 = vmatmul.mubr.bf16.gmra.mrb[0].mxu0 %v1194
      %v1351 = vpop.f32.mrb[0].mxu0
      %v1352 = vadd.f32 0.0, %v1351
      %v1353 = vpop.f32.mrb[0].mxu0
      %v1354 = vpop.f32.mrb[0].mxu0
      %v1355 = vadd.f32 0.0, %v1354
      %v1356 = vpop.f32.mrb[0].mxu0
      %1357 = vmatprep.mubr.bf16.mxu0 0
      %1358 = vmatmul.mubr.bf16.gmra.mrb[0].mxu0 %v1195
      %v1359 = vpop.f32.mrb[0].mxu0
      %v1360 = vadd.f32 0.0, %v1359
      %v1361 = vpop.f32.mrb[0].mxu0
      %v1362 = vpop.f32.mrb[0].mxu0
      %v1363 = vadd.f32 0.0, %v1362
      %v1364 = vpop.f32.mrb[0].mxu0
      %1365 = vmatprep.mubr.bf16.mxu0 0
      %1366 = vmatmul.mubr.bf16.gmra.mrb[0].mxu0 %v1196
      %v1367 = vpop.f32.mrb[0].mxu0
      %v1368 = vadd.f32 0.0, %v1367
      %v1369 = vpop.f32.mrb[0].mxu0
      %v1370 = vpop.f32.mrb[0].mxu0
      %v1371 = vadd.f32 0.0, %v1370
      %v1372 = vpop.f32.mrb[0].mxu0
      %1373 = vmatprep.mubr.bf16.mxu0 0
      %1374 = vmatmul.mubr.bf16.gmra.mrb[0].mxu0 %v1197
      %v1375 = vpop.f32.mrb[0].mxu0
      %v1376 = vadd.f32 0.0, %v1375
      %v1377 = vpop.f32.mrb[0].mxu0
      %v1378 = vpop.f32.mrb[0].mxu0
      %v1379 = vadd.f32 0.0, %v1378
      %v1380 = vpop.f32.mrb[0].mxu0
      %1381 = vmatprep.mubr.bf16.mxu0 0
      %1382 = vmatmul.mubr.bf16.gmra.mrb[0].mxu0 %v1198
      %v1383 = vpop.f32.mrb[0].mxu0
      %v1384 = vadd.f32 0.0, %v1383
      %v1385 = vpop.f32.mrb[0].mxu0
      %v1386 = vpop.f32.mrb[0].mxu0
      %v1387 = vadd.f32 0.0, %v1386
      %v1388 = vpop.f32.mrb[0].mxu0
      %1389 = vmatprep.mubr.bf16.mxu0 0
      %1390 = vmatmul.mubr.bf16.gmra.mrb[0].mxu0 %v1199
      %v1391 = vpop.f32.mrb[0].mxu0
      %v1392 = vadd.f32 0.0, %v1391
      %v1393 = vpop.f32.mrb[0].mxu0
      %v1394 = vpop.f32.mrb[0].mxu0
      %v1395 = vadd.f32 0.0, %v1394
      %v1396 = vpop.f32.mrb[0].mxu0
      %1397 = vmatprep.mubr.bf16.mxu0 0
      %1398 = vmatmul.mubr.bf16.gmra.mrb[0].mxu0 %v1200
      %v1399 = vpop.f32.mrb[0].mxu0
      %v1400 = vadd.f32 0.0, %v1399
      %v1401 = vpop.f32.mrb[0].mxu0
      %v1402 = vpop.f32.mrb[0].mxu0
      %v1403 = vadd.f32 0.0, %v1402
      %v1404 = vpop.f32.mrb[0].mxu0
      %1405 = vmatprep.mubr.bf16.mxu0 0
      %1406 = vmatmul.mubr.bf16.gmra.mrb[0].mxu0 %v1201
      %v1407 = vpop.f32.mrb[0].mxu0
      %v1408 = vadd.f32 0.0, %v1407
      %v1409 = vpop.f32.mrb[0].mxu0
      %v1410 = vpop.f32.mrb[0].mxu0
      %v1411 = vadd.f32 0.0, %v1410
      %v1412 = vpop.f32.mrb[0].mxu0
      %1413 = vmatprep.mubr.bf16.mxu0 0
      %1414 = vmatmul.mubr.bf16.gmra.mrb[0].mxu0 %v1202
      %v1415 = vpop.f32.mrb[0].mxu0
      %v1416 = vadd.f32 0.0, %v1415
      %v1417 = vpop.f32.mrb[0].mxu0
      %v1418 = vpop.f32.mrb[0].mxu0
      %v1419 = vadd.f32 0.0, %v1418
      %v1420 = vpop.f32.mrb[0].mxu0
      %1421 = vmatprep.mubr.bf16.mxu0 0
      %1422 = vmatmul.mubr.bf16.gmra.mrb[0].mxu0 %v1203
      %v1423 = vpop.f32.mrb[0].mxu0
      %v1424 = vadd.f32 0.0, %v1423
      %v1425 = vpop.f32.mrb[0].mxu0
      %v1426 = vpop.f32.mrb[0].mxu0
      %v1427 = vadd.f32 0.0, %v1426
      %v1428 = vpop.f32.mrb[0].mxu0
      %1429 = vdwg.mxu0
      %v1430 = vadd.f32 %v1156, %v1304
      %v1431 = vadd.f32 %v1157, %v1307
      %v1432 = vadd.f32 %v1158, %v1312
      %v1433 = vadd.f32 %v1159, %v1315
      %v1434 = vadd.f32 %v1160, %v1320
      %v1435 = vadd.f32 %v1161, %v1323
      %v1436 = vadd.f32 %v1162, %v1328
      %v1437 = vadd.f32 %v1163, %v1331
      %v1438 = vadd.f32 %v1164, %v1336
      %v1439 = vadd.f32 %v1165, %v1339
      %v1440 = vadd.f32 %v1166, %v1344
      %v1441 = vadd.f32 %v1167, %v1347
      %v1442 = vadd.f32 %v1168, %v1352
      %v1443 = vadd.f32 %v1169, %v1355
      %v1444 = vadd.f32 %v1170, %v1360
      %v1445 = vadd.f32 %v1171, %v1363
      %v1446 = vadd.f32 %v1172, %v1368
      %v1447 = vadd.f32 %v1173, %v1371
      %v1448 = vadd.f32 %v1174, %v1376
      %v1449 = vadd.f32 %v1175, %v1379
      %v1450 = vadd.f32 %v1176, %v1384
      %v1451 = vadd.f32 %v1177, %v1387
      %v1452 = vadd.f32 %v1178, %v1392
      %v1453 = vadd.f32 %v1179, %v1395
      %v1454 = vadd.f32 %v1180, %v1400
      %v1455 = vadd.f32 %v1181, %v1403
      %v1456 = vadd.f32 %v1182, %v1408
      %v1457 = vadd.f32 %v1183, %v1411
      %v1458 = vadd.f32 %v1184, %v1416
      %v1459 = vadd.f32 %v1185, %v1419
      %v1460 = vadd.f32 %v1186, %v1424
      %v1461 = vadd.f32 %v1187, %v1427
      %1462 = vst [vmem:[#allocation3] sm:$0xff] %v1430
      %1463 = vst [vmem:[#allocation3 + $0x8] sm:$0xff] %v1431
      %1464 = vst [vmem:[#allocation3 + $0x10] sm:$0xff] %v1432
      %1465 = vst [vmem:[#allocation3 + $0x18] sm:$0xff] %v1433
      %1466 = vst [vmem:[#allocation3 + $0x20] sm:$0xff] %v1434
      %1467 = vst [vmem:[#allocation3 + $0x28] sm:$0xff] %v1435
      %1468 = vst [vmem:[#allocation3 + $0x30] sm:$0xff] %v1436
      %1469 = vst [vmem:[#allocation3 + $0x38] sm:$0xff] %v1437
      %1470 = vst [vmem:[#allocation3 + $0x40] sm:$0xff] %v1438
      %1471 = vst [vmem:[#allocation3 + $0x48] sm:$0xff] %v1439
      %1472 = vst [vmem:[#allocation3 + $0x50] sm:$0xff] %v1440
      %1473 = vst [vmem:[#allocation3 + $0x58] sm:$0xff] %v1441
      %1474 = vst [vmem:[#allocation3 + $0x60] sm:$0xff] %v1442
      %1475 = vst [vmem:[#allocation3 + $0x68] sm:$0xff] %v1443
      %1476 = vst [vmem:[#allocation3 + $0x70] sm:$0xff] %v1444
      %1477 = vst [vmem:[#allocation3 + $0x78] sm:$0xff] %v1445
      %1478 = vst [vmem:[#allocation3 + $0x80] sm:$0xff] %v1446
      %1479 = vst [vmem:[#allocation3 + $0x88] sm:$0xff] %v1447
      %1480 = vst [vmem:[#allocation3 + $0x90] sm:$0xff] %v1448
      %1481 = vst [vmem:[#allocation3 + $0x98] sm:$0xff] %v1449
      %1482 = vst [vmem:[#allocation3 + $0xa0] sm:$0xff] %v1450
      %1483 = vst [vmem:[#allocation3 + $0xa8] sm:$0xff] %v1451
      %1484 = vst [vmem:[#allocation3 + $0xb0] sm:$0xff] %v1452
      %1485 = vst [vmem:[#allocation3 + $0xb8] sm:$0xff] %v1453
      %1486 = vst [vmem:[#allocation3 + $0xc0] sm:$0xff] %v1454
      %1487 = vst [vmem:[#allocation3 + $0xc8] sm:$0xff] %v1455
      %1488 = vst [vmem:[#allocation3 + $0xd0] sm:$0xff] %v1456
      %1489 = vst [vmem:[#allocation3 + $0xd8] sm:$0xff] %v1457
      %1490 = vst [vmem:[#allocation3 + $0xe0] sm:$0xff] %v1458
      %1491 = vst [vmem:[#allocation3 + $0xe8] sm:$0xff] %v1459
      %1492 = vst [vmem:[#allocation3 + $0xf0] sm:$0xff] %v1460
      %1493 = vst [vmem:[#allocation3 + $0xf8] sm:$0xff] %v1461
      %v1494 = vld [vmem:[#allocation2 + $0x9] sm:$0xff]
      %v1495 = vld [vmem:[#allocation2 + $0x11] sm:$0xff]
      %v1496 = vld [vmem:[#allocation2 + $0x29] sm:$0xff]
      %v1497 = vld [vmem:[#allocation2 + $0x31] sm:$0xff]
      %v1498 = vld [vmem:[#allocation2 + $0x49] sm:$0xff]
      %v1499 = vld [vmem:[#allocation2 + $0x51] sm:$0xff]
      %v1500 = vld [vmem:[#allocation2 + $0x69] sm:$0xff]
      %v1501 = vld [vmem:[#allocation2 + $0x71] sm:$0xff]
      %v1502 = vld [vmem:[#allocation2 + $0x89] sm:$0xff]
      %v1503 = vld [vmem:[#allocation2 + $0x91] sm:$0xff]
      %v1504 = vld [vmem:[#allocation2 + $0xa9] sm:$0xff]
      %v1505 = vld [vmem:[#allocation2 + $0xb1] sm:$0xff]
      %v1506 = vld [vmem:[#allocation2 + $0xc9] sm:$0xff]
      %v1507 = vld [vmem:[#allocation2 + $0xd1] sm:$0xff]
      %v1508 = vld [vmem:[#allocation2 + $0xe9] sm:$0xff]
      %v1509 = vld [vmem:[#allocation2 + $0xf1] sm:$0xff]
      %v1510 = vld [vmem:[#allocation2 + $0x109] sm:$0xff]
      %v1511 = vld [vmem:[#allocation2 + $0x111] sm:$0xff]
      %v1512 = vld [vmem:[#allocation2 + $0x129] sm:$0xff]
      %v1513 = vld [vmem:[#allocation2 + $0x131] sm:$0xff]
      %v1514 = vld [vmem:[#allocation2 + $0x149] sm:$0xff]
      %v1515 = vld [vmem:[#allocation2 + $0x151] sm:$0xff]
      %v1516 = vld [vmem:[#allocation2 + $0x169] sm:$0xff]
      %v1517 = vld [vmem:[#allocation2 + $0x171] sm:$0xff]
      %v1518 = vld [vmem:[#allocation2 + $0x189] sm:$0xff]
      %v1519 = vld [vmem:[#allocation2 + $0x191] sm:$0xff]
      %v1520 = vld [vmem:[#allocation2 + $0x1a9] sm:$0xff]
      %v1521 = vld [vmem:[#allocation2 + $0x1b1] sm:$0xff]
      %v1522 = vld [vmem:[#allocation2 + $0x1c9] sm:$0xff]
      %v1523 = vld [vmem:[#allocation2 + $0x1d1] sm:$0xff]
      %v1524 = vld [vmem:[#allocation2 + $0x1e9] sm:$0xff]
      %v1525 = vld [vmem:[#allocation2 + $0x1f1] sm:$0xff]
      %v1526 = vld [vmem:[#allocation3] sm:$0xff]
      %v1527 = vld [vmem:[#allocation3 + $0x8] sm:$0xff]
      %v1528 = vld [vmem:[#allocation3 + $0x10] sm:$0xff]
      %v1529 = vld [vmem:[#allocation3 + $0x18] sm:$0xff]
      %v1530 = vld [vmem:[#allocation3 + $0x20] sm:$0xff]
      %v1531 = vld [vmem:[#allocation3 + $0x28] sm:$0xff]
      %v1532 = vld [vmem:[#allocation3 + $0x30] sm:$0xff]
      %v1533 = vld [vmem:[#allocation3 + $0x38] sm:$0xff]
      %v1534 = vld [vmem:[#allocation3 + $0x40] sm:$0xff]
      %v1535 = vld [vmem:[#allocation3 + $0x48] sm:$0xff]
      %v1536 = vld [vmem:[#allocation3 + $0x50] sm:$0xff]
      %v1537 = vld [vmem:[#allocation3 + $0x58] sm:$0xff]
      %v1538 = vld [vmem:[#allocation3 + $0x60] sm:$0xff]
      %v1539 = vld [vmem:[#allocation3 + $0x68] sm:$0xff]
      %v1540 = vld [vmem:[#allocation3 + $0x70] sm:$0xff]
      %v1541 = vld [vmem:[#allocation3 + $0x78] sm:$0xff]
      %v1542 = vld [vmem:[#allocation3 + $0x80] sm:$0xff]
      %v1543 = vld [vmem:[#allocation3 + $0x88] sm:$0xff]
      %v1544 = vld [vmem:[#allocation3 + $0x90] sm:$0xff]
      %v1545 = vld [vmem:[#allocation3 + $0x98] sm:$0xff]
      %v1546 = vld [vmem:[#allocation3 + $0xa0] sm:$0xff]
      %v1547 = vld [vmem:[#allocation3 + $0xa8] sm:$0xff]
      %v1548 = vld [vmem:[#allocation3 + $0xb0] sm:$0xff]
      %v1549 = vld [vmem:[#allocation3 + $0xb8] sm:$0xff]
      %v1550 = vld [vmem:[#allocation3 + $0xc0] sm:$0xff]
      %v1551 = vld [vmem:[#allocation3 + $0xc8] sm:$0xff]
      %v1552 = vld [vmem:[#allocation3 + $0xd0] sm:$0xff]
      %v1553 = vld [vmem:[#allocation3 + $0xd8] sm:$0xff]
      %v1554 = vld [vmem:[#allocation3 + $0xe0] sm:$0xff]
      %v1555 = vld [vmem:[#allocation3 + $0xe8] sm:$0xff]
      %v1556 = vld [vmem:[#allocation3 + $0xf0] sm:$0xff]
      %v1557 = vld [vmem:[#allocation3 + $0xf8] sm:$0xff]
      %v1558 = vpack.c.bf16 %v1495, %v1494
      %v1559 = vpack.c.bf16 %v1497, %v1496
      %v1560 = vpack.c.bf16 %v1499, %v1498
      %v1561 = vpack.c.bf16 %v1501, %v1500
      %v1562 = vpack.c.bf16 %v1503, %v1502
      %v1563 = vpack.c.bf16 %v1505, %v1504
      %v1564 = vpack.c.bf16 %v1507, %v1506
      %v1565 = vpack.c.bf16 %v1509, %v1508
      %v1566 = vpack.c.bf16 %v1511, %v1510
      %v1567 = vpack.c.bf16 %v1513, %v1512
      %v1568 = vpack.c.bf16 %v1515, %v1514
      %v1569 = vpack.c.bf16 %v1517, %v1516
      %v1570 = vpack.c.bf16 %v1519, %v1518
      %v1571 = vpack.c.bf16 %v1521, %v1520
      %v1572 = vpack.c.bf16 %v1523, %v1522
      %v1573 = vpack.c.bf16 %v1525, %v1524
      %s1574 = scalar_lea.vmem %s3, 128
      %v1575 = vld [vmem:[%s1574] sm:$0xf]
      %v1576 = vld [vmem:[%s1574 + $0x4] sm:$0xf]
      %v1577 = vld [vmem:[%s1574 + $0x8] sm:$0xf]
      %v1578 = vld [vmem:[%s1574 + $0xc] sm:$0xf]
      %v1579 = vld [vmem:[%s1574 + $0x10] sm:$0xf]
      %v1580 = vld [vmem:[%s1574 + $0x14] sm:$0xf]
      %v1581 = vld [vmem:[%s1574 + $0x18] sm:$0xf]
      %v1582 = vld [vmem:[%s1574 + $0x1c] sm:$0xf]
      %v1583 = vld [vmem:[%s1574 + $0x20] sm:$0xf]
      %v1584 = vld [vmem:[%s1574 + $0x24] sm:$0xf]
      %v1585 = vld [vmem:[%s1574 + $0x28] sm:$0xf]
      %v1586 = vld [vmem:[%s1574 + $0x2c] sm:$0xf]
      %v1587 = vld [vmem:[%s1574 + $0x30] sm:$0xf]
      %v1588 = vld [vmem:[%s1574 + $0x34] sm:$0xf]
      %v1589 = vld [vmem:[%s1574 + $0x38] sm:$0xf]
      %v1590 = vld [vmem:[%s1574 + $0x3c] sm:$0xf]
      %v1607 = vunpack.c.l.b16 %v1575
      %v1608 = vunpack.c.l.b16 %v1576
      %v1609 = vunpack.c.l.b16 %v1577
      %v1610 = vunpack.c.l.b16 %v1578
      %v1611 = vunpack.c.l.b16 %v1579
      %v1612 = vunpack.c.l.b16 %v1580
      %v1613 = vunpack.c.l.b16 %v1581
      %v1614 = vunpack.c.l.b16 %v1582
      %v1615 = vunpack.c.l.b16 %v1583
      %v1616 = vunpack.c.l.b16 %v1584
      %v1617 = vunpack.c.l.b16 %v1585
      %v1618 = vunpack.c.l.b16 %v1586
      %v1619 = vunpack.c.l.b16 %v1587
      %v1620 = vunpack.c.l.b16 %v1588
      %v1621 = vunpack.c.l.b16 %v1589
      %v1622 = vunpack.c.l.b16 %v1590
      %v1623 = vpack.c.b16 %v1608, %v1607
      %v1624 = vpack.c.b16 %v1610, %v1609
      %v1625 = vpack.c.b16 %v1612, %v1611
      %v1626 = vpack.c.b16 %v1614, %v1613
      %v1627 = vpack.c.b16 %v1616, %v1615
      %v1628 = vpack.c.b16 %v1618, %v1617
      %v1629 = vpack.c.b16 %v1620, %v1619
      %v1630 = vpack.c.b16 %v1622, %v1621
      %1639 = vmatprep.subr.bf16.mxu0 0
      %1640 = vmatpush1.bf16.msra.mxu0 %v1623
      %1641 = vmatprep.subr.bf16.mxu0 0
      %1642 = vmatpush1.bf16.msra.mxu0 %v1624
      %1643 = vmatprep.subr.bf16.mxu0 0
      %1644 = vmatpush1.bf16.msra.mxu0 %v1625
      %1645 = vmatprep.subr.bf16.mxu0 0
      %1646 = vmatpush1.bf16.msra.mxu0 %v1626
      %1647 = vmatprep.subr.bf16.mxu0 0
      %1648 = vmatpush1.bf16.msra.mxu0 %v1627
      %1649 = vmatprep.subr.bf16.mxu0 0
      %1650 = vmatpush1.bf16.msra.mxu0 %v1628
      %1651 = vmatprep.subr.bf16.mxu0 0
      %1652 = vmatpush1.bf16.msra.mxu0 %v1629
      %1653 = vmatprep.subr.bf16.mxu0 0
      %1654 = vmatpush1.bf16.msra.mxu0 %v1630
      %1655 = vmatprep.subr.bf16.mxu0 0
      %1656 = vmatpush1.bf16.msra.mxu0 0
      %1657 = vmatprep.subr.bf16.mxu0 0
      %1658 = vmatpush1.bf16.msra.mxu0 0
      %1659 = vmatprep.subr.bf16.mxu0 0
      %1660 = vmatpush1.bf16.msra.mxu0 0
      %1661 = vmatprep.subr.bf16.mxu0 0
      %1662 = vmatpush1.bf16.msra.mxu0 0
      %1663 = vmatprep.subr.bf16.mxu0 0
      %1664 = vmatpush1.bf16.msra.mxu0 0
      %1665 = vmatprep.subr.bf16.mxu0 0
      %1666 = vmatpush1.bf16.msra.mxu0 0
      %1667 = vmatprep.subr.bf16.mxu0 0
      %1668 = vmatpush1.bf16.msra.mxu0 0
      %1669 = vmatprep.subr.bf16.mxu0 0
      %1670 = vmatpush1.bf16.msra.mxu0 0
      %1671 = vmatprep.mubr.bf16.mxu0 0
      %1672 = vmatmul.mubr.bf16.gmra.mrb[0].mxu0 %v1558
      %v1673 = vpop.f32.mrb[0].mxu0
      %v1674 = vadd.f32 0.0, %v1673
      %v1675 = vpop.f32.mrb[0].mxu0
      %v1676 = vpop.f32.mrb[0].mxu0
      %v1677 = vadd.f32 0.0, %v1676
      %v1678 = vpop.f32.mrb[0].mxu0
      %1679 = vmatprep.mubr.bf16.mxu0 0
      %1680 = vmatmul.mubr.bf16.gmra.mrb[0].mxu0 %v1559
      %v1681 = vpop.f32.mrb[0].mxu0
      %v1682 = vadd.f32 0.0, %v1681
      %v1683 = vpop.f32.mrb[0].mxu0
      %v1684 = vpop.f32.mrb[0].mxu0
      %v1685 = vadd.f32 0.0, %v1684
      %v1686 = vpop.f32.mrb[0].mxu0
      %1687 = vmatprep.mubr.bf16.mxu0 0
      %1688 = vmatmul.mubr.bf16.gmra.mrb[0].mxu0 %v1560
      %v1689 = vpop.f32.mrb[0].mxu0
      %v1690 = vadd.f32 0.0, %v1689
      %v1691 = vpop.f32.mrb[0].mxu0
      %v1692 = vpop.f32.mrb[0].mxu0
      %v1693 = vadd.f32 0.0, %v1692
      %v1694 = vpop.f32.mrb[0].mxu0
      %1695 = vmatprep.mubr.bf16.mxu0 0
      %1696 = vmatmul.mubr.bf16.gmra.mrb[0].mxu0 %v1561
      %v1697 = vpop.f32.mrb[0].mxu0
      %v1698 = vadd.f32 0.0, %v1697
      %v1699 = vpop.f32.mrb[0].mxu0
      %v1700 = vpop.f32.mrb[0].mxu0
      %v1701 = vadd.f32 0.0, %v1700
      %v1702 = vpop.f32.mrb[0].mxu0
      %1703 = vmatprep.mubr.bf16.mxu0 0
      %1704 = vmatmul.mubr.bf16.gmra.mrb[0].mxu0 %v1562
      %v1705 = vpop.f32.mrb[0].mxu0
      %v1706 = vadd.f32 0.0, %v1705
      %v1707 = vpop.f32.mrb[0].mxu0
      %v1708 = vpop.f32.mrb[0].mxu0
      %v1709 = vadd.f32 0.0, %v1708
      %v1710 = vpop.f32.mrb[0].mxu0
      %1711 = vmatprep.mubr.bf16.mxu0 0
      %1712 = vmatmul.mubr.bf16.gmra.mrb[0].mxu0 %v1563
      %v1713 = vpop.f32.mrb[0].mxu0
      %v1714 = vadd.f32 0.0, %v1713
      %v1715 = vpop.f32.mrb[0].mxu0
      %v1716 = vpop.f32.mrb[0].mxu0
      %v1717 = vadd.f32 0.0, %v1716
      %v1718 = vpop.f32.mrb[0].mxu0
      %1719 = vmatprep.mubr.bf16.mxu0 0
      %1720 = vmatmul.mubr.bf16.gmra.mrb[0].mxu0 %v1564
      %v1721 = vpop.f32.mrb[0].mxu0
      %v1722 = vadd.f32 0.0, %v1721
      %v1723 = vpop.f32.mrb[0].mxu0
      %v1724 = vpop.f32.mrb[0].mxu0
      %v1725 = vadd.f32 0.0, %v1724
      %v1726 = vpop.f32.mrb[0].mxu0
      %1727 = vmatprep.mubr.bf16.mxu0 0
      %1728 = vmatmul.mubr.bf16.gmra.mrb[0].mxu0 %v1565
      %v1729 = vpop.f32.mrb[0].mxu0
      %v1730 = vadd.f32 0.0, %v1729
      %v1731 = vpop.f32.mrb[0].mxu0
      %v1732 = vpop.f32.mrb[0].mxu0
      %v1733 = vadd.f32 0.0, %v1732
      %v1734 = vpop.f32.mrb[0].mxu0
      %1735 = vmatprep.mubr.bf16.mxu0 0
      %1736 = vmatmul.mubr.bf16.gmra.mrb[0].mxu0 %v1566
      %v1737 = vpop.f32.mrb[0].mxu0
      %v1738 = vadd.f32 0.0, %v1737
      %v1739 = vpop.f32.mrb[0].mxu0
      %v1740 = vpop.f32.mrb[0].mxu0
      %v1741 = vadd.f32 0.0, %v1740
      %v1742 = vpop.f32.mrb[0].mxu0
      %1743 = vmatprep.mubr.bf16.mxu0 0
      %1744 = vmatmul.mubr.bf16.gmra.mrb[0].mxu0 %v1567
      %v1745 = vpop.f32.mrb[0].mxu0
      %v1746 = vadd.f32 0.0, %v1745
      %v1747 = vpop.f32.mrb[0].mxu0
      %v1748 = vpop.f32.mrb[0].mxu0
      %v1749 = vadd.f32 0.0, %v1748
      %v1750 = vpop.f32.mrb[0].mxu0
      %1751 = vmatprep.mubr.bf16.mxu0 0
      %1752 = vmatmul.mubr.bf16.gmra.mrb[0].mxu0 %v1568
      %v1753 = vpop.f32.mrb[0].mxu0
      %v1754 = vadd.f32 0.0, %v1753
      %v1755 = vpop.f32.mrb[0].mxu0
      %v1756 = vpop.f32.mrb[0].mxu0
      %v1757 = vadd.f32 0.0, %v1756
      %v1758 = vpop.f32.mrb[0].mxu0
      %1759 = vmatprep.mubr.bf16.mxu0 0
      %1760 = vmatmul.mubr.bf16.gmra.mrb[0].mxu0 %v1569
      %v1761 = vpop.f32.mrb[0].mxu0
      %v1762 = vadd.f32 0.0, %v1761
      %v1763 = vpop.f32.mrb[0].mxu0
      %v1764 = vpop.f32.mrb[0].mxu0
      %v1765 = vadd.f32 0.0, %v1764
      %v1766 = vpop.f32.mrb[0].mxu0
      %1767 = vmatprep.mubr.bf16.mxu0 0
      %1768 = vmatmul.mubr.bf16.gmra.mrb[0].mxu0 %v1570
      %v1769 = vpop.f32.mrb[0].mxu0
      %v1770 = vadd.f32 0.0, %v1769
      %v1771 = vpop.f32.mrb[0].mxu0
      %v1772 = vpop.f32.mrb[0].mxu0
      %v1773 = vadd.f32 0.0, %v1772
      %v1774 = vpop.f32.mrb[0].mxu0
      %1775 = vmatprep.mubr.bf16.mxu0 0
      %1776 = vmatmul.mubr.bf16.gmra.mrb[0].mxu0 %v1571
      %v1777 = vpop.f32.mrb[0].mxu0
      %v1778 = vadd.f32 0.0, %v1777
      %v1779 = vpop.f32.mrb[0].mxu0
      %v1780 = vpop.f32.mrb[0].mxu0
      %v1781 = vadd.f32 0.0, %v1780
      %v1782 = vpop.f32.mrb[0].mxu0
      %1783 = vmatprep.mubr.bf16.mxu0 0
      %1784 = vmatmul.mubr.bf16.gmra.mrb[0].mxu0 %v1572
      %v1785 = vpop.f32.mrb[0].mxu0
      %v1786 = vadd.f32 0.0, %v1785
      %v1787 = vpop.f32.mrb[0].mxu0
      %v1788 = vpop.f32.mrb[0].mxu0
      %v1789 = vadd.f32 0.0, %v1788
      %v1790 = vpop.f32.mrb[0].mxu0
      %1791 = vmatprep.mubr.bf16.mxu0 0
      %1792 = vmatmul.mubr.bf16.gmra.mrb[0].mxu0 %v1573
      %v1793 = vpop.f32.mrb[0].mxu0
      %v1794 = vadd.f32 0.0, %v1793
      %v1795 = vpop.f32.mrb[0].mxu0
      %v1796 = vpop.f32.mrb[0].mxu0
      %v1797 = vadd.f32 0.0, %v1796
      %v1798 = vpop.f32.mrb[0].mxu0
      %1799 = vdwg.mxu0
      %v1800 = vadd.f32 %v1526, %v1674
      %v1801 = vadd.f32 %v1527, %v1677
      %v1802 = vadd.f32 %v1528, %v1682
      %v1803 = vadd.f32 %v1529, %v1685
      %v1804 = vadd.f32 %v1530, %v1690
      %v1805 = vadd.f32 %v1531, %v1693
      %v1806 = vadd.f32 %v1532, %v1698
      %v1807 = vadd.f32 %v1533, %v1701
      %v1808 = vadd.f32 %v1534, %v1706
      %v1809 = vadd.f32 %v1535, %v1709
      %v1810 = vadd.f32 %v1536, %v1714
      %v1811 = vadd.f32 %v1537, %v1717
      %v1812 = vadd.f32 %v1538, %v1722
      %v1813 = vadd.f32 %v1539, %v1725
      %v1814 = vadd.f32 %v1540, %v1730
      %v1815 = vadd.f32 %v1541, %v1733
      %v1816 = vadd.f32 %v1542, %v1738
      %v1817 = vadd.f32 %v1543, %v1741
      %v1818 = vadd.f32 %v1544, %v1746
      %v1819 = vadd.f32 %v1545, %v1749
      %v1820 = vadd.f32 %v1546, %v1754
      %v1821 = vadd.f32 %v1547, %v1757
      %v1822 = vadd.f32 %v1548, %v1762
      %v1823 = vadd.f32 %v1549, %v1765
      %v1824 = vadd.f32 %v1550, %v1770
      %v1825 = vadd.f32 %v1551, %v1773
      %v1826 = vadd.f32 %v1552, %v1778
      %v1827 = vadd.f32 %v1553, %v1781
      %v1828 = vadd.f32 %v1554, %v1786
      %v1829 = vadd.f32 %v1555, %v1789
      %v1830 = vadd.f32 %v1556, %v1794
      %v1831 = vadd.f32 %v1557, %v1797
      %1832 = vst [vmem:[#allocation3] sm:$0xff] %v1800
      %1833 = vst [vmem:[#allocation3 + $0x8] sm:$0xff] %v1801
      %1834 = vst [vmem:[#allocation3 + $0x10] sm:$0xff] %v1802
      %1835 = vst [vmem:[#allocation3 + $0x18] sm:$0xff] %v1803
      %1836 = vst [vmem:[#allocation3 + $0x20] sm:$0xff] %v1804
      %1837 = vst [vmem:[#allocation3 + $0x28] sm:$0xff] %v1805
      %1838 = vst [vmem:[#allocation3 + $0x30] sm:$0xff] %v1806
      %1839 = vst [vmem:[#allocation3 + $0x38] sm:$0xff] %v1807
      %1840 = vst [vmem:[#allocation3 + $0x40] sm:$0xff] %v1808
      %1841 = vst [vmem:[#allocation3 + $0x48] sm:$0xff] %v1809
      %1842 = vst [vmem:[#allocation3 + $0x50] sm:$0xff] %v1810
      %1843 = vst [vmem:[#allocation3 + $0x58] sm:$0xff] %v1811
      %1844 = vst [vmem:[#allocation3 + $0x60] sm:$0xff] %v1812
      %1845 = vst [vmem:[#allocation3 + $0x68] sm:$0xff] %v1813
      %1846 = vst [vmem:[#allocation3 + $0x70] sm:$0xff] %v1814
      %1847 = vst [vmem:[#allocation3 + $0x78] sm:$0xff] %v1815
      %1848 = vst [vmem:[#allocation3 + $0x80] sm:$0xff] %v1816
      %1849 = vst [vmem:[#allocation3 + $0x88] sm:$0xff] %v1817
      %1850 = vst [vmem:[#allocation3 + $0x90] sm:$0xff] %v1818
      %1851 = vst [vmem:[#allocation3 + $0x98] sm:$0xff] %v1819
      %1852 = vst [vmem:[#allocation3 + $0xa0] sm:$0xff] %v1820
      %1853 = vst [vmem:[#allocation3 + $0xa8] sm:$0xff] %v1821
      %1854 = vst [vmem:[#allocation3 + $0xb0] sm:$0xff] %v1822
      %1855 = vst [vmem:[#allocation3 + $0xb8] sm:$0xff] %v1823
      %1856 = vst [vmem:[#allocation3 + $0xc0] sm:$0xff] %v1824
      %1857 = vst [vmem:[#allocation3 + $0xc8] sm:$0xff] %v1825
      %1858 = vst [vmem:[#allocation3 + $0xd0] sm:$0xff] %v1826
      %1859 = vst [vmem:[#allocation3 + $0xd8] sm:$0xff] %v1827
      %1860 = vst [vmem:[#allocation3 + $0xe0] sm:$0xff] %v1828
      %1861 = vst [vmem:[#allocation3 + $0xe8] sm:$0xff] %v1829
      %1862 = vst [vmem:[#allocation3 + $0xf0] sm:$0xff] %v1830
      %1863 = vst [vmem:[#allocation3 + $0xf8] sm:$0xff] %v1831
      %v1864 = vld [vmem:[%s690 + $0x7] sm:$0xff]
      %v1865 = vld [vmem:[%s690 + $0xf] sm:$0xff]
      %v1866 = vld [vmem:[%s690 + $0x27] sm:$0xff]
      %v1867 = vld [vmem:[%s690 + $0x2f] sm:$0xff]
      %v1868 = vld [vmem:[%s690 + $0x47] sm:$0xff]
      %v1869 = vld [vmem:[%s690 + $0x4f] sm:$0xff]
      %v1870 = vld [vmem:[%s690 + $0x67] sm:$0xff]
      %v1871 = vld [vmem:[%s690 + $0x6f] sm:$0xff]
      %v1872 = vld [vmem:[%s690 + $0x87] sm:$0xff]
      %v1873 = vld [vmem:[%s690 + $0x8f] sm:$0xff]
      %v1874 = vld [vmem:[%s690 + $0xa7] sm:$0xff]
      %v1875 = vld [vmem:[%s690 + $0xaf] sm:$0xff]
      %v1876 = vld [vmem:[%s690 + $0xc7] sm:$0xff]
      %v1877 = vld [vmem:[%s690 + $0xcf] sm:$0xff]
      %v1878 = vld [vmem:[%s690 + $0xe7] sm:$0xff]
      %v1879 = vld [vmem:[%s690 + $0xef] sm:$0xff]
      %v1880 = vld [vmem:[%s690 + $0x107] sm:$0xff]
      %v1881 = vld [vmem:[%s690 + $0x10f] sm:$0xff]
      %v1882 = vld [vmem:[%s690 + $0x127] sm:$0xff]
      %v1883 = vld [vmem:[%s690 + $0x12f] sm:$0xff]
      %v1884 = vld [vmem:[%s690 + $0x147] sm:$0xff]
      %v1885 = vld [vmem:[%s690 + $0x14f] sm:$0xff]
      %v1886 = vld [vmem:[%s690 + $0x167] sm:$0xff]
      %v1887 = vld [vmem:[%s690 + $0x16f] sm:$0xff]
      %v1888 = vld [vmem:[%s690 + $0x187] sm:$0xff]
      %v1889 = vld [vmem:[%s690 + $0x18f] sm:$0xff]
      %v1890 = vld [vmem:[%s690 + $0x1a7] sm:$0xff]
      %v1891 = vld [vmem:[%s690 + $0x1af] sm:$0xff]
      %v1892 = vld [vmem:[%s690 + $0x1c7] sm:$0xff]
      %v1893 = vld [vmem:[%s690 + $0x1cf] sm:$0xff]
      %v1894 = vld [vmem:[%s690 + $0x1e7] sm:$0xff]
      %v1895 = vld [vmem:[%s690 + $0x1ef] sm:$0xff]
      %v1896 = vld [vmem:[#allocation3] sm:$0xff]
      %v1897 = vld [vmem:[#allocation3 + $0x8] sm:$0xff]
      %v1898 = vld [vmem:[#allocation3 + $0x10] sm:$0xff]
      %v1899 = vld [vmem:[#allocation3 + $0x18] sm:$0xff]
      %v1900 = vld [vmem:[#allocation3 + $0x20] sm:$0xff]
      %v1901 = vld [vmem:[#allocation3 + $0x28] sm:$0xff]
      %v1902 = vld [vmem:[#allocation3 + $0x30] sm:$0xff]
      %v1903 = vld [vmem:[#allocation3 + $0x38] sm:$0xff]
      %v1904 = vld [vmem:[#allocation3 + $0x40] sm:$0xff]
      %v1905 = vld [vmem:[#allocation3 + $0x48] sm:$0xff]
      %v1906 = vld [vmem:[#allocation3 + $0x50] sm:$0xff]
      %v1907 = vld [vmem:[#allocation3 + $0x58] sm:$0xff]
      %v1908 = vld [vmem:[#allocation3 + $0x60] sm:$0xff]
      %v1909 = vld [vmem:[#allocation3 + $0x68] sm:$0xff]
      %v1910 = vld [vmem:[#allocation3 + $0x70] sm:$0xff]
      %v1911 = vld [vmem:[#allocation3 + $0x78] sm:$0xff]
      %v1912 = vld [vmem:[#allocation3 + $0x80] sm:$0xff]
      %v1913 = vld [vmem:[#allocation3 + $0x88] sm:$0xff]
      %v1914 = vld [vmem:[#allocation3 + $0x90] sm:$0xff]
      %v1915 = vld [vmem:[#allocation3 + $0x98] sm:$0xff]
      %v1916 = vld [vmem:[#allocation3 + $0xa0] sm:$0xff]
      %v1917 = vld [vmem:[#allocation3 + $0xa8] sm:$0xff]
      %v1918 = vld [vmem:[#allocation3 + $0xb0] sm:$0xff]
      %v1919 = vld [vmem:[#allocation3 + $0xb8] sm:$0xff]
      %v1920 = vld [vmem:[#allocation3 + $0xc0] sm:$0xff]
      %v1921 = vld [vmem:[#allocation3 + $0xc8] sm:$0xff]
      %v1922 = vld [vmem:[#allocation3 + $0xd0] sm:$0xff]
      %v1923 = vld [vmem:[#allocation3 + $0xd8] sm:$0xff]
      %v1924 = vld [vmem:[#allocation3 + $0xe0] sm:$0xff]
      %v1925 = vld [vmem:[#allocation3 + $0xe8] sm:$0xff]
      %v1926 = vld [vmem:[#allocation3 + $0xf0] sm:$0xff]
      %v1927 = vld [vmem:[#allocation3 + $0xf8] sm:$0xff]
      %v1928 = vpack.c.bf16 %v1865, %v1864
      %v1929 = vpack.c.bf16 %v1867, %v1866
      %v1930 = vpack.c.bf16 %v1869, %v1868
      %v1931 = vpack.c.bf16 %v1871, %v1870
      %v1932 = vpack.c.bf16 %v1873, %v1872
      %v1933 = vpack.c.bf16 %v1875, %v1874
      %v1934 = vpack.c.bf16 %v1877, %v1876
      %v1935 = vpack.c.bf16 %v1879, %v1878
      %v1936 = vpack.c.bf16 %v1881, %v1880
      %v1937 = vpack.c.bf16 %v1883, %v1882
      %v1938 = vpack.c.bf16 %v1885, %v1884
      %v1939 = vpack.c.bf16 %v1887, %v1886
      %v1940 = vpack.c.bf16 %v1889, %v1888
      %v1941 = vpack.c.bf16 %v1891, %v1890
      %v1942 = vpack.c.bf16 %v1893, %v1892
      %v1943 = vpack.c.bf16 %v1895, %v1894
      %s1944 = scalar_lea.vmem %s3, 192
      %v1945 = vld [vmem:[%s1944] sm:$0xf]
      %v1946 = vld [vmem:[%s1944 + $0x4] sm:$0xf]
      %v1947 = vld [vmem:[%s1944 + $0x8] sm:$0xf]
      %v1948 = vld [vmem:[%s1944 + $0xc] sm:$0xf]
      %v1949 = vld [vmem:[%s1944 + $0x10] sm:$0xf]
      %v1950 = vld [vmem:[%s1944 + $0x14] sm:$0xf]
      %v1951 = vld [vmem:[%s1944 + $0x18] sm:$0xf]
      %v1952 = vld [vmem:[%s1944 + $0x1c] sm:$0xf]
      %v1953 = vld [vmem:[%s1944 + $0x20] sm:$0xf]
      %v1954 = vld [vmem:[%s1944 + $0x24] sm:$0xf]
      %v1955 = vld [vmem:[%s1944 + $0x28] sm:$0xf]
      %v1956 = vld [vmem:[%s1944 + $0x2c] sm:$0xf]
      %v1957 = vld [vmem:[%s1944 + $0x30] sm:$0xf]
      %v1958 = vld [vmem:[%s1944 + $0x34] sm:$0xf]
      %v1959 = vld [vmem:[%s1944 + $0x38] sm:$0xf]
      %v1960 = vld [vmem:[%s1944 + $0x3c] sm:$0xf]
      %v1977 = vunpack.c.l.b16 %v1945
      %v1978 = vunpack.c.l.b16 %v1946
      %v1979 = vunpack.c.l.b16 %v1947
      %v1980 = vunpack.c.l.b16 %v1948
      %v1981 = vunpack.c.l.b16 %v1949
      %v1982 = vunpack.c.l.b16 %v1950
      %v1983 = vunpack.c.l.b16 %v1951
      %v1984 = vunpack.c.l.b16 %v1952
      %v1985 = vunpack.c.l.b16 %v1953
      %v1986 = vunpack.c.l.b16 %v1954
      %v1987 = vunpack.c.l.b16 %v1955
      %v1988 = vunpack.c.l.b16 %v1956
      %v1989 = vunpack.c.l.b16 %v1957
      %v1990 = vunpack.c.l.b16 %v1958
      %v1991 = vunpack.c.l.b16 %v1959
      %v1992 = vunpack.c.l.b16 %v1960
      %v1993 = vpack.c.b16 %v1978, %v1977
      %v1994 = vpack.c.b16 %v1980, %v1979
      %v1995 = vpack.c.b16 %v1982, %v1981
      %v1996 = vpack.c.b16 %v1984, %v1983
      %v1997 = vpack.c.b16 %v1986, %v1985
      %v1998 = vpack.c.b16 %v1988, %v1987
      %v1999 = vpack.c.b16 %v1990, %v1989
      %v2000 = vpack.c.b16 %v1992, %v1991
      %2009 = vmatprep.subr.bf16.mxu0 0
      %2010 = vmatpush1.bf16.msra.mxu0 %v1993
      %2011 = vmatprep.subr.bf16.mxu0 0
      %2012 = vmatpush1.bf16.msra.mxu0 %v1994
      %2013 = vmatprep.subr.bf16.mxu0 0
      %2014 = vmatpush1.bf16.msra.mxu0 %v1995
      %2015 = vmatprep.subr.bf16.mxu0 0
      %2016 = vmatpush1.bf16.msra.mxu0 %v1996
      %2017 = vmatprep.subr.bf16.mxu0 0
      %2018 = vmatpush1.bf16.msra.mxu0 %v1997
      %2019 = vmatprep.subr.bf16.mxu0 0
      %2020 = vmatpush1.bf16.msra.mxu0 %v1998
      %2021 = vmatprep.subr.bf16.mxu0 0
      %2022 = vmatpush1.bf16.msra.mxu0 %v1999
      %2023 = vmatprep.subr.bf16.mxu0 0
      %2024 = vmatpush1.bf16.msra.mxu0 %v2000
      %2025 = vmatprep.subr.bf16.mxu0 0
      %2026 = vmatpush1.bf16.msra.mxu0 0
      %2027 = vmatprep.subr.bf16.mxu0 0
      %2028 = vmatpush1.bf16.msra.mxu0 0
      %2029 = vmatprep.subr.bf16.mxu0 0
      %2030 = vmatpush1.bf16.msra.mxu0 0
      %2031 = vmatprep.subr.bf16.mxu0 0
      %2032 = vmatpush1.bf16.msra.mxu0 0
      %2033 = vmatprep.subr.bf16.mxu0 0
      %2034 = vmatpush1.bf16.msra.mxu0 0
      %2035 = vmatprep.subr.bf16.mxu0 0
      %2036 = vmatpush1.bf16.msra.mxu0 0
      %2037 = vmatprep.subr.bf16.mxu0 0
      %2038 = vmatpush1.bf16.msra.mxu0 0
      %2039 = vmatprep.subr.bf16.mxu0 0
      %2040 = vmatpush1.bf16.msra.mxu0 0
      %2041 = vmatprep.mubr.bf16.mxu0 0
      %2042 = vmatmul.mubr.bf16.gmra.mrb[0].mxu0 %v1928
      %v2043 = vpop.f32.mrb[0].mxu0
      %v2044 = vadd.f32 0.0, %v2043
      %v2045 = vpop.f32.mrb[0].mxu0
      %v2046 = vpop.f32.mrb[0].mxu0
      %v2047 = vadd.f32 0.0, %v2046
      %v2048 = vpop.f32.mrb[0].mxu0
      %2049 = vmatprep.mubr.bf16.mxu0 0
      %2050 = vmatmul.mubr.bf16.gmra.mrb[0].mxu0 %v1929
      %v2051 = vpop.f32.mrb[0].mxu0
      %v2052 = vadd.f32 0.0, %v2051
      %v2053 = vpop.f32.mrb[0].mxu0
      %v2054 = vpop.f32.mrb[0].mxu0
      %v2055 = vadd.f32 0.0, %v2054
      %v2056 = vpop.f32.mrb[0].mxu0
      %2057 = vmatprep.mubr.bf16.mxu0 0
      %2058 = vmatmul.mubr.bf16.gmra.mrb[0].mxu0 %v1930
      %v2059 = vpop.f32.mrb[0].mxu0
      %v2060 = vadd.f32 0.0, %v2059
      %v2061 = vpop.f32.mrb[0].mxu0
      %v2062 = vpop.f32.mrb[0].mxu0
      %v2063 = vadd.f32 0.0, %v2062
      %v2064 = vpop.f32.mrb[0].mxu0
      %2065 = vmatprep.mubr.bf16.mxu0 0
      %2066 = vmatmul.mubr.bf16.gmra.mrb[0].mxu0 %v1931
      %v2067 = vpop.f32.mrb[0].mxu0
      %v2068 = vadd.f32 0.0, %v2067
      %v2069 = vpop.f32.mrb[0].mxu0
      %v2070 = vpop.f32.mrb[0].mxu0
      %v2071 = vadd.f32 0.0, %v2070
      %v2072 = vpop.f32.mrb[0].mxu0
      %2073 = vmatprep.mubr.bf16.mxu0 0
      %2074 = vmatmul.mubr.bf16.gmra.mrb[0].mxu0 %v1932
      %v2075 = vpop.f32.mrb[0].mxu0
      %v2076 = vadd.f32 0.0, %v2075
      %v2077 = vpop.f32.mrb[0].mxu0
      %v2078 = vpop.f32.mrb[0].mxu0
      %v2079 = vadd.f32 0.0, %v2078
      %v2080 = vpop.f32.mrb[0].mxu0
      %2081 = vmatprep.mubr.bf16.mxu0 0
      %2082 = vmatmul.mubr.bf16.gmra.mrb[0].mxu0 %v1933
      %v2083 = vpop.f32.mrb[0].mxu0
      %v2084 = vadd.f32 0.0, %v2083
      %v2085 = vpop.f32.mrb[0].mxu0
      %v2086 = vpop.f32.mrb[0].mxu0
      %v2087 = vadd.f32 0.0, %v2086
      %v2088 = vpop.f32.mrb[0].mxu0
      %2089 = vmatprep.mubr.bf16.mxu0 0
      %2090 = vmatmul.mubr.bf16.gmra.mrb[0].mxu0 %v1934
      %v2091 = vpop.f32.mrb[0].mxu0
      %v2092 = vadd.f32 0.0, %v2091
      %v2093 = vpop.f32.mrb[0].mxu0
      %v2094 = vpop.f32.mrb[0].mxu0
      %v2095 = vadd.f32 0.0, %v2094
      %v2096 = vpop.f32.mrb[0].mxu0
      %2097 = vmatprep.mubr.bf16.mxu0 0
      %2098 = vmatmul.mubr.bf16.gmra.mrb[0].mxu0 %v1935
      %v2099 = vpop.f32.mrb[0].mxu0
      %v2100 = vadd.f32 0.0, %v2099
      %v2101 = vpop.f32.mrb[0].mxu0
      %v2102 = vpop.f32.mrb[0].mxu0
      %v2103 = vadd.f32 0.0, %v2102
      %v2104 = vpop.f32.mrb[0].mxu0
      %2105 = vmatprep.mubr.bf16.mxu0 0
      %2106 = vmatmul.mubr.bf16.gmra.mrb[0].mxu0 %v1936
      %v2107 = vpop.f32.mrb[0].mxu0
      %v2108 = vadd.f32 0.0, %v2107
      %v2109 = vpop.f32.mrb[0].mxu0
      %v2110 = vpop.f32.mrb[0].mxu0
      %v2111 = vadd.f32 0.0, %v2110
      %v2112 = vpop.f32.mrb[0].mxu0
      %2113 = vmatprep.mubr.bf16.mxu0 0
      %2114 = vmatmul.mubr.bf16.gmra.mrb[0].mxu0 %v1937
      %v2115 = vpop.f32.mrb[0].mxu0
      %v2116 = vadd.f32 0.0, %v2115
      %v2117 = vpop.f32.mrb[0].mxu0
      %v2118 = vpop.f32.mrb[0].mxu0
      %v2119 = vadd.f32 0.0, %v2118
      %v2120 = vpop.f32.mrb[0].mxu0
      %2121 = vmatprep.mubr.bf16.mxu0 0
      %2122 = vmatmul.mubr.bf16.gmra.mrb[0].mxu0 %v1938
      %v2123 = vpop.f32.mrb[0].mxu0
      %v2124 = vadd.f32 0.0, %v2123
      %v2125 = vpop.f32.mrb[0].mxu0
      %v2126 = vpop.f32.mrb[0].mxu0
      %v2127 = vadd.f32 0.0, %v2126
      %v2128 = vpop.f32.mrb[0].mxu0
      %2129 = vmatprep.mubr.bf16.mxu0 0
      %2130 = vmatmul.mubr.bf16.gmra.mrb[0].mxu0 %v1939
      %v2131 = vpop.f32.mrb[0].mxu0
      %v2132 = vadd.f32 0.0, %v2131
      %v2133 = vpop.f32.mrb[0].mxu0
      %v2134 = vpop.f32.mrb[0].mxu0
      %v2135 = vadd.f32 0.0, %v2134
      %v2136 = vpop.f32.mrb[0].mxu0
      %2137 = vmatprep.mubr.bf16.mxu0 0
      %2138 = vmatmul.mubr.bf16.gmra.mrb[0].mxu0 %v1940
      %v2139 = vpop.f32.mrb[0].mxu0
      %v2140 = vadd.f32 0.0, %v2139
      %v2141 = vpop.f32.mrb[0].mxu0
      %v2142 = vpop.f32.mrb[0].mxu0
      %v2143 = vadd.f32 0.0, %v2142
      %v2144 = vpop.f32.mrb[0].mxu0
      %2145 = vmatprep.mubr.bf16.mxu0 0
      %2146 = vmatmul.mubr.bf16.gmra.mrb[0].mxu0 %v1941
      %v2147 = vpop.f32.mrb[0].mxu0
      %v2148 = vadd.f32 0.0, %v2147
      %v2149 = vpop.f32.mrb[0].mxu0
      %v2150 = vpop.f32.mrb[0].mxu0
      %v2151 = vadd.f32 0.0, %v2150
      %v2152 = vpop.f32.mrb[0].mxu0
      %2153 = vmatprep.mubr.bf16.mxu0 0
      %2154 = vmatmul.mubr.bf16.gmra.mrb[0].mxu0 %v1942
      %v2155 = vpop.f32.mrb[0].mxu0
      %v2156 = vadd.f32 0.0, %v2155
      %v2157 = vpop.f32.mrb[0].mxu0
      %v2158 = vpop.f32.mrb[0].mxu0
      %v2159 = vadd.f32 0.0, %v2158
      %v2160 = vpop.f32.mrb[0].mxu0
      %2161 = vmatprep.mubr.bf16.mxu0 0
      %2162 = vmatmul.mubr.bf16.gmra.mrb[0].mxu0 %v1943
      %v2163 = vpop.f32.mrb[0].mxu0
      %v2164 = vadd.f32 0.0, %v2163
      %v2165 = vpop.f32.mrb[0].mxu0
      %v2166 = vpop.f32.mrb[0].mxu0
      %v2167 = vadd.f32 0.0, %v2166
      %v2168 = vpop.f32.mrb[0].mxu0
      %2169 = vdwg.mxu0
      %v2170 = vadd.f32 %v1896, %v2044
      %v2171 = vadd.f32 %v1897, %v2047
      %v2172 = vadd.f32 %v1898, %v2052
      %v2173 = vadd.f32 %v1899, %v2055
      %v2174 = vadd.f32 %v1900, %v2060
      %v2175 = vadd.f32 %v1901, %v2063
      %v2176 = vadd.f32 %v1902, %v2068
      %v2177 = vadd.f32 %v1903, %v2071
      %v2178 = vadd.f32 %v1904, %v2076
      %v2179 = vadd.f32 %v1905, %v2079
      %v2180 = vadd.f32 %v1906, %v2084
      %v2181 = vadd.f32 %v1907, %v2087
      %v2182 = vadd.f32 %v1908, %v2092
      %v2183 = vadd.f32 %v1909, %v2095
      %v2184 = vadd.f32 %v1910, %v2100
      %v2185 = vadd.f32 %v1911, %v2103
      %v2186 = vadd.f32 %v1912, %v2108
      %v2187 = vadd.f32 %v1913, %v2111
      %v2188 = vadd.f32 %v1914, %v2116
      %v2189 = vadd.f32 %v1915, %v2119
      %v2190 = vadd.f32 %v1916, %v2124
      %v2191 = vadd.f32 %v1917, %v2127
      %v2192 = vadd.f32 %v1918, %v2132
      %v2193 = vadd.f32 %v1919, %v2135
      %v2194 = vadd.f32 %v1920, %v2140
      %v2195 = vadd.f32 %v1921, %v2143
      %v2196 = vadd.f32 %v1922, %v2148
      %v2197 = vadd.f32 %v1923, %v2151
      %v2198 = vadd.f32 %v1924, %v2156
      %v2199 = vadd.f32 %v1925, %v2159
      %v2200 = vadd.f32 %v1926, %v2164
      %v2201 = vadd.f32 %v1927, %v2167
      %2202 = vst [vmem:[#allocation3] sm:$0xff] %v2170
      %2203 = vst [vmem:[#allocation3 + $0x8] sm:$0xff] %v2171
      %2204 = vst [vmem:[#allocation3 + $0x10] sm:$0xff] %v2172
      %2205 = vst [vmem:[#allocation3 + $0x18] sm:$0xff] %v2173
      %2206 = vst [vmem:[#allocation3 + $0x20] sm:$0xff] %v2174
      %2207 = vst [vmem:[#allocation3 + $0x28] sm:$0xff] %v2175
      %2208 = vst [vmem:[#allocation3 + $0x30] sm:$0xff] %v2176
      %2209 = vst [vmem:[#allocation3 + $0x38] sm:$0xff] %v2177
      %2210 = vst [vmem:[#allocation3 + $0x40] sm:$0xff] %v2178
      %2211 = vst [vmem:[#allocation3 + $0x48] sm:$0xff] %v2179
      %2212 = vst [vmem:[#allocation3 + $0x50] sm:$0xff] %v2180
      %2213 = vst [vmem:[#allocation3 + $0x58] sm:$0xff] %v2181
      %2214 = vst [vmem:[#allocation3 + $0x60] sm:$0xff] %v2182
      %2215 = vst [vmem:[#allocation3 + $0x68] sm:$0xff] %v2183
      %2216 = vst [vmem:[#allocation3 + $0x70] sm:$0xff] %v2184
      %2217 = vst [vmem:[#allocation3 + $0x78] sm:$0xff] %v2185
      %2218 = vst [vmem:[#allocation3 + $0x80] sm:$0xff] %v2186
      %2219 = vst [vmem:[#allocation3 + $0x88] sm:$0xff] %v2187
      %2220 = vst [vmem:[#allocation3 + $0x90] sm:$0xff] %v2188
      %2221 = vst [vmem:[#allocation3 + $0x98] sm:$0xff] %v2189
      %2222 = vst [vmem:[#allocation3 + $0xa0] sm:$0xff] %v2190
      %2223 = vst [vmem:[#allocation3 + $0xa8] sm:$0xff] %v2191
      %2224 = vst [vmem:[#allocation3 + $0xb0] sm:$0xff] %v2192
      %2225 = vst [vmem:[#allocation3 + $0xb8] sm:$0xff] %v2193
      %2226 = vst [vmem:[#allocation3 + $0xc0] sm:$0xff] %v2194
      %2227 = vst [vmem:[#allocation3 + $0xc8] sm:$0xff] %v2195
      %2228 = vst [vmem:[#allocation3 + $0xd0] sm:$0xff] %v2196
      %2229 = vst [vmem:[#allocation3 + $0xd8] sm:$0xff] %v2197
      %2230 = vst [vmem:[#allocation3 + $0xe0] sm:$0xff] %v2198
      %2231 = vst [vmem:[#allocation3 + $0xe8] sm:$0xff] %v2199
      %2232 = vst [vmem:[#allocation3 + $0xf0] sm:$0xff] %v2200
      %2233 = vst [vmem:[#allocation3 + $0xf8] sm:$0xff] %v2201
      %v2234 = vld [vmem:[%s690 + $0x8] sm:$0xff]
      %v2235 = vld [vmem:[%s690 + $0x10] sm:$0xff]
      %v2236 = vld [vmem:[%s690 + $0x28] sm:$0xff]
      %v2237 = vld [vmem:[%s690 + $0x30] sm:$0xff]
      %v2238 = vld [vmem:[%s690 + $0x48] sm:$0xff]
      %v2239 = vld [vmem:[%s690 + $0x50] sm:$0xff]
      %v2240 = vld [vmem:[%s690 + $0x68] sm:$0xff]
      %v2241 = vld [vmem:[%s690 + $0x70] sm:$0xff]
      %v2242 = vld [vmem:[%s690 + $0x88] sm:$0xff]
      %v2243 = vld [vmem:[%s690 + $0x90] sm:$0xff]
      %v2244 = vld [vmem:[%s690 + $0xa8] sm:$0xff]
      %v2245 = vld [vmem:[%s690 + $0xb0] sm:$0xff]
      %v2246 = vld [vmem:[%s690 + $0xc8] sm:$0xff]
      %v2247 = vld [vmem:[%s690 + $0xd0] sm:$0xff]
      %v2248 = vld [vmem:[%s690 + $0xe8] sm:$0xff]
      %v2249 = vld [vmem:[%s690 + $0xf0] sm:$0xff]
      %v2250 = vld [vmem:[%s690 + $0x108] sm:$0xff]
      %v2251 = vld [vmem:[%s690 + $0x110] sm:$0xff]
      %v2252 = vld [vmem:[%s690 + $0x128] sm:$0xff]
      %v2253 = vld [vmem:[%s690 + $0x130] sm:$0xff]
      %v2254 = vld [vmem:[%s690 + $0x148] sm:$0xff]
      %v2255 = vld [vmem:[%s690 + $0x150] sm:$0xff]
      %v2256 = vld [vmem:[%s690 + $0x168] sm:$0xff]
      %v2257 = vld [vmem:[%s690 + $0x170] sm:$0xff]
      %v2258 = vld [vmem:[%s690 + $0x188] sm:$0xff]
      %v2259 = vld [vmem:[%s690 + $0x190] sm:$0xff]
      %v2260 = vld [vmem:[%s690 + $0x1a8] sm:$0xff]
      %v2261 = vld [vmem:[%s690 + $0x1b0] sm:$0xff]
      %v2262 = vld [vmem:[%s690 + $0x1c8] sm:$0xff]
      %v2263 = vld [vmem:[%s690 + $0x1d0] sm:$0xff]
      %v2264 = vld [vmem:[%s690 + $0x1e8] sm:$0xff]
      %v2265 = vld [vmem:[%s690 + $0x1f0] sm:$0xff]
      %v2266 = vld [vmem:[#allocation3] sm:$0xff]
      %v2267 = vld [vmem:[#allocation3 + $0x8] sm:$0xff]
      %v2268 = vld [vmem:[#allocation3 + $0x10] sm:$0xff]
      %v2269 = vld [vmem:[#allocation3 + $0x18] sm:$0xff]
      %v2270 = vld [vmem:[#allocation3 + $0x20] sm:$0xff]
      %v2271 = vld [vmem:[#allocation3 + $0x28] sm:$0xff]
      %v2272 = vld [vmem:[#allocation3 + $0x30] sm:$0xff]
      %v2273 = vld [vmem:[#allocation3 + $0x38] sm:$0xff]
      %v2274 = vld [vmem:[#allocation3 + $0x40] sm:$0xff]
      %v2275 = vld [vmem:[#allocation3 + $0x48] sm:$0xff]
      %v2276 = vld [vmem:[#allocation3 + $0x50] sm:$0xff]
      %v2277 = vld [vmem:[#allocation3 + $0x58] sm:$0xff]
      %v2278 = vld [vmem:[#allocation3 + $0x60] sm:$0xff]
      %v2279 = vld [vmem:[#allocation3 + $0x68] sm:$0xff]
      %v2280 = vld [vmem:[#allocation3 + $0x70] sm:$0xff]
      %v2281 = vld [vmem:[#allocation3 + $0x78] sm:$0xff]
      %v2282 = vld [vmem:[#allocation3 + $0x80] sm:$0xff]
      %v2283 = vld [vmem:[#allocation3 + $0x88] sm:$0xff]
      %v2284 = vld [vmem:[#allocation3 + $0x90] sm:$0xff]
      %v2285 = vld [vmem:[#allocation3 + $0x98] sm:$0xff]
      %v2286 = vld [vmem:[#allocation3 + $0xa0] sm:$0xff]
      %v2287 = vld [vmem:[#allocation3 + $0xa8] sm:$0xff]
      %v2288 = vld [vmem:[#allocation3 + $0xb0] sm:$0xff]
      %v2289 = vld [vmem:[#allocation3 + $0xb8] sm:$0xff]
      %v2290 = vld [vmem:[#allocation3 + $0xc0] sm:$0xff]
      %v2291 = vld [vmem:[#allocation3 + $0xc8] sm:$0xff]
      %v2292 = vld [vmem:[#allocation3 + $0xd0] sm:$0xff]
      %v2293 = vld [vmem:[#allocation3 + $0xd8] sm:$0xff]
      %v2294 = vld [vmem:[#allocation3 + $0xe0] sm:$0xff]
      %v2295 = vld [vmem:[#allocation3 + $0xe8] sm:$0xff]
      %v2296 = vld [vmem:[#allocation3 + $0xf0] sm:$0xff]
      %v2297 = vld [vmem:[#allocation3 + $0xf8] sm:$0xff]
      %v2298 = vpack.c.bf16 %v2235, %v2234
      %v2299 = vpack.c.bf16 %v2237, %v2236
      %v2300 = vpack.c.bf16 %v2239, %v2238
      %v2301 = vpack.c.bf16 %v2241, %v2240
      %v2302 = vpack.c.bf16 %v2243, %v2242
      %v2303 = vpack.c.bf16 %v2245, %v2244
      %v2304 = vpack.c.bf16 %v2247, %v2246
      %v2305 = vpack.c.bf16 %v2249, %v2248
      %v2306 = vpack.c.bf16 %v2251, %v2250
      %v2307 = vpack.c.bf16 %v2253, %v2252
      %v2308 = vpack.c.bf16 %v2255, %v2254
      %v2309 = vpack.c.bf16 %v2257, %v2256
      %v2310 = vpack.c.bf16 %v2259, %v2258
      %v2311 = vpack.c.bf16 %v2261, %v2260
      %v2312 = vpack.c.bf16 %v2263, %v2262
      %v2313 = vpack.c.bf16 %v2265, %v2264
      %s2314 = scalar_lea.vmem %s3, 256
      %v2315 = vld [vmem:[%s2314] sm:$0xf]
      %v2316 = vld [vmem:[%s2314 + $0x4] sm:$0xf]
      %v2317 = vld [vmem:[%s2314 + $0x8] sm:$0xf]
      %v2318 = vld [vmem:[%s2314 + $0xc] sm:$0xf]
      %v2319 = vld [vmem:[%s2314 + $0x10] sm:$0xf]
      %v2320 = vld [vmem:[%s2314 + $0x14] sm:$0xf]
      %v2321 = vld [vmem:[%s2314 + $0x18] sm:$0xf]
      %v2322 = vld [vmem:[%s2314 + $0x1c] sm:$0xf]
      %v2323 = vld [vmem:[%s2314 + $0x20] sm:$0xf]
      %v2324 = vld [vmem:[%s2314 + $0x24] sm:$0xf]
      %v2325 = vld [vmem:[%s2314 + $0x28] sm:$0xf]
      %v2326 = vld [vmem:[%s2314 + $0x2c] sm:$0xf]
      %v2327 = vld [vmem:[%s2314 + $0x30] sm:$0xf]
      %v2328 = vld [vmem:[%s2314 + $0x34] sm:$0xf]
      %v2329 = vld [vmem:[%s2314 + $0x38] sm:$0xf]
      %v2330 = vld [vmem:[%s2314 + $0x3c] sm:$0xf]
      %v2347 = vunpack.c.l.b16 %v2315
      %v2348 = vunpack.c.l.b16 %v2316
      %v2349 = vunpack.c.l.b16 %v2317
      %v2350 = vunpack.c.l.b16 %v2318
      %v2351 = vunpack.c.l.b16 %v2319
      %v2352 = vunpack.c.l.b16 %v2320
      %v2353 = vunpack.c.l.b16 %v2321
      %v2354 = vunpack.c.l.b16 %v2322
      %v2355 = vunpack.c.l.b16 %v2323
      %v2356 = vunpack.c.l.b16 %v2324
      %v2357 = vunpack.c.l.b16 %v2325
      %v2358 = vunpack.c.l.b16 %v2326
      %v2359 = vunpack.c.l.b16 %v2327
      %v2360 = vunpack.c.l.b16 %v2328
      %v2361 = vunpack.c.l.b16 %v2329
      %v2362 = vunpack.c.l.b16 %v2330
      %v2363 = vpack.c.b16 %v2348, %v2347
      %v2364 = vpack.c.b16 %v2350, %v2349
      %v2365 = vpack.c.b16 %v2352, %v2351
      %v2366 = vpack.c.b16 %v2354, %v2353
      %v2367 = vpack.c.b16 %v2356, %v2355
      %v2368 = vpack.c.b16 %v2358, %v2357
      %v2369 = vpack.c.b16 %v2360, %v2359
      %v2370 = vpack.c.b16 %v2362, %v2361
      %2379 = vmatprep.subr.bf16.mxu0 0
      %2380 = vmatpush1.bf16.msra.mxu0 %v2363
      %2381 = vmatprep.subr.bf16.mxu0 0
      %2382 = vmatpush1.bf16.msra.mxu0 %v2364
      %2383 = vmatprep.subr.bf16.mxu0 0
      %2384 = vmatpush1.bf16.msra.mxu0 %v2365
      %2385 = vmatprep.subr.bf16.mxu0 0
      %2386 = vmatpush1.bf16.msra.mxu0 %v2366
      %2387 = vmatprep.subr.bf16.mxu0 0
      %2388 = vmatpush1.bf16.msra.mxu0 %v2367
      %2389 = vmatprep.subr.bf16.mxu0 0
      %2390 = vmatpush1.bf16.msra.mxu0 %v2368
      %2391 = vmatprep.subr.bf16.mxu0 0
      %2392 = vmatpush1.bf16.msra.mxu0 %v2369
      %2393 = vmatprep.subr.bf16.mxu0 0
      %2394 = vmatpush1.bf16.msra.mxu0 %v2370
      %2395 = vmatprep.subr.bf16.mxu0 0
      %2396 = vmatpush1.bf16.msra.mxu0 0
      %2397 = vmatprep.subr.bf16.mxu0 0
      %2398 = vmatpush1.bf16.msra.mxu0 0
      %2399 = vmatprep.subr.bf16.mxu0 0
      %2400 = vmatpush1.bf16.msra.mxu0 0
      %2401 = vmatprep.subr.bf16.mxu0 0
      %2402 = vmatpush1.bf16.msra.mxu0 0
      %2403 = vmatprep.subr.bf16.mxu0 0
      %2404 = vmatpush1.bf16.msra.mxu0 0
      %2405 = vmatprep.subr.bf16.mxu0 0
      %2406 = vmatpush1.bf16.msra.mxu0 0
      %2407 = vmatprep.subr.bf16.mxu0 0
      %2408 = vmatpush1.bf16.msra.mxu0 0
      %2409 = vmatprep.subr.bf16.mxu0 0
      %2410 = vmatpush1.bf16.msra.mxu0 0
      %2411 = vmatprep.mubr.bf16.mxu0 0
      %2412 = vmatmul.mubr.bf16.gmra.mrb[0].mxu0 %v2298
      %v2413 = vpop.f32.mrb[0].mxu0
      %v2414 = vadd.f32 0.0, %v2413
      %v2415 = vpop.f32.mrb[0].mxu0
      %v2416 = vpop.f32.mrb[0].mxu0
      %v2417 = vadd.f32 0.0, %v2416
      %v2418 = vpop.f32.mrb[0].mxu0
      %2419 = vmatprep.mubr.bf16.mxu0 0
      %2420 = vmatmul.mubr.bf16.gmra.mrb[0].mxu0 %v2299
      %v2421 = vpop.f32.mrb[0].mxu0
      %v2422 = vadd.f32 0.0, %v2421
      %v2423 = vpop.f32.mrb[0].mxu0
      %v2424 = vpop.f32.mrb[0].mxu0
      %v2425 = vadd.f32 0.0, %v2424
      %v2426 = vpop.f32.mrb[0].mxu0
      %2427 = vmatprep.mubr.bf16.mxu0 0
      %2428 = vmatmul.mubr.bf16.gmra.mrb[0].mxu0 %v2300
      %v2429 = vpop.f32.mrb[0].mxu0
      %v2430 = vadd.f32 0.0, %v2429
      %v2431 = vpop.f32.mrb[0].mxu0
      %v2432 = vpop.f32.mrb[0].mxu0
      %v2433 = vadd.f32 0.0, %v2432
      %v2434 = vpop.f32.mrb[0].mxu0
      %2435 = vmatprep.mubr.bf16.mxu0 0
      %2436 = vmatmul.mubr.bf16.gmra.mrb[0].mxu0 %v2301
      %v2437 = vpop.f32.mrb[0].mxu0
      %v2438 = vadd.f32 0.0, %v2437
      %v2439 = vpop.f32.mrb[0].mxu0
      %v2440 = vpop.f32.mrb[0].mxu0
      %v2441 = vadd.f32 0.0, %v2440
      %v2442 = vpop.f32.mrb[0].mxu0
      %2443 = vmatprep.mubr.bf16.mxu0 0
      %2444 = vmatmul.mubr.bf16.gmra.mrb[0].mxu0 %v2302
      %v2445 = vpop.f32.mrb[0].mxu0
      %v2446 = vadd.f32 0.0, %v2445
      %v2447 = vpop.f32.mrb[0].mxu0
      %v2448 = vpop.f32.mrb[0].mxu0
      %v2449 = vadd.f32 0.0, %v2448
      %v2450 = vpop.f32.mrb[0].mxu0
      %2451 = vmatprep.mubr.bf16.mxu0 0
      %2452 = vmatmul.mubr.bf16.gmra.mrb[0].mxu0 %v2303
      %v2453 = vpop.f32.mrb[0].mxu0
      %v2454 = vadd.f32 0.0, %v2453
      %v2455 = vpop.f32.mrb[0].mxu0
      %v2456 = vpop.f32.mrb[0].mxu0
      %v2457 = vadd.f32 0.0, %v2456
      %v2458 = vpop.f32.mrb[0].mxu0
      %2459 = vmatprep.mubr.bf16.mxu0 0
      %2460 = vmatmul.mubr.bf16.gmra.mrb[0].mxu0 %v2304
      %v2461 = vpop.f32.mrb[0].mxu0
      %v2462 = vadd.f32 0.0, %v2461
      %v2463 = vpop.f32.mrb[0].mxu0
      %v2464 = vpop.f32.mrb[0].mxu0
      %v2465 = vadd.f32 0.0, %v2464
      %v2466 = vpop.f32.mrb[0].mxu0
      %2467 = vmatprep.mubr.bf16.mxu0 0
      %2468 = vmatmul.mubr.bf16.gmra.mrb[0].mxu0 %v2305
      %v2469 = vpop.f32.mrb[0].mxu0
      %v2470 = vadd.f32 0.0, %v2469
      %v2471 = vpop.f32.mrb[0].mxu0
      %v2472 = vpop.f32.mrb[0].mxu0
      %v2473 = vadd.f32 0.0, %v2472
      %v2474 = vpop.f32.mrb[0].mxu0
      %2475 = vmatprep.mubr.bf16.mxu0 0
      %2476 = vmatmul.mubr.bf16.gmra.mrb[0].mxu0 %v2306
      %v2477 = vpop.f32.mrb[0].mxu0
      %v2478 = vadd.f32 0.0, %v2477
      %v2479 = vpop.f32.mrb[0].mxu0
      %v2480 = vpop.f32.mrb[0].mxu0
      %v2481 = vadd.f32 0.0, %v2480
      %v2482 = vpop.f32.mrb[0].mxu0
      %2483 = vmatprep.mubr.bf16.mxu0 0
      %2484 = vmatmul.mubr.bf16.gmra.mrb[0].mxu0 %v2307
      %v2485 = vpop.f32.mrb[0].mxu0
      %v2486 = vadd.f32 0.0, %v2485
      %v2487 = vpop.f32.mrb[0].mxu0
      %v2488 = vpop.f32.mrb[0].mxu0
      %v2489 = vadd.f32 0.0, %v2488
      %v2490 = vpop.f32.mrb[0].mxu0
      %2491 = vmatprep.mubr.bf16.mxu0 0
      %2492 = vmatmul.mubr.bf16.gmra.mrb[0].mxu0 %v2308
      %v2493 = vpop.f32.mrb[0].mxu0
      %v2494 = vadd.f32 0.0, %v2493
      %v2495 = vpop.f32.mrb[0].mxu0
      %v2496 = vpop.f32.mrb[0].mxu0
      %v2497 = vadd.f32 0.0, %v2496
      %v2498 = vpop.f32.mrb[0].mxu0
      %2499 = vmatprep.mubr.bf16.mxu0 0
      %2500 = vmatmul.mubr.bf16.gmra.mrb[0].mxu0 %v2309
      %v2501 = vpop.f32.mrb[0].mxu0
      %v2502 = vadd.f32 0.0, %v2501
      %v2503 = vpop.f32.mrb[0].mxu0
      %v2504 = vpop.f32.mrb[0].mxu0
      %v2505 = vadd.f32 0.0, %v2504
      %v2506 = vpop.f32.mrb[0].mxu0
      %2507 = vmatprep.mubr.bf16.mxu0 0
      %2508 = vmatmul.mubr.bf16.gmra.mrb[0].mxu0 %v2310
      %v2509 = vpop.f32.mrb[0].mxu0
      %v2510 = vadd.f32 0.0, %v2509
      %v2511 = vpop.f32.mrb[0].mxu0
      %v2512 = vpop.f32.mrb[0].mxu0
      %v2513 = vadd.f32 0.0, %v2512
      %v2514 = vpop.f32.mrb[0].mxu0
      %2515 = vmatprep.mubr.bf16.mxu0 0
      %2516 = vmatmul.mubr.bf16.gmra.mrb[0].mxu0 %v2311
      %v2517 = vpop.f32.mrb[0].mxu0
      %v2518 = vadd.f32 0.0, %v2517
      %v2519 = vpop.f32.mrb[0].mxu0
      %v2520 = vpop.f32.mrb[0].mxu0
      %v2521 = vadd.f32 0.0, %v2520
      %v2522 = vpop.f32.mrb[0].mxu0
      %2523 = vmatprep.mubr.bf16.mxu0 0
      %2524 = vmatmul.mubr.bf16.gmra.mrb[0].mxu0 %v2312
      %v2525 = vpop.f32.mrb[0].mxu0
      %v2526 = vadd.f32 0.0, %v2525
      %v2527 = vpop.f32.mrb[0].mxu0
      %v2528 = vpop.f32.mrb[0].mxu0
      %v2529 = vadd.f32 0.0, %v2528
      %v2530 = vpop.f32.mrb[0].mxu0
      %2531 = vmatprep.mubr.bf16.mxu0 0
      %2532 = vmatmul.mubr.bf16.gmra.mrb[0].mxu0 %v2313
      %v2533 = vpop.f32.mrb[0].mxu0
      %v2534 = vadd.f32 0.0, %v2533
      %v2535 = vpop.f32.mrb[0].mxu0
      %v2536 = vpop.f32.mrb[0].mxu0
      %v2537 = vadd.f32 0.0, %v2536
      %v2538 = vpop.f32.mrb[0].mxu0
      %2539 = vdwg.mxu0
      %v2540 = vadd.f32 %v2266, %v2414
      %v2541 = vadd.f32 %v2267, %v2417
      %v2542 = vadd.f32 %v2268, %v2422
      %v2543 = vadd.f32 %v2269, %v2425
      %v2544 = vadd.f32 %v2270, %v2430
      %v2545 = vadd.f32 %v2271, %v2433
      %v2546 = vadd.f32 %v2272, %v2438
      %v2547 = vadd.f32 %v2273, %v2441
      %v2548 = vadd.f32 %v2274, %v2446
      %v2549 = vadd.f32 %v2275, %v2449
      %v2550 = vadd.f32 %v2276, %v2454
      %v2551 = vadd.f32 %v2277, %v2457
      %v2552 = vadd.f32 %v2278, %v2462
      %v2553 = vadd.f32 %v2279, %v2465
      %v2554 = vadd.f32 %v2280, %v2470
      %v2555 = vadd.f32 %v2281, %v2473
      %v2556 = vadd.f32 %v2282, %v2478
      %v2557 = vadd.f32 %v2283, %v2481
      %v2558 = vadd.f32 %v2284, %v2486
      %v2559 = vadd.f32 %v2285, %v2489
      %v2560 = vadd.f32 %v2286, %v2494
      %v2561 = vadd.f32 %v2287, %v2497
      %v2562 = vadd.f32 %v2288, %v2502
      %v2563 = vadd.f32 %v2289, %v2505
      %v2564 = vadd.f32 %v2290, %v2510
      %v2565 = vadd.f32 %v2291, %v2513
      %v2566 = vadd.f32 %v2292, %v2518
      %v2567 = vadd.f32 %v2293, %v2521
      %v2568 = vadd.f32 %v2294, %v2526
      %v2569 = vadd.f32 %v2295, %v2529
      %v2570 = vadd.f32 %v2296, %v2534
      %v2571 = vadd.f32 %v2297, %v2537
      %2572 = vst [vmem:[#allocation3] sm:$0xff] %v2540
      %2573 = vst [vmem:[#allocation3 + $0x8] sm:$0xff] %v2541
      %2574 = vst [vmem:[#allocation3 + $0x10] sm:$0xff] %v2542
      %2575 = vst [vmem:[#allocation3 + $0x18] sm:$0xff] %v2543
      %2576 = vst [vmem:[#allocation3 + $0x20] sm:$0xff] %v2544
      %2577 = vst [vmem:[#allocation3 + $0x28] sm:$0xff] %v2545
      %2578 = vst [vmem:[#allocation3 + $0x30] sm:$0xff] %v2546
      %2579 = vst [vmem:[#allocation3 + $0x38] sm:$0xff] %v2547
      %2580 = vst [vmem:[#allocation3 + $0x40] sm:$0xff] %v2548
      %2581 = vst [vmem:[#allocation3 + $0x48] sm:$0xff] %v2549
      %2582 = vst [vmem:[#allocation3 + $0x50] sm:$0xff] %v2550
      %2583 = vst [vmem:[#allocation3 + $0x58] sm:$0xff] %v2551
      %2584 = vst [vmem:[#allocation3 + $0x60] sm:$0xff] %v2552
      %2585 = vst [vmem:[#allocation3 + $0x68] sm:$0xff] %v2553
      %2586 = vst [vmem:[#allocation3 + $0x70] sm:$0xff] %v2554
      %2587 = vst [vmem:[#allocation3 + $0x78] sm:$0xff] %v2555
      %2588 = vst [vmem:[#allocation3 + $0x80] sm:$0xff] %v2556
      %2589 = vst [vmem:[#allocation3 + $0x88] sm:$0xff] %v2557
      %2590 = vst [vmem:[#allocation3 + $0x90] sm:$0xff] %v2558
      %2591 = vst [vmem:[#allocation3 + $0x98] sm:$0xff] %v2559
      %2592 = vst [vmem:[#allocation3 + $0xa0] sm:$0xff] %v2560
      %2593 = vst [vmem:[#allocation3 + $0xa8] sm:$0xff] %v2561
      %2594 = vst [vmem:[#allocation3 + $0xb0] sm:$0xff] %v2562
      %2595 = vst [vmem:[#allocation3 + $0xb8] sm:$0xff] %v2563
      %2596 = vst [vmem:[#allocation3 + $0xc0] sm:$0xff] %v2564
      %2597 = vst [vmem:[#allocation3 + $0xc8] sm:$0xff] %v2565
      %2598 = vst [vmem:[#allocation3 + $0xd0] sm:$0xff] %v2566
      %2599 = vst [vmem:[#allocation3 + $0xd8] sm:$0xff] %v2567
      %2600 = vst [vmem:[#allocation3 + $0xe0] sm:$0xff] %v2568
      %2601 = vst [vmem:[#allocation3 + $0xe8] sm:$0xff] %v2569
      %2602 = vst [vmem:[#allocation3 + $0xf0] sm:$0xff] %v2570
      %2603 = vst [vmem:[#allocation3 + $0xf8] sm:$0xff] %v2571
      %v2604 = vld [vmem:[%s690 + $0x9] sm:$0xff]
      %v2605 = vld [vmem:[%s690 + $0x11] sm:$0xff]
      %v2606 = vld [vmem:[%s690 + $0x29] sm:$0xff]
      %v2607 = vld [vmem:[%s690 + $0x31] sm:$0xff]
      %v2608 = vld [vmem:[%s690 + $0x49] sm:$0xff]
      %v2609 = vld [vmem:[%s690 + $0x51] sm:$0xff]
      %v2610 = vld [vmem:[%s690 + $0x69] sm:$0xff]
      %v2611 = vld [vmem:[%s690 + $0x71] sm:$0xff]
      %v2612 = vld [vmem:[%s690 + $0x89] sm:$0xff]
      %v2613 = vld [vmem:[%s690 + $0x91] sm:$0xff]
      %v2614 = vld [vmem:[%s690 + $0xa9] sm:$0xff]
      %v2615 = vld [vmem:[%s690 + $0xb1] sm:$0xff]
      %v2616 = vld [vmem:[%s690 + $0xc9] sm:$0xff]
      %v2617 = vld [vmem:[%s690 + $0xd1] sm:$0xff]
      %v2618 = vld [vmem:[%s690 + $0xe9] sm:$0xff]
      %v2619 = vld [vmem:[%s690 + $0xf1] sm:$0xff]
      %v2620 = vld [vmem:[%s690 + $0x109] sm:$0xff]
      %v2621 = vld [vmem:[%s690 + $0x111] sm:$0xff]
      %v2622 = vld [vmem:[%s690 + $0x129] sm:$0xff]
      %v2623 = vld [vmem:[%s690 + $0x131] sm:$0xff]
      %v2624 = vld [vmem:[%s690 + $0x149] sm:$0xff]
      %v2625 = vld [vmem:[%s690 + $0x151] sm:$0xff]
      %v2626 = vld [vmem:[%s690 + $0x169] sm:$0xff]
      %v2627 = vld [vmem:[%s690 + $0x171] sm:$0xff]
      %v2628 = vld [vmem:[%s690 + $0x189] sm:$0xff]
      %v2629 = vld [vmem:[%s690 + $0x191] sm:$0xff]
      %v2630 = vld [vmem:[%s690 + $0x1a9] sm:$0xff]
      %v2631 = vld [vmem:[%s690 + $0x1b1] sm:$0xff]
      %v2632 = vld [vmem:[%s690 + $0x1c9] sm:$0xff]
      %v2633 = vld [vmem:[%s690 + $0x1d1] sm:$0xff]
      %v2634 = vld [vmem:[%s690 + $0x1e9] sm:$0xff]
      %v2635 = vld [vmem:[%s690 + $0x1f1] sm:$0xff]
      %v2636 = vld [vmem:[#allocation3] sm:$0xff]
      %v2637 = vld [vmem:[#allocation3 + $0x8] sm:$0xff]
      %v2638 = vld [vmem:[#allocation3 + $0x10] sm:$0xff]
      %v2639 = vld [vmem:[#allocation3 + $0x18] sm:$0xff]
      %v2640 = vld [vmem:[#allocation3 + $0x20] sm:$0xff]
      %v2641 = vld [vmem:[#allocation3 + $0x28] sm:$0xff]
      %v2642 = vld [vmem:[#allocation3 + $0x30] sm:$0xff]
      %v2643 = vld [vmem:[#allocation3 + $0x38] sm:$0xff]
      %v2644 = vld [vmem:[#allocation3 + $0x40] sm:$0xff]
      %v2645 = vld [vmem:[#allocation3 + $0x48] sm:$0xff]
      %v2646 = vld [vmem:[#allocation3 + $0x50] sm:$0xff]
      %v2647 = vld [vmem:[#allocation3 + $0x58] sm:$0xff]
      %v2648 = vld [vmem:[#allocation3 + $0x60] sm:$0xff]
      %v2649 = vld [vmem:[#allocation3 + $0x68] sm:$0xff]
      %v2650 = vld [vmem:[#allocation3 + $0x70] sm:$0xff]
      %v2651 = vld [vmem:[#allocation3 + $0x78] sm:$0xff]
      %v2652 = vld [vmem:[#allocation3 + $0x80] sm:$0xff]
      %v2653 = vld [vmem:[#allocation3 + $0x88] sm:$0xff]
      %v2654 = vld [vmem:[#allocation3 + $0x90] sm:$0xff]
      %v2655 = vld [vmem:[#allocation3 + $0x98] sm:$0xff]
      %v2656 = vld [vmem:[#allocation3 + $0xa0] sm:$0xff]
      %v2657 = vld [vmem:[#allocation3 + $0xa8] sm:$0xff]
      %v2658 = vld [vmem:[#allocation3 + $0xb0] sm:$0xff]
      %v2659 = vld [vmem:[#allocation3 + $0xb8] sm:$0xff]
      %v2660 = vld [vmem:[#allocation3 + $0xc0] sm:$0xff]
      %v2661 = vld [vmem:[#allocation3 + $0xc8] sm:$0xff]
      %v2662 = vld [vmem:[#allocation3 + $0xd0] sm:$0xff]
      %v2663 = vld [vmem:[#allocation3 + $0xd8] sm:$0xff]
      %v2664 = vld [vmem:[#allocation3 + $0xe0] sm:$0xff]
      %v2665 = vld [vmem:[#allocation3 + $0xe8] sm:$0xff]
      %v2666 = vld [vmem:[#allocation3 + $0xf0] sm:$0xff]
      %v2667 = vld [vmem:[#allocation3 + $0xf8] sm:$0xff]
      %v2668 = vpack.c.bf16 %v2605, %v2604
      %v2669 = vpack.c.bf16 %v2607, %v2606
      %v2670 = vpack.c.bf16 %v2609, %v2608
      %v2671 = vpack.c.bf16 %v2611, %v2610
      %v2672 = vpack.c.bf16 %v2613, %v2612
      %v2673 = vpack.c.bf16 %v2615, %v2614
      %v2674 = vpack.c.bf16 %v2617, %v2616
      %v2675 = vpack.c.bf16 %v2619, %v2618
      %v2676 = vpack.c.bf16 %v2621, %v2620
      %v2677 = vpack.c.bf16 %v2623, %v2622
      %v2678 = vpack.c.bf16 %v2625, %v2624
      %v2679 = vpack.c.bf16 %v2627, %v2626
      %v2680 = vpack.c.bf16 %v2629, %v2628
      %v2681 = vpack.c.bf16 %v2631, %v2630
      %v2682 = vpack.c.bf16 %v2633, %v2632
      %v2683 = vpack.c.bf16 %v2635, %v2634
      %s2684 = scalar_lea.vmem %s3, 320
      %v2685 = vld [vmem:[%s2684] sm:$0xf]
      %v2686 = vld [vmem:[%s2684 + $0x4] sm:$0xf]
      %v2687 = vld [vmem:[%s2684 + $0x8] sm:$0xf]
      %v2688 = vld [vmem:[%s2684 + $0xc] sm:$0xf]
      %v2689 = vld [vmem:[%s2684 + $0x10] sm:$0xf]
      %v2690 = vld [vmem:[%s2684 + $0x14] sm:$0xf]
      %v2691 = vld [vmem:[%s2684 + $0x18] sm:$0xf]
      %v2692 = vld [vmem:[%s2684 + $0x1c] sm:$0xf]
      %v2693 = vld [vmem:[%s2684 + $0x20] sm:$0xf]
      %v2694 = vld [vmem:[%s2684 + $0x24] sm:$0xf]
      %v2695 = vld [vmem:[%s2684 + $0x28] sm:$0xf]
      %v2696 = vld [vmem:[%s2684 + $0x2c] sm:$0xf]
      %v2697 = vld [vmem:[%s2684 + $0x30] sm:$0xf]
      %v2698 = vld [vmem:[%s2684 + $0x34] sm:$0xf]
      %v2699 = vld [vmem:[%s2684 + $0x38] sm:$0xf]
      %v2700 = vld [vmem:[%s2684 + $0x3c] sm:$0xf]
      %v2717 = vunpack.c.l.b16 %v2685
      %v2718 = vunpack.c.l.b16 %v2686
      %v2719 = vunpack.c.l.b16 %v2687
      %v2720 = vunpack.c.l.b16 %v2688
      %v2721 = vunpack.c.l.b16 %v2689
      %v2722 = vunpack.c.l.b16 %v2690
      %v2723 = vunpack.c.l.b16 %v2691
      %v2724 = vunpack.c.l.b16 %v2692
      %v2725 = vunpack.c.l.b16 %v2693
      %v2726 = vunpack.c.l.b16 %v2694
      %v2727 = vunpack.c.l.b16 %v2695
      %v2728 = vunpack.c.l.b16 %v2696
      %v2729 = vunpack.c.l.b16 %v2697
      %v2730 = vunpack.c.l.b16 %v2698
      %v2731 = vunpack.c.l.b16 %v2699
      %v2732 = vunpack.c.l.b16 %v2700
      %v2733 = vpack.c.b16 %v2718, %v2717
      %v2734 = vpack.c.b16 %v2720, %v2719
      %v2735 = vpack.c.b16 %v2722, %v2721
      %v2736 = vpack.c.b16 %v2724, %v2723
      %v2737 = vpack.c.b16 %v2726, %v2725
      %v2738 = vpack.c.b16 %v2728, %v2727
      %v2739 = vpack.c.b16 %v2730, %v2729
      %v2740 = vpack.c.b16 %v2732, %v2731
      %2749 = vmatprep.subr.bf16.mxu0 0
      %2750 = vmatpush1.bf16.msra.mxu0 %v2733
      %2751 = vmatprep.subr.bf16.mxu0 0
      %2752 = vmatpush1.bf16.msra.mxu0 %v2734
      %2753 = vmatprep.subr.bf16.mxu0 0
      %2754 = vmatpush1.bf16.msra.mxu0 %v2735
      %2755 = vmatprep.subr.bf16.mxu0 0
      %2756 = vmatpush1.bf16.msra.mxu0 %v2736
      %2757 = vmatprep.subr.bf16.mxu0 0
      %2758 = vmatpush1.bf16.msra.mxu0 %v2737
      %2759 = vmatprep.subr.bf16.mxu0 0
      %2760 = vmatpush1.bf16.msra.mxu0 %v2738
      %2761 = vmatprep.subr.bf16.mxu0 0
      %2762 = vmatpush1.bf16.msra.mxu0 %v2739
      %2763 = vmatprep.subr.bf16.mxu0 0
      %2764 = vmatpush1.bf16.msra.mxu0 %v2740
      %2765 = vmatprep.subr.bf16.mxu0 0
      %2766 = vmatpush1.bf16.msra.mxu0 0
      %2767 = vmatprep.subr.bf16.mxu0 0
      %2768 = vmatpush1.bf16.msra.mxu0 0
      %2769 = vmatprep.subr.bf16.mxu0 0
      %2770 = vmatpush1.bf16.msra.mxu0 0
      %2771 = vmatprep.subr.bf16.mxu0 0
      %2772 = vmatpush1.bf16.msra.mxu0 0
      %2773 = vmatprep.subr.bf16.mxu0 0
      %2774 = vmatpush1.bf16.msra.mxu0 0
      %2775 = vmatprep.subr.bf16.mxu0 0
      %2776 = vmatpush1.bf16.msra.mxu0 0
      %2777 = vmatprep.subr.bf16.mxu0 0
      %2778 = vmatpush1.bf16.msra.mxu0 0
      %2779 = vmatprep.subr.bf16.mxu0 0
      %2780 = vmatpush1.bf16.msra.mxu0 0
      %2781 = vmatprep.mubr.bf16.mxu0 0
      %2782 = vmatmul.mubr.bf16.gmra.mrb[0].mxu0 %v2668
      %v2783 = vpop.f32.mrb[0].mxu0
      %v2784 = vadd.f32 0.0, %v2783
      %v2785 = vpop.f32.mrb[0].mxu0
      %v2786 = vpop.f32.mrb[0].mxu0
      %v2787 = vadd.f32 0.0, %v2786
      %v2788 = vpop.f32.mrb[0].mxu0
      %2789 = vmatprep.mubr.bf16.mxu0 0
      %2790 = vmatmul.mubr.bf16.gmra.mrb[0].mxu0 %v2669
      %v2791 = vpop.f32.mrb[0].mxu0
      %v2792 = vadd.f32 0.0, %v2791
      %v2793 = vpop.f32.mrb[0].mxu0
      %v2794 = vpop.f32.mrb[0].mxu0
      %v2795 = vadd.f32 0.0, %v2794
      %v2796 = vpop.f32.mrb[0].mxu0
      %2797 = vmatprep.mubr.bf16.mxu0 0
      %2798 = vmatmul.mubr.bf16.gmra.mrb[0].mxu0 %v2670
      %v2799 = vpop.f32.mrb[0].mxu0
      %v2800 = vadd.f32 0.0, %v2799
      %v2801 = vpop.f32.mrb[0].mxu0
      %v2802 = vpop.f32.mrb[0].mxu0
      %v2803 = vadd.f32 0.0, %v2802
      %v2804 = vpop.f32.mrb[0].mxu0
      %2805 = vmatprep.mubr.bf16.mxu0 0
      %2806 = vmatmul.mubr.bf16.gmra.mrb[0].mxu0 %v2671
      %v2807 = vpop.f32.mrb[0].mxu0
      %v2808 = vadd.f32 0.0, %v2807
      %v2809 = vpop.f32.mrb[0].mxu0
      %v2810 = vpop.f32.mrb[0].mxu0
      %v2811 = vadd.f32 0.0, %v2810
      %v2812 = vpop.f32.mrb[0].mxu0
      %2813 = vmatprep.mubr.bf16.mxu0 0
      %2814 = vmatmul.mubr.bf16.gmra.mrb[0].mxu0 %v2672
      %v2815 = vpop.f32.mrb[0].mxu0
      %v2816 = vadd.f32 0.0, %v2815
      %v2817 = vpop.f32.mrb[0].mxu0
      %v2818 = vpop.f32.mrb[0].mxu0
      %v2819 = vadd.f32 0.0, %v2818
      %v2820 = vpop.f32.mrb[0].mxu0
      %2821 = vmatprep.mubr.bf16.mxu0 0
      %2822 = vmatmul.mubr.bf16.gmra.mrb[0].mxu0 %v2673
      %v2823 = vpop.f32.mrb[0].mxu0
      %v2824 = vadd.f32 0.0, %v2823
      %v2825 = vpop.f32.mrb[0].mxu0
      %v2826 = vpop.f32.mrb[0].mxu0
      %v2827 = vadd.f32 0.0, %v2826
      %v2828 = vpop.f32.mrb[0].mxu0
      %2829 = vmatprep.mubr.bf16.mxu0 0
      %2830 = vmatmul.mubr.bf16.gmra.mrb[0].mxu0 %v2674
      %v2831 = vpop.f32.mrb[0].mxu0
      %v2832 = vadd.f32 0.0, %v2831
      %v2833 = vpop.f32.mrb[0].mxu0
      %v2834 = vpop.f32.mrb[0].mxu0
      %v2835 = vadd.f32 0.0, %v2834
      %v2836 = vpop.f32.mrb[0].mxu0
      %2837 = vmatprep.mubr.bf16.mxu0 0
      %2838 = vmatmul.mubr.bf16.gmra.mrb[0].mxu0 %v2675
      %v2839 = vpop.f32.mrb[0].mxu0
      %v2840 = vadd.f32 0.0, %v2839
      %v2841 = vpop.f32.mrb[0].mxu0
      %v2842 = vpop.f32.mrb[0].mxu0
      %v2843 = vadd.f32 0.0, %v2842
      %v2844 = vpop.f32.mrb[0].mxu0
      %2845 = vmatprep.mubr.bf16.mxu0 0
      %2846 = vmatmul.mubr.bf16.gmra.mrb[0].mxu0 %v2676
      %v2847 = vpop.f32.mrb[0].mxu0
      %v2848 = vadd.f32 0.0, %v2847
      %v2849 = vpop.f32.mrb[0].mxu0
      %v2850 = vpop.f32.mrb[0].mxu0
      %v2851 = vadd.f32 0.0, %v2850
      %v2852 = vpop.f32.mrb[0].mxu0
      %2853 = vmatprep.mubr.bf16.mxu0 0
      %2854 = vmatmul.mubr.bf16.gmra.mrb[0].mxu0 %v2677
      %v2855 = vpop.f32.mrb[0].mxu0
      %v2856 = vadd.f32 0.0, %v2855
      %v2857 = vpop.f32.mrb[0].mxu0
      %v2858 = vpop.f32.mrb[0].mxu0
      %v2859 = vadd.f32 0.0, %v2858
      %v2860 = vpop.f32.mrb[0].mxu0
      %2861 = vmatprep.mubr.bf16.mxu0 0
      %2862 = vmatmul.mubr.bf16.gmra.mrb[0].mxu0 %v2678
      %v2863 = vpop.f32.mrb[0].mxu0
      %v2864 = vadd.f32 0.0, %v2863
      %v2865 = vpop.f32.mrb[0].mxu0
      %v2866 = vpop.f32.mrb[0].mxu0
      %v2867 = vadd.f32 0.0, %v2866
      %v2868 = vpop.f32.mrb[0].mxu0
      %2869 = vmatprep.mubr.bf16.mxu0 0
      %2870 = vmatmul.mubr.bf16.gmra.mrb[0].mxu0 %v2679
      %v2871 = vpop.f32.mrb[0].mxu0
      %v2872 = vadd.f32 0.0, %v2871
      %v2873 = vpop.f32.mrb[0].mxu0
      %v2874 = vpop.f32.mrb[0].mxu0
      %v2875 = vadd.f32 0.0, %v2874
      %v2876 = vpop.f32.mrb[0].mxu0
      %2877 = vmatprep.mubr.bf16.mxu0 0
      %2878 = vmatmul.mubr.bf16.gmra.mrb[0].mxu0 %v2680
      %v2879 = vpop.f32.mrb[0].mxu0
      %v2880 = vadd.f32 0.0, %v2879
      %v2881 = vpop.f32.mrb[0].mxu0
      %v2882 = vpop.f32.mrb[0].mxu0
      %v2883 = vadd.f32 0.0, %v2882
      %v2884 = vpop.f32.mrb[0].mxu0
      %2885 = vmatprep.mubr.bf16.mxu0 0
      %2886 = vmatmul.mubr.bf16.gmra.mrb[0].mxu0 %v2681
      %v2887 = vpop.f32.mrb[0].mxu0
      %v2888 = vadd.f32 0.0, %v2887
      %v2889 = vpop.f32.mrb[0].mxu0
      %v2890 = vpop.f32.mrb[0].mxu0
      %v2891 = vadd.f32 0.0, %v2890
      %v2892 = vpop.f32.mrb[0].mxu0
      %2893 = vmatprep.mubr.bf16.mxu0 0
      %2894 = vmatmul.mubr.bf16.gmra.mrb[0].mxu0 %v2682
      %v2895 = vpop.f32.mrb[0].mxu0
      %v2896 = vadd.f32 0.0, %v2895
      %v2897 = vpop.f32.mrb[0].mxu0
      %v2898 = vpop.f32.mrb[0].mxu0
      %v2899 = vadd.f32 0.0, %v2898
      %v2900 = vpop.f32.mrb[0].mxu0
      %2901 = vmatprep.mubr.bf16.mxu0 0
      %2902 = vmatmul.mubr.bf16.gmra.mrb[0].mxu0 %v2683
      %v2903 = vpop.f32.mrb[0].mxu0
      %v2904 = vadd.f32 0.0, %v2903
      %v2905 = vpop.f32.mrb[0].mxu0
      %v2906 = vpop.f32.mrb[0].mxu0
      %v2907 = vadd.f32 0.0, %v2906
      %v2908 = vpop.f32.mrb[0].mxu0
      %2909 = vdwg.mxu0
      %v2910 = vadd.f32 %v2636, %v2784
      %v2911 = vadd.f32 %v2637, %v2787
      %v2912 = vadd.f32 %v2638, %v2792
      %v2913 = vadd.f32 %v2639, %v2795
      %v2914 = vadd.f32 %v2640, %v2800
      %v2915 = vadd.f32 %v2641, %v2803
      %v2916 = vadd.f32 %v2642, %v2808
      %v2917 = vadd.f32 %v2643, %v2811
      %v2918 = vadd.f32 %v2644, %v2816
      %v2919 = vadd.f32 %v2645, %v2819
      %v2920 = vadd.f32 %v2646, %v2824
      %v2921 = vadd.f32 %v2647, %v2827
      %v2922 = vadd.f32 %v2648, %v2832
      %v2923 = vadd.f32 %v2649, %v2835
      %v2924 = vadd.f32 %v2650, %v2840
      %v2925 = vadd.f32 %v2651, %v2843
      %v2926 = vadd.f32 %v2652, %v2848
      %v2927 = vadd.f32 %v2653, %v2851
      %v2928 = vadd.f32 %v2654, %v2856
      %v2929 = vadd.f32 %v2655, %v2859
      %v2930 = vadd.f32 %v2656, %v2864
      %v2931 = vadd.f32 %v2657, %v2867
      %v2932 = vadd.f32 %v2658, %v2872
      %v2933 = vadd.f32 %v2659, %v2875
      %v2934 = vadd.f32 %v2660, %v2880
      %v2935 = vadd.f32 %v2661, %v2883
      %v2936 = vadd.f32 %v2662, %v2888
      %v2937 = vadd.f32 %v2663, %v2891
      %v2938 = vadd.f32 %v2664, %v2896
      %v2939 = vadd.f32 %v2665, %v2899
      %v2940 = vadd.f32 %v2666, %v2904
      %v2941 = vadd.f32 %v2667, %v2907
      %2942 = vst [vmem:[#allocation3] sm:$0xff] %v2910
      %2943 = vst [vmem:[#allocation3 + $0x8] sm:$0xff] %v2911
      %2944 = vst [vmem:[#allocation3 + $0x10] sm:$0xff] %v2912
      %2945 = vst [vmem:[#allocation3 + $0x18] sm:$0xff] %v2913
      %2946 = vst [vmem:[#allocation3 + $0x20] sm:$0xff] %v2914
      %2947 = vst [vmem:[#allocation3 + $0x28] sm:$0xff] %v2915
      %2948 = vst [vmem:[#allocation3 + $0x30] sm:$0xff] %v2916
      %2949 = vst [vmem:[#allocation3 + $0x38] sm:$0xff] %v2917
      %2950 = vst [vmem:[#allocation3 + $0x40] sm:$0xff] %v2918
      %2951 = vst [vmem:[#allocation3 + $0x48] sm:$0xff] %v2919
      %2952 = vst [vmem:[#allocation3 + $0x50] sm:$0xff] %v2920
      %2953 = vst [vmem:[#allocation3 + $0x58] sm:$0xff] %v2921
      %2954 = vst [vmem:[#allocation3 + $0x60] sm:$0xff] %v2922
      %2955 = vst [vmem:[#allocation3 + $0x68] sm:$0xff] %v2923
      %2956 = vst [vmem:[#allocation3 + $0x70] sm:$0xff] %v2924
      %2957 = vst [vmem:[#allocation3 + $0x78] sm:$0xff] %v2925
      %2958 = vst [vmem:[#allocation3 + $0x80] sm:$0xff] %v2926
      %2959 = vst [vmem:[#allocation3 + $0x88] sm:$0xff] %v2927
      %2960 = vst [vmem:[#allocation3 + $0x90] sm:$0xff] %v2928
      %2961 = vst [vmem:[#allocation3 + $0x98] sm:$0xff] %v2929
      %2962 = vst [vmem:[#allocation3 + $0xa0] sm:$0xff] %v2930
      %2963 = vst [vmem:[#allocation3 + $0xa8] sm:$0xff] %v2931
      %2964 = vst [vmem:[#allocation3 + $0xb0] sm:$0xff] %v2932
      %2965 = vst [vmem:[#allocation3 + $0xb8] sm:$0xff] %v2933
      %2966 = vst [vmem:[#allocation3 + $0xc0] sm:$0xff] %v2934
      %2967 = vst [vmem:[#allocation3 + $0xc8] sm:$0xff] %v2935
      %2968 = vst [vmem:[#allocation3 + $0xd0] sm:$0xff] %v2936
      %2969 = vst [vmem:[#allocation3 + $0xd8] sm:$0xff] %v2937
      %2970 = vst [vmem:[#allocation3 + $0xe0] sm:$0xff] %v2938
      %2971 = vst [vmem:[#allocation3 + $0xe8] sm:$0xff] %v2939
      %2972 = vst [vmem:[#allocation3 + $0xf0] sm:$0xff] %v2940
      %2973 = vst [vmem:[#allocation3 + $0xf8] sm:$0xff] %v2941
      %s2974 = scalar_lea.vmem [#allocation2], 64
      %v2975 = vld [vmem:[%s2974 + $0x7] sm:$0xff]
      %v2976 = vld [vmem:[%s2974 + $0xf] sm:$0xff]
      %v2977 = vld [vmem:[%s2974 + $0x27] sm:$0xff]
      %v2978 = vld [vmem:[%s2974 + $0x2f] sm:$0xff]
      %v2979 = vld [vmem:[%s2974 + $0x47] sm:$0xff]
      %v2980 = vld [vmem:[%s2974 + $0x4f] sm:$0xff]
      %v2981 = vld [vmem:[%s2974 + $0x67] sm:$0xff]
      %v2982 = vld [vmem:[%s2974 + $0x6f] sm:$0xff]
      %v2983 = vld [vmem:[%s2974 + $0x87] sm:$0xff]
      %v2984 = vld [vmem:[%s2974 + $0x8f] sm:$0xff]
      %v2985 = vld [vmem:[%s2974 + $0xa7] sm:$0xff]
      %v2986 = vld [vmem:[%s2974 + $0xaf] sm:$0xff]
      %v2987 = vld [vmem:[%s2974 + $0xc7] sm:$0xff]
      %v2988 = vld [vmem:[%s2974 + $0xcf] sm:$0xff]
      %v2989 = vld [vmem:[%s2974 + $0xe7] sm:$0xff]
      %v2990 = vld [vmem:[%s2974 + $0xef] sm:$0xff]
      %v2991 = vld [vmem:[%s2974 + $0x107] sm:$0xff]
      %v2992 = vld [vmem:[%s2974 + $0x10f] sm:$0xff]
      %v2993 = vld [vmem:[%s2974 + $0x127] sm:$0xff]
      %v2994 = vld [vmem:[%s2974 + $0x12f] sm:$0xff]
      %v2995 = vld [vmem:[%s2974 + $0x147] sm:$0xff]
      %v2996 = vld [vmem:[%s2974 + $0x14f] sm:$0xff]
      %v2997 = vld [vmem:[%s2974 + $0x167] sm:$0xff]
      %v2998 = vld [vmem:[%s2974 + $0x16f] sm:$0xff]
      %v2999 = vld [vmem:[%s2974 + $0x187] sm:$0xff]
      %v3000 = vld [vmem:[%s2974 + $0x18f] sm:$0xff]
      %v3001 = vld [vmem:[%s2974 + $0x1a7] sm:$0xff]
      %v3002 = vld [vmem:[%s2974 + $0x1af] sm:$0xff]
      %v3003 = vld [vmem:[%s2974 + $0x1c7] sm:$0xff]
      %v3004 = vld [vmem:[%s2974 + $0x1cf] sm:$0xff]
      %v3005 = vld [vmem:[%s2974 + $0x1e7] sm:$0xff]
      %v3006 = vld [vmem:[%s2974 + $0x1ef] sm:$0xff]
      %v3007 = vld [vmem:[#allocation3] sm:$0xff]
      %v3008 = vld [vmem:[#allocation3 + $0x8] sm:$0xff]
      %v3009 = vld [vmem:[#allocation3 + $0x10] sm:$0xff]
      %v3010 = vld [vmem:[#allocation3 + $0x18] sm:$0xff]
      %v3011 = vld [vmem:[#allocation3 + $0x20] sm:$0xff]
      %v3012 = vld [vmem:[#allocation3 + $0x28] sm:$0xff]
      %v3013 = vld [vmem:[#allocation3 + $0x30] sm:$0xff]
      %v3014 = vld [vmem:[#allocation3 + $0x38] sm:$0xff]
      %v3015 = vld [vmem:[#allocation3 + $0x40] sm:$0xff]
      %v3016 = vld [vmem:[#allocation3 + $0x48] sm:$0xff]
      %v3017 = vld [vmem:[#allocation3 + $0x50] sm:$0xff]
      %v3018 = vld [vmem:[#allocation3 + $0x58] sm:$0xff]
      %v3019 = vld [vmem:[#allocation3 + $0x60] sm:$0xff]
      %v3020 = vld [vmem:[#allocation3 + $0x68] sm:$0xff]
      %v3021 = vld [vmem:[#allocation3 + $0x70] sm:$0xff]
      %v3022 = vld [vmem:[#allocation3 + $0x78] sm:$0xff]
      %v3023 = vld [vmem:[#allocation3 + $0x80] sm:$0xff]
      %v3024 = vld [vmem:[#allocation3 + $0x88] sm:$0xff]
      %v3025 = vld [vmem:[#allocation3 + $0x90] sm:$0xff]
      %v3026 = vld [vmem:[#allocation3 + $0x98] sm:$0xff]
      %v3027 = vld [vmem:[#allocation3 + $0xa0] sm:$0xff]
      %v3028 = vld [vmem:[#allocation3 + $0xa8] sm:$0xff]
      %v3029 = vld [vmem:[#allocation3 + $0xb0] sm:$0xff]
      %v3030 = vld [vmem:[#allocation3 + $0xb8] sm:$0xff]
      %v3031 = vld [vmem:[#allocation3 + $0xc0] sm:$0xff]
      %v3032 = vld [vmem:[#allocation3 + $0xc8] sm:$0xff]
      %v3033 = vld [vmem:[#allocation3 + $0xd0] sm:$0xff]
      %v3034 = vld [vmem:[#allocation3 + $0xd8] sm:$0xff]
      %v3035 = vld [vmem:[#allocation3 + $0xe0] sm:$0xff]
      %v3036 = vld [vmem:[#allocation3 + $0xe8] sm:$0xff]
      %v3037 = vld [vmem:[#allocation3 + $0xf0] sm:$0xff]
      %v3038 = vld [vmem:[#allocation3 + $0xf8] sm:$0xff]
      %v3039 = vpack.c.bf16 %v2976, %v2975
      %v3040 = vpack.c.bf16 %v2978, %v2977
      %v3041 = vpack.c.bf16 %v2980, %v2979
      %v3042 = vpack.c.bf16 %v2982, %v2981
      %v3043 = vpack.c.bf16 %v2984, %v2983
      %v3044 = vpack.c.bf16 %v2986, %v2985
      %v3045 = vpack.c.bf16 %v2988, %v2987
      %v3046 = vpack.c.bf16 %v2990, %v2989
      %v3047 = vpack.c.bf16 %v2992, %v2991
      %v3048 = vpack.c.bf16 %v2994, %v2993
      %v3049 = vpack.c.bf16 %v2996, %v2995
      %v3050 = vpack.c.bf16 %v2998, %v2997
      %v3051 = vpack.c.bf16 %v3000, %v2999
      %v3052 = vpack.c.bf16 %v3002, %v3001
      %v3053 = vpack.c.bf16 %v3004, %v3003
      %v3054 = vpack.c.bf16 %v3006, %v3005
      %s3055 = scalar_lea.vmem %s3, 384
      %v3056 = vld [vmem:[%s3055] sm:$0xf]
      %v3057 = vld [vmem:[%s3055 + $0x4] sm:$0xf]
      %v3058 = vld [vmem:[%s3055 + $0x8] sm:$0xf]
      %v3059 = vld [vmem:[%s3055 + $0xc] sm:$0xf]
      %v3060 = vld [vmem:[%s3055 + $0x10] sm:$0xf]
      %v3061 = vld [vmem:[%s3055 + $0x14] sm:$0xf]
      %v3062 = vld [vmem:[%s3055 + $0x18] sm:$0xf]
      %v3063 = vld [vmem:[%s3055 + $0x1c] sm:$0xf]
      %v3064 = vld [vmem:[%s3055 + $0x20] sm:$0xf]
      %v3065 = vld [vmem:[%s3055 + $0x24] sm:$0xf]
      %v3066 = vld [vmem:[%s3055 + $0x28] sm:$0xf]
      %v3067 = vld [vmem:[%s3055 + $0x2c] sm:$0xf]
      %v3068 = vld [vmem:[%s3055 + $0x30] sm:$0xf]
      %v3069 = vld [vmem:[%s3055 + $0x34] sm:$0xf]
      %v3070 = vld [vmem:[%s3055 + $0x38] sm:$0xf]
      %v3071 = vld [vmem:[%s3055 + $0x3c] sm:$0xf]
      %v3088 = vunpack.c.l.b16 %v3056
      %v3089 = vunpack.c.l.b16 %v3057
      %v3090 = vunpack.c.l.b16 %v3058
      %v3091 = vunpack.c.l.b16 %v3059
      %v3092 = vunpack.c.l.b16 %v3060
      %v3093 = vunpack.c.l.b16 %v3061
      %v3094 = vunpack.c.l.b16 %v3062
      %v3095 = vunpack.c.l.b16 %v3063
      %v3096 = vunpack.c.l.b16 %v3064
      %v3097 = vunpack.c.l.b16 %v3065
      %v3098 = vunpack.c.l.b16 %v3066
      %v3099 = vunpack.c.l.b16 %v3067
      %v3100 = vunpack.c.l.b16 %v3068
      %v3101 = vunpack.c.l.b16 %v3069
      %v3102 = vunpack.c.l.b16 %v3070
      %v3103 = vunpack.c.l.b16 %v3071
      %v3104 = vpack.c.b16 %v3089, %v3088
      %v3105 = vpack.c.b16 %v3091, %v3090
      %v3106 = vpack.c.b16 %v3093, %v3092
      %v3107 = vpack.c.b16 %v3095, %v3094
      %v3108 = vpack.c.b16 %v3097, %v3096
      %v3109 = vpack.c.b16 %v3099, %v3098
      %v3110 = vpack.c.b16 %v3101, %v3100
      %v3111 = vpack.c.b16 %v3103, %v3102
      %3120 = vmatprep.subr.bf16.mxu0 0
      %3121 = vmatpush1.bf16.msra.mxu0 %v3104
      %3122 = vmatprep.subr.bf16.mxu0 0
      %3123 = vmatpush1.bf16.msra.mxu0 %v3105
      %3124 = vmatprep.subr.bf16.mxu0 0
      %3125 = vmatpush1.bf16.msra.mxu0 %v3106
      %3126 = vmatprep.subr.bf16.mxu0 0
      %3127 = vmatpush1.bf16.msra.mxu0 %v3107
      %3128 = vmatprep.subr.bf16.mxu0 0
      %3129 = vmatpush1.bf16.msra.mxu0 %v3108
      %3130 = vmatprep.subr.bf16.mxu0 0
      %3131 = vmatpush1.bf16.msra.mxu0 %v3109
      %3132 = vmatprep.subr.bf16.mxu0 0
      %3133 = vmatpush1.bf16.msra.mxu0 %v3110
      %3134 = vmatprep.subr.bf16.mxu0 0
      %3135 = vmatpush1.bf16.msra.mxu0 %v3111
      %3136 = vmatprep.subr.bf16.mxu0 0
      %3137 = vmatpush1.bf16.msra.mxu0 0
      %3138 = vmatprep.subr.bf16.mxu0 0
      %3139 = vmatpush1.bf16.msra.mxu0 0
      %3140 = vmatprep.subr.bf16.mxu0 0
      %3141 = vmatpush1.bf16.msra.mxu0 0
      %3142 = vmatprep.subr.bf16.mxu0 0
      %3143 = vmatpush1.bf16.msra.mxu0 0
      %3144 = vmatprep.subr.bf16.mxu0 0
      %3145 = vmatpush1.bf16.msra.mxu0 0
      %3146 = vmatprep.subr.bf16.mxu0 0
      %3147 = vmatpush1.bf16.msra.mxu0 0
      %3148 = vmatprep.subr.bf16.mxu0 0
      %3149 = vmatpush1.bf16.msra.mxu0 0
      %3150 = vmatprep.subr.bf16.mxu0 0
      %3151 = vmatpush1.bf16.msra.mxu0 0
      %3152 = vmatprep.mubr.bf16.mxu0 0
      %3153 = vmatmul.mubr.bf16.gmra.mrb[0].mxu0 %v3039
      %v3154 = vpop.f32.mrb[0].mxu0
      %v3155 = vadd.f32 0.0, %v3154
      %v3156 = vpop.f32.mrb[0].mxu0
      %v3157 = vpop.f32.mrb[0].mxu0
      %v3158 = vadd.f32 0.0, %v3157
      %v3159 = vpop.f32.mrb[0].mxu0
      %3160 = vmatprep.mubr.bf16.mxu0 0
      %3161 = vmatmul.mubr.bf16.gmra.mrb[0].mxu0 %v3040
      %v3162 = vpop.f32.mrb[0].mxu0
      %v3163 = vadd.f32 0.0, %v3162
      %v3164 = vpop.f32.mrb[0].mxu0
      %v3165 = vpop.f32.mrb[0].mxu0
      %v3166 = vadd.f32 0.0, %v3165
      %v3167 = vpop.f32.mrb[0].mxu0
      %3168 = vmatprep.mubr.bf16.mxu0 0
      %3169 = vmatmul.mubr.bf16.gmra.mrb[0].mxu0 %v3041
      %v3170 = vpop.f32.mrb[0].mxu0
      %v3171 = vadd.f32 0.0, %v3170
      %v3172 = vpop.f32.mrb[0].mxu0
      %v3173 = vpop.f32.mrb[0].mxu0
      %v3174 = vadd.f32 0.0, %v3173
      %v3175 = vpop.f32.mrb[0].mxu0
      %3176 = vmatprep.mubr.bf16.mxu0 0
      %3177 = vmatmul.mubr.bf16.gmra.mrb[0].mxu0 %v3042
      %v3178 = vpop.f32.mrb[0].mxu0
      %v3179 = vadd.f32 0.0, %v3178
      %v3180 = vpop.f32.mrb[0].mxu0
      %v3181 = vpop.f32.mrb[0].mxu0
      %v3182 = vadd.f32 0.0, %v3181
      %v3183 = vpop.f32.mrb[0].mxu0
      %3184 = vmatprep.mubr.bf16.mxu0 0
      %3185 = vmatmul.mubr.bf16.gmra.mrb[0].mxu0 %v3043
      %v3186 = vpop.f32.mrb[0].mxu0
      %v3187 = vadd.f32 0.0, %v3186
      %v3188 = vpop.f32.mrb[0].mxu0
      %v3189 = vpop.f32.mrb[0].mxu0
      %v3190 = vadd.f32 0.0, %v3189
      %v3191 = vpop.f32.mrb[0].mxu0
      %3192 = vmatprep.mubr.bf16.mxu0 0
      %3193 = vmatmul.mubr.bf16.gmra.mrb[0].mxu0 %v3044
      %v3194 = vpop.f32.mrb[0].mxu0
      %v3195 = vadd.f32 0.0, %v3194
      %v3196 = vpop.f32.mrb[0].mxu0
      %v3197 = vpop.f32.mrb[0].mxu0
      %v3198 = vadd.f32 0.0, %v3197
      %v3199 = vpop.f32.mrb[0].mxu0
      %3200 = vmatprep.mubr.bf16.mxu0 0
      %3201 = vmatmul.mubr.bf16.gmra.mrb[0].mxu0 %v3045
      %v3202 = vpop.f32.mrb[0].mxu0
      %v3203 = vadd.f32 0.0, %v3202
      %v3204 = vpop.f32.mrb[0].mxu0
      %v3205 = vpop.f32.mrb[0].mxu0
      %v3206 = vadd.f32 0.0, %v3205
      %v3207 = vpop.f32.mrb[0].mxu0
      %3208 = vmatprep.mubr.bf16.mxu0 0
      %3209 = vmatmul.mubr.bf16.gmra.mrb[0].mxu0 %v3046
      %v3210 = vpop.f32.mrb[0].mxu0
      %v3211 = vadd.f32 0.0, %v3210
      %v3212 = vpop.f32.mrb[0].mxu0
      %v3213 = vpop.f32.mrb[0].mxu0
      %v3214 = vadd.f32 0.0, %v3213
      %v3215 = vpop.f32.mrb[0].mxu0
      %3216 = vmatprep.mubr.bf16.mxu0 0
      %3217 = vmatmul.mubr.bf16.gmra.mrb[0].mxu0 %v3047
      %v3218 = vpop.f32.mrb[0].mxu0
      %v3219 = vadd.f32 0.0, %v3218
      %v3220 = vpop.f32.mrb[0].mxu0
      %v3221 = vpop.f32.mrb[0].mxu0
      %v3222 = vadd.f32 0.0, %v3221
      %v3223 = vpop.f32.mrb[0].mxu0
      %3224 = vmatprep.mubr.bf16.mxu0 0
      %3225 = vmatmul.mubr.bf16.gmra.mrb[0].mxu0 %v3048
      %v3226 = vpop.f32.mrb[0].mxu0
      %v3227 = vadd.f32 0.0, %v3226
      %v3228 = vpop.f32.mrb[0].mxu0
      %v3229 = vpop.f32.mrb[0].mxu0
      %v3230 = vadd.f32 0.0, %v3229
      %v3231 = vpop.f32.mrb[0].mxu0
      %3232 = vmatprep.mubr.bf16.mxu0 0
      %3233 = vmatmul.mubr.bf16.gmra.mrb[0].mxu0 %v3049
      %v3234 = vpop.f32.mrb[0].mxu0
      %v3235 = vadd.f32 0.0, %v3234
      %v3236 = vpop.f32.mrb[0].mxu0
      %v3237 = vpop.f32.mrb[0].mxu0
      %v3238 = vadd.f32 0.0, %v3237
      %v3239 = vpop.f32.mrb[0].mxu0
      %3240 = vmatprep.mubr.bf16.mxu0 0
      %3241 = vmatmul.mubr.bf16.gmra.mrb[0].mxu0 %v3050
      %v3242 = vpop.f32.mrb[0].mxu0
      %v3243 = vadd.f32 0.0, %v3242
      %v3244 = vpop.f32.mrb[0].mxu0
      %v3245 = vpop.f32.mrb[0].mxu0
      %v3246 = vadd.f32 0.0, %v3245
      %v3247 = vpop.f32.mrb[0].mxu0
      %3248 = vmatprep.mubr.bf16.mxu0 0
      %3249 = vmatmul.mubr.bf16.gmra.mrb[0].mxu0 %v3051
      %v3250 = vpop.f32.mrb[0].mxu0
      %v3251 = vadd.f32 0.0, %v3250
      %v3252 = vpop.f32.mrb[0].mxu0
      %v3253 = vpop.f32.mrb[0].mxu0
      %v3254 = vadd.f32 0.0, %v3253
      %v3255 = vpop.f32.mrb[0].mxu0
      %3256 = vmatprep.mubr.bf16.mxu0 0
      %3257 = vmatmul.mubr.bf16.gmra.mrb[0].mxu0 %v3052
      %v3258 = vpop.f32.mrb[0].mxu0
      %v3259 = vadd.f32 0.0, %v3258
      %v3260 = vpop.f32.mrb[0].mxu0
      %v3261 = vpop.f32.mrb[0].mxu0
      %v3262 = vadd.f32 0.0, %v3261
      %v3263 = vpop.f32.mrb[0].mxu0
      %3264 = vmatprep.mubr.bf16.mxu0 0
      %3265 = vmatmul.mubr.bf16.gmra.mrb[0].mxu0 %v3053
      %v3266 = vpop.f32.mrb[0].mxu0
      %v3267 = vadd.f32 0.0, %v3266
      %v3268 = vpop.f32.mrb[0].mxu0
      %v3269 = vpop.f32.mrb[0].mxu0
      %v3270 = vadd.f32 0.0, %v3269
      %v3271 = vpop.f32.mrb[0].mxu0
      %3272 = vmatprep.mubr.bf16.mxu0 0
      %3273 = vmatmul.mubr.bf16.gmra.mrb[0].mxu0 %v3054
      %v3274 = vpop.f32.mrb[0].mxu0
      %v3275 = vadd.f32 0.0, %v3274
      %v3276 = vpop.f32.mrb[0].mxu0
      %v3277 = vpop.f32.mrb[0].mxu0
      %v3278 = vadd.f32 0.0, %v3277
      %v3279 = vpop.f32.mrb[0].mxu0
      %3280 = vdwg.mxu0
      %v3281 = vadd.f32 %v3007, %v3155
      %v3282 = vadd.f32 %v3008, %v3158
      %v3283 = vadd.f32 %v3009, %v3163
      %v3284 = vadd.f32 %v3010, %v3166
      %v3285 = vadd.f32 %v3011, %v3171
      %v3286 = vadd.f32 %v3012, %v3174
      %v3287 = vadd.f32 %v3013, %v3179
      %v3288 = vadd.f32 %v3014, %v3182
      %v3289 = vadd.f32 %v3015, %v3187
      %v3290 = vadd.f32 %v3016, %v3190
      %v3291 = vadd.f32 %v3017, %v3195
      %v3292 = vadd.f32 %v3018, %v3198
      %v3293 = vadd.f32 %v3019, %v3203
      %v3294 = vadd.f32 %v3020, %v3206
      %v3295 = vadd.f32 %v3021, %v3211
      %v3296 = vadd.f32 %v3022, %v3214
      %v3297 = vadd.f32 %v3023, %v3219
      %v3298 = vadd.f32 %v3024, %v3222
      %v3299 = vadd.f32 %v3025, %v3227
      %v3300 = vadd.f32 %v3026, %v3230
      %v3301 = vadd.f32 %v3027, %v3235
      %v3302 = vadd.f32 %v3028, %v3238
      %v3303 = vadd.f32 %v3029, %v3243
      %v3304 = vadd.f32 %v3030, %v3246
      %v3305 = vadd.f32 %v3031, %v3251
      %v3306 = vadd.f32 %v3032, %v3254
      %v3307 = vadd.f32 %v3033, %v3259
      %v3308 = vadd.f32 %v3034, %v3262
      %v3309 = vadd.f32 %v3035, %v3267
      %v3310 = vadd.f32 %v3036, %v3270
      %v3311 = vadd.f32 %v3037, %v3275
      %v3312 = vadd.f32 %v3038, %v3278
      %3313 = vst [vmem:[#allocation3] sm:$0xff] %v3281
      %3314 = vst [vmem:[#allocation3 + $0x8] sm:$0xff] %v3282
      %3315 = vst [vmem:[#allocation3 + $0x10] sm:$0xff] %v3283
      %3316 = vst [vmem:[#allocation3 + $0x18] sm:$0xff] %v3284
      %3317 = vst [vmem:[#allocation3 + $0x20] sm:$0xff] %v3285
      %3318 = vst [vmem:[#allocation3 + $0x28] sm:$0xff] %v3286
      %3319 = vst [vmem:[#allocation3 + $0x30] sm:$0xff] %v3287
      %3320 = vst [vmem:[#allocation3 + $0x38] sm:$0xff] %v3288
      %3321 = vst [vmem:[#allocation3 + $0x40] sm:$0xff] %v3289
      %3322 = vst [vmem:[#allocation3 + $0x48] sm:$0xff] %v3290
      %3323 = vst [vmem:[#allocation3 + $0x50] sm:$0xff] %v3291
      %3324 = vst [vmem:[#allocation3 + $0x58] sm:$0xff] %v3292
      %3325 = vst [vmem:[#allocation3 + $0x60] sm:$0xff] %v3293
      %3326 = vst [vmem:[#allocation3 + $0x68] sm:$0xff] %v3294
      %3327 = vst [vmem:[#allocation3 + $0x70] sm:$0xff] %v3295
      %3328 = vst [vmem:[#allocation3 + $0x78] sm:$0xff] %v3296
      %3329 = vst [vmem:[#allocation3 + $0x80] sm:$0xff] %v3297
      %3330 = vst [vmem:[#allocation3 + $0x88] sm:$0xff] %v3298
      %3331 = vst [vmem:[#allocation3 + $0x90] sm:$0xff] %v3299
      %3332 = vst [vmem:[#allocation3 + $0x98] sm:$0xff] %v3300
      %3333 = vst [vmem:[#allocation3 + $0xa0] sm:$0xff] %v3301
      %3334 = vst [vmem:[#allocation3 + $0xa8] sm:$0xff] %v3302
      %3335 = vst [vmem:[#allocation3 + $0xb0] sm:$0xff] %v3303
      %3336 = vst [vmem:[#allocation3 + $0xb8] sm:$0xff] %v3304
      %3337 = vst [vmem:[#allocation3 + $0xc0] sm:$0xff] %v3305
      %3338 = vst [vmem:[#allocation3 + $0xc8] sm:$0xff] %v3306
      %3339 = vst [vmem:[#allocation3 + $0xd0] sm:$0xff] %v3307
      %3340 = vst [vmem:[#allocation3 + $0xd8] sm:$0xff] %v3308
      %3341 = vst [vmem:[#allocation3 + $0xe0] sm:$0xff] %v3309
      %3342 = vst [vmem:[#allocation3 + $0xe8] sm:$0xff] %v3310
      %3343 = vst [vmem:[#allocation3 + $0xf0] sm:$0xff] %v3311
      %3344 = vst [vmem:[#allocation3 + $0xf8] sm:$0xff] %v3312
      %v3345 = vld [vmem:[%s2974 + $0x8] sm:$0xff]
      %v3346 = vld [vmem:[%s2974 + $0x10] sm:$0xff]
      %v3347 = vld [vmem:[%s2974 + $0x28] sm:$0xff]
      %v3348 = vld [vmem:[%s2974 + $0x30] sm:$0xff]
      %v3349 = vld [vmem:[%s2974 + $0x48] sm:$0xff]
      %v3350 = vld [vmem:[%s2974 + $0x50] sm:$0xff]
      %v3351 = vld [vmem:[%s2974 + $0x68] sm:$0xff]
      %v3352 = vld [vmem:[%s2974 + $0x70] sm:$0xff]
      %v3353 = vld [vmem:[%s2974 + $0x88] sm:$0xff]
      %v3354 = vld [vmem:[%s2974 + $0x90] sm:$0xff]
      %v3355 = vld [vmem:[%s2974 + $0xa8] sm:$0xff]
      %v3356 = vld [vmem:[%s2974 + $0xb0] sm:$0xff]
      %v3357 = vld [vmem:[%s2974 + $0xc8] sm:$0xff]
      %v3358 = vld [vmem:[%s2974 + $0xd0] sm:$0xff]
      %v3359 = vld [vmem:[%s2974 + $0xe8] sm:$0xff]
      %v3360 = vld [vmem:[%s2974 + $0xf0] sm:$0xff]
      %v3361 = vld [vmem:[%s2974 + $0x108] sm:$0xff]
      %v3362 = vld [vmem:[%s2974 + $0x110] sm:$0xff]
      %v3363 = vld [vmem:[%s2974 + $0x128] sm:$0xff]
      %v3364 = vld [vmem:[%s2974 + $0x130] sm:$0xff]
      %v3365 = vld [vmem:[%s2974 + $0x148] sm:$0xff]
      %v3366 = vld [vmem:[%s2974 + $0x150] sm:$0xff]
      %v3367 = vld [vmem:[%s2974 + $0x168] sm:$0xff]
      %v3368 = vld [vmem:[%s2974 + $0x170] sm:$0xff]
      %v3369 = vld [vmem:[%s2974 + $0x188] sm:$0xff]
      %v3370 = vld [vmem:[%s2974 + $0x190] sm:$0xff]
      %v3371 = vld [vmem:[%s2974 + $0x1a8] sm:$0xff]
      %v3372 = vld [vmem:[%s2974 + $0x1b0] sm:$0xff]
      %v3373 = vld [vmem:[%s2974 + $0x1c8] sm:$0xff]
      %v3374 = vld [vmem:[%s2974 + $0x1d0] sm:$0xff]
      %v3375 = vld [vmem:[%s2974 + $0x1e8] sm:$0xff]
      %v3376 = vld [vmem:[%s2974 + $0x1f0] sm:$0xff]
      %v3377 = vld [vmem:[#allocation3] sm:$0xff]
      %v3378 = vld [vmem:[#allocation3 + $0x8] sm:$0xff]
      %v3379 = vld [vmem:[#allocation3 + $0x10] sm:$0xff]
      %v3380 = vld [vmem:[#allocation3 + $0x18] sm:$0xff]
      %v3381 = vld [vmem:[#allocation3 + $0x20] sm:$0xff]
      %v3382 = vld [vmem:[#allocation3 + $0x28] sm:$0xff]
      %v3383 = vld [vmem:[#allocation3 + $0x30] sm:$0xff]
      %v3384 = vld [vmem:[#allocation3 + $0x38] sm:$0xff]
      %v3385 = vld [vmem:[#allocation3 + $0x40] sm:$0xff]
      %v3386 = vld [vmem:[#allocation3 + $0x48] sm:$0xff]
      %v3387 = vld [vmem:[#allocation3 + $0x50] sm:$0xff]
      %v3388 = vld [vmem:[#allocation3 + $0x58] sm:$0xff]
      %v3389 = vld [vmem:[#allocation3 + $0x60] sm:$0xff]
      %v3390 = vld [vmem:[#allocation3 + $0x68] sm:$0xff]
      %v3391 = vld [vmem:[#allocation3 + $0x70] sm:$0xff]
      %v3392 = vld [vmem:[#allocation3 + $0x78] sm:$0xff]
      %v3393 = vld [vmem:[#allocation3 + $0x80] sm:$0xff]
      %v3394 = vld [vmem:[#allocation3 + $0x88] sm:$0xff]
      %v3395 = vld [vmem:[#allocation3 + $0x90] sm:$0xff]
      %v3396 = vld [vmem:[#allocation3 + $0x98] sm:$0xff]
      %v3397 = vld [vmem:[#allocation3 + $0xa0] sm:$0xff]
      %v3398 = vld [vmem:[#allocation3 + $0xa8] sm:$0xff]
      %v3399 = vld [vmem:[#allocation3 + $0xb0] sm:$0xff]
      %v3400 = vld [vmem:[#allocation3 + $0xb8] sm:$0xff]
      %v3401 = vld [vmem:[#allocation3 + $0xc0] sm:$0xff]
      %v3402 = vld [vmem:[#allocation3 + $0xc8] sm:$0xff]
      %v3403 = vld [vmem:[#allocation3 + $0xd0] sm:$0xff]
      %v3404 = vld [vmem:[#allocation3 + $0xd8] sm:$0xff]
      %v3405 = vld [vmem:[#allocation3 + $0xe0] sm:$0xff]
      %v3406 = vld [vmem:[#allocation3 + $0xe8] sm:$0xff]
      %v3407 = vld [vmem:[#allocation3 + $0xf0] sm:$0xff]
      %v3408 = vld [vmem:[#allocation3 + $0xf8] sm:$0xff]
      %v3409 = vpack.c.bf16 %v3346, %v3345
      %v3410 = vpack.c.bf16 %v3348, %v3347
      %v3411 = vpack.c.bf16 %v3350, %v3349
      %v3412 = vpack.c.bf16 %v3352, %v3351
      %v3413 = vpack.c.bf16 %v3354, %v3353
      %v3414 = vpack.c.bf16 %v3356, %v3355
      %v3415 = vpack.c.bf16 %v3358, %v3357
      %v3416 = vpack.c.bf16 %v3360, %v3359
      %v3417 = vpack.c.bf16 %v3362, %v3361
      %v3418 = vpack.c.bf16 %v3364, %v3363
      %v3419 = vpack.c.bf16 %v3366, %v3365
      %v3420 = vpack.c.bf16 %v3368, %v3367
      %v3421 = vpack.c.bf16 %v3370, %v3369
      %v3422 = vpack.c.bf16 %v3372, %v3371
      %v3423 = vpack.c.bf16 %v3374, %v3373
      %v3424 = vpack.c.bf16 %v3376, %v3375
      %s3425 = scalar_lea.vmem %s3, 448
      %v3426 = vld [vmem:[%s3425] sm:$0xf]
      %v3427 = vld [vmem:[%s3425 + $0x4] sm:$0xf]
      %v3428 = vld [vmem:[%s3425 + $0x8] sm:$0xf]
      %v3429 = vld [vmem:[%s3425 + $0xc] sm:$0xf]
      %v3430 = vld [vmem:[%s3425 + $0x10] sm:$0xf]
      %v3431 = vld [vmem:[%s3425 + $0x14] sm:$0xf]
      %v3432 = vld [vmem:[%s3425 + $0x18] sm:$0xf]
      %v3433 = vld [vmem:[%s3425 + $0x1c] sm:$0xf]
      %v3434 = vld [vmem:[%s3425 + $0x20] sm:$0xf]
      %v3435 = vld [vmem:[%s3425 + $0x24] sm:$0xf]
      %v3436 = vld [vmem:[%s3425 + $0x28] sm:$0xf]
      %v3437 = vld [vmem:[%s3425 + $0x2c] sm:$0xf]
      %v3438 = vld [vmem:[%s3425 + $0x30] sm:$0xf]
      %v3439 = vld [vmem:[%s3425 + $0x34] sm:$0xf]
      %v3440 = vld [vmem:[%s3425 + $0x38] sm:$0xf]
      %v3441 = vld [vmem:[%s3425 + $0x3c] sm:$0xf]
      %v3458 = vunpack.c.l.b16 %v3426
      %v3459 = vunpack.c.l.b16 %v3427
      %v3460 = vunpack.c.l.b16 %v3428
      %v3461 = vunpack.c.l.b16 %v3429
      %v3462 = vunpack.c.l.b16 %v3430
      %v3463 = vunpack.c.l.b16 %v3431
      %v3464 = vunpack.c.l.b16 %v3432
      %v3465 = vunpack.c.l.b16 %v3433
      %v3466 = vunpack.c.l.b16 %v3434
      %v3467 = vunpack.c.l.b16 %v3435
      %v3468 = vunpack.c.l.b16 %v3436
      %v3469 = vunpack.c.l.b16 %v3437
      %v3470 = vunpack.c.l.b16 %v3438
      %v3471 = vunpack.c.l.b16 %v3439
      %v3472 = vunpack.c.l.b16 %v3440
      %v3473 = vunpack.c.l.b16 %v3441
      %v3474 = vpack.c.b16 %v3459, %v3458
      %v3475 = vpack.c.b16 %v3461, %v3460
      %v3476 = vpack.c.b16 %v3463, %v3462
      %v3477 = vpack.c.b16 %v3465, %v3464
      %v3478 = vpack.c.b16 %v3467, %v3466
      %v3479 = vpack.c.b16 %v3469, %v3468
      %v3480 = vpack.c.b16 %v3471, %v3470
      %v3481 = vpack.c.b16 %v3473, %v3472
      %3490 = vmatprep.subr.bf16.mxu0 0
      %3491 = vmatpush1.bf16.msra.mxu0 %v3474
      %3492 = vmatprep.subr.bf16.mxu0 0
      %3493 = vmatpush1.bf16.msra.mxu0 %v3475
      %3494 = vmatprep.subr.bf16.mxu0 0
      %3495 = vmatpush1.bf16.msra.mxu0 %v3476
      %3496 = vmatprep.subr.bf16.mxu0 0
      %3497 = vmatpush1.bf16.msra.mxu0 %v3477
      %3498 = vmatprep.subr.bf16.mxu0 0
      %3499 = vmatpush1.bf16.msra.mxu0 %v3478
      %3500 = vmatprep.subr.bf16.mxu0 0
      %3501 = vmatpush1.bf16.msra.mxu0 %v3479
      %3502 = vmatprep.subr.bf16.mxu0 0
      %3503 = vmatpush1.bf16.msra.mxu0 %v3480
      %3504 = vmatprep.subr.bf16.mxu0 0
      %3505 = vmatpush1.bf16.msra.mxu0 %v3481
      %3506 = vmatprep.subr.bf16.mxu0 0
      %3507 = vmatpush1.bf16.msra.mxu0 0
      %3508 = vmatprep.subr.bf16.mxu0 0
      %3509 = vmatpush1.bf16.msra.mxu0 0
      %3510 = vmatprep.subr.bf16.mxu0 0
      %3511 = vmatpush1.bf16.msra.mxu0 0
      %3512 = vmatprep.subr.bf16.mxu0 0
      %3513 = vmatpush1.bf16.msra.mxu0 0
      %3514 = vmatprep.subr.bf16.mxu0 0
      %3515 = vmatpush1.bf16.msra.mxu0 0
      %3516 = vmatprep.subr.bf16.mxu0 0
      %3517 = vmatpush1.bf16.msra.mxu0 0
      %3518 = vmatprep.subr.bf16.mxu0 0
      %3519 = vmatpush1.bf16.msra.mxu0 0
      %3520 = vmatprep.subr.bf16.mxu0 0
      %3521 = vmatpush1.bf16.msra.mxu0 0
      %3522 = vmatprep.mubr.bf16.mxu0 0
      %3523 = vmatmul.mubr.bf16.gmra.mrb[0].mxu0 %v3409
      %v3524 = vpop.f32.mrb[0].mxu0
      %v3525 = vadd.f32 0.0, %v3524
      %v3526 = vpop.f32.mrb[0].mxu0
      %v3527 = vpop.f32.mrb[0].mxu0
      %v3528 = vadd.f32 0.0, %v3527
      %v3529 = vpop.f32.mrb[0].mxu0
      %3530 = vmatprep.mubr.bf16.mxu0 0
      %3531 = vmatmul.mubr.bf16.gmra.mrb[0].mxu0 %v3410
      %v3532 = vpop.f32.mrb[0].mxu0
      %v3533 = vadd.f32 0.0, %v3532
      %v3534 = vpop.f32.mrb[0].mxu0
      %v3535 = vpop.f32.mrb[0].mxu0
      %v3536 = vadd.f32 0.0, %v3535
      %v3537 = vpop.f32.mrb[0].mxu0
      %3538 = vmatprep.mubr.bf16.mxu0 0
      %3539 = vmatmul.mubr.bf16.gmra.mrb[0].mxu0 %v3411
      %v3540 = vpop.f32.mrb[0].mxu0
      %v3541 = vadd.f32 0.0, %v3540
      %v3542 = vpop.f32.mrb[0].mxu0
      %v3543 = vpop.f32.mrb[0].mxu0
      %v3544 = vadd.f32 0.0, %v3543
      %v3545 = vpop.f32.mrb[0].mxu0
      %3546 = vmatprep.mubr.bf16.mxu0 0
      %3547 = vmatmul.mubr.bf16.gmra.mrb[0].mxu0 %v3412
      %v3548 = vpop.f32.mrb[0].mxu0
      %v3549 = vadd.f32 0.0, %v3548
      %v3550 = vpop.f32.mrb[0].mxu0
      %v3551 = vpop.f32.mrb[0].mxu0
      %v3552 = vadd.f32 0.0, %v3551
      %v3553 = vpop.f32.mrb[0].mxu0
      %3554 = vmatprep.mubr.bf16.mxu0 0
      %3555 = vmatmul.mubr.bf16.gmra.mrb[0].mxu0 %v3413
      %v3556 = vpop.f32.mrb[0].mxu0
      %v3557 = vadd.f32 0.0, %v3556
      %v3558 = vpop.f32.mrb[0].mxu0
      %v3559 = vpop.f32.mrb[0].mxu0
      %v3560 = vadd.f32 0.0, %v3559
      %v3561 = vpop.f32.mrb[0].mxu0
      %3562 = vmatprep.mubr.bf16.mxu0 0
      %3563 = vmatmul.mubr.bf16.gmra.mrb[0].mxu0 %v3414
      %v3564 = vpop.f32.mrb[0].mxu0
      %v3565 = vadd.f32 0.0, %v3564
      %v3566 = vpop.f32.mrb[0].mxu0
      %v3567 = vpop.f32.mrb[0].mxu0
      %v3568 = vadd.f32 0.0, %v3567
      %v3569 = vpop.f32.mrb[0].mxu0
      %3570 = vmatprep.mubr.bf16.mxu0 0
      %3571 = vmatmul.mubr.bf16.gmra.mrb[0].mxu0 %v3415
      %v3572 = vpop.f32.mrb[0].mxu0
      %v3573 = vadd.f32 0.0, %v3572
      %v3574 = vpop.f32.mrb[0].mxu0
      %v3575 = vpop.f32.mrb[0].mxu0
      %v3576 = vadd.f32 0.0, %v3575
      %v3577 = vpop.f32.mrb[0].mxu0
      %3578 = vmatprep.mubr.bf16.mxu0 0
      %3579 = vmatmul.mubr.bf16.gmra.mrb[0].mxu0 %v3416
      %v3580 = vpop.f32.mrb[0].mxu0
      %v3581 = vadd.f32 0.0, %v3580
      %v3582 = vpop.f32.mrb[0].mxu0
      %v3583 = vpop.f32.mrb[0].mxu0
      %v3584 = vadd.f32 0.0, %v3583
      %v3585 = vpop.f32.mrb[0].mxu0
      %3586 = vmatprep.mubr.bf16.mxu0 0
      %3587 = vmatmul.mubr.bf16.gmra.mrb[0].mxu0 %v3417
      %v3588 = vpop.f32.mrb[0].mxu0
      %v3589 = vadd.f32 0.0, %v3588
      %v3590 = vpop.f32.mrb[0].mxu0
      %v3591 = vpop.f32.mrb[0].mxu0
      %v3592 = vadd.f32 0.0, %v3591
      %v3593 = vpop.f32.mrb[0].mxu0
      %3594 = vmatprep.mubr.bf16.mxu0 0
      %3595 = vmatmul.mubr.bf16.gmra.mrb[0].mxu0 %v3418
      %v3596 = vpop.f32.mrb[0].mxu0
      %v3597 = vadd.f32 0.0, %v3596
      %v3598 = vpop.f32.mrb[0].mxu0
      %v3599 = vpop.f32.mrb[0].mxu0
      %v3600 = vadd.f32 0.0, %v3599
      %v3601 = vpop.f32.mrb[0].mxu0
      %3602 = vmatprep.mubr.bf16.mxu0 0
      %3603 = vmatmul.mubr.bf16.gmra.mrb[0].mxu0 %v3419
      %v3604 = vpop.f32.mrb[0].mxu0
      %v3605 = vadd.f32 0.0, %v3604
      %v3606 = vpop.f32.mrb[0].mxu0
      %v3607 = vpop.f32.mrb[0].mxu0
      %v3608 = vadd.f32 0.0, %v3607
      %v3609 = vpop.f32.mrb[0].mxu0
      %3610 = vmatprep.mubr.bf16.mxu0 0
      %3611 = vmatmul.mubr.bf16.gmra.mrb[0].mxu0 %v3420
      %v3612 = vpop.f32.mrb[0].mxu0
      %v3613 = vadd.f32 0.0, %v3612
      %v3614 = vpop.f32.mrb[0].mxu0
      %v3615 = vpop.f32.mrb[0].mxu0
      %v3616 = vadd.f32 0.0, %v3615
      %v3617 = vpop.f32.mrb[0].mxu0
      %3618 = vmatprep.mubr.bf16.mxu0 0
      %3619 = vmatmul.mubr.bf16.gmra.mrb[0].mxu0 %v3421
      %v3620 = vpop.f32.mrb[0].mxu0
      %v3621 = vadd.f32 0.0, %v3620
      %v3622 = vpop.f32.mrb[0].mxu0
      %v3623 = vpop.f32.mrb[0].mxu0
      %v3624 = vadd.f32 0.0, %v3623
      %v3625 = vpop.f32.mrb[0].mxu0
      %3626 = vmatprep.mubr.bf16.mxu0 0
      %3627 = vmatmul.mubr.bf16.gmra.mrb[0].mxu0 %v3422
      %v3628 = vpop.f32.mrb[0].mxu0
      %v3629 = vadd.f32 0.0, %v3628
      %v3630 = vpop.f32.mrb[0].mxu0
      %v3631 = vpop.f32.mrb[0].mxu0
      %v3632 = vadd.f32 0.0, %v3631
      %v3633 = vpop.f32.mrb[0].mxu0
      %3634 = vmatprep.mubr.bf16.mxu0 0
      %3635 = vmatmul.mubr.bf16.gmra.mrb[0].mxu0 %v3423
      %v3636 = vpop.f32.mrb[0].mxu0
      %v3637 = vadd.f32 0.0, %v3636
      %v3638 = vpop.f32.mrb[0].mxu0
      %v3639 = vpop.f32.mrb[0].mxu0
      %v3640 = vadd.f32 0.0, %v3639
      %v3641 = vpop.f32.mrb[0].mxu0
      %3642 = vmatprep.mubr.bf16.mxu0 0
      %3643 = vmatmul.mubr.bf16.gmra.mrb[0].mxu0 %v3424
      %v3644 = vpop.f32.mrb[0].mxu0
      %v3645 = vadd.f32 0.0, %v3644
      %v3646 = vpop.f32.mrb[0].mxu0
      %v3647 = vpop.f32.mrb[0].mxu0
      %v3648 = vadd.f32 0.0, %v3647
      %v3649 = vpop.f32.mrb[0].mxu0
      %3650 = vdwg.mxu0
      %v3651 = vadd.f32 %v3377, %v3525
      %v3652 = vadd.f32 %v3378, %v3528
      %v3653 = vadd.f32 %v3379, %v3533
      %v3654 = vadd.f32 %v3380, %v3536
      %v3655 = vadd.f32 %v3381, %v3541
      %v3656 = vadd.f32 %v3382, %v3544
      %v3657 = vadd.f32 %v3383, %v3549
      %v3658 = vadd.f32 %v3384, %v3552
      %v3659 = vadd.f32 %v3385, %v3557
      %v3660 = vadd.f32 %v3386, %v3560
      %v3661 = vadd.f32 %v3387, %v3565
      %v3662 = vadd.f32 %v3388, %v3568
      %v3663 = vadd.f32 %v3389, %v3573
      %v3664 = vadd.f32 %v3390, %v3576
      %v3665 = vadd.f32 %v3391, %v3581
      %v3666 = vadd.f32 %v3392, %v3584
      %v3667 = vadd.f32 %v3393, %v3589
      %v3668 = vadd.f32 %v3394, %v3592
      %v3669 = vadd.f32 %v3395, %v3597
      %v3670 = vadd.f32 %v3396, %v3600
      %v3671 = vadd.f32 %v3397, %v3605
      %v3672 = vadd.f32 %v3398, %v3608
      %v3673 = vadd.f32 %v3399, %v3613
      %v3674 = vadd.f32 %v3400, %v3616
      %v3675 = vadd.f32 %v3401, %v3621
      %v3676 = vadd.f32 %v3402, %v3624
      %v3677 = vadd.f32 %v3403, %v3629
      %v3678 = vadd.f32 %v3404, %v3632
      %v3679 = vadd.f32 %v3405, %v3637
      %v3680 = vadd.f32 %v3406, %v3640
      %v3681 = vadd.f32 %v3407, %v3645
      %v3682 = vadd.f32 %v3408, %v3648
      %3683 = vst [vmem:[#allocation3] sm:$0xff] %v3651
      %3684 = vst [vmem:[#allocation3 + $0x8] sm:$0xff] %v3652
      %3685 = vst [vmem:[#allocation3 + $0x10] sm:$0xff] %v3653
      %3686 = vst [vmem:[#allocation3 + $0x18] sm:$0xff] %v3654
      %3687 = vst [vmem:[#allocation3 + $0x20] sm:$0xff] %v3655
      %3688 = vst [vmem:[#allocation3 + $0x28] sm:$0xff] %v3656
      %3689 = vst [vmem:[#allocation3 + $0x30] sm:$0xff] %v3657
      %3690 = vst [vmem:[#allocation3 + $0x38] sm:$0xff] %v3658
      %3691 = vst [vmem:[#allocation3 + $0x40] sm:$0xff] %v3659
      %3692 = vst [vmem:[#allocation3 + $0x48] sm:$0xff] %v3660
      %3693 = vst [vmem:[#allocation3 + $0x50] sm:$0xff] %v3661
      %3694 = vst [vmem:[#allocation3 + $0x58] sm:$0xff] %v3662
      %3695 = vst [vmem:[#allocation3 + $0x60] sm:$0xff] %v3663
      %3696 = vst [vmem:[#allocation3 + $0x68] sm:$0xff] %v3664
      %3697 = vst [vmem:[#allocation3 + $0x70] sm:$0xff] %v3665
      %3698 = vst [vmem:[#allocation3 + $0x78] sm:$0xff] %v3666
      %3699 = vst [vmem:[#allocation3 + $0x80] sm:$0xff] %v3667
      %3700 = vst [vmem:[#allocation3 + $0x88] sm:$0xff] %v3668
      %3701 = vst [vmem:[#allocation3 + $0x90] sm:$0xff] %v3669
      %3702 = vst [vmem:[#allocation3 + $0x98] sm:$0xff] %v3670
      %3703 = vst [vmem:[#allocation3 + $0xa0] sm:$0xff] %v3671
      %3704 = vst [vmem:[#allocation3 + $0xa8] sm:$0xff] %v3672
      %3705 = vst [vmem:[#allocation3 + $0xb0] sm:$0xff] %v3673
      %3706 = vst [vmem:[#allocation3 + $0xb8] sm:$0xff] %v3674
      %3707 = vst [vmem:[#allocation3 + $0xc0] sm:$0xff] %v3675
      %3708 = vst [vmem:[#allocation3 + $0xc8] sm:$0xff] %v3676
      %3709 = vst [vmem:[#allocation3 + $0xd0] sm:$0xff] %v3677
      %3710 = vst [vmem:[#allocation3 + $0xd8] sm:$0xff] %v3678
      %3711 = vst [vmem:[#allocation3 + $0xe0] sm:$0xff] %v3679
      %3712 = vst [vmem:[#allocation3 + $0xe8] sm:$0xff] %v3680
      %3713 = vst [vmem:[#allocation3 + $0xf0] sm:$0xff] %v3681
      %3714 = vst [vmem:[#allocation3 + $0xf8] sm:$0xff] %v3682
      %v3715 = vld [vmem:[%s2974 + $0x9] sm:$0xff]
      %v3716 = vld [vmem:[%s2974 + $0x11] sm:$0xff]
      %v3717 = vld [vmem:[%s2974 + $0x29] sm:$0xff]
      %v3718 = vld [vmem:[%s2974 + $0x31] sm:$0xff]
      %v3719 = vld [vmem:[%s2974 + $0x49] sm:$0xff]
      %v3720 = vld [vmem:[%s2974 + $0x51] sm:$0xff]
      %v3721 = vld [vmem:[%s2974 + $0x69] sm:$0xff]
      %v3722 = vld [vmem:[%s2974 + $0x71] sm:$0xff]
      %v3723 = vld [vmem:[%s2974 + $0x89] sm:$0xff]
      %v3724 = vld [vmem:[%s2974 + $0x91] sm:$0xff]
      %v3725 = vld [vmem:[%s2974 + $0xa9] sm:$0xff]
      %v3726 = vld [vmem:[%s2974 + $0xb1] sm:$0xff]
      %v3727 = vld [vmem:[%s2974 + $0xc9] sm:$0xff]
      %v3728 = vld [vmem:[%s2974 + $0xd1] sm:$0xff]
      %v3729 = vld [vmem:[%s2974 + $0xe9] sm:$0xff]
      %v3730 = vld [vmem:[%s2974 + $0xf1] sm:$0xff]
      %v3731 = vld [vmem:[%s2974 + $0x109] sm:$0xff]
      %v3732 = vld [vmem:[%s2974 + $0x111] sm:$0xff]
      %v3733 = vld [vmem:[%s2974 + $0x129] sm:$0xff]
      %v3734 = vld [vmem:[%s2974 + $0x131] sm:$0xff]
      %v3735 = vld [vmem:[%s2974 + $0x149] sm:$0xff]
      %v3736 = vld [vmem:[%s2974 + $0x151] sm:$0xff]
      %v3737 = vld [vmem:[%s2974 + $0x169] sm:$0xff]
      %v3738 = vld [vmem:[%s2974 + $0x171] sm:$0xff]
      %v3739 = vld [vmem:[%s2974 + $0x189] sm:$0xff]
      %v3740 = vld [vmem:[%s2974 + $0x191] sm:$0xff]
      %v3741 = vld [vmem:[%s2974 + $0x1a9] sm:$0xff]
      %v3742 = vld [vmem:[%s2974 + $0x1b1] sm:$0xff]
      %v3743 = vld [vmem:[%s2974 + $0x1c9] sm:$0xff]
      %v3744 = vld [vmem:[%s2974 + $0x1d1] sm:$0xff]
      %v3745 = vld [vmem:[%s2974 + $0x1e9] sm:$0xff]
      %v3746 = vld [vmem:[%s2974 + $0x1f1] sm:$0xff]
      %v3747 = vld [vmem:[#allocation3] sm:$0xff]
      %v3748 = vld [vmem:[#allocation3 + $0x8] sm:$0xff]
      %v3749 = vld [vmem:[#allocation3 + $0x10] sm:$0xff]
      %v3750 = vld [vmem:[#allocation3 + $0x18] sm:$0xff]
      %v3751 = vld [vmem:[#allocation3 + $0x20] sm:$0xff]
      %v3752 = vld [vmem:[#allocation3 + $0x28] sm:$0xff]
      %v3753 = vld [vmem:[#allocation3 + $0x30] sm:$0xff]
      %v3754 = vld [vmem:[#allocation3 + $0x38] sm:$0xff]
      %v3755 = vld [vmem:[#allocation3 + $0x40] sm:$0xff]
      %v3756 = vld [vmem:[#allocation3 + $0x48] sm:$0xff]
      %v3757 = vld [vmem:[#allocation3 + $0x50] sm:$0xff]
      %v3758 = vld [vmem:[#allocation3 + $0x58] sm:$0xff]
      %v3759 = vld [vmem:[#allocation3 + $0x60] sm:$0xff]
      %v3760 = vld [vmem:[#allocation3 + $0x68] sm:$0xff]
      %v3761 = vld [vmem:[#allocation3 + $0x70] sm:$0xff]
      %v3762 = vld [vmem:[#allocation3 + $0x78] sm:$0xff]
      %v3763 = vld [vmem:[#allocation3 + $0x80] sm:$0xff]
      %v3764 = vld [vmem:[#allocation3 + $0x88] sm:$0xff]
      %v3765 = vld [vmem:[#allocation3 + $0x90] sm:$0xff]
      %v3766 = vld [vmem:[#allocation3 + $0x98] sm:$0xff]
      %v3767 = vld [vmem:[#allocation3 + $0xa0] sm:$0xff]
      %v3768 = vld [vmem:[#allocation3 + $0xa8] sm:$0xff]
      %v3769 = vld [vmem:[#allocation3 + $0xb0] sm:$0xff]
      %v3770 = vld [vmem:[#allocation3 + $0xb8] sm:$0xff]
      %v3771 = vld [vmem:[#allocation3 + $0xc0] sm:$0xff]
      %v3772 = vld [vmem:[#allocation3 + $0xc8] sm:$0xff]
      %v3773 = vld [vmem:[#allocation3 + $0xd0] sm:$0xff]
      %v3774 = vld [vmem:[#allocation3 + $0xd8] sm:$0xff]
      %v3775 = vld [vmem:[#allocation3 + $0xe0] sm:$0xff]
      %v3776 = vld [vmem:[#allocation3 + $0xe8] sm:$0xff]
      %v3777 = vld [vmem:[#allocation3 + $0xf0] sm:$0xff]
      %v3778 = vld [vmem:[#allocation3 + $0xf8] sm:$0xff]
      %v3779 = vpack.c.bf16 %v3716, %v3715
      %v3780 = vpack.c.bf16 %v3718, %v3717
      %v3781 = vpack.c.bf16 %v3720, %v3719
      %v3782 = vpack.c.bf16 %v3722, %v3721
      %v3783 = vpack.c.bf16 %v3724, %v3723
      %v3784 = vpack.c.bf16 %v3726, %v3725
      %v3785 = vpack.c.bf16 %v3728, %v3727
      %v3786 = vpack.c.bf16 %v3730, %v3729
      %v3787 = vpack.c.bf16 %v3732, %v3731
      %v3788 = vpack.c.bf16 %v3734, %v3733
      %v3789 = vpack.c.bf16 %v3736, %v3735
      %v3790 = vpack.c.bf16 %v3738, %v3737
      %v3791 = vpack.c.bf16 %v3740, %v3739
      %v3792 = vpack.c.bf16 %v3742, %v3741
      %v3793 = vpack.c.bf16 %v3744, %v3743
      %v3794 = vpack.c.bf16 %v3746, %v3745
      %s3795 = scalar_lea.vmem %s3, 512
      %v3796 = vld [vmem:[%s3795] sm:$0xf]
      %v3797 = vld [vmem:[%s3795 + $0x4] sm:$0xf]
      %v3798 = vld [vmem:[%s3795 + $0x8] sm:$0xf]
      %v3799 = vld [vmem:[%s3795 + $0xc] sm:$0xf]
      %v3800 = vld [vmem:[%s3795 + $0x10] sm:$0xf]
      %v3801 = vld [vmem:[%s3795 + $0x14] sm:$0xf]
      %v3802 = vld [vmem:[%s3795 + $0x18] sm:$0xf]
      %v3803 = vld [vmem:[%s3795 + $0x1c] sm:$0xf]
      %v3804 = vld [vmem:[%s3795 + $0x20] sm:$0xf]
      %v3805 = vld [vmem:[%s3795 + $0x24] sm:$0xf]
      %v3806 = vld [vmem:[%s3795 + $0x28] sm:$0xf]
      %v3807 = vld [vmem:[%s3795 + $0x2c] sm:$0xf]
      %v3808 = vld [vmem:[%s3795 + $0x30] sm:$0xf]
      %v3809 = vld [vmem:[%s3795 + $0x34] sm:$0xf]
      %v3810 = vld [vmem:[%s3795 + $0x38] sm:$0xf]
      %v3811 = vld [vmem:[%s3795 + $0x3c] sm:$0xf]
      %v3828 = vunpack.c.l.b16 %v3796
      %v3829 = vunpack.c.l.b16 %v3797
      %v3830 = vunpack.c.l.b16 %v3798
      %v3831 = vunpack.c.l.b16 %v3799
      %v3832 = vunpack.c.l.b16 %v3800
      %v3833 = vunpack.c.l.b16 %v3801
      %v3834 = vunpack.c.l.b16 %v3802
      %v3835 = vunpack.c.l.b16 %v3803
      %v3836 = vunpack.c.l.b16 %v3804
      %v3837 = vunpack.c.l.b16 %v3805
      %v3838 = vunpack.c.l.b16 %v3806
      %v3839 = vunpack.c.l.b16 %v3807
      %v3840 = vunpack.c.l.b16 %v3808
      %v3841 = vunpack.c.l.b16 %v3809
      %v3842 = vunpack.c.l.b16 %v3810
      %v3843 = vunpack.c.l.b16 %v3811
      %v3844 = vpack.c.b16 %v3829, %v3828
      %v3845 = vpack.c.b16 %v3831, %v3830
      %v3846 = vpack.c.b16 %v3833, %v3832
      %v3847 = vpack.c.b16 %v3835, %v3834
      %v3848 = vpack.c.b16 %v3837, %v3836
      %v3849 = vpack.c.b16 %v3839, %v3838
      %v3850 = vpack.c.b16 %v3841, %v3840
      %v3851 = vpack.c.b16 %v3843, %v3842
      %3860 = vmatprep.subr.bf16.mxu0 0
      %3861 = vmatpush1.bf16.msra.mxu0 %v3844
      %3862 = vmatprep.subr.bf16.mxu0 0
      %3863 = vmatpush1.bf16.msra.mxu0 %v3845
      %3864 = vmatprep.subr.bf16.mxu0 0
      %3865 = vmatpush1.bf16.msra.mxu0 %v3846
      %3866 = vmatprep.subr.bf16.mxu0 0
      %3867 = vmatpush1.bf16.msra.mxu0 %v3847
      %3868 = vmatprep.subr.bf16.mxu0 0
      %3869 = vmatpush1.bf16.msra.mxu0 %v3848
      %3870 = vmatprep.subr.bf16.mxu0 0
      %3871 = vmatpush1.bf16.msra.mxu0 %v3849
      %3872 = vmatprep.subr.bf16.mxu0 0
      %3873 = vmatpush1.bf16.msra.mxu0 %v3850
      %3874 = vmatprep.subr.bf16.mxu0 0
      %3875 = vmatpush1.bf16.msra.mxu0 %v3851
      %3876 = vmatprep.subr.bf16.mxu0 0
      %3877 = vmatpush1.bf16.msra.mxu0 0
      %3878 = vmatprep.subr.bf16.mxu0 0
      %3879 = vmatpush1.bf16.msra.mxu0 0
      %3880 = vmatprep.subr.bf16.mxu0 0
      %3881 = vmatpush1.bf16.msra.mxu0 0
      %3882 = vmatprep.subr.bf16.mxu0 0
      %3883 = vmatpush1.bf16.msra.mxu0 0
      %3884 = vmatprep.subr.bf16.mxu0 0
      %3885 = vmatpush1.bf16.msra.mxu0 0
      %3886 = vmatprep.subr.bf16.mxu0 0
      %3887 = vmatpush1.bf16.msra.mxu0 0
      %3888 = vmatprep.subr.bf16.mxu0 0
      %3889 = vmatpush1.bf16.msra.mxu0 0
      %3890 = vmatprep.subr.bf16.mxu0 0
      %3891 = vmatpush1.bf16.msra.mxu0 0
      %3892 = vmatprep.mubr.bf16.mxu0 0
      %3893 = vmatmul.mubr.bf16.gmra.mrb[0].mxu0 %v3779
      %v3894 = vpop.f32.mrb[0].mxu0
      %v3895 = vadd.f32 0.0, %v3894
      %v3896 = vpop.f32.mrb[0].mxu0
      %v3897 = vpop.f32.mrb[0].mxu0
      %v3898 = vadd.f32 0.0, %v3897
      %v3899 = vpop.f32.mrb[0].mxu0
      %3900 = vmatprep.mubr.bf16.mxu0 0
      %3901 = vmatmul.mubr.bf16.gmra.mrb[0].mxu0 %v3780
      %v3902 = vpop.f32.mrb[0].mxu0
      %v3903 = vadd.f32 0.0, %v3902
      %v3904 = vpop.f32.mrb[0].mxu0
      %v3905 = vpop.f32.mrb[0].mxu0
      %v3906 = vadd.f32 0.0, %v3905
      %v3907 = vpop.f32.mrb[0].mxu0
      %3908 = vmatprep.mubr.bf16.mxu0 0
      %3909 = vmatmul.mubr.bf16.gmra.mrb[0].mxu0 %v3781
      %v3910 = vpop.f32.mrb[0].mxu0
      %v3911 = vadd.f32 0.0, %v3910
      %v3912 = vpop.f32.mrb[0].mxu0
      %v3913 = vpop.f32.mrb[0].mxu0
      %v3914 = vadd.f32 0.0, %v3913
      %v3915 = vpop.f32.mrb[0].mxu0
      %3916 = vmatprep.mubr.bf16.mxu0 0
      %3917 = vmatmul.mubr.bf16.gmra.mrb[0].mxu0 %v3782
      %v3918 = vpop.f32.mrb[0].mxu0
      %v3919 = vadd.f32 0.0, %v3918
      %v3920 = vpop.f32.mrb[0].mxu0
      %v3921 = vpop.f32.mrb[0].mxu0
      %v3922 = vadd.f32 0.0, %v3921
      %v3923 = vpop.f32.mrb[0].mxu0
      %3924 = vmatprep.mubr.bf16.mxu0 0
      %3925 = vmatmul.mubr.bf16.gmra.mrb[0].mxu0 %v3783
      %v3926 = vpop.f32.mrb[0].mxu0
      %v3927 = vadd.f32 0.0, %v3926
      %v3928 = vpop.f32.mrb[0].mxu0
      %v3929 = vpop.f32.mrb[0].mxu0
      %v3930 = vadd.f32 0.0, %v3929
      %v3931 = vpop.f32.mrb[0].mxu0
      %3932 = vmatprep.mubr.bf16.mxu0 0
      %3933 = vmatmul.mubr.bf16.gmra.mrb[0].mxu0 %v3784
      %v3934 = vpop.f32.mrb[0].mxu0
      %v3935 = vadd.f32 0.0, %v3934
      %v3936 = vpop.f32.mrb[0].mxu0
      %v3937 = vpop.f32.mrb[0].mxu0
      %v3938 = vadd.f32 0.0, %v3937
      %v3939 = vpop.f32.mrb[0].mxu0
      %3940 = vmatprep.mubr.bf16.mxu0 0
      %3941 = vmatmul.mubr.bf16.gmra.mrb[0].mxu0 %v3785
      %v3942 = vpop.f32.mrb[0].mxu0
      %v3943 = vadd.f32 0.0, %v3942
      %v3944 = vpop.f32.mrb[0].mxu0
      %v3945 = vpop.f32.mrb[0].mxu0
      %v3946 = vadd.f32 0.0, %v3945
      %v3947 = vpop.f32.mrb[0].mxu0
      %3948 = vmatprep.mubr.bf16.mxu0 0
      %3949 = vmatmul.mubr.bf16.gmra.mrb[0].mxu0 %v3786
      %v3950 = vpop.f32.mrb[0].mxu0
      %v3951 = vadd.f32 0.0, %v3950
      %v3952 = vpop.f32.mrb[0].mxu0
      %v3953 = vpop.f32.mrb[0].mxu0
      %v3954 = vadd.f32 0.0, %v3953
      %v3955 = vpop.f32.mrb[0].mxu0
      %3956 = vmatprep.mubr.bf16.mxu0 0
      %3957 = vmatmul.mubr.bf16.gmra.mrb[0].mxu0 %v3787
      %v3958 = vpop.f32.mrb[0].mxu0
      %v3959 = vadd.f32 0.0, %v3958
      %v3960 = vpop.f32.mrb[0].mxu0
      %v3961 = vpop.f32.mrb[0].mxu0
      %v3962 = vadd.f32 0.0, %v3961
      %v3963 = vpop.f32.mrb[0].mxu0
      %3964 = vmatprep.mubr.bf16.mxu0 0
      %3965 = vmatmul.mubr.bf16.gmra.mrb[0].mxu0 %v3788
      %v3966 = vpop.f32.mrb[0].mxu0
      %v3967 = vadd.f32 0.0, %v3966
      %v3968 = vpop.f32.mrb[0].mxu0
      %v3969 = vpop.f32.mrb[0].mxu0
      %v3970 = vadd.f32 0.0, %v3969
      %v3971 = vpop.f32.mrb[0].mxu0
      %3972 = vmatprep.mubr.bf16.mxu0 0
      %3973 = vmatmul.mubr.bf16.gmra.mrb[0].mxu0 %v3789
      %v3974 = vpop.f32.mrb[0].mxu0
      %v3975 = vadd.f32 0.0, %v3974
      %v3976 = vpop.f32.mrb[0].mxu0
      %v3977 = vpop.f32.mrb[0].mxu0
      %v3978 = vadd.f32 0.0, %v3977
      %v3979 = vpop.f32.mrb[0].mxu0
      %3980 = vmatprep.mubr.bf16.mxu0 0
      %3981 = vmatmul.mubr.bf16.gmra.mrb[0].mxu0 %v3790
      %v3982 = vpop.f32.mrb[0].mxu0
      %v3983 = vadd.f32 0.0, %v3982
      %v3984 = vpop.f32.mrb[0].mxu0
      %v3985 = vpop.f32.mrb[0].mxu0
      %v3986 = vadd.f32 0.0, %v3985
      %v3987 = vpop.f32.mrb[0].mxu0
      %3988 = vmatprep.mubr.bf16.mxu0 0
      %3989 = vmatmul.mubr.bf16.gmra.mrb[0].mxu0 %v3791
      %v3990 = vpop.f32.mrb[0].mxu0
      %v3991 = vadd.f32 0.0, %v3990
      %v3992 = vpop.f32.mrb[0].mxu0
      %v3993 = vpop.f32.mrb[0].mxu0
      %v3994 = vadd.f32 0.0, %v3993
      %v3995 = vpop.f32.mrb[0].mxu0
      %3996 = vmatprep.mubr.bf16.mxu0 0
      %3997 = vmatmul.mubr.bf16.gmra.mrb[0].mxu0 %v3792
      %v3998 = vpop.f32.mrb[0].mxu0
      %v3999 = vadd.f32 0.0, %v3998
      %v4000 = vpop.f32.mrb[0].mxu0
      %v4001 = vpop.f32.mrb[0].mxu0
      %v4002 = vadd.f32 0.0, %v4001
      %v4003 = vpop.f32.mrb[0].mxu0
      %4004 = vmatprep.mubr.bf16.mxu0 0
      %4005 = vmatmul.mubr.bf16.gmra.mrb[0].mxu0 %v3793
      %v4006 = vpop.f32.mrb[0].mxu0
      %v4007 = vadd.f32 0.0, %v4006
      %v4008 = vpop.f32.mrb[0].mxu0
      %v4009 = vpop.f32.mrb[0].mxu0
      %v4010 = vadd.f32 0.0, %v4009
      %v4011 = vpop.f32.mrb[0].mxu0
      %4012 = vmatprep.mubr.bf16.mxu0 0
      %4013 = vmatmul.mubr.bf16.gmra.mrb[0].mxu0 %v3794
      %v4014 = vpop.f32.mrb[0].mxu0
      %v4015 = vadd.f32 0.0, %v4014
      %v4016 = vpop.f32.mrb[0].mxu0
      %v4017 = vpop.f32.mrb[0].mxu0
      %v4018 = vadd.f32 0.0, %v4017
      %v4019 = vpop.f32.mrb[0].mxu0
      %4020 = vdwg.mxu0
      %v4021 = vadd.f32 %v3747, %v3895
      %v4022 = vadd.f32 %v3748, %v3898
      %v4023 = vadd.f32 %v3749, %v3903
      %v4024 = vadd.f32 %v3750, %v3906
      %v4025 = vadd.f32 %v3751, %v3911
      %v4026 = vadd.f32 %v3752, %v3914
      %v4027 = vadd.f32 %v3753, %v3919
      %v4028 = vadd.f32 %v3754, %v3922
      %v4029 = vadd.f32 %v3755, %v3927
      %v4030 = vadd.f32 %v3756, %v3930
      %v4031 = vadd.f32 %v3757, %v3935
      %v4032 = vadd.f32 %v3758, %v3938
      %v4033 = vadd.f32 %v3759, %v3943
      %v4034 = vadd.f32 %v3760, %v3946
      %v4035 = vadd.f32 %v3761, %v3951
      %v4036 = vadd.f32 %v3762, %v3954
      %v4037 = vadd.f32 %v3763, %v3959
      %v4038 = vadd.f32 %v3764, %v3962
      %v4039 = vadd.f32 %v3765, %v3967
      %v4040 = vadd.f32 %v3766, %v3970
      %v4041 = vadd.f32 %v3767, %v3975
      %v4042 = vadd.f32 %v3768, %v3978
      %v4043 = vadd.f32 %v3769, %v3983
      %v4044 = vadd.f32 %v3770, %v3986
      %v4045 = vadd.f32 %v3771, %v3991
      %v4046 = vadd.f32 %v3772, %v3994
      %v4047 = vadd.f32 %v3773, %v3999
      %v4048 = vadd.f32 %v3774, %v4002
      %v4049 = vadd.f32 %v3775, %v4007
      %v4050 = vadd.f32 %v3776, %v4010
      %v4051 = vadd.f32 %v3777, %v4015
      %v4052 = vadd.f32 %v3778, %v4018
      %4053 = vst [vmem:[#allocation3] sm:$0xff] %v4021
      %4054 = vst [vmem:[#allocation3 + $0x8] sm:$0xff] %v4022
      %4055 = vst [vmem:[#allocation3 + $0x10] sm:$0xff] %v4023
      %4056 = vst [vmem:[#allocation3 + $0x18] sm:$0xff] %v4024
      %4057 = vst [vmem:[#allocation3 + $0x20] sm:$0xff] %v4025
      %4058 = vst [vmem:[#allocation3 + $0x28] sm:$0xff] %v4026
      %4059 = vst [vmem:[#allocation3 + $0x30] sm:$0xff] %v4027
      %4060 = vst [vmem:[#allocation3 + $0x38] sm:$0xff] %v4028
      %4061 = vst [vmem:[#allocation3 + $0x40] sm:$0xff] %v4029
      %4062 = vst [vmem:[#allocation3 + $0x48] sm:$0xff] %v4030
      %4063 = vst [vmem:[#allocation3 + $0x50] sm:$0xff] %v4031
      %4064 = vst [vmem:[#allocation3 + $0x58] sm:$0xff] %v4032
      %4065 = vst [vmem:[#allocation3 + $0x60] sm:$0xff] %v4033
      %4066 = vst [vmem:[#allocation3 + $0x68] sm:$0xff] %v4034
      %4067 = vst [vmem:[#allocation3 + $0x70] sm:$0xff] %v4035
      %4068 = vst [vmem:[#allocation3 + $0x78] sm:$0xff] %v4036
      %4069 = vst [vmem:[#allocation3 + $0x80] sm:$0xff] %v4037
      %4070 = vst [vmem:[#allocation3 + $0x88] sm:$0xff] %v4038
      %4071 = vst [vmem:[#allocation3 + $0x90] sm:$0xff] %v4039
      %4072 = vst [vmem:[#allocation3 + $0x98] sm:$0xff] %v4040
      %4073 = vst [vmem:[#allocation3 + $0xa0] sm:$0xff] %v4041
      %4074 = vst [vmem:[#allocation3 + $0xa8] sm:$0xff] %v4042
      %4075 = vst [vmem:[#allocation3 + $0xb0] sm:$0xff] %v4043
      %4076 = vst [vmem:[#allocation3 + $0xb8] sm:$0xff] %v4044
      %4077 = vst [vmem:[#allocation3 + $0xc0] sm:$0xff] %v4045
      %4078 = vst [vmem:[#allocation3 + $0xc8] sm:$0xff] %v4046
      %4079 = vst [vmem:[#allocation3 + $0xd0] sm:$0xff] %v4047
      %4080 = vst [vmem:[#allocation3 + $0xd8] sm:$0xff] %v4048
      %4081 = vst [vmem:[#allocation3 + $0xe0] sm:$0xff] %v4049
      %4082 = vst [vmem:[#allocation3 + $0xe8] sm:$0xff] %v4050
      %4083 = vst [vmem:[#allocation3 + $0xf0] sm:$0xff] %v4051
      %4084 = vst [vmem:[#allocation3 + $0xf8] sm:$0xff] %v4052
      %v4085 = vld [vmem:[#allocation3] sm:$0xff]
      %v4086 = vld [vmem:[#allocation3 + $0x8] sm:$0xff]
      %v4087 = vld [vmem:[#allocation3 + $0x10] sm:$0xff]
      %v4088 = vld [vmem:[#allocation3 + $0x18] sm:$0xff]
      %v4089 = vld [vmem:[#allocation3 + $0x20] sm:$0xff]
      %v4090 = vld [vmem:[#allocation3 + $0x28] sm:$0xff]
      %v4091 = vld [vmem:[#allocation3 + $0x30] sm:$0xff]
      %v4092 = vld [vmem:[#allocation3 + $0x38] sm:$0xff]
      %v4093 = vld [vmem:[#allocation3 + $0x40] sm:$0xff]
      %v4094 = vld [vmem:[#allocation3 + $0x48] sm:$0xff]
      %v4095 = vld [vmem:[#allocation3 + $0x50] sm:$0xff]
      %v4096 = vld [vmem:[#allocation3 + $0x58] sm:$0xff]
      %v4097 = vld [vmem:[#allocation3 + $0x60] sm:$0xff]
      %v4098 = vld [vmem:[#allocation3 + $0x68] sm:$0xff]
      %v4099 = vld [vmem:[#allocation3 + $0x70] sm:$0xff]
      %v4100 = vld [vmem:[#allocation3 + $0x78] sm:$0xff]
      %v4101 = vld [vmem:[#allocation3 + $0x80] sm:$0xff]
      %v4102 = vld [vmem:[#allocation3 + $0x88] sm:$0xff]
      %v4103 = vld [vmem:[#allocation3 + $0x90] sm:$0xff]
      %v4104 = vld [vmem:[#allocation3 + $0x98] sm:$0xff]
      %v4105 = vld [vmem:[#allocation3 + $0xa0] sm:$0xff]
      %v4106 = vld [vmem:[#allocation3 + $0xa8] sm:$0xff]
      %v4107 = vld [vmem:[#allocation3 + $0xb0] sm:$0xff]
      %v4108 = vld [vmem:[#allocation3 + $0xb8] sm:$0xff]
      %v4109 = vld [vmem:[#allocation3 + $0xc0] sm:$0xff]
      %v4110 = vld [vmem:[#allocation3 + $0xc8] sm:$0xff]
      %v4111 = vld [vmem:[#allocation3 + $0xd0] sm:$0xff]
      %v4112 = vld [vmem:[#allocation3 + $0xd8] sm:$0xff]
      %v4113 = vld [vmem:[#allocation3 + $0xe0] sm:$0xff]
      %v4114 = vld [vmem:[#allocation3 + $0xe8] sm:$0xff]
      %v4115 = vld [vmem:[#allocation3 + $0xf0] sm:$0xff]
      %v4116 = vld [vmem:[#allocation3 + $0xf8] sm:$0xff]
      %v4117 = vld [vmem:[%s4] sm:$0x1]
      %v4119 = vlaneseq
      %v4120 = vshrl.u32 %v4119, 7
      %v4121 = vsub.s32 0, %v4120
      %v4122 = vrot.slane %v4117, %v4121
      %v4124 = vadd.f32 %v4085, %v4122
      %v4125 = vadd.f32 %v4086, %v4122
      %v4126 = vadd.f32 %v4087, %v4122
      %v4127 = vadd.f32 %v4088, %v4122
      %v4128 = vadd.f32 %v4089, %v4122
      %v4129 = vadd.f32 %v4090, %v4122
      %v4130 = vadd.f32 %v4091, %v4122
      %v4131 = vadd.f32 %v4092, %v4122
      %v4132 = vadd.f32 %v4093, %v4122
      %v4133 = vadd.f32 %v4094, %v4122
      %v4134 = vadd.f32 %v4095, %v4122
      %v4135 = vadd.f32 %v4096, %v4122
      %v4136 = vadd.f32 %v4097, %v4122
      %v4137 = vadd.f32 %v4098, %v4122
      %v4138 = vadd.f32 %v4099, %v4122
      %v4139 = vadd.f32 %v4100, %v4122
      %v4140 = vadd.f32 %v4101, %v4122
      %v4141 = vadd.f32 %v4102, %v4122
      %v4142 = vadd.f32 %v4103, %v4122
      %v4143 = vadd.f32 %v4104, %v4122
      %v4144 = vadd.f32 %v4105, %v4122
      %v4145 = vadd.f32 %v4106, %v4122
      %v4146 = vadd.f32 %v4107, %v4122
      %v4147 = vadd.f32 %v4108, %v4122
      %v4148 = vadd.f32 %v4109, %v4122
      %v4149 = vadd.f32 %v4110, %v4122
      %v4150 = vadd.f32 %v4111, %v4122
      %v4151 = vadd.f32 %v4112, %v4122
      %v4152 = vadd.f32 %v4113, %v4122
      %v4153 = vadd.f32 %v4114, %v4122
      %v4154 = vadd.f32 %v4115, %v4122
      %v4155 = vadd.f32 %v4116, %v4122
      %v4156 = vmax.f32 %v4124, 0.0
      %v4157 = vmax.f32 %v4125, 0.0
      %v4158 = vmax.f32 %v4126, 0.0
      %v4159 = vmax.f32 %v4127, 0.0
      %v4160 = vmax.f32 %v4128, 0.0
      %v4161 = vmax.f32 %v4129, 0.0
      %v4162 = vmax.f32 %v4130, 0.0
      %v4163 = vmax.f32 %v4131, 0.0
      %v4164 = vmax.f32 %v4132, 0.0
      %v4165 = vmax.f32 %v4133, 0.0
      %v4166 = vmax.f32 %v4134, 0.0
      %v4167 = vmax.f32 %v4135, 0.0
      %v4168 = vmax.f32 %v4136, 0.0
      %v4169 = vmax.f32 %v4137, 0.0
      %v4170 = vmax.f32 %v4138, 0.0
      %v4171 = vmax.f32 %v4139, 0.0
      %v4172 = vmax.f32 %v4140, 0.0
      %v4173 = vmax.f32 %v4141, 0.0
      %v4174 = vmax.f32 %v4142, 0.0
      %v4175 = vmax.f32 %v4143, 0.0
      %v4176 = vmax.f32 %v4144, 0.0
      %v4177 = vmax.f32 %v4145, 0.0
      %v4178 = vmax.f32 %v4146, 0.0
      %v4179 = vmax.f32 %v4147, 0.0
      %v4180 = vmax.f32 %v4148, 0.0
      %v4181 = vmax.f32 %v4149, 0.0
      %v4182 = vmax.f32 %v4150, 0.0
      %v4183 = vmax.f32 %v4151, 0.0
      %v4184 = vmax.f32 %v4152, 0.0
      %v4185 = vmax.f32 %v4153, 0.0
      %v4186 = vmax.f32 %v4154, 0.0
      %v4187 = vmax.f32 %v4155, 0.0
      %v4188 = vpack.c.bf16 %v4157, %v4156
      %v4189 = vpack.c.bf16 %v4159, %v4158
      %v4190 = vpack.c.bf16 %v4161, %v4160
      %v4191 = vpack.c.bf16 %v4163, %v4162
      %v4192 = vpack.c.bf16 %v4165, %v4164
      %v4193 = vpack.c.bf16 %v4167, %v4166
      %v4194 = vpack.c.bf16 %v4169, %v4168
      %v4195 = vpack.c.bf16 %v4171, %v4170
      %v4196 = vpack.c.bf16 %v4173, %v4172
      %v4197 = vpack.c.bf16 %v4175, %v4174
      %v4198 = vpack.c.bf16 %v4177, %v4176
      %v4199 = vpack.c.bf16 %v4179, %v4178
      %v4200 = vpack.c.bf16 %v4181, %v4180
      %v4201 = vpack.c.bf16 %v4183, %v4182
      %v4202 = vpack.c.bf16 %v4185, %v4184
      %v4203 = vpack.c.bf16 %v4187, %v4186
      %v4220 = vunpack.c.l.b16 %v4188
      %v4221 = vunpack.c.h.b16 %v4188
      %v4222 = vunpack.c.l.b16 %v4189
      %v4223 = vunpack.c.h.b16 %v4189
      %v4224 = vunpack.c.l.b16 %v4190
      %v4225 = vunpack.c.h.b16 %v4190
      %v4226 = vunpack.c.l.b16 %v4191
      %v4227 = vunpack.c.h.b16 %v4191
      %v4228 = vunpack.c.l.b16 %v4192
      %v4229 = vunpack.c.h.b16 %v4192
      %v4230 = vunpack.c.l.b16 %v4193
      %v4231 = vunpack.c.h.b16 %v4193
      %v4232 = vunpack.c.l.b16 %v4194
      %v4233 = vunpack.c.h.b16 %v4194
      %v4234 = vunpack.c.l.b16 %v4195
      %v4235 = vunpack.c.h.b16 %v4195
      %v4236 = vunpack.c.l.b16 %v4196
      %v4237 = vunpack.c.h.b16 %v4196
      %v4238 = vunpack.c.l.b16 %v4197
      %v4239 = vunpack.c.h.b16 %v4197
      %v4240 = vunpack.c.l.b16 %v4198
      %v4241 = vunpack.c.h.b16 %v4198
      %v4242 = vunpack.c.l.b16 %v4199
      %v4243 = vunpack.c.h.b16 %v4199
      %v4244 = vunpack.c.l.b16 %v4200
      %v4245 = vunpack.c.h.b16 %v4200
      %v4246 = vunpack.c.l.b16 %v4201
      %v4247 = vunpack.c.h.b16 %v4201
      %v4248 = vunpack.c.l.b16 %v4202
      %v4249 = vunpack.c.h.b16 %v4202
      %v4250 = vunpack.c.l.b16 %v4203
      %v4251 = vunpack.c.h.b16 %v4203
      %v4252 = vpack.c.b16 %v4220, %v4220
      %v4253 = vpack.c.b16 %v4221, %v4221
      %v4254 = vpack.c.b16 %v4222, %v4222
      %v4255 = vpack.c.b16 %v4223, %v4223
      %v4256 = vpack.c.b16 %v4224, %v4224
      %v4257 = vpack.c.b16 %v4225, %v4225
      %v4258 = vpack.c.b16 %v4226, %v4226
      %v4259 = vpack.c.b16 %v4227, %v4227
      %v4260 = vpack.c.b16 %v4228, %v4228
      %v4261 = vpack.c.b16 %v4229, %v4229
      %v4262 = vpack.c.b16 %v4230, %v4230
      %v4263 = vpack.c.b16 %v4231, %v4231
      %v4264 = vpack.c.b16 %v4232, %v4232
      %v4265 = vpack.c.b16 %v4233, %v4233
      %v4266 = vpack.c.b16 %v4234, %v4234
      %v4267 = vpack.c.b16 %v4235, %v4235
      %v4268 = vpack.c.b16 %v4236, %v4236
      %v4269 = vpack.c.b16 %v4237, %v4237
      %v4270 = vpack.c.b16 %v4238, %v4238
      %v4271 = vpack.c.b16 %v4239, %v4239
      %v4272 = vpack.c.b16 %v4240, %v4240
      %v4273 = vpack.c.b16 %v4241, %v4241
      %v4274 = vpack.c.b16 %v4242, %v4242
      %v4275 = vpack.c.b16 %v4243, %v4243
      %v4276 = vpack.c.b16 %v4244, %v4244
      %v4277 = vpack.c.b16 %v4245, %v4245
      %v4278 = vpack.c.b16 %v4246, %v4246
      %v4279 = vpack.c.b16 %v4247, %v4247
      %v4280 = vpack.c.b16 %v4248, %v4248
      %v4281 = vpack.c.b16 %v4249, %v4249
      %v4282 = vpack.c.b16 %v4250, %v4250
      %v4283 = vpack.c.b16 %v4251, %v4251
      %4316 = vst [vmem:[%s224] sm:$0xf] %v4252
      %4317 = vst [vmem:[%s224 + $0x4] sm:$0xf] %v4253
      %4318 = vst [vmem:[%s224 + $0x8] sm:$0xf] %v4254
      %4319 = vst [vmem:[%s224 + $0xc] sm:$0xf] %v4255
      %4320 = vst [vmem:[%s224 + $0x10] sm:$0xf] %v4256
      %4321 = vst [vmem:[%s224 + $0x14] sm:$0xf] %v4257
      %4322 = vst [vmem:[%s224 + $0x18] sm:$0xf] %v4258
      %4323 = vst [vmem:[%s224 + $0x1c] sm:$0xf] %v4259
      %4324 = vst [vmem:[%s224 + $0x20] sm:$0xf] %v4260
      %4325 = vst [vmem:[%s224 + $0x24] sm:$0xf] %v4261
      %4326 = vst [vmem:[%s224 + $0x28] sm:$0xf] %v4262
      %4327 = vst [vmem:[%s224 + $0x2c] sm:$0xf] %v4263
      %4328 = vst [vmem:[%s224 + $0x30] sm:$0xf] %v4264
      %4329 = vst [vmem:[%s224 + $0x34] sm:$0xf] %v4265
      %4330 = vst [vmem:[%s224 + $0x38] sm:$0xf] %v4266
      %4331 = vst [vmem:[%s224 + $0x3c] sm:$0xf] %v4267
      %4332 = vst [vmem:[%s224 + $0x40] sm:$0xf] %v4268
      %4333 = vst [vmem:[%s224 + $0x44] sm:$0xf] %v4269
      %4334 = vst [vmem:[%s224 + $0x48] sm:$0xf] %v4270
      %4335 = vst [vmem:[%s224 + $0x4c] sm:$0xf] %v4271
      %4336 = vst [vmem:[%s224 + $0x50] sm:$0xf] %v4272
      %4337 = vst [vmem:[%s224 + $0x54] sm:$0xf] %v4273
      %4338 = vst [vmem:[%s224 + $0x58] sm:$0xf] %v4274
      %4339 = vst [vmem:[%s224 + $0x5c] sm:$0xf] %v4275
      %4340 = vst [vmem:[%s224 + $0x60] sm:$0xf] %v4276
      %4341 = vst [vmem:[%s224 + $0x64] sm:$0xf] %v4277
      %4342 = vst [vmem:[%s224 + $0x68] sm:$0xf] %v4278
      %4343 = vst [vmem:[%s224 + $0x6c] sm:$0xf] %v4279
      %4344 = vst [vmem:[%s224 + $0x70] sm:$0xf] %v4280
      %4345 = vst [vmem:[%s224 + $0x74] sm:$0xf] %v4281
      %4346 = vst [vmem:[%s224 + $0x78] sm:$0xf] %v4282
      %4347 = vst [vmem:[%s224 + $0x7c] sm:$0xf] %v4283
      %p4348 = scmp.lt.s32.totalorder %s16, 1
      %s4349 = scalar_select %p4348, %s16, 1
      %s4350 = smul.addr %s4349, 32
      %s4351 = smul.addr %s4350, 4
      %s4352 = scalar_lea.vmem %s5, %s4351
      // Predicated region
      $region41: #{bottleneck_forward.2} parent=39 // pred_check
        %p4353 = pneg %p144
      $region42: #{bottleneck_forward.2} parent=39 // pred_check_branch
        %4355 = sbr.rel (%p4353) target = $region44
      $region43: #{bottleneck_forward.2} parent=39 // pred_region
        _
      $region44: #{bottleneck_forward.2} parent=39 // pred_fallthru
        _
    $region40: #{bottleneck_forward.2} parent=5 // pred_fallthru
      _
    %p4356 = scmp.le.s32.totalorder 2, %s11
    // Predicated region
    $region45: #{bottleneck_forward.2} parent=5 // pred_check
      %p4357 = pneg %p4356
    $region46: #{bottleneck_forward.2} parent=5 // pred_check_branch
      %4359 = sbr.rel (%p4357) target = $region48
    $region47: #{bottleneck_forward.2} parent=5 // pred_region
      %s4360 = ssub.s32 %s11, 2
      // Predicated region
      $region49: #{bottleneck_forward.2} parent=47 // pred_check
        %p4361 = pneg %p150
      $region50: #{bottleneck_forward.2} parent=47 // pred_check_branch
        %4363 = sbr.rel (%p4361) target = $region52
      $region51: #{bottleneck_forward.2} parent=47 // pred_region
        %p4364 = scmp.lt.s32.totalorder %s17, 1
        %s4365 = scalar_select %p4364, %s17, 1
        %s4366 = smul.addr %s4365, 32
        %s4367 = smul.addr %s4366, 4
        %s4368 = scalar_lea.vmem %s5, %s4367
      $region52: #{bottleneck_forward.2} parent=47 // pred_fallthru
        _
    $region48: #{bottleneck_forward.2} parent=5 // pred_fallthru
      _
  $region6: #{bottleneck_forward.2} parent=0 // loop_footer
    %s15 = sadd.s32 1, %s11
  $region7: #{bottleneck_forward.2} parent=0 // loop_footer_branch
    %10 = sbr.rel target = $region3
  $region8: #{bottleneck_forward.2} parent=0 // loop_exit
    _

</llo_original>
